<compile_context>
chip_gen: v7x
topology: tpu7x:2x2x1
jax: 0.10.0
libtpu: 0.0.40
codegen_flags: <defaults>
</compile_context>

<pallas_src>
import functools

import jax
import jax.numpy as jnp
import numpy as np
from jax.experimental import pallas as pl
from jax.experimental.pallas import tpu as pltpu

EPS = 1e-5
LANE = 128


def _round_up(x, m):
    return (x + m - 1) // m * m


# ----------------------------- fused Pallas kernel ------------------------- #
def _fused_block_kernel(p1_ref, wc_ref, g1_ref, bt1_ref, ge_ref, bte_ref,
                        w2_ref, g2_ref, bt2_ref, o_ref, *,
                        m, ho_sz, wo_sz, cp, eps, use_roll):
    """Whole DownsampleBlock: 3 convs (MXU matmuls) + 3 BNs + residual + ReLUs."""

    def bn(y, gamma, beta):
        # Two-pass batch stats (E[(x-mean)^2]) -> better numerics than E[x^2]-E[x]^2.
        mean = jnp.mean(y, axis=0, keepdims=True)
        cent = y - mean
        var = jnp.mean(cent * cent, axis=0, keepdims=True)
        scale = gamma * jax.lax.rsqrt(var + eps)          # rsqrt -> EUP slot
        return cent * scale + beta

    # --- conv1 (3x3, stride s0, im2col) + shortcut (1x1) in ONE MXU pass ----
    # wc columns [0, cp)   : conv1 weights (9*Cin -> Cout, lane-padded)
    # wc columns [cp, 2cp) : 1x1 shortcut weights in the center-tap rows only
    combo = jnp.dot(p1_ref[...], wc_ref[...], preferred_element_type=jnp.float32)
    h1 = jnp.maximum(bn(combo[:, :cp], g1_ref[...], bt1_ref[...]), 0.0)  # (m,cp) f32
    extra = bn(combo[:, cp:], ge_ref[...], bte_ref[...])                 # (m,cp) f32

    # --- in-kernel per-row (ho, wo) coordinates (replaces the (9,M,1) mask) --
    # Integer //, % by the constants Wo, Ho are done as exact float
    # floor((i+0.5)*(1/k)) to avoid relying on vector integer-division
    # lowering; exact because |i| < 2^24 and the true quotient is >= 0.5/k
    # away from any integer.
    row = jax.lax.broadcasted_iota(jnp.int32, (m, 1), 0).astype(jnp.float32)
    q1 = jnp.floor((row + 0.5) * (1.0 / wo_sz))                  # row // Wo
    wo_i = row - q1 * wo_sz                                      # row %  Wo
    ho_i = q1 - jnp.floor((q1 + 0.5) * (1.0 / ho_sz)) * ho_sz    # (row//Wo) % Ho

    # --- conv2 (3x3, stride 1, pad 1): 9 shifted matmuls over VMEM h1 --------
    # Row shift d = (kh-1)*Wo + (kw-1) in flattened (n,ho,wo) row space.
    # pltpu.roll is circular, but every wrapped / cross-image row is exactly a
    # row the validity mask zeroes, so the result equals a zero-fill shift.
    acc = jnp.zeros((m, cp), jnp.float32)
    for kh in range(3):
        for kw in range(3):
            d = (kh - 1) * wo_sz + (kw - 1)
            if d == 0:
                shifted = h1
            elif use_roll:
                shifted = pltpu.roll(h1, shift=(-d) % m, axis=0)   # XLU, no copies
            elif d > 0:
                shifted = jnp.concatenate(
                    [h1[d:, :], jnp.zeros((d, cp), jnp.float32)], axis=0)
            else:
                shifted = jnp.concatenate(
                    [jnp.zeros((-d, cp), jnp.float32), h1[:d, :]], axis=0)

            conds = []
            if kh == 0:
                conds.append(ho_i >= 1)
            if kh == 2:
                conds.append(ho_i < ho_sz - 1)
            if kw == 0:
                conds.append(wo_i >= 1)
            if kw == 2:
                conds.append(wo_i < wo_sz - 1)
            if conds:
                valid = functools.reduce(jnp.logical_and, conds)   # (m,1) bool
                shifted = jnp.where(valid, shifted, 0.0)

            acc = acc + jnp.dot(shifted.astype(jnp.bfloat16), w2_ref[kh * 3 + kw],
                                preferred_element_type=jnp.float32)

    out = bn(acc, g2_ref[...], bt2_ref[...]) + extra               # BN2 + residual
    o_ref[...] = jnp.maximum(out, 0.0).astype(o_ref.dtype)


def _fused_block_call(inputs, *, m, ho_sz, wo_sz, cp, use_roll):
    k1 = inputs[0].shape[1]                      # 9*Cin
    flops = 2 * m * k1 * (2 * cp) + 9 * 2 * m * cp * cp
    bytes_accessed = int(sum(a.size * a.dtype.itemsize for a in inputs)) + m * cp * 4

    kernel = functools.partial(_fused_block_kernel, m=m, ho_sz=ho_sz, wo_sz=wo_sz,
                               cp=cp, eps=EPS, use_roll=use_roll)
    # No grid: single invocation, whole operands land in VMEM exactly once
    # (no double-buffered pipeline for a kernel with nothing to overlap).
    return pl.pallas_call(
        kernel,
        out_shape=jax.ShapeDtypeStruct((m, cp), jnp.float32),
        compiler_params=pltpu.CompilerParams(vmem_limit_bytes=64 * 1024 * 1024),
        cost_estimate=pl.CostEstimate(flops=flops, transcendentals=3 * cp,
                                      bytes_accessed=bytes_accessed),
    )(*inputs)


# ------------------------------ JAX glue ---------------------------------- #
def _im2col_3x3(x_nhwc, stride):
    """3x3, pad=1 patch extraction. Returns (N*Ho*Wo, 9*C), Ho, Wo."""
    N, H, W, C = x_nhwc.shape
    xp = jnp.pad(x_nhwc, ((0, 0), (1, 1), (1, 1), (0, 0)))
    Ho = (H - 1) // stride + 1
    Wo = (W - 1) // stride + 1
    cols = []
    for kh in range(3):
        for kw in range(3):
            cols.append(xp[:, kh:kh + stride * (Ho - 1) + 1:stride,
                            kw:kw + stride * (Wo - 1) + 1:stride, :])
    patches = jnp.stack(cols, axis=3)  # (N, Ho, Wo, 9, C)
    return patches.reshape(N * Ho * Wo, 9 * C), Ho, Wo


def downsample_block_forward(x_nchw, params, stride, use_roll=True):
    s0, s1 = stride
    # The residual add in the PyTorch module (extra_x + out) only shape-checks
    # when conv2 (3x3, pad=1) has stride 1, which is the ResNet-18 case.
    assert s1 == 1, "conv2 stride must be 1 for the residual shapes to match"

    N, Cin, H, W = x_nchw.shape
    Cout = params["w1"].shape[0]
    CP = _round_up(max(Cout, LANE), LANE)          # lane-dense channel width

    x = jnp.transpose(x_nchw, (0, 2, 3, 1)).astype(jnp.float32)   # NHWC

    # conv1 patches (im2col, stride s0, pad 1) -> bf16 MXU operand.
    # TODO(synk): move this extraction in-kernel for real shapes (9x HBM dup).
    p1, Ho, Wo = _im2col_3x3(x, s0)
    M = N * Ho * Wo

    def pad_vec(v):      # (Cout,) -> (1, CP) f32
        return jnp.pad(v.astype(jnp.float32), (0, CP - Cout)).reshape(1, CP)

    # Fused conv1 + shortcut RHS: w1 in columns [0,CP); the 1x1 shortcut
    # weights occupy the center-tap rows of columns [CP, 2*CP).
    w1_mat = jnp.transpose(params["w1"], (2, 3, 1, 0)).reshape(9 * Cin, Cout)
    we_mat = jnp.transpose(params["we"], (2, 3, 1, 0)).reshape(Cin, Cout)
    wc = jnp.zeros((9 * Cin, 2 * CP), jnp.float32)
    wc = wc.at[:, :Cout].set(w1_mat)
    wc = wc.at[4 * Cin:5 * Cin, CP:CP + Cout].set(we_mat)
    wc = wc.astype(jnp.bfloat16)

    w2_taps = jnp.transpose(params["w2"], (2, 3, 1, 0)).reshape(9, Cout, Cout)
    w2_taps = jnp.pad(
        w2_taps, ((0, 0), (0, CP - Cout), (0, CP - Cout))).astype(jnp.bfloat16)

    # NOTE: conv biases are intentionally NOT passed -- training-mode BN
    # cancels them exactly (saves one (M,C) VPU sweep + one DMA per stage).
    inputs = (
        p1.astype(jnp.bfloat16), wc,
        pad_vec(params["g1"]), pad_vec(params["bt1"]),
        pad_vec(params["ge"]), pad_vec(params["bee"]),
        w2_taps,
        pad_vec(params["g2"]), pad_vec(params["bt2"]),
    )
    out = _fused_block_call(inputs, m=M, ho_sz=Ho, wo_sz=Wo, cp=CP,
                            use_roll=use_roll)                # (M, CP) f32
    out = out[:, :Cout].reshape(N, Ho, Wo, Cout)
    return jnp.transpose(out, (0, 3, 1, 2))                   # back to NCHW


# -------------------------- params / reference ---------------------------- #
def init_params(key, in_channels, out_channels):
    ks = jax.random.split(key, 12)

    def nrm(k, shape, scale=0.1):
        return scale * jax.random.normal(k, shape, dtype=jnp.float32)

    return dict(
        w1=nrm(ks[0], (out_channels, in_channels, 3, 3)),
        b1=nrm(ks[1], (out_channels,)),
        g1=1.0 + nrm(ks[2], (out_channels,)),
        bt1=nrm(ks[3], (out_channels,)),
        w2=nrm(ks[4], (out_channels, out_channels, 3, 3)),
        b2=nrm(ks[5], (out_channels,)),
        g2=1.0 + nrm(ks[6], (out_channels,)),
        bt2=nrm(ks[7], (out_channels,)),
        we=nrm(ks[8], (out_channels, in_channels, 1, 1)),
        be_c=nrm(ks[9], (out_channels,)),
        ge=1.0 + nrm(ks[10], (out_channels,)),
        bee=nrm(ks[11], (out_channels,)),
    )


def reference_forward(x, p, stride):
    """Pure-JAX reference mirroring the PyTorch module (training-mode BN).

    Conv operands are cast to bf16 (f32 accumulation) to mirror the kernel's
    single-pass MXU precision; BN / residual / ReLU math stays f32.
    """

    def conv(x, w, b, s, pad):
        y = jax.lax.conv_general_dilated(
            x.astype(jnp.bfloat16), w.astype(jnp.bfloat16),
            window_strides=(s, s), padding=[(pad, pad), (pad, pad)],
            dimension_numbers=("NCHW", "OIHW", "NCHW"),
            preferred_element_type=jnp.float32,
        )
        return y + b[None, :, None, None]

    def bn(y, g, bta):
        m = jnp.mean(y, axis=(0, 2, 3), keepdims=True)
        v = jnp.mean(jnp.square(y - m), axis=(0, 2, 3), keepdims=True)
        return (y - m) / jnp.sqrt(v + EPS) * g[None, :, None, None] + bta[None, :, None, None]

    extra = bn(conv(x, p["we"], p["be_c"], stride[0], 0), p["ge"], p["bee"])
    out = jax.nn.relu(bn(conv(x, p["w1"], p["b1"], stride[0], 1), p["g1"], p["bt1"]))
    out = bn(conv(out, p["w2"], p["b2"], stride[1], 1), p["g2"], p["bt2"])
    return jax.nn.relu(extra + out)


# --------------------------------- main ------------------------------------ #
if __name__ == "__main__":
    key = jax.random.PRNGKey(0)
    k_x, k_p = jax.random.split(key)

    N, Cin, H, W = 2, 4, 16, 16
    Cout = 8
    stride = (2, 1)  # typical ResNet-18 downsample block: stride=[2, 1]

    x = jax.random.normal(k_x, (N, Cin, H, W), dtype=jnp.float32)
    params = init_params(k_p, Cin, Cout)
    y_ref = reference_forward(x, params, stride)

    def run(use_roll):
        fwd = jax.jit(functools.partial(downsample_block_forward,
                                        stride=stride, use_roll=use_roll))
        y = jax.block_until_ready(fwd(x, params))
        np.testing.assert_allclose(np.asarray(y), np.asarray(y_ref),
                                   rtol=5e-3, atol=5e-3)
        return y

    try:
        y = run(use_roll=True)      # fast path: XLU sublane roll for conv2 shifts
    except Exception:
        # TODO(synk): drop this fallback once sublane pltpu.roll is verified on
        # every deployed toolchain; the concatenate shifts are correct but slower.
        y = run(use_roll=False)

    assert y.shape == (N, Cout, H // stride[0], W // stride[0]), y.shape
    print("KERNEL_OK")
</pallas_src>

<mosaic_0001>
module attributes {stable_mosaic.version = 11 : i64} {
  func.func @_fused_block_kernel(%arg0: memref<128x36xbf16, #tpu.memory_space<vmem>>, %arg1: memref<36x256xbf16, #tpu.memory_space<vmem>>, %arg2: memref<1x128xf32, #tpu.memory_space<vmem>>, %arg3: memref<1x128xf32, #tpu.memory_space<vmem>>, %arg4: memref<1x128xf32, #tpu.memory_space<vmem>>, %arg5: memref<1x128xf32, #tpu.memory_space<vmem>>, %arg6: memref<9x128x128xbf16, #tpu.memory_space<vmem>>, %arg7: memref<1x128xf32, #tpu.memory_space<vmem>>, %arg8: memref<1x128xf32, #tpu.memory_space<vmem>>, %arg9: memref<128x128xf32, #tpu.memory_space<vmem>>) attributes {dimension_semantics = [], scalar_prefetch = 0 : i64, scratch_operands = 0 : i64, tpu.core_type = #tpu.core_type<tc>} {
    %c0 = arith.constant 0 : index
    %c0_0 = arith.constant 0 : index
    %0 = vector.load %arg0[%c0, %c0_0] : memref<128x36xbf16, #tpu.memory_space<vmem>>, vector<128x36xbf16>
    %c0_1 = arith.constant 0 : index
    %c0_2 = arith.constant 0 : index
    %1 = vector.load %arg1[%c0_1, %c0_2] : memref<36x256xbf16, #tpu.memory_space<vmem>>, vector<36x256xbf16>
    %cst = arith.constant dense<0.000000e+00> : vector<128x256xf32>
    %2 = tpu.matmul %0, %1, %cst {dimension_numbers = #tpu.dot_dimension_numbers<[1], [0], [0], [1], [0, 0, 1, 1], [], []>} : vector<128x36xbf16>, vector<36x256xbf16>, vector<128x256xf32> -> vector<128x256xf32>
    %3 = vector.extract_strided_slice %2 {offsets = [0, 0], sizes = [128, 128], strides = [1, 1]} : vector<128x256xf32> to vector<128x128xf32>
    %c0_3 = arith.constant 0 : index
    %c0_4 = arith.constant 0 : index
    %4 = vector.load %arg2[%c0_3, %c0_4] : memref<1x128xf32, #tpu.memory_space<vmem>>, vector<1x128xf32>
    %c0_5 = arith.constant 0 : index
    %c0_6 = arith.constant 0 : index
    %5 = vector.load %arg3[%c0_5, %c0_6] : memref<1x128xf32, #tpu.memory_space<vmem>>, vector<1x128xf32>
    %cst_7 = arith.constant dense<0.000000e+00> : vector<128xf32>
    %6 = vector.multi_reduction <add>, %3, %cst_7 [0] : vector<128x128xf32> to vector<128xf32>
    %7 = vector.shape_cast %6 : vector<128xf32> to vector<1x128xf32>
    %cst_8 = arith.constant 1.280000e+02 : f32
    %8 = vector.broadcast %cst_8 : f32 to vector<1x128xf32>
    %9 = arith.divf %7, %8 : vector<1x128xf32>
    %10 = vector.broadcast %9 : vector<1x128xf32> to vector<128x128xf32>
    %11 = arith.subf %3, %10 : vector<128x128xf32>
    %12 = arith.mulf %11, %11 : vector<128x128xf32>
    %cst_9 = arith.constant dense<0.000000e+00> : vector<128xf32>
    %13 = vector.multi_reduction <add>, %12, %cst_9 [0] : vector<128x128xf32> to vector<128xf32>
    %14 = vector.shape_cast %13 : vector<128xf32> to vector<1x128xf32>
    %cst_10 = arith.constant 1.280000e+02 : f32
    %15 = vector.broadcast %cst_10 : f32 to vector<1x128xf32>
    %16 = arith.divf %14, %15 : vector<1x128xf32>
    %cst_11 = arith.constant 9.99999974E-6 : f32
    %17 = vector.broadcast %cst_11 : f32 to vector<1x128xf32>
    %18 = arith.addf %16, %17 : vector<1x128xf32>
    %19 = math.rsqrt %18 : vector<1x128xf32>
    %20 = arith.mulf %4, %19 : vector<1x128xf32>
    %21 = vector.broadcast %20 : vector<1x128xf32> to vector<128x128xf32>
    %22 = arith.mulf %11, %21 : vector<128x128xf32>
    %23 = vector.broadcast %5 : vector<1x128xf32> to vector<128x128xf32>
    %24 = arith.addf %22, %23 : vector<128x128xf32>
    %cst_12 = arith.constant 0.000000e+00 : f32
    %25 = vector.broadcast %cst_12 : f32 to vector<128x128xf32>
    %26 = arith.maximumf %24, %25 : vector<128x128xf32>
    %27 = vector.extract_strided_slice %2 {offsets = [0, 128], sizes = [128, 128], strides = [1, 1]} : vector<128x256xf32> to vector<128x128xf32>
    %c0_13 = arith.constant 0 : index
    %c0_14 = arith.constant 0 : index
    %28 = vector.load %arg4[%c0_13, %c0_14] : memref<1x128xf32, #tpu.memory_space<vmem>>, vector<1x128xf32>
    %c0_15 = arith.constant 0 : index
    %c0_16 = arith.constant 0 : index
    %29 = vector.load %arg5[%c0_15, %c0_16] : memref<1x128xf32, #tpu.memory_space<vmem>>, vector<1x128xf32>
    %cst_17 = arith.constant dense<0.000000e+00> : vector<128xf32>
    %30 = vector.multi_reduction <add>, %27, %cst_17 [0] : vector<128x128xf32> to vector<128xf32>
    %31 = vector.shape_cast %30 : vector<128xf32> to vector<1x128xf32>
    %cst_18 = arith.constant 1.280000e+02 : f32
    %32 = vector.broadcast %cst_18 : f32 to vector<1x128xf32>
    %33 = arith.divf %31, %32 : vector<1x128xf32>
    %34 = vector.broadcast %33 : vector<1x128xf32> to vector<128x128xf32>
    %35 = arith.subf %27, %34 : vector<128x128xf32>
    %36 = arith.mulf %35, %35 : vector<128x128xf32>
    %cst_19 = arith.constant dense<0.000000e+00> : vector<128xf32>
    %37 = vector.multi_reduction <add>, %36, %cst_19 [0] : vector<128x128xf32> to vector<128xf32>
    %38 = vector.shape_cast %37 : vector<128xf32> to vector<1x128xf32>
    %cst_20 = arith.constant 1.280000e+02 : f32
    %39 = vector.broadcast %cst_20 : f32 to vector<1x128xf32>
    %40 = arith.divf %38, %39 : vector<1x128xf32>
    %cst_21 = arith.constant 9.99999974E-6 : f32
    %41 = vector.broadcast %cst_21 : f32 to vector<1x128xf32>
    %42 = arith.addf %40, %41 : vector<1x128xf32>
    %43 = math.rsqrt %42 : vector<1x128xf32>
    %44 = arith.mulf %28, %43 : vector<1x128xf32>
    %45 = vector.broadcast %44 : vector<1x128xf32> to vector<128x128xf32>
    %46 = arith.mulf %35, %45 : vector<128x128xf32>
    %47 = vector.broadcast %29 : vector<1x128xf32> to vector<128x128xf32>
    %48 = arith.addf %46, %47 : vector<128x128xf32>
    %49 = tpu.iota {dimensions = array<i32: 0>} : vector<128x1xi32>
    %50 = arith.sitofp %49 : vector<128x1xi32> to vector<128x1xf32>
    %cst_22 = arith.constant 5.000000e-01 : f32
    %51 = vector.broadcast %cst_22 : f32 to vector<128x1xf32>
    %52 = arith.addf %50, %51 : vector<128x1xf32>
    %cst_23 = arith.constant 1.250000e-01 : f32
    %53 = vector.broadcast %cst_23 : f32 to vector<128x1xf32>
    %54 = arith.mulf %52, %53 : vector<128x1xf32>
    %55 = math.floor %54 : vector<128x1xf32>
    %cst_24 = arith.constant 8.000000e+00 : f32
    %56 = vector.broadcast %cst_24 : f32 to vector<128x1xf32>
    %57 = arith.mulf %55, %56 : vector<128x1xf32>
    %58 = arith.subf %50, %57 : vector<128x1xf32>
    %cst_25 = arith.constant 5.000000e-01 : f32
    %59 = vector.broadcast %cst_25 : f32 to vector<128x1xf32>
    %60 = arith.addf %55, %59 : vector<128x1xf32>
    %cst_26 = arith.constant 1.250000e-01 : f32
    %61 = vector.broadcast %cst_26 : f32 to vector<128x1xf32>
    %62 = arith.mulf %60, %61 : vector<128x1xf32>
    %63 = math.floor %62 : vector<128x1xf32>
    %cst_27 = arith.constant 8.000000e+00 : f32
    %64 = vector.broadcast %cst_27 : f32 to vector<128x1xf32>
    %65 = arith.mulf %63, %64 : vector<128x1xf32>
    %66 = arith.subf %55, %65 : vector<128x1xf32>
    %cst_28 = arith.constant 0.000000e+00 : f32
    %67 = vector.broadcast %cst_28 : f32 to vector<128x128xf32>
    %c9_i32 = arith.constant 9 : i32
    %68 = tpu.dynamic_rotate %26 by %c9_i32 dim 0 : vector<128x128xf32>, i32 -> vector<128x128xf32>
    %cst_29 = arith.constant 1.000000e+00 : f32
    %69 = vector.broadcast %cst_29 : f32 to vector<128x1xf32>
    %70 = arith.cmpf oge, %66, %69 : vector<128x1xf32>
    %cst_30 = arith.constant 1.000000e+00 : f32
    %71 = vector.broadcast %cst_30 : f32 to vector<128x1xf32>
    %72 = arith.cmpf oge, %58, %71 : vector<128x1xf32>
    %73 = arith.andi %70, %72 : vector<128x1xi1>
    %cst_31 = arith.constant 0.000000e+00 : f32
    %74 = vector.shape_cast %73 : vector<128x1xi1> to vector<128x1xi1>
    %75 = vector.broadcast %74 : vector<128x1xi1> to vector<128x128xi1>
    %76 = vector.broadcast %cst_31 : f32 to vector<128x128xf32>
    %77 = arith.select %75, %68, %76 : vector<128x128xi1>, vector<128x128xf32>
    %78 = arith.truncf %77 : vector<128x128xf32> to vector<128x128xbf16>
    %c0_32 = arith.constant 0 : index
    %c0_33 = arith.constant 0 : index
    %c0_34 = arith.constant 0 : index
    %79 = vector.load %arg6[%c0_32, %c0_33, %c0_34] : memref<9x128x128xbf16, #tpu.memory_space<vmem>>, vector<1x128x128xbf16>
    %80 = vector.shape_cast %79 : vector<1x128x128xbf16> to vector<128x128xbf16>
    %cst_35 = arith.constant dense<0.000000e+00> : vector<128x128xf32>
    %81 = tpu.matmul %78, %80, %cst_35 {dimension_numbers = #tpu.dot_dimension_numbers<[1], [0], [0], [1], [0, 0, 1, 1], [], []>} : vector<128x128xbf16>, vector<128x128xbf16>, vector<128x128xf32> -> vector<128x128xf32>
    %82 = arith.addf %67, %81 : vector<128x128xf32>
    %c8_i32 = arith.constant 8 : i32
    %83 = tpu.dynamic_rotate %26 by %c8_i32 dim 0 : vector<128x128xf32>, i32 -> vector<128x128xf32>
    %cst_36 = arith.constant 1.000000e+00 : f32
    %84 = vector.broadcast %cst_36 : f32 to vector<128x1xf32>
    %85 = arith.cmpf oge, %66, %84 : vector<128x1xf32>
    %cst_37 = arith.constant 0.000000e+00 : f32
    %86 = vector.shape_cast %85 : vector<128x1xi1> to vector<128x1xi1>
    %87 = vector.broadcast %86 : vector<128x1xi1> to vector<128x128xi1>
    %88 = vector.broadcast %cst_37 : f32 to vector<128x128xf32>
    %89 = arith.select %87, %83, %88 : vector<128x128xi1>, vector<128x128xf32>
    %90 = arith.truncf %89 : vector<128x128xf32> to vector<128x128xbf16>
    %c1 = arith.constant 1 : index
    %c0_38 = arith.constant 0 : index
    %c0_39 = arith.constant 0 : index
    %91 = vector.load %arg6[%c1, %c0_38, %c0_39] : memref<9x128x128xbf16, #tpu.memory_space<vmem>>, vector<1x128x128xbf16>
    %92 = vector.shape_cast %91 : vector<1x128x128xbf16> to vector<128x128xbf16>
    %cst_40 = arith.constant dense<0.000000e+00> : vector<128x128xf32>
    %93 = tpu.matmul %90, %92, %cst_40 {dimension_numbers = #tpu.dot_dimension_numbers<[1], [0], [0], [1], [0, 0, 1, 1], [], []>} : vector<128x128xbf16>, vector<128x128xbf16>, vector<128x128xf32> -> vector<128x128xf32>
    %94 = arith.addf %82, %93 : vector<128x128xf32>
    %c7_i32 = arith.constant 7 : i32
    %95 = tpu.dynamic_rotate %26 by %c7_i32 dim 0 : vector<128x128xf32>, i32 -> vector<128x128xf32>
    %cst_41 = arith.constant 1.000000e+00 : f32
    %96 = vector.broadcast %cst_41 : f32 to vector<128x1xf32>
    %97 = arith.cmpf oge, %66, %96 : vector<128x1xf32>
    %cst_42 = arith.constant 7.000000e+00 : f32
    %98 = vector.broadcast %cst_42 : f32 to vector<128x1xf32>
    %99 = arith.cmpf olt, %58, %98 : vector<128x1xf32>
    %100 = arith.andi %97, %99 : vector<128x1xi1>
    %cst_43 = arith.constant 0.000000e+00 : f32
    %101 = vector.shape_cast %100 : vector<128x1xi1> to vector<128x1xi1>
    %102 = vector.broadcast %101 : vector<128x1xi1> to vector<128x128xi1>
    %103 = vector.broadcast %cst_43 : f32 to vector<128x128xf32>
    %104 = arith.select %102, %95, %103 : vector<128x128xi1>, vector<128x128xf32>
    %105 = arith.truncf %104 : vector<128x128xf32> to vector<128x128xbf16>
    %c2 = arith.constant 2 : index
    %c0_44 = arith.constant 0 : index
    %c0_45 = arith.constant 0 : index
    %106 = vector.load %arg6[%c2, %c0_44, %c0_45] : memref<9x128x128xbf16, #tpu.memory_space<vmem>>, vector<1x128x128xbf16>
    %107 = vector.shape_cast %106 : vector<1x128x128xbf16> to vector<128x128xbf16>
    %cst_46 = arith.constant dense<0.000000e+00> : vector<128x128xf32>
    %108 = tpu.matmul %105, %107, %cst_46 {dimension_numbers = #tpu.dot_dimension_numbers<[1], [0], [0], [1], [0, 0, 1, 1], [], []>} : vector<128x128xbf16>, vector<128x128xbf16>, vector<128x128xf32> -> vector<128x128xf32>
    %109 = arith.addf %94, %108 : vector<128x128xf32>
    %c1_i32 = arith.constant 1 : i32
    %110 = tpu.dynamic_rotate %26 by %c1_i32 dim 0 : vector<128x128xf32>, i32 -> vector<128x128xf32>
    %cst_47 = arith.constant 1.000000e+00 : f32
    %111 = vector.broadcast %cst_47 : f32 to vector<128x1xf32>
    %112 = arith.cmpf oge, %58, %111 : vector<128x1xf32>
    %cst_48 = arith.constant 0.000000e+00 : f32
    %113 = vector.shape_cast %112 : vector<128x1xi1> to vector<128x1xi1>
    %114 = vector.broadcast %113 : vector<128x1xi1> to vector<128x128xi1>
    %115 = vector.broadcast %cst_48 : f32 to vector<128x128xf32>
    %116 = arith.select %114, %110, %115 : vector<128x128xi1>, vector<128x128xf32>
    %117 = arith.truncf %116 : vector<128x128xf32> to vector<128x128xbf16>
    %c3 = arith.constant 3 : index
    %c0_49 = arith.constant 0 : index
    %c0_50 = arith.constant 0 : index
    %118 = vector.load %arg6[%c3, %c0_49, %c0_50] : memref<9x128x128xbf16, #tpu.memory_space<vmem>>, vector<1x128x128xbf16>
    %119 = vector.shape_cast %118 : vector<1x128x128xbf16> to vector<128x128xbf16>
    %cst_51 = arith.constant dense<0.000000e+00> : vector<128x128xf32>
    %120 = tpu.matmul %117, %119, %cst_51 {dimension_numbers = #tpu.dot_dimension_numbers<[1], [0], [0], [1], [0, 0, 1, 1], [], []>} : vector<128x128xbf16>, vector<128x128xbf16>, vector<128x128xf32> -> vector<128x128xf32>
    %121 = arith.addf %109, %120 : vector<128x128xf32>
    %122 = arith.truncf %26 : vector<128x128xf32> to vector<128x128xbf16>
    %c4 = arith.constant 4 : index
    %c0_52 = arith.constant 0 : index
    %c0_53 = arith.constant 0 : index
    %123 = vector.load %arg6[%c4, %c0_52, %c0_53] : memref<9x128x128xbf16, #tpu.memory_space<vmem>>, vector<1x128x128xbf16>
    %124 = vector.shape_cast %123 : vector<1x128x128xbf16> to vector<128x128xbf16>
    %cst_54 = arith.constant dense<0.000000e+00> : vector<128x128xf32>
    %125 = tpu.matmul %122, %124, %cst_54 {dimension_numbers = #tpu.dot_dimension_numbers<[1], [0], [0], [1], [0, 0, 1, 1], [], []>} : vector<128x128xbf16>, vector<128x128xbf16>, vector<128x128xf32> -> vector<128x128xf32>
    %126 = arith.addf %121, %125 : vector<128x128xf32>
    %c127_i32 = arith.constant 127 : i32
    %127 = tpu.dynamic_rotate %26 by %c127_i32 dim 0 : vector<128x128xf32>, i32 -> vector<128x128xf32>
    %cst_55 = arith.constant 7.000000e+00 : f32
    %128 = vector.broadcast %cst_55 : f32 to vector<128x1xf32>
    %129 = arith.cmpf olt, %58, %128 : vector<128x1xf32>
    %cst_56 = arith.constant 0.000000e+00 : f32
    %130 = vector.shape_cast %129 : vector<128x1xi1> to vector<128x1xi1>
    %131 = vector.broadcast %130 : vector<128x1xi1> to vector<128x128xi1>
    %132 = vector.broadcast %cst_56 : f32 to vector<128x128xf32>
    %133 = arith.select %131, %127, %132 : vector<128x128xi1>, vector<128x128xf32>
    %134 = arith.truncf %133 : vector<128x128xf32> to vector<128x128xbf16>
    %c5 = arith.constant 5 : index
    %c0_57 = arith.constant 0 : index
    %c0_58 = arith.constant 0 : index
    %135 = vector.load %arg6[%c5, %c0_57, %c0_58] : memref<9x128x128xbf16, #tpu.memory_space<vmem>>, vector<1x128x128xbf16>
    %136 = vector.shape_cast %135 : vector<1x128x128xbf16> to vector<128x128xbf16>
    %cst_59 = arith.constant dense<0.000000e+00> : vector<128x128xf32>
    %137 = tpu.matmul %134, %136, %cst_59 {dimension_numbers = #tpu.dot_dimension_numbers<[1], [0], [0], [1], [0, 0, 1, 1], [], []>} : vector<128x128xbf16>, vector<128x128xbf16>, vector<128x128xf32> -> vector<128x128xf32>
    %138 = arith.addf %126, %137 : vector<128x128xf32>
    %c121_i32 = arith.constant 121 : i32
    %139 = tpu.dynamic_rotate %26 by %c121_i32 dim 0 : vector<128x128xf32>, i32 -> vector<128x128xf32>
    %cst_60 = arith.constant 7.000000e+00 : f32
    %140 = vector.broadcast %cst_60 : f32 to vector<128x1xf32>
    %141 = arith.cmpf olt, %66, %140 : vector<128x1xf32>
    %cst_61 = arith.constant 1.000000e+00 : f32
    %142 = vector.broadcast %cst_61 : f32 to vector<128x1xf32>
    %143 = arith.cmpf oge, %58, %142 : vector<128x1xf32>
    %144 = arith.andi %141, %143 : vector<128x1xi1>
    %cst_62 = arith.constant 0.000000e+00 : f32
    %145 = vector.shape_cast %144 : vector<128x1xi1> to vector<128x1xi1>
    %146 = vector.broadcast %145 : vector<128x1xi1> to vector<128x128xi1>
    %147 = vector.broadcast %cst_62 : f32 to vector<128x128xf32>
    %148 = arith.select %146, %139, %147 : vector<128x128xi1>, vector<128x128xf32>
    %149 = arith.truncf %148 : vector<128x128xf32> to vector<128x128xbf16>
    %c6 = arith.constant 6 : index
    %c0_63 = arith.constant 0 : index
    %c0_64 = arith.constant 0 : index
    %150 = vector.load %arg6[%c6, %c0_63, %c0_64] : memref<9x128x128xbf16, #tpu.memory_space<vmem>>, vector<1x128x128xbf16>
    %151 = vector.shape_cast %150 : vector<1x128x128xbf16> to vector<128x128xbf16>
    %cst_65 = arith.constant dense<0.000000e+00> : vector<128x128xf32>
    %152 = tpu.matmul %149, %151, %cst_65 {dimension_numbers = #tpu.dot_dimension_numbers<[1], [0], [0], [1], [0, 0, 1, 1], [], []>} : vector<128x128xbf16>, vector<128x128xbf16>, vector<128x128xf32> -> vector<128x128xf32>
    %153 = arith.addf %138, %152 : vector<128x128xf32>
    %c120_i32 = arith.constant 120 : i32
    %154 = tpu.dynamic_rotate %26 by %c120_i32 dim 0 : vector<128x128xf32>, i32 -> vector<128x128xf32>
    %cst_66 = arith.constant 7.000000e+00 : f32
    %155 = vector.broadcast %cst_66 : f32 to vector<128x1xf32>
    %156 = arith.cmpf olt, %66, %155 : vector<128x1xf32>
    %cst_67 = arith.constant 0.000000e+00 : f32
    %157 = vector.shape_cast %156 : vector<128x1xi1> to vector<128x1xi1>
    %158 = vector.broadcast %157 : vector<128x1xi1> to vector<128x128xi1>
    %159 = vector.broadcast %cst_67 : f32 to vector<128x128xf32>
    %160 = arith.select %158, %154, %159 : vector<128x128xi1>, vector<128x128xf32>
    %161 = arith.truncf %160 : vector<128x128xf32> to vector<128x128xbf16>
    %c7 = arith.constant 7 : index
    %c0_68 = arith.constant 0 : index
    %c0_69 = arith.constant 0 : index
    %162 = vector.load %arg6[%c7, %c0_68, %c0_69] : memref<9x128x128xbf16, #tpu.memory_space<vmem>>, vector<1x128x128xbf16>
    %163 = vector.shape_cast %162 : vector<1x128x128xbf16> to vector<128x128xbf16>
    %cst_70 = arith.constant dense<0.000000e+00> : vector<128x128xf32>
    %164 = tpu.matmul %161, %163, %cst_70 {dimension_numbers = #tpu.dot_dimension_numbers<[1], [0], [0], [1], [0, 0, 1, 1], [], []>} : vector<128x128xbf16>, vector<128x128xbf16>, vector<128x128xf32> -> vector<128x128xf32>
    %165 = arith.addf %153, %164 : vector<128x128xf32>
    %c119_i32 = arith.constant 119 : i32
    %166 = tpu.dynamic_rotate %26 by %c119_i32 dim 0 : vector<128x128xf32>, i32 -> vector<128x128xf32>
    %cst_71 = arith.constant 7.000000e+00 : f32
    %167 = vector.broadcast %cst_71 : f32 to vector<128x1xf32>
    %168 = arith.cmpf olt, %66, %167 : vector<128x1xf32>
    %cst_72 = arith.constant 7.000000e+00 : f32
    %169 = vector.broadcast %cst_72 : f32 to vector<128x1xf32>
    %170 = arith.cmpf olt, %58, %169 : vector<128x1xf32>
    %171 = arith.andi %168, %170 : vector<128x1xi1>
    %cst_73 = arith.constant 0.000000e+00 : f32
    %172 = vector.shape_cast %171 : vector<128x1xi1> to vector<128x1xi1>
    %173 = vector.broadcast %172 : vector<128x1xi1> to vector<128x128xi1>
    %174 = vector.broadcast %cst_73 : f32 to vector<128x128xf32>
    %175 = arith.select %173, %166, %174 : vector<128x128xi1>, vector<128x128xf32>
    %176 = arith.truncf %175 : vector<128x128xf32> to vector<128x128xbf16>
    %c8 = arith.constant 8 : index
    %c0_74 = arith.constant 0 : index
    %c0_75 = arith.constant 0 : index
    %177 = vector.load %arg6[%c8, %c0_74, %c0_75] : memref<9x128x128xbf16, #tpu.memory_space<vmem>>, vector<1x128x128xbf16>
    %178 = vector.shape_cast %177 : vector<1x128x128xbf16> to vector<128x128xbf16>
    %cst_76 = arith.constant dense<0.000000e+00> : vector<128x128xf32>
    %179 = tpu.matmul %176, %178, %cst_76 {dimension_numbers = #tpu.dot_dimension_numbers<[1], [0], [0], [1], [0, 0, 1, 1], [], []>} : vector<128x128xbf16>, vector<128x128xbf16>, vector<128x128xf32> -> vector<128x128xf32>
    %180 = arith.addf %165, %179 : vector<128x128xf32>
    %c0_77 = arith.constant 0 : index
    %c0_78 = arith.constant 0 : index
    %181 = vector.load %arg7[%c0_77, %c0_78] : memref<1x128xf32, #tpu.memory_space<vmem>>, vector<1x128xf32>
    %c0_79 = arith.constant 0 : index
    %c0_80 = arith.constant 0 : index
    %182 = vector.load %arg8[%c0_79, %c0_80] : memref<1x128xf32, #tpu.memory_space<vmem>>, vector<1x128xf32>
    %cst_81 = arith.constant dense<0.000000e+00> : vector<128xf32>
    %183 = vector.multi_reduction <add>, %180, %cst_81 [0] : vector<128x128xf32> to vector<128xf32>
    %184 = vector.shape_cast %183 : vector<128xf32> to vector<1x128xf32>
    %cst_82 = arith.constant 1.280000e+02 : f32
    %185 = vector.broadcast %cst_82 : f32 to vector<1x128xf32>
    %186 = arith.divf %184, %185 : vector<1x128xf32>
    %187 = vector.broadcast %186 : vector<1x128xf32> to vector<128x128xf32>
    %188 = arith.subf %180, %187 : vector<128x128xf32>
    %189 = arith.mulf %188, %188 : vector<128x128xf32>
    %cst_83 = arith.constant dense<0.000000e+00> : vector<128xf32>
    %190 = vector.multi_reduction <add>, %189, %cst_83 [0] : vector<128x128xf32> to vector<128xf32>
    %191 = vector.shape_cast %190 : vector<128xf32> to vector<1x128xf32>
    %cst_84 = arith.constant 1.280000e+02 : f32
    %192 = vector.broadcast %cst_84 : f32 to vector<1x128xf32>
    %193 = arith.divf %191, %192 : vector<1x128xf32>
    %cst_85 = arith.constant 9.99999974E-6 : f32
    %194 = vector.broadcast %cst_85 : f32 to vector<1x128xf32>
    %195 = arith.addf %193, %194 : vector<1x128xf32>
    %196 = math.rsqrt %195 : vector<1x128xf32>
    %197 = arith.mulf %181, %196 : vector<1x128xf32>
    %198 = vector.broadcast %197 : vector<1x128xf32> to vector<128x128xf32>
    %199 = arith.mulf %188, %198 : vector<128x128xf32>
    %200 = vector.broadcast %182 : vector<1x128xf32> to vector<128x128xf32>
    %201 = arith.addf %199, %200 : vector<128x128xf32>
    %202 = arith.addf %201, %48 : vector<128x128xf32>
    %cst_86 = arith.constant 0.000000e+00 : f32
    %203 = vector.broadcast %cst_86 : f32 to vector<128x128xf32>
    %204 = arith.maximumf %202, %203 : vector<128x128xf32>
    %c0_87 = arith.constant 0 : index
    %c0_88 = arith.constant 0 : index
    %205 = vector.load %arg9[%c0_87, %c0_88] : memref<128x128xf32, #tpu.memory_space<vmem>>, vector<128x128xf32>
    tpu.vector_store %arg9[%c0_87, %c0_88], %204 {strides = array<i32>} : memref<128x128xf32, #tpu.memory_space<vmem>>, vector<128x128xf32>,
    return
  }
}

module attributes {stable_mosaic.version = 11 : i64} {
  func.func @_fused_block_kernel(%arg0: memref<128x36xbf16, #tpu.memory_space<vmem>>, %arg1: memref<36x256xbf16, #tpu.memory_space<vmem>>, %arg2: memref<1x128xf32, #tpu.memory_space<vmem>>, %arg3: memref<1x128xf32, #tpu.memory_space<vmem>>, %arg4: memref<1x128xf32, #tpu.memory_space<vmem>>, %arg5: memref<1x128xf32, #tpu.memory_space<vmem>>, %arg6: memref<9x128x128xbf16, #tpu.memory_space<vmem>>, %arg7: memref<1x128xf32, #tpu.memory_space<vmem>>, %arg8: memref<1x128xf32, #tpu.memory_space<vmem>>, %arg9: memref<128x128xf32, #tpu.memory_space<vmem>>) attributes {dimension_semantics = [], scalar_prefetch = 0 : i64, scratch_operands = 0 : i64, tpu.core_type = #tpu.core_type<tc>} {
    %c0 = arith.constant 0 : index
    %c0_0 = arith.constant 0 : index
    %0 = vector.load %arg0[%c0, %c0_0] : memref<128x36xbf16, #tpu.memory_space<vmem>>, vector<128x36xbf16>
    %c0_1 = arith.constant 0 : index
    %c0_2 = arith.constant 0 : index
    %1 = vector.load %arg1[%c0_1, %c0_2] : memref<36x256xbf16, #tpu.memory_space<vmem>>, vector<36x256xbf16>
    %cst = arith.constant dense<0.000000e+00> : vector<128x256xf32>
    %2 = tpu.matmul %0, %1, %cst {dimension_numbers = #tpu.dot_dimension_numbers<[1], [0], [0], [1], [0, 0, 1, 1], [], []>} : vector<128x36xbf16>, vector<36x256xbf16>, vector<128x256xf32> -> vector<128x256xf32>
    %3 = vector.extract_strided_slice %2 {offsets = [0, 0], sizes = [128, 128], strides = [1, 1]} : vector<128x256xf32> to vector<128x128xf32>
    %c0_3 = arith.constant 0 : index
    %c0_4 = arith.constant 0 : index
    %4 = vector.load %arg2[%c0_3, %c0_4] : memref<1x128xf32, #tpu.memory_space<vmem>>, vector<1x128xf32>
    %c0_5 = arith.constant 0 : index
    %c0_6 = arith.constant 0 : index
    %5 = vector.load %arg3[%c0_5, %c0_6] : memref<1x128xf32, #tpu.memory_space<vmem>>, vector<1x128xf32>
    %cst_7 = arith.constant dense<0.000000e+00> : vector<128xf32>
    %6 = vector.multi_reduction <add>, %3, %cst_7 [0] : vector<128x128xf32> to vector<128xf32>
    %7 = vector.shape_cast %6 : vector<128xf32> to vector<1x128xf32>
    %cst_8 = arith.constant 1.280000e+02 : f32
    %8 = vector.broadcast %cst_8 : f32 to vector<1x128xf32>
    %9 = arith.divf %7, %8 : vector<1x128xf32>
    %10 = vector.broadcast %9 : vector<1x128xf32> to vector<128x128xf32>
    %11 = arith.subf %3, %10 : vector<128x128xf32>
    %12 = arith.mulf %11, %11 : vector<128x128xf32>
    %cst_9 = arith.constant dense<0.000000e+00> : vector<128xf32>
    %13 = vector.multi_reduction <add>, %12, %cst_9 [0] : vector<128x128xf32> to vector<128xf32>
    %14 = vector.shape_cast %13 : vector<128xf32> to vector<1x128xf32>
    %cst_10 = arith.constant 1.280000e+02 : f32
    %15 = vector.broadcast %cst_10 : f32 to vector<1x128xf32>
    %16 = arith.divf %14, %15 : vector<1x128xf32>
    %cst_11 = arith.constant 9.99999974E-6 : f32
    %17 = vector.broadcast %cst_11 : f32 to vector<1x128xf32>
    %18 = arith.addf %16, %17 : vector<1x128xf32>
    %19 = math.rsqrt %18 : vector<1x128xf32>
    %20 = arith.mulf %4, %19 : vector<1x128xf32>
    %21 = vector.broadcast %20 : vector<1x128xf32> to vector<128x128xf32>
    %22 = arith.mulf %11, %21 : vector<128x128xf32>
    %23 = vector.broadcast %5 : vector<1x128xf32> to vector<128x128xf32>
    %24 = arith.addf %22, %23 : vector<128x128xf32>
    %cst_12 = arith.constant 0.000000e+00 : f32
    %25 = vector.broadcast %cst_12 : f32 to vector<128x128xf32>
    %26 = arith.maximumf %24, %25 : vector<128x128xf32>
    %27 = vector.extract_strided_slice %2 {offsets = [0, 128], sizes = [128, 128], strides = [1, 1]} : vector<128x256xf32> to vector<128x128xf32>
    %c0_13 = arith.constant 0 : index
    %c0_14 = arith.constant 0 : index
    %28 = vector.load %arg4[%c0_13, %c0_14] : memref<1x128xf32, #tpu.memory_space<vmem>>, vector<1x128xf32>
    %c0_15 = arith.constant 0 : index
    %c0_16 = arith.constant 0 : index
    %29 = vector.load %arg5[%c0_15, %c0_16] : memref<1x128xf32, #tpu.memory_space<vmem>>, vector<1x128xf32>
    %cst_17 = arith.constant dense<0.000000e+00> : vector<128xf32>
    %30 = vector.multi_reduction <add>, %27, %cst_17 [0] : vector<128x128xf32> to vector<128xf32>
    %31 = vector.shape_cast %30 : vector<128xf32> to vector<1x128xf32>
    %cst_18 = arith.constant 1.280000e+02 : f32
    %32 = vector.broadcast %cst_18 : f32 to vector<1x128xf32>
    %33 = arith.divf %31, %32 : vector<1x128xf32>
    %34 = vector.broadcast %33 : vector<1x128xf32> to vector<128x128xf32>
    %35 = arith.subf %27, %34 : vector<128x128xf32>
    %36 = arith.mulf %35, %35 : vector<128x128xf32>
    %cst_19 = arith.constant dense<0.000000e+00> : vector<128xf32>
    %37 = vector.multi_reduction <add>, %36, %cst_19 [0] : vector<128x128xf32> to vector<128xf32>
    %38 = vector.shape_cast %37 : vector<128xf32> to vector<1x128xf32>
    %cst_20 = arith.constant 1.280000e+02 : f32
    %39 = vector.broadcast %cst_20 : f32 to vector<1x128xf32>
    %40 = arith.divf %38, %39 : vector<1x128xf32>
    %cst_21 = arith.constant 9.99999974E-6 : f32
    %41 = vector.broadcast %cst_21 : f32 to vector<1x128xf32>
    %42 = arith.addf %40, %41 : vector<1x128xf32>
    %43 = math.rsqrt %42 : vector<1x128xf32>
    %44 = arith.mulf %28, %43 : vector<1x128xf32>
    %45 = vector.broadcast %44 : vector<1x128xf32> to vector<128x128xf32>
    %46 = arith.mulf %35, %45 : vector<128x128xf32>
    %47 = vector.broadcast %29 : vector<1x128xf32> to vector<128x128xf32>
    %48 = arith.addf %46, %47 : vector<128x128xf32>
    %49 = tpu.iota {dimensions = array<i32: 0>} : vector<128x1xi32>
    %50 = arith.sitofp %49 : vector<128x1xi32> to vector<128x1xf32>
    %cst_22 = arith.constant 5.000000e-01 : f32
    %51 = vector.broadcast %cst_22 : f32 to vector<128x1xf32>
    %52 = arith.addf %50, %51 : vector<128x1xf32>
    %cst_23 = arith.constant 1.250000e-01 : f32
    %53 = vector.broadcast %cst_23 : f32 to vector<128x1xf32>
    %54 = arith.mulf %52, %53 : vector<128x1xf32>
    %55 = math.floor %54 : vector<128x1xf32>
    %cst_24 = arith.constant 8.000000e+00 : f32
    %56 = vector.broadcast %cst_24 : f32 to vector<128x1xf32>
    %57 = arith.mulf %55, %56 : vector<128x1xf32>
    %58 = arith.subf %50, %57 : vector<128x1xf32>
    %cst_25 = arith.constant 5.000000e-01 : f32
    %59 = vector.broadcast %cst_25 : f32 to vector<128x1xf32>
    %60 = arith.addf %55, %59 : vector<128x1xf32>
    %cst_26 = arith.constant 1.250000e-01 : f32
    %61 = vector.broadcast %cst_26 : f32 to vector<128x1xf32>
    %62 = arith.mulf %60, %61 : vector<128x1xf32>
    %63 = math.floor %62 : vector<128x1xf32>
    %cst_27 = arith.constant 8.000000e+00 : f32
    %64 = vector.broadcast %cst_27 : f32 to vector<128x1xf32>
    %65 = arith.mulf %63, %64 : vector<128x1xf32>
    %66 = arith.subf %55, %65 : vector<128x1xf32>
    %cst_28 = arith.constant 0.000000e+00 : f32
    %67 = vector.broadcast %cst_28 : f32 to vector<128x128xf32>
    %cst_29 = arith.constant 0.000000e+00 : f32
    %68 = vector.broadcast %cst_29 : f32 to vector<9x128xf32>
    %69 = vector.extract_strided_slice %26 {offsets = [0, 0], sizes = [119, 128], strides = [1, 1]} : vector<128x128xf32> to vector<119x128xf32>
    %70 = tpu.concatenate %68, %69 in 0 : vector<9x128xf32>, vector<119x128xf32> -> vector<128x128xf32>
    %cst_30 = arith.constant 1.000000e+00 : f32
    %71 = vector.broadcast %cst_30 : f32 to vector<128x1xf32>
    %72 = arith.cmpf oge, %66, %71 : vector<128x1xf32>
    %cst_31 = arith.constant 1.000000e+00 : f32
    %73 = vector.broadcast %cst_31 : f32 to vector<128x1xf32>
    %74 = arith.cmpf oge, %58, %73 : vector<128x1xf32>
    %75 = arith.andi %72, %74 : vector<128x1xi1>
    %cst_32 = arith.constant 0.000000e+00 : f32
    %76 = vector.shape_cast %75 : vector<128x1xi1> to vector<128x1xi1>
    %77 = vector.broadcast %76 : vector<128x1xi1> to vector<128x128xi1>
    %78 = vector.broadcast %cst_32 : f32 to vector<128x128xf32>
    %79 = arith.select %77, %70, %78 : vector<128x128xi1>, vector<128x128xf32>
    %80 = arith.truncf %79 : vector<128x128xf32> to vector<128x128xbf16>
    %c0_33 = arith.constant 0 : index
    %c0_34 = arith.constant 0 : index
    %c0_35 = arith.constant 0 : index
    %81 = vector.load %arg6[%c0_33, %c0_34, %c0_35] : memref<9x128x128xbf16, #tpu.memory_space<vmem>>, vector<1x128x128xbf16>
    %82 = vector.shape_cast %81 : vector<1x128x128xbf16> to vector<128x128xbf16>
    %cst_36 = arith.constant dense<0.000000e+00> : vector<128x128xf32>
    %83 = tpu.matmul %80, %82, %cst_36 {dimension_numbers = #tpu.dot_dimension_numbers<[1], [0], [0], [1], [0, 0, 1, 1], [], []>} : vector<128x128xbf16>, vector<128x128xbf16>, vector<128x128xf32> -> vector<128x128xf32>
    %84 = arith.addf %67, %83 : vector<128x128xf32>
    %cst_37 = arith.constant 0.000000e+00 : f32
    %85 = vector.broadcast %cst_37 : f32 to vector<8x128xf32>
    %86 = vector.extract_strided_slice %26 {offsets = [0, 0], sizes = [120, 128], strides = [1, 1]} : vector<128x128xf32> to vector<120x128xf32>
    %87 = tpu.concatenate %85, %86 in 0 : vector<8x128xf32>, vector<120x128xf32> -> vector<128x128xf32>
    %cst_38 = arith.constant 1.000000e+00 : f32
    %88 = vector.broadcast %cst_38 : f32 to vector<128x1xf32>
    %89 = arith.cmpf oge, %66, %88 : vector<128x1xf32>
    %cst_39 = arith.constant 0.000000e+00 : f32
    %90 = vector.shape_cast %89 : vector<128x1xi1> to vector<128x1xi1>
    %91 = vector.broadcast %90 : vector<128x1xi1> to vector<128x128xi1>
    %92 = vector.broadcast %cst_39 : f32 to vector<128x128xf32>
    %93 = arith.select %91, %87, %92 : vector<128x128xi1>, vector<128x128xf32>
    %94 = arith.truncf %93 : vector<128x128xf32> to vector<128x128xbf16>
    %c1 = arith.constant 1 : index
    %c0_40 = arith.constant 0 : index
    %c0_41 = arith.constant 0 : index
    %95 = vector.load %arg6[%c1, %c0_40, %c0_41] : memref<9x128x128xbf16, #tpu.memory_space<vmem>>, vector<1x128x128xbf16>
    %96 = vector.shape_cast %95 : vector<1x128x128xbf16> to vector<128x128xbf16>
    %cst_42 = arith.constant dense<0.000000e+00> : vector<128x128xf32>
    %97 = tpu.matmul %94, %96, %cst_42 {dimension_numbers = #tpu.dot_dimension_numbers<[1], [0], [0], [1], [0, 0, 1, 1], [], []>} : vector<128x128xbf16>, vector<128x128xbf16>, vector<128x128xf32> -> vector<128x128xf32>
    %98 = arith.addf %84, %97 : vector<128x128xf32>
    %cst_43 = arith.constant 0.000000e+00 : f32
    %99 = vector.broadcast %cst_43 : f32 to vector<7x128xf32>
    %100 = vector.extract_strided_slice %26 {offsets = [0, 0], sizes = [121, 128], strides = [1, 1]} : vector<128x128xf32> to vector<121x128xf32>
    %101 = tpu.concatenate %99, %100 in 0 : vector<7x128xf32>, vector<121x128xf32> -> vector<128x128xf32>
    %cst_44 = arith.constant 1.000000e+00 : f32
    %102 = vector.broadcast %cst_44 : f32 to vector<128x1xf32>
    %103 = arith.cmpf oge, %66, %102 : vector<128x1xf32>
    %cst_45 = arith.constant 7.000000e+00 : f32
    %104 = vector.broadcast %cst_45 : f32 to vector<128x1xf32>
    %105 = arith.cmpf olt, %58, %104 : vector<128x1xf32>
    %106 = arith.andi %103, %105 : vector<128x1xi1>
    %cst_46 = arith.constant 0.000000e+00 : f32
    %107 = vector.shape_cast %106 : vector<128x1xi1> to vector<128x1xi1>
    %108 = vector.broadcast %107 : vector<128x1xi1> to vector<128x128xi1>
    %109 = vector.broadcast %cst_46 : f32 to vector<128x128xf32>
    %110 = arith.select %108, %101, %109 : vector<128x128xi1>, vector<128x128xf32>
    %111 = arith.truncf %110 : vector<128x128xf32> to vector<128x128xbf16>
    %c2 = arith.constant 2 : index
    %c0_47 = arith.constant 0 : index
    %c0_48 = arith.constant 0 : index
    %112 = vector.load %arg6[%c2, %c0_47, %c0_48] : memref<9x128x128xbf16, #tpu.memory_space<vmem>>, vector<1x128x128xbf16>
    %113 = vector.shape_cast %112 : vector<1x128x128xbf16> to vector<128x128xbf16>
    %cst_49 = arith.constant dense<0.000000e+00> : vector<128x128xf32>
    %114 = tpu.matmul %111, %113, %cst_49 {dimension_numbers = #tpu.dot_dimension_numbers<[1], [0], [0], [1], [0, 0, 1, 1], [], []>} : vector<128x128xbf16>, vector<128x128xbf16>, vector<128x128xf32> -> vector<128x128xf32>
    %115 = arith.addf %98, %114 : vector<128x128xf32>
    %cst_50 = arith.constant 0.000000e+00 : f32
    %116 = vector.broadcast %cst_50 : f32 to vector<1x128xf32>
    %117 = vector.extract_strided_slice %26 {offsets = [0, 0], sizes = [127, 128], strides = [1, 1]} : vector<128x128xf32> to vector<127x128xf32>
    %118 = tpu.concatenate %116, %117 in 0 : vector<1x128xf32>, vector<127x128xf32> -> vector<128x128xf32>
    %cst_51 = arith.constant 1.000000e+00 : f32
    %119 = vector.broadcast %cst_51 : f32 to vector<128x1xf32>
    %120 = arith.cmpf oge, %58, %119 : vector<128x1xf32>
    %cst_52 = arith.constant 0.000000e+00 : f32
    %121 = vector.shape_cast %120 : vector<128x1xi1> to vector<128x1xi1>
    %122 = vector.broadcast %121 : vector<128x1xi1> to vector<128x128xi1>
    %123 = vector.broadcast %cst_52 : f32 to vector<128x128xf32>
    %124 = arith.select %122, %118, %123 : vector<128x128xi1>, vector<128x128xf32>
    %125 = arith.truncf %124 : vector<128x128xf32> to vector<128x128xbf16>
    %c3 = arith.constant 3 : index
    %c0_53 = arith.constant 0 : index
    %c0_54 = arith.constant 0 : index
    %126 = vector.load %arg6[%c3, %c0_53, %c0_54] : memref<9x128x128xbf16, #tpu.memory_space<vmem>>, vector<1x128x128xbf16>
    %127 = vector.shape_cast %126 : vector<1x128x128xbf16> to vector<128x128xbf16>
    %cst_55 = arith.constant dense<0.000000e+00> : vector<128x128xf32>
    %128 = tpu.matmul %125, %127, %cst_55 {dimension_numbers = #tpu.dot_dimension_numbers<[1], [0], [0], [1], [0, 0, 1, 1], [], []>} : vector<128x128xbf16>, vector<128x128xbf16>, vector<128x128xf32> -> vector<128x128xf32>
    %129 = arith.addf %115, %128 : vector<128x128xf32>
    %130 = arith.truncf %26 : vector<128x128xf32> to vector<128x128xbf16>
    %c4 = arith.constant 4 : index
    %c0_56 = arith.constant 0 : index
    %c0_57 = arith.constant 0 : index
    %131 = vector.load %arg6[%c4, %c0_56, %c0_57] : memref<9x128x128xbf16, #tpu.memory_space<vmem>>, vector<1x128x128xbf16>
    %132 = vector.shape_cast %131 : vector<1x128x128xbf16> to vector<128x128xbf16>
    %cst_58 = arith.constant dense<0.000000e+00> : vector<128x128xf32>
    %133 = tpu.matmul %130, %132, %cst_58 {dimension_numbers = #tpu.dot_dimension_numbers<[1], [0], [0], [1], [0, 0, 1, 1], [], []>} : vector<128x128xbf16>, vector<128x128xbf16>, vector<128x128xf32> -> vector<128x128xf32>
    %134 = arith.addf %129, %133 : vector<128x128xf32>
    %135 = vector.extract_strided_slice %26 {offsets = [1, 0], sizes = [127, 128], strides = [1, 1]} : vector<128x128xf32> to vector<127x128xf32>
    %cst_59 = arith.constant 0.000000e+00 : f32
    %136 = vector.broadcast %cst_59 : f32 to vector<1x128xf32>
    %137 = tpu.concatenate %135, %136 in 0 : vector<127x128xf32>, vector<1x128xf32> -> vector<128x128xf32>
    %cst_60 = arith.constant 7.000000e+00 : f32
    %138 = vector.broadcast %cst_60 : f32 to vector<128x1xf32>
    %139 = arith.cmpf olt, %58, %138 : vector<128x1xf32>
    %cst_61 = arith.constant 0.000000e+00 : f32
    %140 = vector.shape_cast %139 : vector<128x1xi1> to vector<128x1xi1>
    %141 = vector.broadcast %140 : vector<128x1xi1> to vector<128x128xi1>
    %142 = vector.broadcast %cst_61 : f32 to vector<128x128xf32>
    %143 = arith.select %141, %137, %142 : vector<128x128xi1>, vector<128x128xf32>
    %144 = arith.truncf %143 : vector<128x128xf32> to vector<128x128xbf16>
    %c5 = arith.constant 5 : index
    %c0_62 = arith.constant 0 : index
    %c0_63 = arith.constant 0 : index
    %145 = vector.load %arg6[%c5, %c0_62, %c0_63] : memref<9x128x128xbf16, #tpu.memory_space<vmem>>, vector<1x128x128xbf16>
    %146 = vector.shape_cast %145 : vector<1x128x128xbf16> to vector<128x128xbf16>
    %cst_64 = arith.constant dense<0.000000e+00> : vector<128x128xf32>
    %147 = tpu.matmul %144, %146, %cst_64 {dimension_numbers = #tpu.dot_dimension_numbers<[1], [0], [0], [1], [0, 0, 1, 1], [], []>} : vector<128x128xbf16>, vector<128x128xbf16>, vector<128x128xf32> -> vector<128x128xf32>
    %148 = arith.addf %134, %147 : vector<128x128xf32>
    %149 = vector.extract_strided_slice %26 {offsets = [7, 0], sizes = [121, 128], strides = [1, 1]} : vector<128x128xf32> to vector<121x128xf32>
    %cst_65 = arith.constant 0.000000e+00 : f32
    %150 = vector.broadcast %cst_65 : f32 to vector<7x128xf32>
    %151 = tpu.concatenate %149, %150 in 0 : vector<121x128xf32>, vector<7x128xf32> -> vector<128x128xf32>
    %cst_66 = arith.constant 7.000000e+00 : f32
    %152 = vector.broadcast %cst_66 : f32 to vector<128x1xf32>
    %153 = arith.cmpf olt, %66, %152 : vector<128x1xf32>
    %cst_67 = arith.constant 1.000000e+00 : f32
    %154 = vector.broadcast %cst_67 : f32 to vector<128x1xf32>
    %155 = arith.cmpf oge, %58, %154 : vector<128x1xf32>
    %156 = arith.andi %153, %155 : vector<128x1xi1>
    %cst_68 = arith.constant 0.000000e+00 : f32
    %157 = vector.shape_cast %156 : vector<128x1xi1> to vector<128x1xi1>
    %158 = vector.broadcast %157 : vector<128x1xi1> to vector<128x128xi1>
    %159 = vector.broadcast %cst_68 : f32 to vector<128x128xf32>
    %160 = arith.select %158, %151, %159 : vector<128x128xi1>, vector<128x128xf32>
    %161 = arith.truncf %160 : vector<128x128xf32> to vector<128x128xbf16>
    %c6 = arith.constant 6 : index
    %c0_69 = arith.constant 0 : index
    %c0_70 = arith.constant 0 : index
    %162 = vector.load %arg6[%c6, %c0_69, %c0_70] : memref<9x128x128xbf16, #tpu.memory_space<vmem>>, vector<1x128x128xbf16>
    %163 = vector.shape_cast %162 : vector<1x128x128xbf16> to vector<128x128xbf16>
    %cst_71 = arith.constant dense<0.000000e+00> : vector<128x128xf32>
    %164 = tpu.matmul %161, %163, %cst_71 {dimension_numbers = #tpu.dot_dimension_numbers<[1], [0], [0], [1], [0, 0, 1, 1], [], []>} : vector<128x128xbf16>, vector<128x128xbf16>, vector<128x128xf32> -> vector<128x128xf32>
    %165 = arith.addf %148, %164 : vector<128x128xf32>
    %166 = vector.extract_strided_slice %26 {offsets = [8, 0], sizes = [120, 128], strides = [1, 1]} : vector<128x128xf32> to vector<120x128xf32>
    %cst_72 = arith.constant 0.000000e+00 : f32
    %167 = vector.broadcast %cst_72 : f32 to vector<8x128xf32>
    %168 = tpu.concatenate %166, %167 in 0 : vector<120x128xf32>, vector<8x128xf32> -> vector<128x128xf32>
    %cst_73 = arith.constant 7.000000e+00 : f32
    %169 = vector.broadcast %cst_73 : f32 to vector<128x1xf32>
    %170 = arith.cmpf olt, %66, %169 : vector<128x1xf32>
    %cst_74 = arith.constant 0.000000e+00 : f32
    %171 = vector.shape_cast %170 : vector<128x1xi1> to vector<128x1xi1>
    %172 = vector.broadcast %171 : vector<128x1xi1> to vector<128x128xi1>
    %173 = vector.broadcast %cst_74 : f32 to vector<128x128xf32>
    %174 = arith.select %172, %168, %173 : vector<128x128xi1>, vector<128x128xf32>
    %175 = arith.truncf %174 : vector<128x128xf32> to vector<128x128xbf16>
    %c7 = arith.constant 7 : index
    %c0_75 = arith.constant 0 : index
    %c0_76 = arith.constant 0 : index
    %176 = vector.load %arg6[%c7, %c0_75, %c0_76] : memref<9x128x128xbf16, #tpu.memory_space<vmem>>, vector<1x128x128xbf16>
    %177 = vector.shape_cast %176 : vector<1x128x128xbf16> to vector<128x128xbf16>
    %cst_77 = arith.constant dense<0.000000e+00> : vector<128x128xf32>
    %178 = tpu.matmul %175, %177, %cst_77 {dimension_numbers = #tpu.dot_dimension_numbers<[1], [0], [0], [1], [0, 0, 1, 1], [], []>} : vector<128x128xbf16>, vector<128x128xbf16>, vector<128x128xf32> -> vector<128x128xf32>
    %179 = arith.addf %165, %178 : vector<128x128xf32>
    %180 = vector.extract_strided_slice %26 {offsets = [9, 0], sizes = [119, 128], strides = [1, 1]} : vector<128x128xf32> to vector<119x128xf32>
    %cst_78 = arith.constant 0.000000e+00 : f32
    %181 = vector.broadcast %cst_78 : f32 to vector<9x128xf32>
    %182 = tpu.concatenate %180, %181 in 0 : vector<119x128xf32>, vector<9x128xf32> -> vector<128x128xf32>
    %cst_79 = arith.constant 7.000000e+00 : f32
    %183 = vector.broadcast %cst_79 : f32 to vector<128x1xf32>
    %184 = arith.cmpf olt, %66, %183 : vector<128x1xf32>
    %cst_80 = arith.constant 7.000000e+00 : f32
    %185 = vector.broadcast %cst_80 : f32 to vector<128x1xf32>
    %186 = arith.cmpf olt, %58, %185 : vector<128x1xf32>
    %187 = arith.andi %184, %186 : vector<128x1xi1>
    %cst_81 = arith.constant 0.000000e+00 : f32
    %188 = vector.shape_cast %187 : vector<128x1xi1> to vector<128x1xi1>
    %189 = vector.broadcast %188 : vector<128x1xi1> to vector<128x128xi1>
    %190 = vector.broadcast %cst_81 : f32 to vector<128x128xf32>
    %191 = arith.select %189, %182, %190 : vector<128x128xi1>, vector<128x128xf32>
    %192 = arith.truncf %191 : vector<128x128xf32> to vector<128x128xbf16>
    %c8 = arith.constant 8 : index
    %c0_82 = arith.constant 0 : index
    %c0_83 = arith.constant 0 : index
    %193 = vector.load %arg6[%c8, %c0_82, %c0_83] : memref<9x128x128xbf16, #tpu.memory_space<vmem>>, vector<1x128x128xbf16>
    %194 = vector.shape_cast %193 : vector<1x128x128xbf16> to vector<128x128xbf16>
    %cst_84 = arith.constant dense<0.000000e+00> : vector<128x128xf32>
    %195 = tpu.matmul %192, %194, %cst_84 {dimension_numbers = #tpu.dot_dimension_numbers<[1], [0], [0], [1], [0, 0, 1, 1], [], []>} : vector<128x128xbf16>, vector<128x128xbf16>, vector<128x128xf32> -> vector<128x128xf32>
    %196 = arith.addf %179, %195 : vector<128x128xf32>
    %c0_85 = arith.constant 0 : index
    %c0_86 = arith.constant 0 : index
    %197 = vector.load %arg7[%c0_85, %c0_86] : memref<1x128xf32, #tpu.memory_space<vmem>>, vector<1x128xf32>
    %c0_87 = arith.constant 0 : index
    %c0_88 = arith.constant 0 : index
    %198 = vector.load %arg8[%c0_87, %c0_88] : memref<1x128xf32, #tpu.memory_space<vmem>>, vector<1x128xf32>
    %cst_89 = arith.constant dense<0.000000e+00> : vector<128xf32>
    %199 = vector.multi_reduction <add>, %196, %cst_89 [0] : vector<128x128xf32> to vector<128xf32>
    %200 = vector.shape_cast %199 : vector<128xf32> to vector<1x128xf32>
    %cst_90 = arith.constant 1.280000e+02 : f32
    %201 = vector.broadcast %cst_90 : f32 to vector<1x128xf32>
    %202 = arith.divf %200, %201 : vector<1x128xf32>
    %203 = vector.broadcast %202 : vector<1x128xf32> to vector<128x128xf32>
    %204 = arith.subf %196, %203 : vector<128x128xf32>
    %205 = arith.mulf %204, %204 : vector<128x128xf32>
    %cst_91 = arith.constant dense<0.000000e+00> : vector<128xf32>
    %206 = vector.multi_reduction <add>, %205, %cst_91 [0] : vector<128x128xf32> to vector<128xf32>
    %207 = vector.shape_cast %206 : vector<128xf32> to vector<1x128xf32>
    %cst_92 = arith.constant 1.280000e+02 : f32
    %208 = vector.broadcast %cst_92 : f32 to vector<1x128xf32>
    %209 = arith.divf %207, %208 : vector<1x128xf32>
    %cst_93 = arith.constant 9.99999974E-6 : f32
    %210 = vector.broadcast %cst_93 : f32 to vector<1x128xf32>
    %211 = arith.addf %209, %210 : vector<1x128xf32>
    %212 = math.rsqrt %211 : vector<1x128xf32>
    %213 = arith.mulf %197, %212 : vector<1x128xf32>
    %214 = vector.broadcast %213 : vector<1x128xf32> to vector<128x128xf32>
    %215 = arith.mulf %204, %214 : vector<128x128xf32>
    %216 = vector.broadcast %198 : vector<1x128xf32> to vector<128x128xf32>
    %217 = arith.addf %215, %216 : vector<128x128xf32>
    %218 = arith.addf %217, %48 : vector<128x128xf32>
    %cst_94 = arith.constant 0.000000e+00 : f32
    %219 = vector.broadcast %cst_94 : f32 to vector<128x128xf32>
    %220 = arith.maximumf %218, %219 : vector<128x128xf32>
    %c0_95 = arith.constant 0 : index
    %c0_96 = arith.constant 0 : index
    %221 = vector.load %arg9[%c0_95, %c0_96] : memref<128x128xf32, #tpu.memory_space<vmem>>, vector<128x128xf32>
    tpu.vector_store %arg9[%c0_95, %c0_96], %220 {strides = array<i32>} : memref<128x128xf32, #tpu.memory_space<vmem>>, vector<128x128xf32>,
    return
  }
}

</mosaic_0001>

<llo_original>
// kernel: downsample_block_forward.1
$region0: #{downsample_block_forward.1}
  #allocation0 [shape = 'u32[]', space=smem, size = 0x4, offset = 0x4, fixed_abs, tag = 'smem constant byte address 0x4 - core index']
  #allocation1 [shape = 'u32[144,128]{1,0:T(1,128)}', space=vmem, size = 0x12000, scoped, tag = 'internal scratch']
  %s0 = inlined_call_operand.hbm [shape: bf16[128,36], index: 0, kind: input, shape index: {}]
  %s1 = inlined_call_operand.hbm [shape: bf16[36,256], index: 1, kind: input, shape index: {}]
  %s2 = inlined_call_operand.hbm [shape: f32[1,128], index: 2, kind: input, shape index: {}]
  %s3 = inlined_call_operand.hbm [shape: f32[1,128], index: 3, kind: input, shape index: {}]
  %s4 = inlined_call_operand.hbm [shape: f32[1,128], index: 4, kind: input, shape index: {}]
  %s5 = inlined_call_operand.hbm [shape: f32[1,128], index: 5, kind: input, shape index: {}]
  %s6 = inlined_call_operand.hbm [shape: bf16[9,128,128], index: 6, kind: input, shape index: {}]
  %s7 = inlined_call_operand.hbm [shape: f32[1,128], index: 7, kind: input, shape index: {}]
  %s8 = inlined_call_operand.hbm [shape: f32[1,128], index: 8, kind: input, shape index: {}]
  %s9 = inlined_call_operand.hbm [shape: f32[128,128], index: 9, kind: output, shape index: {}]
  %s10 = sld [smem:[#allocation0]]
  $region82: #{downsample_block_forward.1} parent=0
    _
  %s12 = ssub.s32 1, %s10
  %s13 = scalar_select 0, %s12, %s10
  $region1: #{downsample_block_forward.1} parent=0
    #allocation2 [shape = 'u8[32768]{0}', space=vmem, size = 0x8000, scoped, tag = 'input window, operand 0, single buffered']
    #allocation3 [shape = 's32[1]{0}', space=sflag, size = 0x4, scoped, tag = 'scoped memory for downsample_block_forward.1']
    #allocation4 [shape = 's32[1]{0}', space=sflag, size = 0x4, scoped, tag = 'scoped memory for downsample_block_forward.1']
    #allocation5 [shape = 'u8[20480]{0}', space=vmem, size = 0x5000, scoped, tag = 'input window, operand 1, single buffered']
    #allocation6 [shape = 's32[1]{0}', space=sflag, size = 0x4, scoped, tag = 'scoped memory for downsample_block_forward.1']
    #allocation7 [shape = 'u8[512]{0}', space=vmem, size = 0x400, scoped, tag = 'input window, operand 2, single buffered']
    #allocation8 [shape = 'u8[512]{0}', space=vmem, size = 0x400, scoped, tag = 'input window, operand 3, single buffered']
    #allocation9 [shape = 's32[1]{0}', space=sflag, size = 0x4, scoped, tag = 'scoped memory for downsample_block_forward.1']
    #allocation10 [shape = 'u8[512]{0}', space=vmem, size = 0x400, scoped, tag = 'input window, operand 4, single buffered']
    #allocation11 [shape = 'u8[512]{0}', space=vmem, size = 0x400, scoped, tag = 'input window, operand 5, single buffered']
    #allocation12 [shape = 's32[1]{0}', space=sflag, size = 0x4, scoped, tag = 'scoped memory for downsample_block_forward.1']
    #allocation13 [shape = 'u8[294912]{0}', space=vmem, size = 0x48000, scoped, tag = 'input window, operand 6, single buffered']
    #allocation14 [shape = 'u8[512]{0}', space=vmem, size = 0x400, scoped, tag = 'input window, operand 7, single buffered']
    #allocation15 [shape = 's32[1]{0}', space=sflag, size = 0x4, scoped, tag = 'scoped memory for downsample_block_forward.1']
    #allocation16 [shape = 'u8[512]{0}', space=vmem, size = 0x400, scoped, tag = 'input window, operand 8, single buffered']
    #allocation17 [shape = 'u8[65536]{0}', space=vmem, size = 0x10000, scoped, tag = 'output window, operand 0, single buffered']
    %14 = vsyncpa [#allocation3], 0
    %15 = vsyncpa [#allocation6], 0
    %16 = vsyncpa [#allocation9], 0
    %17 = vsyncpa [#allocation12], 0
    %18 = vsyncpa [#allocation15], 0
    %19 = vsyncpa [#allocation4], 0
    // Predicated region
    $region2: #{downsample_block_forward.1} parent=1 // pred_check
      _
    $region3: #{downsample_block_forward.1} parent=1 // pred_check_branch
      %21 = sbr.rel (0) target = $region5
    $region4: #{downsample_block_forward.1} parent=1 // pred_region
      %s23 = ssub.s32 1024, 1024
      %24 = vsyncadd [#allocation3], %s23
      %s25 = sshll.u32 [#allocation2], 4
      %s26 = int_to_ptr.vmem [resolvable:$true] %s25
      %31 = dma.hbm_to_vmem [thread:$0]  %s0, 1024, %s26, [#allocation3], 64, 64, 4
    $region5: #{downsample_block_forward.1} parent=1 // pred_fallthru
      _
    // Predicated region
    $region6: #{downsample_block_forward.1} parent=1 // pred_check
      _
    $region7: #{downsample_block_forward.1} parent=1 // pred_check_branch
      %33 = sbr.rel (0) target = $region9
    $region8: #{downsample_block_forward.1} parent=1 // pred_region
      %s35 = ssub.s32 640, 640
      %36 = vsyncadd [#allocation6], %s35
      %s37 = sshll.u32 [#allocation5], 4
      %s38 = int_to_ptr.vmem [resolvable:$true] %s37
      %43 = dma.hbm_to_vmem [thread:$0]  %s1, 640, %s38, [#allocation6], 128, 128, 8
    $region9: #{downsample_block_forward.1} parent=1 // pred_fallthru
      _
    // Predicated region
    $region10: #{downsample_block_forward.1} parent=1 // pred_check
      _
    $region11: #{downsample_block_forward.1} parent=1 // pred_check_branch
      %45 = sbr.rel (0) target = $region13
    $region12: #{downsample_block_forward.1} parent=1 // pred_region
      %s47 = ssub.s32 16, 16
      %48 = vsyncadd [#allocation6], %s47
      %s50 = sshll.u32 [#allocation7], 4
      %s51 = int_to_ptr.vmem [resolvable:$true] %s50
      %53 = dma.hbm_to_vmem [thread:$0]  %s2, 16, %s51, [#allocation6]
    $region13: #{downsample_block_forward.1} parent=1 // pred_fallthru
      _
    // Predicated region
    $region14: #{downsample_block_forward.1} parent=1 // pred_check
      _
    $region15: #{downsample_block_forward.1} parent=1 // pred_check_branch
      %55 = sbr.rel (0) target = $region17
    $region16: #{downsample_block_forward.1} parent=1 // pred_region
      %s57 = ssub.s32 16, 16
      %58 = vsyncadd [#allocation9], %s57
      %s60 = sshll.u32 [#allocation8], 4
      %s61 = int_to_ptr.vmem [resolvable:$true] %s60
      %63 = dma.hbm_to_vmem [thread:$0]  %s3, 16, %s61, [#allocation9]
    $region17: #{downsample_block_forward.1} parent=1 // pred_fallthru
      _
    // Predicated region
    $region18: #{downsample_block_forward.1} parent=1 // pred_check
      _
    $region19: #{downsample_block_forward.1} parent=1 // pred_check_branch
      %65 = sbr.rel (0) target = $region21
    $region20: #{downsample_block_forward.1} parent=1 // pred_region
      %s67 = ssub.s32 16, 16
      %68 = vsyncadd [#allocation9], %s67
      %s70 = sshll.u32 [#allocation10], 4
      %s71 = int_to_ptr.vmem [resolvable:$true] %s70
      %73 = dma.hbm_to_vmem [thread:$0]  %s4, 16, %s71, [#allocation9]
    $region21: #{downsample_block_forward.1} parent=1 // pred_fallthru
      _
    // Predicated region
    $region22: #{downsample_block_forward.1} parent=1 // pred_check
      _
    $region23: #{downsample_block_forward.1} parent=1 // pred_check_branch
      %75 = sbr.rel (0) target = $region25
    $region24: #{downsample_block_forward.1} parent=1 // pred_region
      %s77 = ssub.s32 16, 16
      %78 = vsyncadd [#allocation12], %s77
      %s80 = sshll.u32 [#allocation11], 4
      %s81 = int_to_ptr.vmem [resolvable:$true] %s80
      %83 = dma.hbm_to_vmem [thread:$0]  %s5, 16, %s81, [#allocation12]
    $region25: #{downsample_block_forward.1} parent=1 // pred_fallthru
      _
    // Predicated region
    $region26: #{downsample_block_forward.1} parent=1 // pred_check
      _
    $region27: #{downsample_block_forward.1} parent=1 // pred_check_branch
      %85 = sbr.rel (0) target = $region29
    $region28: #{downsample_block_forward.1} parent=1 // pred_region
      %s87 = ssub.s32 9216, 9216
      %88 = vsyncadd [#allocation12], %s87
      %s89 = sshll.u32 [#allocation13], 4
      %s90 = int_to_ptr.vmem [resolvable:$true] %s89
      %95 = dma.hbm_to_vmem [thread:$0]  %s6, 9216, %s90, [#allocation12], 64, 64, 4
    $region29: #{downsample_block_forward.1} parent=1 // pred_fallthru
      _
    // Predicated region
    $region30: #{downsample_block_forward.1} parent=1 // pred_check
      _
    $region31: #{downsample_block_forward.1} parent=1 // pred_check_branch
      %97 = sbr.rel (0) target = $region33
    $region32: #{downsample_block_forward.1} parent=1 // pred_region
      %s99 = ssub.s32 16, 16
      %100 = vsyncadd [#allocation15], %s99
      %s102 = sshll.u32 [#allocation14], 4
      %s103 = int_to_ptr.vmem [resolvable:$true] %s102
      %105 = dma.hbm_to_vmem [thread:$0]  %s7, 16, %s103, [#allocation15]
    $region33: #{downsample_block_forward.1} parent=1 // pred_fallthru
      _
    // Predicated region
    $region34: #{downsample_block_forward.1} parent=1 // pred_check
      _
    $region35: #{downsample_block_forward.1} parent=1 // pred_check_branch
      %107 = sbr.rel (0) target = $region37
    $region36: #{downsample_block_forward.1} parent=1 // pred_region
      %s109 = ssub.s32 16, 16
      %110 = vsyncadd [#allocation15], %s109
      %s112 = sshll.u32 [#allocation16], 4
      %s113 = int_to_ptr.vmem [resolvable:$true] %s112
      %115 = dma.hbm_to_vmem [thread:$0]  %s8, 16, %s113, [#allocation15]
    $region37: #{downsample_block_forward.1} parent=1 // pred_fallthru
      _
    // Predicated region
    $region38: #{downsample_block_forward.1} parent=1 // pred_check
      _
    $region39: #{downsample_block_forward.1} parent=1 // pred_check_branch
      %117 = sbr.rel (0) target = $region41
    $region40: #{downsample_block_forward.1} parent=1 // pred_region
      %118 = dma.done [#allocation3], 1024
    $region41: #{downsample_block_forward.1} parent=1 // pred_fallthru
      _
    // Predicated region
    $region42: #{downsample_block_forward.1} parent=1 // pred_check
      _
    $region43: #{downsample_block_forward.1} parent=1 // pred_check_branch
      %120 = sbr.rel (0) target = $region45
    $region44: #{downsample_block_forward.1} parent=1 // pred_region
      %121 = dma.done [#allocation6], 640
    $region45: #{downsample_block_forward.1} parent=1 // pred_fallthru
      _
    // Predicated region
    $region46: #{downsample_block_forward.1} parent=1 // pred_check
      _
    $region47: #{downsample_block_forward.1} parent=1 // pred_check_branch
      %123 = sbr.rel (0) target = $region49
    $region48: #{downsample_block_forward.1} parent=1 // pred_region
      %124 = dma.done [#allocation6], 16
    $region49: #{downsample_block_forward.1} parent=1 // pred_fallthru
      _
    // Predicated region
    $region50: #{downsample_block_forward.1} parent=1 // pred_check
      _
    $region51: #{downsample_block_forward.1} parent=1 // pred_check_branch
      %126 = sbr.rel (0) target = $region53
    $region52: #{downsample_block_forward.1} parent=1 // pred_region
      %127 = dma.done [#allocation9], 16
    $region53: #{downsample_block_forward.1} parent=1 // pred_fallthru
      _
    // Predicated region
    $region54: #{downsample_block_forward.1} parent=1 // pred_check
      _
    $region55: #{downsample_block_forward.1} parent=1 // pred_check_branch
      %129 = sbr.rel (0) target = $region57
    $region56: #{downsample_block_forward.1} parent=1 // pred_region
      %130 = dma.done [#allocation9], 16
    $region57: #{downsample_block_forward.1} parent=1 // pred_fallthru
      _
    // Predicated region
    $region58: #{downsample_block_forward.1} parent=1 // pred_check
      _
    $region59: #{downsample_block_forward.1} parent=1 // pred_check_branch
      %132 = sbr.rel (0) target = $region61
    $region60: #{downsample_block_forward.1} parent=1 // pred_region
      %133 = dma.done [#allocation12], 16
    $region61: #{downsample_block_forward.1} parent=1 // pred_fallthru
      _
    // Predicated region
    $region62: #{downsample_block_forward.1} parent=1 // pred_check
      _
    $region63: #{downsample_block_forward.1} parent=1 // pred_check_branch
      %135 = sbr.rel (0) target = $region65
    $region64: #{downsample_block_forward.1} parent=1 // pred_region
      %136 = dma.done [#allocation12], 9216
    $region65: #{downsample_block_forward.1} parent=1 // pred_fallthru
      _
    // Predicated region
    $region66: #{downsample_block_forward.1} parent=1 // pred_check
      _
    $region67: #{downsample_block_forward.1} parent=1 // pred_check_branch
      %138 = sbr.rel (0) target = $region69
    $region68: #{downsample_block_forward.1} parent=1 // pred_region
      %139 = dma.done [#allocation15], 16
    $region69: #{downsample_block_forward.1} parent=1 // pred_fallthru
      _
    // Predicated region
    $region70: #{downsample_block_forward.1} parent=1 // pred_check
      _
    $region71: #{downsample_block_forward.1} parent=1 // pred_check_branch
      %141 = sbr.rel (0) target = $region73
    $region72: #{downsample_block_forward.1} parent=1 // pred_region
      %142 = dma.done [#allocation15], 16
    $region73: #{downsample_block_forward.1} parent=1 // pred_fallthru
      _
    %v144 = vld [vmem:[#allocation2] sm:$0xf]
    %v145 = vld [vmem:[#allocation2 + $0x4] sm:$0xf]
    %v146 = vld [vmem:[#allocation2 + $0x8] sm:$0xf]
    %v147 = vld [vmem:[#allocation2 + $0xc] sm:$0xf]
    %v148 = vld [vmem:[#allocation2 + $0x10] sm:$0xf]
    %v149 = vld [vmem:[#allocation2 + $0x14] sm:$0xf]
    %v150 = vld [vmem:[#allocation2 + $0x18] sm:$0xf]
    %v151 = vld [vmem:[#allocation2 + $0x1c] sm:$0xf]
    %v152 = vld [vmem:[#allocation2 + $0x20] sm:$0xf]
    %v153 = vld [vmem:[#allocation2 + $0x24] sm:$0xf]
    %v154 = vld [vmem:[#allocation2 + $0x28] sm:$0xf]
    %v155 = vld [vmem:[#allocation2 + $0x2c] sm:$0xf]
    %v156 = vld [vmem:[#allocation2 + $0x30] sm:$0xf]
    %v157 = vld [vmem:[#allocation2 + $0x34] sm:$0xf]
    %v158 = vld [vmem:[#allocation2 + $0x38] sm:$0xf]
    %v159 = vld [vmem:[#allocation2 + $0x3c] sm:$0xf]
    %v160 = vld [vmem:[#allocation5] sm:$0xff]
    %v161 = vld [vmem:[#allocation5 + $0x8] sm:$0xff]
    %v162 = vld [vmem:[#allocation5 + $0x10] sm:$0xff]
    %v163 = vld [vmem:[#allocation5 + $0x18] sm:$0xff]
    %v164 = vld [vmem:[#allocation5 + $0x20] sm:$0x33]
    %v181 = vunpack.c.l.b16 %v144
    %v182 = vunpack.c.l.b16 %v145
    %v183 = vunpack.c.l.b16 %v146
    %v184 = vunpack.c.l.b16 %v147
    %v185 = vunpack.c.l.b16 %v148
    %v186 = vunpack.c.l.b16 %v149
    %v187 = vunpack.c.l.b16 %v150
    %v188 = vunpack.c.l.b16 %v151
    %v189 = vunpack.c.l.b16 %v152
    %v190 = vunpack.c.l.b16 %v153
    %v191 = vunpack.c.l.b16 %v154
    %v192 = vunpack.c.l.b16 %v155
    %v193 = vunpack.c.l.b16 %v156
    %v194 = vunpack.c.l.b16 %v157
    %v195 = vunpack.c.l.b16 %v158
    %v196 = vunpack.c.l.b16 %v159
    %v197 = vpack.c.b16 %v182, %v181
    %v198 = vpack.c.b16 %v184, %v183
    %v199 = vpack.c.b16 %v186, %v185
    %v200 = vpack.c.b16 %v188, %v187
    %v201 = vpack.c.b16 %v190, %v189
    %v202 = vpack.c.b16 %v192, %v191
    %v203 = vpack.c.b16 %v194, %v193
    %v204 = vpack.c.b16 %v196, %v195
    %v210 = vunpack.c.l.b16 %v160
    %v211 = vunpack.c.h.b16 %v160
    %v212 = vunpack.c.l.b16 %v161
    %v213 = vunpack.c.h.b16 %v161
    %v214 = vunpack.c.l.b16 %v162
    %v215 = vunpack.c.h.b16 %v162
    %v216 = vunpack.c.l.b16 %v163
    %v217 = vunpack.c.h.b16 %v163
    %v218 = vunpack.c.l.b16 %v164
    %v219 = vunpack.c.h.b16 %v164
    %v220 = vpack.c.b16 %v212, %v210
    %v221 = vpack.c.b16 %v213, %v211
    %v222 = vpack.c.b16 %v216, %v214
    %v223 = vpack.c.b16 %v217, %v215
    %v224 = vpack.c.b16 %v218, %v218
    %v225 = vpack.c.b16 %v219, %v219
    %vm230 = vcmask 293888
    %v232 = vsel %vm230, %v197, 0
    %v235 = vsel %vm230, %v198, 0
    %v238 = vsel %vm230, %v199, 0
    %v241 = vsel %vm230, %v200, 0
    %v244 = vsel %vm230, %v201, 0
    %v247 = vsel %vm230, %v202, 0
    %v250 = vsel %vm230, %v203, 0
    %v253 = vsel %vm230, %v204, 0
    %vm255 = vcmask 1041408
    %v257 = vsel %vm255, %v224, 0
    %v260 = vsel %vm255, %v225, 0
    %262 = vmatprep.subr.bf16.mxu0 %v221
    %263 = vmatpush1.bf16.msra.mxu0 %v220
    %264 = vmatprep.subr.bf16.mxu0 %v223
    %265 = vmatpush1.bf16.msra.mxu0 %v222
    %266 = vmatprep.subr.bf16.mxu0 %v260
    %267 = vmatpush1.bf16.msra.mxu0 %v257
    %268 = vmatprep.subr.bf16.mxu0 0
    %269 = vmatpush1.bf16.msra.mxu0 0
    %270 = vmatprep.subr.bf16.mxu0 0
    %271 = vmatpush1.bf16.msra.mxu0 0
    %272 = vmatprep.subr.bf16.mxu0 0
    %273 = vmatpush1.bf16.msra.mxu0 0
    %274 = vmatprep.subr.bf16.mxu0 0
    %275 = vmatpush1.bf16.msra.mxu0 0
    %276 = vmatprep.subr.bf16.mxu0 0
    %277 = vmatpush1.bf16.msra.mxu0 0
    %278 = vmatprep.subr.bf16.mxu0 0
    %279 = vmatpush1.bf16.msra.mxu0 0
    %280 = vmatprep.subr.bf16.mxu0 0
    %281 = vmatpush1.bf16.msra.mxu0 0
    %282 = vmatprep.subr.bf16.mxu0 0
    %283 = vmatpush1.bf16.msra.mxu0 0
    %284 = vmatprep.subr.bf16.mxu0 0
    %285 = vmatpush1.bf16.msra.mxu0 0
    %286 = vmatprep.subr.bf16.mxu0 0
    %287 = vmatpush1.bf16.msra.mxu0 0
    %288 = vmatprep.subr.bf16.mxu0 0
    %289 = vmatpush1.bf16.msra.mxu0 0
    %290 = vmatprep.subr.bf16.mxu0 0
    %291 = vmatpush1.bf16.msra.mxu0 0
    %292 = vmatprep.subr.bf16.mxu0 0
    %293 = vmatpush1.bf16.msra.mxu0 0
    %294 = vmatprep.mubr.bf16.mxu0 0
    %295 = vmatmul.mubr.bf16.gmra.mrb[0].mxu0 %v232
    %v296 = vpop.f32.mrb[0].mxu0
    %v297 = vadd.f32 0.0, %v296
    %v298 = vpop.f32.mrb[0].mxu0
    %v299 = vadd.f32 0.0, %v298
    %v300 = vpop.f32.mrb[0].mxu0
    %v301 = vadd.f32 0.0, %v300
    %v302 = vpop.f32.mrb[0].mxu0
    %v303 = vadd.f32 0.0, %v302
    %304 = vmatprep.mubr.bf16.mxu0 0
    %305 = vmatmul.mubr.bf16.gmra.mrb[0].mxu0 %v235
    %v306 = vpop.f32.mrb[0].mxu0
    %v307 = vadd.f32 0.0, %v306
    %v308 = vpop.f32.mrb[0].mxu0
    %v309 = vadd.f32 0.0, %v308
    %v310 = vpop.f32.mrb[0].mxu0
    %v311 = vadd.f32 0.0, %v310
    %v312 = vpop.f32.mrb[0].mxu0
    %v313 = vadd.f32 0.0, %v312
    %314 = vmatprep.mubr.bf16.mxu0 0
    %315 = vmatmul.mubr.bf16.gmra.mrb[0].mxu0 %v238
    %v316 = vpop.f32.mrb[0].mxu0
    %v317 = vadd.f32 0.0, %v316
    %v318 = vpop.f32.mrb[0].mxu0
    %v319 = vadd.f32 0.0, %v318
    %v320 = vpop.f32.mrb[0].mxu0
    %v321 = vadd.f32 0.0, %v320
    %v322 = vpop.f32.mrb[0].mxu0
    %v323 = vadd.f32 0.0, %v322
    %324 = vmatprep.mubr.bf16.mxu0 0
    %325 = vmatmul.mubr.bf16.gmra.mrb[0].mxu0 %v241
    %v326 = vpop.f32.mrb[0].mxu0
    %v327 = vadd.f32 0.0, %v326
    %v328 = vpop.f32.mrb[0].mxu0
    %v329 = vadd.f32 0.0, %v328
    %v330 = vpop.f32.mrb[0].mxu0
    %v331 = vadd.f32 0.0, %v330
    %v332 = vpop.f32.mrb[0].mxu0
    %v333 = vadd.f32 0.0, %v332
    %334 = vmatprep.mubr.bf16.mxu0 0
    %335 = vmatmul.mubr.bf16.gmra.mrb[0].mxu0 %v244
    %v336 = vpop.f32.mrb[0].mxu0
    %v337 = vadd.f32 0.0, %v336
    %v338 = vpop.f32.mrb[0].mxu0
    %v339 = vadd.f32 0.0, %v338
    %v340 = vpop.f32.mrb[0].mxu0
    %v341 = vadd.f32 0.0, %v340
    %v342 = vpop.f32.mrb[0].mxu0
    %v343 = vadd.f32 0.0, %v342
    %344 = vmatprep.mubr.bf16.mxu0 0
    %345 = vmatmul.mubr.bf16.gmra.mrb[0].mxu0 %v247
    %v346 = vpop.f32.mrb[0].mxu0
    %v347 = vadd.f32 0.0, %v346
    %v348 = vpop.f32.mrb[0].mxu0
    %v349 = vadd.f32 0.0, %v348
    %v350 = vpop.f32.mrb[0].mxu0
    %v351 = vadd.f32 0.0, %v350
    %v352 = vpop.f32.mrb[0].mxu0
    %v353 = vadd.f32 0.0, %v352
    %354 = vmatprep.mubr.bf16.mxu0 0
    %355 = vmatmul.mubr.bf16.gmra.mrb[0].mxu0 %v250
    %v356 = vpop.f32.mrb[0].mxu0
    %v357 = vadd.f32 0.0, %v356
    %v358 = vpop.f32.mrb[0].mxu0
    %v359 = vadd.f32 0.0, %v358
    %v360 = vpop.f32.mrb[0].mxu0
    %v361 = vadd.f32 0.0, %v360
    %v362 = vpop.f32.mrb[0].mxu0
    %v363 = vadd.f32 0.0, %v362
    %364 = vmatprep.mubr.bf16.mxu0 0
    %365 = vmatmul.mubr.bf16.gmra.mrb[0].mxu0 %v253
    %v366 = vpop.f32.mrb[0].mxu0
    %v367 = vadd.f32 0.0, %v366
    %v368 = vpop.f32.mrb[0].mxu0
    %v369 = vadd.f32 0.0, %v368
    %v370 = vpop.f32.mrb[0].mxu0
    %v371 = vadd.f32 0.0, %v370
    %v372 = vpop.f32.mrb[0].mxu0
    %v373 = vadd.f32 0.0, %v372
    %374 = vdwg.mxu0
    %v375 = vld [vmem:[#allocation7] sm:$0x1]
    %v376 = vld [vmem:[#allocation8] sm:$0x1]
    %v377 = vadd.f32 %v297, %v301
    %v378 = vadd.f32 %v377, %v307
    %v379 = vadd.f32 %v378, %v311
    %v380 = vadd.f32 %v379, %v317
    %v381 = vadd.f32 %v380, %v321
    %v382 = vadd.f32 %v381, %v327
    %v383 = vadd.f32 %v382, %v331
    %v384 = vadd.f32 %v383, %v337
    %v385 = vadd.f32 %v384, %v341
    %v386 = vadd.f32 %v385, %v347
    %v387 = vadd.f32 %v386, %v351
    %v388 = vadd.f32 %v387, %v357
    %v389 = vadd.f32 %v388, %v361
    %v390 = vadd.f32 %v389, %v367
    %v391 = vadd.f32 %v390, %v371
    %v392 = vrot.slane %v391, 4
    %v393 = vadd.f32 %v391, %v392
    %v394 = vrot.slane %v393, 2
    %v395 = vadd.f32 %v393, %v394
    %v396 = vrot.slane %v395, 1
    %v397 = vadd.f32 %v395, %v396
    %v398 = vrcp.pop 128.0
    %v399 = vmul.f32 %v397, %v398
    %v400 = vsub.f32 %v297, %v399
    %v401 = vsub.f32 %v301, %v399
    %v402 = vsub.f32 %v307, %v399
    %v403 = vsub.f32 %v311, %v399
    %v404 = vsub.f32 %v317, %v399
    %v405 = vsub.f32 %v321, %v399
    %v406 = vsub.f32 %v327, %v399
    %v407 = vsub.f32 %v331, %v399
    %v408 = vsub.f32 %v337, %v399
    %v409 = vsub.f32 %v341, %v399
    %v410 = vsub.f32 %v347, %v399
    %v411 = vsub.f32 %v351, %v399
    %v412 = vsub.f32 %v357, %v399
    %v413 = vsub.f32 %v361, %v399
    %v414 = vsub.f32 %v367, %v399
    %v415 = vsub.f32 %v371, %v399
    %v416 = vmul.f32 %v400, %v400
    %v417 = vmul.f32 %v401, %v401
    %v418 = vmul.f32 %v402, %v402
    %v419 = vmul.f32 %v403, %v403
    %v420 = vmul.f32 %v404, %v404
    %v421 = vmul.f32 %v405, %v405
    %v422 = vmul.f32 %v406, %v406
    %v423 = vmul.f32 %v407, %v407
    %v424 = vmul.f32 %v408, %v408
    %v425 = vmul.f32 %v409, %v409
    %v426 = vmul.f32 %v410, %v410
    %v427 = vmul.f32 %v411, %v411
    %v428 = vmul.f32 %v412, %v412
    %v429 = vmul.f32 %v413, %v413
    %v430 = vmul.f32 %v414, %v414
    %v431 = vmul.f32 %v415, %v415
    %v432 = vadd.f32 %v416, %v417
    %v433 = vadd.f32 %v432, %v418
    %v434 = vadd.f32 %v433, %v419
    %v435 = vadd.f32 %v434, %v420
    %v436 = vadd.f32 %v435, %v421
    %v437 = vadd.f32 %v436, %v422
    %v438 = vadd.f32 %v437, %v423
    %v439 = vadd.f32 %v438, %v424
    %v440 = vadd.f32 %v439, %v425
    %v441 = vadd.f32 %v440, %v426
    %v442 = vadd.f32 %v441, %v427
    %v443 = vadd.f32 %v442, %v428
    %v444 = vadd.f32 %v443, %v429
    %v445 = vadd.f32 %v444, %v430
    %v446 = vadd.f32 %v445, %v431
    %v447 = vrot.slane %v446, 4
    %v448 = vadd.f32 %v446, %v447
    %v449 = vrot.slane %v448, 2
    %v450 = vadd.f32 %v448, %v449
    %v451 = vrot.slane %v450, 1
    %v452 = vadd.f32 %v450, %v451
    %v453 = vmul.f32 %v452, %v398
    %v454 = vadd.f32 %v453, 1e-05
    %v455 = vrsqrt.pop %v454
    %v456 = vmul.f32 %v375, %v455
    %v458 = vlaneseq
    %v459 = vshrl.u32 %v458, 7
    %v460 = vsub.s32 0, %v459
    %v461 = vrot.slane %v456, %v460
    %v463 = vmul.f32 %v400, %v461
    %v464 = vmul.f32 %v401, %v461
    %v465 = vmul.f32 %v402, %v461
    %v466 = vmul.f32 %v403, %v461
    %v467 = vmul.f32 %v404, %v461
    %v468 = vmul.f32 %v405, %v461
    %v469 = vmul.f32 %v406, %v461
    %v470 = vmul.f32 %v407, %v461
    %v471 = vmul.f32 %v408, %v461
    %v472 = vmul.f32 %v409, %v461
    %v473 = vmul.f32 %v410, %v461
    %v474 = vmul.f32 %v411, %v461
    %v475 = vmul.f32 %v412, %v461
    %v476 = vmul.f32 %v413, %v461
    %v477 = vmul.f32 %v414, %v461
    %v478 = vmul.f32 %v415, %v461
    %v480 = vlaneseq
    %v481 = vshrl.u32 %v480, 7
    %v482 = vsub.s32 0, %v481
    %v483 = vrot.slane %v376, %v482
    %v485 = vadd.f32 %v463, %v483
    %v486 = vadd.f32 %v464, %v483
    %v487 = vadd.f32 %v465, %v483
    %v488 = vadd.f32 %v466, %v483
    %v489 = vadd.f32 %v467, %v483
    %v490 = vadd.f32 %v468, %v483
    %v491 = vadd.f32 %v469, %v483
    %v492 = vadd.f32 %v470, %v483
    %v493 = vadd.f32 %v471, %v483
    %v494 = vadd.f32 %v472, %v483
    %v495 = vadd.f32 %v473, %v483
    %v496 = vadd.f32 %v474, %v483
    %v497 = vadd.f32 %v475, %v483
    %v498 = vadd.f32 %v476, %v483
    %v499 = vadd.f32 %v477, %v483
    %v500 = vadd.f32 %v478, %v483
    %v501 = vmax.f32 %v485, 0.0
    %v502 = vmax.f32 %v486, 0.0
    %v503 = vmax.f32 %v487, 0.0
    %v504 = vmax.f32 %v488, 0.0
    %v505 = vmax.f32 %v489, 0.0
    %v506 = vmax.f32 %v490, 0.0
    %v507 = vmax.f32 %v491, 0.0
    %v508 = vmax.f32 %v492, 0.0
    %v509 = vmax.f32 %v493, 0.0
    %v510 = vmax.f32 %v494, 0.0
    %v511 = vmax.f32 %v495, 0.0
    %v512 = vmax.f32 %v496, 0.0
    %v513 = vmax.f32 %v497, 0.0
    %v514 = vmax.f32 %v498, 0.0
    %v515 = vmax.f32 %v499, 0.0
    %v516 = vmax.f32 %v500, 0.0
    %v517 = vld [vmem:[#allocation10] sm:$0x1]
    %v518 = vld [vmem:[#allocation11] sm:$0x1]
    %v519 = vadd.f32 %v299, %v303
    %v520 = vadd.f32 %v519, %v309
    %v521 = vadd.f32 %v520, %v313
    %v522 = vadd.f32 %v521, %v319
    %v523 = vadd.f32 %v522, %v323
    %v524 = vadd.f32 %v523, %v329
    %v525 = vadd.f32 %v524, %v333
    %v526 = vadd.f32 %v525, %v339
    %v527 = vadd.f32 %v526, %v343
    %v528 = vadd.f32 %v527, %v349
    %v529 = vadd.f32 %v528, %v353
    %v530 = vadd.f32 %v529, %v359
    %v531 = vadd.f32 %v530, %v363
    %v532 = vadd.f32 %v531, %v369
    %v533 = vadd.f32 %v532, %v373
    %v534 = vrot.slane %v533, 4
    %v535 = vadd.f32 %v533, %v534
    %v536 = vrot.slane %v535, 2
    %v537 = vadd.f32 %v535, %v536
    %v538 = vrot.slane %v537, 1
    %v539 = vadd.f32 %v537, %v538
    %v540 = vmul.f32 %v539, %v398
    %v541 = vsub.f32 %v299, %v540
    %v542 = vsub.f32 %v303, %v540
    %v543 = vsub.f32 %v309, %v540
    %v544 = vsub.f32 %v313, %v540
    %v545 = vsub.f32 %v319, %v540
    %v546 = vsub.f32 %v323, %v540
    %v547 = vsub.f32 %v329, %v540
    %v548 = vsub.f32 %v333, %v540
    %v549 = vsub.f32 %v339, %v540
    %v550 = vsub.f32 %v343, %v540
    %v551 = vsub.f32 %v349, %v540
    %v552 = vsub.f32 %v353, %v540
    %v553 = vsub.f32 %v359, %v540
    %v554 = vsub.f32 %v363, %v540
    %v555 = vsub.f32 %v369, %v540
    %v556 = vsub.f32 %v373, %v540
    %v557 = vmul.f32 %v541, %v541
    %v558 = vmul.f32 %v542, %v542
    %v559 = vmul.f32 %v543, %v543
    %v560 = vmul.f32 %v544, %v544
    %v561 = vmul.f32 %v545, %v545
    %v562 = vmul.f32 %v546, %v546
    %v563 = vmul.f32 %v547, %v547
    %v564 = vmul.f32 %v548, %v548
    %v565 = vmul.f32 %v549, %v549
    %v566 = vmul.f32 %v550, %v550
    %v567 = vmul.f32 %v551, %v551
    %v568 = vmul.f32 %v552, %v552
    %v569 = vmul.f32 %v553, %v553
    %v570 = vmul.f32 %v554, %v554
    %v571 = vmul.f32 %v555, %v555
    %v572 = vmul.f32 %v556, %v556
    %v573 = vadd.f32 %v557, %v558
    %v574 = vadd.f32 %v573, %v559
    %v575 = vadd.f32 %v574, %v560
    %v576 = vadd.f32 %v575, %v561
    %v577 = vadd.f32 %v576, %v562
    %v578 = vadd.f32 %v577, %v563
    %v579 = vadd.f32 %v578, %v564
    %v580 = vadd.f32 %v579, %v565
    %v581 = vadd.f32 %v580, %v566
    %v582 = vadd.f32 %v581, %v567
    %v583 = vadd.f32 %v582, %v568
    %v584 = vadd.f32 %v583, %v569
    %v585 = vadd.f32 %v584, %v570
    %v586 = vadd.f32 %v585, %v571
    %v587 = vadd.f32 %v586, %v572
    %v588 = vrot.slane %v587, 4
    %v589 = vadd.f32 %v587, %v588
    %v590 = vrot.slane %v589, 2
    %v591 = vadd.f32 %v589, %v590
    %v592 = vrot.slane %v591, 1
    %v593 = vadd.f32 %v591, %v592
    %v594 = vmul.f32 %v593, %v398
    %v595 = vadd.f32 %v594, 1e-05
    %v596 = vrsqrt.pop %v595
    %v597 = vmul.f32 %v517, %v596
    %v599 = vlaneseq
    %v600 = vshrl.u32 %v599, 7
    %v601 = vsub.s32 0, %v600
    %v602 = vrot.slane %v597, %v601
    %v604 = vmul.f32 %v541, %v602
    %v605 = vmul.f32 %v542, %v602
    %v606 = vmul.f32 %v543, %v602
    %v607 = vmul.f32 %v544, %v602
    %v608 = vmul.f32 %v545, %v602
    %v609 = vmul.f32 %v546, %v602
    %v610 = vmul.f32 %v547, %v602
    %v611 = vmul.f32 %v548, %v602
    %v612 = vmul.f32 %v549, %v602
    %v613 = vmul.f32 %v550, %v602
    %v614 = vmul.f32 %v551, %v602
    %v615 = vmul.f32 %v552, %v602
    %v616 = vmul.f32 %v553, %v602
    %v617 = vmul.f32 %v554, %v602
    %v618 = vmul.f32 %v555, %v602
    %v619 = vmul.f32 %v556, %v602
    %v621 = vlaneseq
    %v622 = vshrl.u32 %v621, 7
    %v623 = vsub.s32 0, %v622
    %v624 = vrot.slane %v518, %v623
    %v626 = vadd.f32 %v604, %v624
    %v627 = vadd.f32 %v605, %v624
    %v628 = vadd.f32 %v606, %v624
    %v629 = vadd.f32 %v607, %v624
    %v630 = vadd.f32 %v608, %v624
    %v631 = vadd.f32 %v609, %v624
    %v632 = vadd.f32 %v610, %v624
    %v633 = vadd.f32 %v611, %v624
    %v634 = vadd.f32 %v612, %v624
    %v635 = vadd.f32 %v613, %v624
    %v636 = vadd.f32 %v614, %v624
    %v637 = vadd.f32 %v615, %v624
    %v638 = vadd.f32 %v616, %v624
    %v639 = vadd.f32 %v617, %v624
    %v640 = vadd.f32 %v618, %v624
    %v641 = vadd.f32 %v619, %v624
    %v642 = vlaneseq
    %v643 = vshrl.u32 %v642, 7
    %v644 = vadd.s32 %v643, 8
    %v645 = vadd.s32 %v643, 16
    %v646 = vadd.s32 %v643, 24
    %v647 = vadd.s32 %v643, 32
    %v648 = vadd.s32 %v643, 40
    %v649 = vadd.s32 %v643, 48
    %v650 = vadd.s32 %v643, 56
    %v651 = vadd.s32 %v643, 64
    %v652 = vadd.s32 %v643, 72
    %v653 = vadd.s32 %v643, 80
    %v654 = vadd.s32 %v643, 88
    %v655 = vadd.s32 %v643, 96
    %v656 = vadd.s32 %v643, 104
    %v657 = vadd.s32 %v643, 112
    %v658 = vadd.s32 %v643, 120
    %v659 = vcvt.s32.f32 %v643
    %v660 = vcvt.s32.f32 %v644
    %v661 = vcvt.s32.f32 %v645
    %v662 = vcvt.s32.f32 %v646
    %v663 = vcvt.s32.f32 %v647
    %v664 = vcvt.s32.f32 %v648
    %v665 = vcvt.s32.f32 %v649
    %v666 = vcvt.s32.f32 %v650
    %v667 = vcvt.s32.f32 %v651
    %v668 = vcvt.s32.f32 %v652
    %v669 = vcvt.s32.f32 %v653
    %v670 = vcvt.s32.f32 %v654
    %v671 = vcvt.s32.f32 %v655
    %v672 = vcvt.s32.f32 %v656
    %v673 = vcvt.s32.f32 %v657
    %v674 = vcvt.s32.f32 %v658
    %v675 = vadd.f32 %v659, 0.5
    %v676 = vadd.f32 %v660, 0.5
    %v677 = vadd.f32 %v661, 0.5
    %v678 = vadd.f32 %v662, 0.5
    %v679 = vadd.f32 %v663, 0.5
    %v680 = vadd.f32 %v664, 0.5
    %v681 = vadd.f32 %v665, 0.5
    %v682 = vadd.f32 %v666, 0.5
    %v683 = vadd.f32 %v667, 0.5
    %v684 = vadd.f32 %v668, 0.5
    %v685 = vadd.f32 %v669, 0.5
    %v686 = vadd.f32 %v670, 0.5
    %v687 = vadd.f32 %v671, 0.5
    %v688 = vadd.f32 %v672, 0.5
    %v689 = vadd.f32 %v673, 0.5
    %v690 = vadd.f32 %v674, 0.5
    %v691 = vmul.f32 %v675, 0.125
    %v692 = vmul.f32 %v676, 0.125
    %v693 = vmul.f32 %v677, 0.125
    %v694 = vmul.f32 %v678, 0.125
    %v695 = vmul.f32 %v679, 0.125
    %v696 = vmul.f32 %v680, 0.125
    %v697 = vmul.f32 %v681, 0.125
    %v698 = vmul.f32 %v682, 0.125
    %v699 = vmul.f32 %v683, 0.125
    %v700 = vmul.f32 %v684, 0.125
    %v701 = vmul.f32 %v685, 0.125
    %v702 = vmul.f32 %v686, 0.125
    %v703 = vmul.f32 %v687, 0.125
    %v704 = vmul.f32 %v688, 0.125
    %v705 = vmul.f32 %v689, 0.125
    %v706 = vmul.f32 %v690, 0.125
    %v707 = vfloor.f32 %v691
    %v708 = vfloor.f32 %v692
    %v709 = vfloor.f32 %v693
    %v710 = vfloor.f32 %v694
    %v711 = vfloor.f32 %v695
    %v712 = vfloor.f32 %v696
    %v713 = vfloor.f32 %v697
    %v714 = vfloor.f32 %v698
    %v715 = vfloor.f32 %v699
    %v716 = vfloor.f32 %v700
    %v717 = vfloor.f32 %v701
    %v718 = vfloor.f32 %v702
    %v719 = vfloor.f32 %v703
    %v720 = vfloor.f32 %v704
    %v721 = vfloor.f32 %v705
    %v722 = vfloor.f32 %v706
    %v723 = vmul.f32 %v707, 8.0
    %v724 = vmul.f32 %v708, 8.0
    %v725 = vmul.f32 %v709, 8.0
    %v726 = vmul.f32 %v710, 8.0
    %v727 = vmul.f32 %v711, 8.0
    %v728 = vmul.f32 %v712, 8.0
    %v729 = vmul.f32 %v713, 8.0
    %v730 = vmul.f32 %v714, 8.0
    %v731 = vmul.f32 %v715, 8.0
    %v732 = vmul.f32 %v716, 8.0
    %v733 = vmul.f32 %v717, 8.0
    %v734 = vmul.f32 %v718, 8.0
    %v735 = vmul.f32 %v719, 8.0
    %v736 = vmul.f32 %v720, 8.0
    %v737 = vmul.f32 %v721, 8.0
    %v738 = vmul.f32 %v722, 8.0
    %v739 = vsub.f32 %v659, %v723
    %v740 = vsub.f32 %v660, %v724
    %v741 = vsub.f32 %v661, %v725
    %v742 = vsub.f32 %v662, %v726
    %v743 = vsub.f32 %v663, %v727
    %v744 = vsub.f32 %v664, %v728
    %v745 = vsub.f32 %v665, %v729
    %v746 = vsub.f32 %v666, %v730
    %v747 = vsub.f32 %v667, %v731
    %v748 = vsub.f32 %v668, %v732
    %v749 = vsub.f32 %v669, %v733
    %v750 = vsub.f32 %v670, %v734
    %v751 = vsub.f32 %v671, %v735
    %v752 = vsub.f32 %v672, %v736
    %v753 = vsub.f32 %v673, %v737
    %v754 = vsub.f32 %v674, %v738
    %v755 = vadd.f32 %v707, 0.5
    %v756 = vadd.f32 %v708, 0.5
    %v757 = vadd.f32 %v709, 0.5
    %v758 = vadd.f32 %v710, 0.5
    %v759 = vadd.f32 %v711, 0.5
    %v760 = vadd.f32 %v712, 0.5
    %v761 = vadd.f32 %v713, 0.5
    %v762 = vadd.f32 %v714, 0.5
    %v763 = vadd.f32 %v715, 0.5
    %v764 = vadd.f32 %v716, 0.5
    %v765 = vadd.f32 %v717, 0.5
    %v766 = vadd.f32 %v718, 0.5
    %v767 = vadd.f32 %v719, 0.5
    %v768 = vadd.f32 %v720, 0.5
    %v769 = vadd.f32 %v721, 0.5
    %v770 = vadd.f32 %v722, 0.5
    %v771 = vmul.f32 %v755, 0.125
    %v772 = vmul.f32 %v756, 0.125
    %v773 = vmul.f32 %v757, 0.125
    %v774 = vmul.f32 %v758, 0.125
    %v775 = vmul.f32 %v759, 0.125
    %v776 = vmul.f32 %v760, 0.125
    %v777 = vmul.f32 %v761, 0.125
    %v778 = vmul.f32 %v762, 0.125
    %v779 = vmul.f32 %v763, 0.125
    %v780 = vmul.f32 %v764, 0.125
    %v781 = vmul.f32 %v765, 0.125
    %v782 = vmul.f32 %v766, 0.125
    %v783 = vmul.f32 %v767, 0.125
    %v784 = vmul.f32 %v768, 0.125
    %v785 = vmul.f32 %v769, 0.125
    %v786 = vmul.f32 %v770, 0.125
    %v787 = vfloor.f32 %v771
    %v788 = vfloor.f32 %v772
    %v789 = vfloor.f32 %v773
    %v790 = vfloor.f32 %v774
    %v791 = vfloor.f32 %v775
    %v792 = vfloor.f32 %v776
    %v793 = vfloor.f32 %v777
    %v794 = vfloor.f32 %v778
    %v795 = vfloor.f32 %v779
    %v796 = vfloor.f32 %v780
    %v797 = vfloor.f32 %v781
    %v798 = vfloor.f32 %v782
    %v799 = vfloor.f32 %v783
    %v800 = vfloor.f32 %v784
    %v801 = vfloor.f32 %v785
    %v802 = vfloor.f32 %v786
    %v803 = vmul.f32 %v787, 8.0
    %v804 = vmul.f32 %v788, 8.0
    %v805 = vmul.f32 %v789, 8.0
    %v806 = vmul.f32 %v790, 8.0
    %v807 = vmul.f32 %v791, 8.0
    %v808 = vmul.f32 %v792, 8.0
    %v809 = vmul.f32 %v793, 8.0
    %v810 = vmul.f32 %v794, 8.0
    %v811 = vmul.f32 %v795, 8.0
    %v812 = vmul.f32 %v796, 8.0
    %v813 = vmul.f32 %v797, 8.0
    %v814 = vmul.f32 %v798, 8.0
    %v815 = vmul.f32 %v799, 8.0
    %v816 = vmul.f32 %v800, 8.0
    %v817 = vmul.f32 %v801, 8.0
    %v818 = vmul.f32 %v802, 8.0
    %v819 = vsub.f32 %v707, %v803
    %v820 = vsub.f32 %v708, %v804
    %v821 = vsub.f32 %v709, %v805
    %v822 = vsub.f32 %v710, %v806
    %v823 = vsub.f32 %v711, %v807
    %v824 = vsub.f32 %v712, %v808
    %v825 = vsub.f32 %v713, %v809
    %v826 = vsub.f32 %v714, %v810
    %v827 = vsub.f32 %v715, %v811
    %v828 = vsub.f32 %v716, %v812
    %v829 = vsub.f32 %v717, %v813
    %v830 = vsub.f32 %v718, %v814
    %v831 = vsub.f32 %v719, %v815
    %v832 = vsub.f32 %v720, %v816
    %v833 = vsub.f32 %v721, %v817
    %v834 = vsub.f32 %v722, %v818
    %v835 = vrot.slane %v501, 7
    %v836 = vrot.slane %v502, 7
    %v837 = vrot.slane %v503, 7
    %v838 = vrot.slane %v504, 7
    %v839 = vrot.slane %v505, 7
    %v840 = vrot.slane %v506, 7
    %v841 = vrot.slane %v507, 7
    %v842 = vrot.slane %v508, 7
    %v843 = vrot.slane %v509, 7
    %v844 = vrot.slane %v510, 7
    %v845 = vrot.slane %v511, 7
    %v846 = vrot.slane %v512, 7
    %v847 = vrot.slane %v513, 7
    %v848 = vrot.slane %v514, 7
    %v849 = vrot.slane %v515, 7
    %v850 = vrot.slane %v516, 7
    %vm851 = vcmp.lt.s32.totalorder %v643, 1
    %v852 = vsel %vm851, %v849, %v850
    %v853 = vsel %vm851, %v848, %v849
    %v854 = vsel %vm851, %v847, %v848
    %v855 = vsel %vm851, %v846, %v847
    %v856 = vsel %vm851, %v845, %v846
    %v857 = vsel %vm851, %v844, %v845
    %v858 = vsel %vm851, %v843, %v844
    %v859 = vsel %vm851, %v842, %v843
    %v860 = vsel %vm851, %v841, %v842
    %v861 = vsel %vm851, %v840, %v841
    %v862 = vsel %vm851, %v839, %v840
    %v863 = vsel %vm851, %v838, %v839
    %v864 = vsel %vm851, %v837, %v838
    %v865 = vsel %vm851, %v836, %v837
    %v866 = vsel %vm851, %v835, %v836
    %v867 = vsel %vm851, %v850, %v835
    %vm868 = vcmp.ge.f32.partialorder %v819, 1.0
    %vm869 = vcmp.ge.f32.partialorder %v820, 1.0
    %vm870 = vcmp.ge.f32.partialorder %v821, 1.0
    %vm871 = vcmp.ge.f32.partialorder %v822, 1.0
    %vm872 = vcmp.ge.f32.partialorder %v823, 1.0
    %vm873 = vcmp.ge.f32.partialorder %v824, 1.0
    %vm874 = vcmp.ge.f32.partialorder %v825, 1.0
    %vm875 = vcmp.ge.f32.partialorder %v826, 1.0
    %vm876 = vcmp.ge.f32.partialorder %v827, 1.0
    %vm877 = vcmp.ge.f32.partialorder %v828, 1.0
    %vm878 = vcmp.ge.f32.partialorder %v829, 1.0
    %vm879 = vcmp.ge.f32.partialorder %v830, 1.0
    %vm880 = vcmp.ge.f32.partialorder %v831, 1.0
    %vm881 = vcmp.ge.f32.partialorder %v832, 1.0
    %vm882 = vcmp.ge.f32.partialorder %v833, 1.0
    %vm883 = vcmp.ge.f32.partialorder %v834, 1.0
    %vm884 = vcmp.ge.f32.partialorder %v739, 1.0
    %vm885 = vcmp.ge.f32.partialorder %v740, 1.0
    %vm886 = vcmp.ge.f32.partialorder %v741, 1.0
    %vm887 = vcmp.ge.f32.partialorder %v742, 1.0
    %vm888 = vcmp.ge.f32.partialorder %v743, 1.0
    %vm889 = vcmp.ge.f32.partialorder %v744, 1.0
    %vm890 = vcmp.ge.f32.partialorder %v745, 1.0
    %vm891 = vcmp.ge.f32.partialorder %v746, 1.0
    %vm892 = vcmp.ge.f32.partialorder %v747, 1.0
    %vm893 = vcmp.ge.f32.partialorder %v748, 1.0
    %vm894 = vcmp.ge.f32.partialorder %v749, 1.0
    %vm895 = vcmp.ge.f32.partialorder %v750, 1.0
    %vm896 = vcmp.ge.f32.partialorder %v751, 1.0
    %vm897 = vcmp.ge.f32.partialorder %v752, 1.0
    %vm898 = vcmp.ge.f32.partialorder %v753, 1.0
    %vm899 = vcmp.ge.f32.partialorder %v754, 1.0
    %vm900 = vmand %vm868, %vm884
    %vm901 = vmand %vm869, %vm885
    %vm902 = vmand %vm870, %vm886
    %vm903 = vmand %vm871, %vm887
    %vm904 = vmand %vm872, %vm888
    %vm905 = vmand %vm873, %vm889
    %vm906 = vmand %vm874, %vm890
    %vm907 = vmand %vm875, %vm891
    %vm908 = vmand %vm876, %vm892
    %vm909 = vmand %vm877, %vm893
    %vm910 = vmand %vm878, %vm894
    %vm911 = vmand %vm879, %vm895
    %vm912 = vmand %vm880, %vm896
    %vm913 = vmand %vm881, %vm897
    %vm914 = vmand %vm882, %vm898
    %vm915 = vmand %vm883, %vm899
    %v916 = vsel %vm900, 1, 0
    %v917 = vsel %vm901, 1, 0
    %v918 = vsel %vm902, 1, 0
    %v919 = vsel %vm903, 1, 0
    %v920 = vsel %vm904, 1, 0
    %v921 = vsel %vm905, 1, 0
    %v922 = vsel %vm906, 1, 0
    %v923 = vsel %vm907, 1, 0
    %v924 = vsel %vm908, 1, 0
    %v925 = vsel %vm909, 1, 0
    %v926 = vsel %vm910, 1, 0
    %v927 = vsel %vm911, 1, 0
    %v928 = vsel %vm912, 1, 0
    %v929 = vsel %vm913, 1, 0
    %v930 = vsel %vm914, 1, 0
    %v931 = vsel %vm915, 1, 0
    %vm932 = vcmp.eq.s32.totalorder %v916, 1
    %vm933 = vcmp.eq.s32.totalorder %v917, 1
    %vm934 = vcmp.eq.s32.totalorder %v918, 1
    %vm935 = vcmp.eq.s32.totalorder %v919, 1
    %vm936 = vcmp.eq.s32.totalorder %v920, 1
    %vm937 = vcmp.eq.s32.totalorder %v921, 1
    %vm938 = vcmp.eq.s32.totalorder %v922, 1
    %vm939 = vcmp.eq.s32.totalorder %v923, 1
    %vm940 = vcmp.eq.s32.totalorder %v924, 1
    %vm941 = vcmp.eq.s32.totalorder %v925, 1
    %vm942 = vcmp.eq.s32.totalorder %v926, 1
    %vm943 = vcmp.eq.s32.totalorder %v927, 1
    %vm944 = vcmp.eq.s32.totalorder %v928, 1
    %vm945 = vcmp.eq.s32.totalorder %v929, 1
    %vm946 = vcmp.eq.s32.totalorder %v930, 1
    %vm947 = vcmp.eq.s32.totalorder %v931, 1
    %v948 = vsel %vm932, %v852, 0.0
    %v949 = vsel %vm933, %v867, 0.0
    %v950 = vsel %vm934, %v866, 0.0
    %v951 = vsel %vm935, %v865, 0.0
    %v952 = vsel %vm936, %v864, 0.0
    %v953 = vsel %vm937, %v863, 0.0
    %v954 = vsel %vm938, %v862, 0.0
    %v955 = vsel %vm939, %v861, 0.0
    %v956 = vsel %vm940, %v860, 0.0
    %v957 = vsel %vm941, %v859, 0.0
    %v958 = vsel %vm942, %v858, 0.0
    %v959 = vsel %vm943, %v857, 0.0
    %v960 = vsel %vm944, %v856, 0.0
    %v961 = vsel %vm945, %v855, 0.0
    %v962 = vsel %vm946, %v854, 0.0
    %v963 = vsel %vm947, %v853, 0.0
    %v964 = vpack.c.bf16 %v949, %v948
    %v965 = vpack.c.bf16 %v951, %v950
    %v966 = vpack.c.bf16 %v953, %v952
    %v967 = vpack.c.bf16 %v955, %v954
    %v968 = vpack.c.bf16 %v957, %v956
    %v969 = vpack.c.bf16 %v959, %v958
    %v970 = vpack.c.bf16 %v961, %v960
    %v971 = vpack.c.bf16 %v963, %v962
    %v972 = vld [vmem:[#allocation13] sm:$0xf]
    %v973 = vld [vmem:[#allocation13 + $0x4] sm:$0xf]
    %v974 = vld [vmem:[#allocation13 + $0x8] sm:$0xf]
    %v975 = vld [vmem:[#allocation13 + $0xc] sm:$0xf]
    %v976 = vld [vmem:[#allocation13 + $0x10] sm:$0xf]
    %v977 = vld [vmem:[#allocation13 + $0x14] sm:$0xf]
    %v978 = vld [vmem:[#allocation13 + $0x18] sm:$0xf]
    %v979 = vld [vmem:[#allocation13 + $0x1c] sm:$0xf]
    %v980 = vld [vmem:[#allocation13 + $0x20] sm:$0xf]
    %v981 = vld [vmem:[#allocation13 + $0x24] sm:$0xf]
    %v982 = vld [vmem:[#allocation13 + $0x28] sm:$0xf]
    %v983 = vld [vmem:[#allocation13 + $0x2c] sm:$0xf]
    %v984 = vld [vmem:[#allocation13 + $0x30] sm:$0xf]
    %v985 = vld [vmem:[#allocation13 + $0x34] sm:$0xf]
    %v986 = vld [vmem:[#allocation13 + $0x38] sm:$0xf]
    %v987 = vld [vmem:[#allocation13 + $0x3c] sm:$0xf]
    %v988 = vsel %vm868, 1, 0
    %v989 = vsel %vm869, 1, 0
    %v990 = vsel %vm870, 1, 0
    %v991 = vsel %vm871, 1, 0
    %v992 = vsel %vm872, 1, 0
    %v993 = vsel %vm873, 1, 0
    %v994 = vsel %vm874, 1, 0
    %v995 = vsel %vm875, 1, 0
    %v996 = vsel %vm876, 1, 0
    %v997 = vsel %vm877, 1, 0
    %v998 = vsel %vm878, 1, 0
    %v999 = vsel %vm879, 1, 0
    %v1000 = vsel %vm880, 1, 0
    %v1001 = vsel %vm881, 1, 0
    %v1002 = vsel %vm882, 1, 0
    %v1003 = vsel %vm883, 1, 0
    %vm1004 = vcmp.eq.s32.totalorder %v988, 1
    %vm1005 = vcmp.eq.s32.totalorder %v989, 1
    %vm1006 = vcmp.eq.s32.totalorder %v990, 1
    %vm1007 = vcmp.eq.s32.totalorder %v991, 1
    %vm1008 = vcmp.eq.s32.totalorder %v992, 1
    %vm1009 = vcmp.eq.s32.totalorder %v993, 1
    %vm1010 = vcmp.eq.s32.totalorder %v994, 1
    %vm1011 = vcmp.eq.s32.totalorder %v995, 1
    %vm1012 = vcmp.eq.s32.totalorder %v996, 1
    %vm1013 = vcmp.eq.s32.totalorder %v997, 1
    %vm1014 = vcmp.eq.s32.totalorder %v998, 1
    %vm1015 = vcmp.eq.s32.totalorder %v999, 1
    %vm1016 = vcmp.eq.s32.totalorder %v1000, 1
    %vm1017 = vcmp.eq.s32.totalorder %v1001, 1
    %vm1018 = vcmp.eq.s32.totalorder %v1002, 1
    %vm1019 = vcmp.eq.s32.totalorder %v1003, 1
    %v1020 = vsel %vm1004, %v516, 0.0
    %v1021 = vsel %vm1005, %v501, 0.0
    %v1022 = vsel %vm1006, %v502, 0.0
    %v1023 = vsel %vm1007, %v503, 0.0
    %v1024 = vsel %vm1008, %v504, 0.0
    %v1025 = vsel %vm1009, %v505, 0.0
    %v1026 = vsel %vm1010, %v506, 0.0
    %v1027 = vsel %vm1011, %v507, 0.0
    %v1028 = vsel %vm1012, %v508, 0.0
    %v1029 = vsel %vm1013, %v509, 0.0
    %v1030 = vsel %vm1014, %v510, 0.0
    %v1031 = vsel %vm1015, %v511, 0.0
    %v1032 = vsel %vm1016, %v512, 0.0
    %v1033 = vsel %vm1017, %v513, 0.0
    %v1034 = vsel %vm1018, %v514, 0.0
    %v1035 = vsel %vm1019, %v515, 0.0
    %v1036 = vpack.c.bf16 %v1021, %v1020
    %v1037 = vpack.c.bf16 %v1023, %v1022
    %v1038 = vpack.c.bf16 %v1025, %v1024
    %v1039 = vpack.c.bf16 %v1027, %v1026
    %v1040 = vpack.c.bf16 %v1029, %v1028
    %v1041 = vpack.c.bf16 %v1031, %v1030
    %v1042 = vpack.c.bf16 %v1033, %v1032
    %v1043 = vpack.c.bf16 %v1035, %v1034
    %s1044 = scalar_lea.vmem [#allocation13], 64
    %v1045 = vld [vmem:[%s1044] sm:$0xf]
    %v1046 = vld [vmem:[%s1044 + $0x4] sm:$0xf]
    %v1047 = vld [vmem:[%s1044 + $0x8] sm:$0xf]
    %v1048 = vld [vmem:[%s1044 + $0xc] sm:$0xf]
    %v1049 = vld [vmem:[%s1044 + $0x10] sm:$0xf]
    %v1050 = vld [vmem:[%s1044 + $0x14] sm:$0xf]
    %v1051 = vld [vmem:[%s1044 + $0x18] sm:$0xf]
    %v1052 = vld [vmem:[%s1044 + $0x1c] sm:$0xf]
    %v1053 = vld [vmem:[%s1044 + $0x20] sm:$0xf]
    %v1054 = vld [vmem:[%s1044 + $0x24] sm:$0xf]
    %v1055 = vld [vmem:[%s1044 + $0x28] sm:$0xf]
    %v1056 = vld [vmem:[%s1044 + $0x2c] sm:$0xf]
    %v1057 = vld [vmem:[%s1044 + $0x30] sm:$0xf]
    %v1058 = vld [vmem:[%s1044 + $0x34] sm:$0xf]
    %v1059 = vld [vmem:[%s1044 + $0x38] sm:$0xf]
    %v1060 = vld [vmem:[%s1044 + $0x3c] sm:$0xf]
    %v1077 = vunpack.c.l.b16 %v1045
    %v1078 = vunpack.c.l.b16 %v1046
    %v1079 = vunpack.c.l.b16 %v1047
    %v1080 = vunpack.c.l.b16 %v1048
    %v1081 = vunpack.c.l.b16 %v1049
    %v1082 = vunpack.c.l.b16 %v1050
    %v1083 = vunpack.c.l.b16 %v1051
    %v1084 = vunpack.c.l.b16 %v1052
    %v1085 = vunpack.c.l.b16 %v1053
    %v1086 = vunpack.c.l.b16 %v1054
    %v1087 = vunpack.c.l.b16 %v1055
    %v1088 = vunpack.c.l.b16 %v1056
    %v1089 = vunpack.c.l.b16 %v1057
    %v1090 = vunpack.c.l.b16 %v1058
    %v1091 = vunpack.c.l.b16 %v1059
    %v1092 = vunpack.c.l.b16 %v1060
    %v1093 = vpack.c.b16 %v1078, %v1077
    %v1094 = vpack.c.b16 %v1080, %v1079
    %v1095 = vpack.c.b16 %v1082, %v1081
    %v1096 = vpack.c.b16 %v1084, %v1083
    %v1097 = vpack.c.b16 %v1086, %v1085
    %v1098 = vpack.c.b16 %v1088, %v1087
    %v1099 = vpack.c.b16 %v1090, %v1089
    %v1100 = vpack.c.b16 %v1092, %v1091
    %1109 = vmatprep.subr.bf16.mxu0 0
    %1110 = vmatpush1.bf16.msra.mxu0 %v1093
    %1111 = vmatprep.subr.bf16.mxu0 0
    %1112 = vmatpush1.bf16.msra.mxu0 %v1094
    %1113 = vmatprep.subr.bf16.mxu0 0
    %1114 = vmatpush1.bf16.msra.mxu0 %v1095
    %1115 = vmatprep.subr.bf16.mxu0 0
    %1116 = vmatpush1.bf16.msra.mxu0 %v1096
    %1117 = vmatprep.subr.bf16.mxu0 0
    %1118 = vmatpush1.bf16.msra.mxu0 %v1097
    %1119 = vmatprep.subr.bf16.mxu0 0
    %1120 = vmatpush1.bf16.msra.mxu0 %v1098
    %1121 = vmatprep.subr.bf16.mxu0 0
    %1122 = vmatpush1.bf16.msra.mxu0 %v1099
    %1123 = vmatprep.subr.bf16.mxu0 0
    %1124 = vmatpush1.bf16.msra.mxu0 %v1100
    %1125 = vmatprep.subr.bf16.mxu0 0
    %1126 = vmatpush1.bf16.msra.mxu0 0
    %1127 = vmatprep.subr.bf16.mxu0 0
    %1128 = vmatpush1.bf16.msra.mxu0 0
    %1129 = vmatprep.subr.bf16.mxu0 0
    %1130 = vmatpush1.bf16.msra.mxu0 0
    %1131 = vmatprep.subr.bf16.mxu0 0
    %1132 = vmatpush1.bf16.msra.mxu0 0
    %1133 = vmatprep.subr.bf16.mxu0 0
    %1134 = vmatpush1.bf16.msra.mxu0 0
    %1135 = vmatprep.subr.bf16.mxu0 0
    %1136 = vmatpush1.bf16.msra.mxu0 0
    %1137 = vmatprep.subr.bf16.mxu0 0
    %1138 = vmatpush1.bf16.msra.mxu0 0
    %1139 = vmatprep.subr.bf16.mxu0 0
    %1140 = vmatpush1.bf16.msra.mxu0 0
    %1141 = vmatprep.mubr.bf16.mxu0 0
    %1142 = vmatmul.mubr.bf16.gmra.mrb[0].mxu0 %v1036
    %v1143 = vpop.f32.mrb[0].mxu0
    %v1144 = vadd.f32 0.0, %v1143
    %v1145 = vpop.f32.mrb[0].mxu0
    %v1146 = vpop.f32.mrb[0].mxu0
    %v1147 = vadd.f32 0.0, %v1146
    %v1148 = vpop.f32.mrb[0].mxu0
    %1149 = vmatprep.mubr.bf16.mxu0 0
    %1150 = vmatmul.mubr.bf16.gmra.mrb[0].mxu0 %v1037
    %v1151 = vpop.f32.mrb[0].mxu0
    %v1152 = vadd.f32 0.0, %v1151
    %v1153 = vpop.f32.mrb[0].mxu0
    %v1154 = vpop.f32.mrb[0].mxu0
    %v1155 = vadd.f32 0.0, %v1154
    %v1156 = vpop.f32.mrb[0].mxu0
    %1157 = vmatprep.mubr.bf16.mxu0 0
    %1158 = vmatmul.mubr.bf16.gmra.mrb[0].mxu0 %v1038
    %v1159 = vpop.f32.mrb[0].mxu0
    %v1160 = vadd.f32 0.0, %v1159
    %v1161 = vpop.f32.mrb[0].mxu0
    %v1162 = vpop.f32.mrb[0].mxu0
    %v1163 = vadd.f32 0.0, %v1162
    %v1164 = vpop.f32.mrb[0].mxu0
    %1165 = vmatprep.mubr.bf16.mxu0 0
    %1166 = vmatmul.mubr.bf16.gmra.mrb[0].mxu0 %v1039
    %v1167 = vpop.f32.mrb[0].mxu0
    %v1168 = vadd.f32 0.0, %v1167
    %v1169 = vpop.f32.mrb[0].mxu0
    %v1170 = vpop.f32.mrb[0].mxu0
    %v1171 = vadd.f32 0.0, %v1170
    %v1172 = vpop.f32.mrb[0].mxu0
    %1173 = vmatprep.mubr.bf16.mxu0 0
    %1174 = vmatmul.mubr.bf16.gmra.mrb[0].mxu0 %v1040
    %v1175 = vpop.f32.mrb[0].mxu0
    %v1176 = vadd.f32 0.0, %v1175
    %v1177 = vpop.f32.mrb[0].mxu0
    %v1178 = vpop.f32.mrb[0].mxu0
    %v1179 = vadd.f32 0.0, %v1178
    %v1180 = vpop.f32.mrb[0].mxu0
    %1181 = vmatprep.mubr.bf16.mxu0 0
    %1182 = vmatmul.mubr.bf16.gmra.mrb[0].mxu0 %v1041
    %v1183 = vpop.f32.mrb[0].mxu0
    %v1184 = vadd.f32 0.0, %v1183
    %v1185 = vpop.f32.mrb[0].mxu0
    %v1186 = vpop.f32.mrb[0].mxu0
    %v1187 = vadd.f32 0.0, %v1186
    %v1188 = vpop.f32.mrb[0].mxu0
    %1189 = vmatprep.mubr.bf16.mxu0 0
    %1190 = vmatmul.mubr.bf16.gmra.mrb[0].mxu0 %v1042
    %v1191 = vpop.f32.mrb[0].mxu0
    %v1192 = vadd.f32 0.0, %v1191
    %v1193 = vpop.f32.mrb[0].mxu0
    %v1194 = vpop.f32.mrb[0].mxu0
    %v1195 = vadd.f32 0.0, %v1194
    %v1196 = vpop.f32.mrb[0].mxu0
    %1197 = vmatprep.mubr.bf16.mxu0 0
    %1198 = vmatmul.mubr.bf16.gmra.mrb[0].mxu0 %v1043
    %v1199 = vpop.f32.mrb[0].mxu0
    %v1200 = vadd.f32 0.0, %v1199
    %v1201 = vpop.f32.mrb[0].mxu0
    %v1202 = vpop.f32.mrb[0].mxu0
    %v1203 = vadd.f32 0.0, %v1202
    %v1204 = vpop.f32.mrb[0].mxu0
    %1205 = vdwg.mxu0
    %v1222 = vunpack.c.l.b16 %v972
    %v1223 = vunpack.c.l.b16 %v973
    %v1224 = vunpack.c.l.b16 %v974
    %v1225 = vunpack.c.l.b16 %v975
    %v1226 = vunpack.c.l.b16 %v976
    %v1227 = vunpack.c.l.b16 %v977
    %v1228 = vunpack.c.l.b16 %v978
    %v1229 = vunpack.c.l.b16 %v979
    %v1230 = vunpack.c.l.b16 %v980
    %v1231 = vunpack.c.l.b16 %v981
    %v1232 = vunpack.c.l.b16 %v982
    %v1233 = vunpack.c.l.b16 %v983
    %v1234 = vunpack.c.l.b16 %v984
    %v1235 = vunpack.c.l.b16 %v985
    %v1236 = vunpack.c.l.b16 %v986
    %v1237 = vunpack.c.l.b16 %v987
    %v1238 = vpack.c.b16 %v1223, %v1222
    %v1239 = vpack.c.b16 %v1225, %v1224
    %v1240 = vpack.c.b16 %v1227, %v1226
    %v1241 = vpack.c.b16 %v1229, %v1228
    %v1242 = vpack.c.b16 %v1231, %v1230
    %v1243 = vpack.c.b16 %v1233, %v1232
    %v1244 = vpack.c.b16 %v1235, %v1234
    %v1245 = vpack.c.b16 %v1237, %v1236
    %1254 = vmatprep.subr.bf16.mxu0 0
    %1255 = vmatpush1.bf16.msra.mxu0 %v1238
    %1256 = vmatprep.subr.bf16.mxu0 0
    %1257 = vmatpush1.bf16.msra.mxu0 %v1239
    %1258 = vmatprep.subr.bf16.mxu0 0
    %1259 = vmatpush1.bf16.msra.mxu0 %v1240
    %1260 = vmatprep.subr.bf16.mxu0 0
    %1261 = vmatpush1.bf16.msra.mxu0 %v1241
    %1262 = vmatprep.subr.bf16.mxu0 0
    %1263 = vmatpush1.bf16.msra.mxu0 %v1242
    %1264 = vmatprep.subr.bf16.mxu0 0
    %1265 = vmatpush1.bf16.msra.mxu0 %v1243
    %1266 = vmatprep.subr.bf16.mxu0 0
    %1267 = vmatpush1.bf16.msra.mxu0 %v1244
    %1268 = vmatprep.subr.bf16.mxu0 0
    %1269 = vmatpush1.bf16.msra.mxu0 %v1245
    %1270 = vmatprep.subr.bf16.mxu0 0
    %1271 = vmatpush1.bf16.msra.mxu0 0
    %1272 = vmatprep.subr.bf16.mxu0 0
    %1273 = vmatpush1.bf16.msra.mxu0 0
    %1274 = vmatprep.subr.bf16.mxu0 0
    %1275 = vmatpush1.bf16.msra.mxu0 0
    %1276 = vmatprep.subr.bf16.mxu0 0
    %1277 = vmatpush1.bf16.msra.mxu0 0
    %1278 = vmatprep.subr.bf16.mxu0 0
    %1279 = vmatpush1.bf16.msra.mxu0 0
    %1280 = vmatprep.subr.bf16.mxu0 0
    %1281 = vmatpush1.bf16.msra.mxu0 0
    %1282 = vmatprep.subr.bf16.mxu0 0
    %1283 = vmatpush1.bf16.msra.mxu0 0
    %1284 = vmatprep.subr.bf16.mxu0 0
    %1285 = vmatpush1.bf16.msra.mxu0 0
    %1286 = vmatprep.mubr.bf16.mxu0 0
    %1287 = vmatmul.mubr.bf16.gmra.mrb[0].mxu0 %v964
    %v1288 = vpop.f32.mrb[0].mxu0
    %v1289 = vadd.f32 %v1144, %v1288
    %v1290 = vpop.f32.mrb[0].mxu0
    %v1291 = vpop.f32.mrb[0].mxu0
    %v1292 = vadd.f32 %v1147, %v1291
    %v1293 = vpop.f32.mrb[0].mxu0
    %1294 = vmatprep.mubr.bf16.mxu0 0
    %1295 = vmatmul.mubr.bf16.gmra.mrb[0].mxu0 %v965
    %v1296 = vpop.f32.mrb[0].mxu0
    %v1297 = vadd.f32 %v1152, %v1296
    %v1298 = vpop.f32.mrb[0].mxu0
    %v1299 = vpop.f32.mrb[0].mxu0
    %v1300 = vadd.f32 %v1155, %v1299
    %v1301 = vpop.f32.mrb[0].mxu0
    %1302 = vmatprep.mubr.bf16.mxu0 0
    %1303 = vmatmul.mubr.bf16.gmra.mrb[0].mxu0 %v966
    %v1304 = vpop.f32.mrb[0].mxu0
    %v1305 = vadd.f32 %v1160, %v1304
    %v1306 = vpop.f32.mrb[0].mxu0
    %v1307 = vpop.f32.mrb[0].mxu0
    %v1308 = vadd.f32 %v1163, %v1307
    %v1309 = vpop.f32.mrb[0].mxu0
    %1310 = vmatprep.mubr.bf16.mxu0 0
    %1311 = vmatmul.mubr.bf16.gmra.mrb[0].mxu0 %v967
    %v1312 = vpop.f32.mrb[0].mxu0
    %v1313 = vadd.f32 %v1168, %v1312
    %v1314 = vpop.f32.mrb[0].mxu0
    %v1315 = vpop.f32.mrb[0].mxu0
    %v1316 = vadd.f32 %v1171, %v1315
    %v1317 = vpop.f32.mrb[0].mxu0
    %1318 = vmatprep.mubr.bf16.mxu0 0
    %1319 = vmatmul.mubr.bf16.gmra.mrb[0].mxu0 %v968
    %v1320 = vpop.f32.mrb[0].mxu0
    %v1321 = vadd.f32 %v1176, %v1320
    %v1322 = vpop.f32.mrb[0].mxu0
    %v1323 = vpop.f32.mrb[0].mxu0
    %v1324 = vadd.f32 %v1179, %v1323
    %v1325 = vpop.f32.mrb[0].mxu0
    %1326 = vmatprep.mubr.bf16.mxu0 0
    %1327 = vmatmul.mubr.bf16.gmra.mrb[0].mxu0 %v969
    %v1328 = vpop.f32.mrb[0].mxu0
    %v1329 = vadd.f32 %v1184, %v1328
    %v1330 = vpop.f32.mrb[0].mxu0
    %v1331 = vpop.f32.mrb[0].mxu0
    %v1332 = vadd.f32 %v1187, %v1331
    %v1333 = vpop.f32.mrb[0].mxu0
    %1334 = vmatprep.mubr.bf16.mxu0 0
    %1335 = vmatmul.mubr.bf16.gmra.mrb[0].mxu0 %v970
    %v1336 = vpop.f32.mrb[0].mxu0
    %v1337 = vadd.f32 %v1192, %v1336
    %v1338 = vpop.f32.mrb[0].mxu0
    %v1339 = vpop.f32.mrb[0].mxu0
    %v1340 = vadd.f32 %v1195, %v1339
    %v1341 = vpop.f32.mrb[0].mxu0
    %1342 = vmatprep.mubr.bf16.mxu0 0
    %1343 = vmatmul.mubr.bf16.gmra.mrb[0].mxu0 %v971
    %v1344 = vpop.f32.mrb[0].mxu0
    %v1345 = vadd.f32 %v1200, %v1344
    %v1346 = vpop.f32.mrb[0].mxu0
    %v1347 = vpop.f32.mrb[0].mxu0
    %v1348 = vadd.f32 %v1203, %v1347
    %v1349 = vpop.f32.mrb[0].mxu0
    %1350 = vdwg.mxu0
    %v1351 = vrot.slane %v501, 1
    %v1352 = vrot.slane %v502, 1
    %v1353 = vrot.slane %v503, 1
    %v1354 = vrot.slane %v504, 1
    %v1355 = vrot.slane %v505, 1
    %v1356 = vrot.slane %v506, 1
    %v1357 = vrot.slane %v507, 1
    %v1358 = vrot.slane %v508, 1
    %v1359 = vrot.slane %v509, 1
    %v1360 = vrot.slane %v510, 1
    %v1361 = vrot.slane %v511, 1
    %v1362 = vrot.slane %v512, 1
    %v1363 = vrot.slane %v513, 1
    %v1364 = vrot.slane %v514, 1
    %v1365 = vrot.slane %v515, 1
    %v1366 = vrot.slane %v516, 1
    %vm1367 = vcmp.lt.s32.totalorder %v643, 7
    %v1368 = vsel %vm1367, %v1365, %v1366
    %v1369 = vsel %vm1367, %v1364, %v1365
    %v1370 = vsel %vm1367, %v1363, %v1364
    %v1371 = vsel %vm1367, %v1362, %v1363
    %v1372 = vsel %vm1367, %v1361, %v1362
    %v1373 = vsel %vm1367, %v1360, %v1361
    %v1374 = vsel %vm1367, %v1359, %v1360
    %v1375 = vsel %vm1367, %v1358, %v1359
    %v1376 = vsel %vm1367, %v1357, %v1358
    %v1377 = vsel %vm1367, %v1356, %v1357
    %v1378 = vsel %vm1367, %v1355, %v1356
    %v1379 = vsel %vm1367, %v1354, %v1355
    %v1380 = vsel %vm1367, %v1353, %v1354
    %v1381 = vsel %vm1367, %v1352, %v1353
    %v1382 = vsel %vm1367, %v1351, %v1352
    %v1383 = vsel %vm1367, %v1366, %v1351
    %vm1384 = vcmp.lt.f32.partialorder %v739, 7.0
    %vm1385 = vcmp.lt.f32.partialorder %v740, 7.0
    %vm1386 = vcmp.lt.f32.partialorder %v741, 7.0
    %vm1387 = vcmp.lt.f32.partialorder %v742, 7.0
    %vm1388 = vcmp.lt.f32.partialorder %v743, 7.0
    %vm1389 = vcmp.lt.f32.partialorder %v744, 7.0
    %vm1390 = vcmp.lt.f32.partialorder %v745, 7.0
    %vm1391 = vcmp.lt.f32.partialorder %v746, 7.0
    %vm1392 = vcmp.lt.f32.partialorder %v747, 7.0
    %vm1393 = vcmp.lt.f32.partialorder %v748, 7.0
    %vm1394 = vcmp.lt.f32.partialorder %v749, 7.0
    %vm1395 = vcmp.lt.f32.partialorder %v750, 7.0
    %vm1396 = vcmp.lt.f32.partialorder %v751, 7.0
    %vm1397 = vcmp.lt.f32.partialorder %v752, 7.0
    %vm1398 = vcmp.lt.f32.partialorder %v753, 7.0
    %vm1399 = vcmp.lt.f32.partialorder %v754, 7.0
    %vm1400 = vmand %vm868, %vm1384
    %vm1401 = vmand %vm869, %vm1385
    %vm1402 = vmand %vm870, %vm1386
    %vm1403 = vmand %vm871, %vm1387
    %vm1404 = vmand %vm872, %vm1388
    %vm1405 = vmand %vm873, %vm1389
    %vm1406 = vmand %vm874, %vm1390
    %vm1407 = vmand %vm875, %vm1391
    %vm1408 = vmand %vm876, %vm1392
    %vm1409 = vmand %vm877, %vm1393
    %vm1410 = vmand %vm878, %vm1394
    %vm1411 = vmand %vm879, %vm1395
    %vm1412 = vmand %vm880, %vm1396
    %vm1413 = vmand %vm881, %vm1397
    %vm1414 = vmand %vm882, %vm1398
    %vm1415 = vmand %vm883, %vm1399
    %v1416 = vsel %vm1400, 1, 0
    %v1417 = vsel %vm1401, 1, 0
    %v1418 = vsel %vm1402, 1, 0
    %v1419 = vsel %vm1403, 1, 0
    %v1420 = vsel %vm1404, 1, 0
    %v1421 = vsel %vm1405, 1, 0
    %v1422 = vsel %vm1406, 1, 0
    %v1423 = vsel %vm1407, 1, 0
    %v1424 = vsel %vm1408, 1, 0
    %v1425 = vsel %vm1409, 1, 0
    %v1426 = vsel %vm1410, 1, 0
    %v1427 = vsel %vm1411, 1, 0
    %v1428 = vsel %vm1412, 1, 0
    %v1429 = vsel %vm1413, 1, 0
    %v1430 = vsel %vm1414, 1, 0
    %v1431 = vsel %vm1415, 1, 0
    %vm1432 = vcmp.eq.s32.totalorder %v1416, 1
    %vm1433 = vcmp.eq.s32.totalorder %v1417, 1
    %vm1434 = vcmp.eq.s32.totalorder %v1418, 1
    %vm1435 = vcmp.eq.s32.totalorder %v1419, 1
    %vm1436 = vcmp.eq.s32.totalorder %v1420, 1
    %vm1437 = vcmp.eq.s32.totalorder %v1421, 1
    %vm1438 = vcmp.eq.s32.totalorder %v1422, 1
    %vm1439 = vcmp.eq.s32.totalorder %v1423, 1
    %vm1440 = vcmp.eq.s32.totalorder %v1424, 1
    %vm1441 = vcmp.eq.s32.totalorder %v1425, 1
    %vm1442 = vcmp.eq.s32.totalorder %v1426, 1
    %vm1443 = vcmp.eq.s32.totalorder %v1427, 1
    %vm1444 = vcmp.eq.s32.totalorder %v1428, 1
    %vm1445 = vcmp.eq.s32.totalorder %v1429, 1
    %vm1446 = vcmp.eq.s32.totalorder %v1430, 1
    %vm1447 = vcmp.eq.s32.totalorder %v1431, 1
    %v1448 = vsel %vm1432, %v1383, 0.0
    %v1449 = vsel %vm1433, %v1382, 0.0
    %v1450 = vsel %vm1434, %v1381, 0.0
    %v1451 = vsel %vm1435, %v1380, 0.0
    %v1452 = vsel %vm1436, %v1379, 0.0
    %v1453 = vsel %vm1437, %v1378, 0.0
    %v1454 = vsel %vm1438, %v1377, 0.0
    %v1455 = vsel %vm1439, %v1376, 0.0
    %v1456 = vsel %vm1440, %v1375, 0.0
    %v1457 = vsel %vm1441, %v1374, 0.0
    %v1458 = vsel %vm1442, %v1373, 0.0
    %v1459 = vsel %vm1443, %v1372, 0.0
    %v1460 = vsel %vm1444, %v1371, 0.0
    %v1461 = vsel %vm1445, %v1370, 0.0
    %v1462 = vsel %vm1446, %v1369, 0.0
    %v1463 = vsel %vm1447, %v1368, 0.0
    %v1464 = vpack.c.bf16 %v1449, %v1448
    %v1465 = vpack.c.bf16 %v1451, %v1450
    %v1466 = vpack.c.bf16 %v1453, %v1452
    %v1467 = vpack.c.bf16 %v1455, %v1454
    %v1468 = vpack.c.bf16 %v1457, %v1456
    %v1469 = vpack.c.bf16 %v1459, %v1458
    %v1470 = vpack.c.bf16 %v1461, %v1460
    %v1471 = vpack.c.bf16 %v1463, %v1462
    %s1472 = scalar_lea.vmem [#allocation13], 128
    %v1473 = vld [vmem:[%s1472] sm:$0xf]
    %v1474 = vld [vmem:[%s1472 + $0x4] sm:$0xf]
    %v1475 = vld [vmem:[%s1472 + $0x8] sm:$0xf]
    %v1476 = vld [vmem:[%s1472 + $0xc] sm:$0xf]
    %v1477 = vld [vmem:[%s1472 + $0x10] sm:$0xf]
    %v1478 = vld [vmem:[%s1472 + $0x14] sm:$0xf]
    %v1479 = vld [vmem:[%s1472 + $0x18] sm:$0xf]
    %v1480 = vld [vmem:[%s1472 + $0x1c] sm:$0xf]
    %v1481 = vld [vmem:[%s1472 + $0x20] sm:$0xf]
    %v1482 = vld [vmem:[%s1472 + $0x24] sm:$0xf]
    %v1483 = vld [vmem:[%s1472 + $0x28] sm:$0xf]
    %v1484 = vld [vmem:[%s1472 + $0x2c] sm:$0xf]
    %v1485 = vld [vmem:[%s1472 + $0x30] sm:$0xf]
    %v1486 = vld [vmem:[%s1472 + $0x34] sm:$0xf]
    %v1487 = vld [vmem:[%s1472 + $0x38] sm:$0xf]
    %v1488 = vld [vmem:[%s1472 + $0x3c] sm:$0xf]
    %v1505 = vunpack.c.l.b16 %v1473
    %v1506 = vunpack.c.l.b16 %v1474
    %v1507 = vunpack.c.l.b16 %v1475
    %v1508 = vunpack.c.l.b16 %v1476
    %v1509 = vunpack.c.l.b16 %v1477
    %v1510 = vunpack.c.l.b16 %v1478
    %v1511 = vunpack.c.l.b16 %v1479
    %v1512 = vunpack.c.l.b16 %v1480
    %v1513 = vunpack.c.l.b16 %v1481
    %v1514 = vunpack.c.l.b16 %v1482
    %v1515 = vunpack.c.l.b16 %v1483
    %v1516 = vunpack.c.l.b16 %v1484
    %v1517 = vunpack.c.l.b16 %v1485
    %v1518 = vunpack.c.l.b16 %v1486
    %v1519 = vunpack.c.l.b16 %v1487
    %v1520 = vunpack.c.l.b16 %v1488
    %v1521 = vpack.c.b16 %v1506, %v1505
    %v1522 = vpack.c.b16 %v1508, %v1507
    %v1523 = vpack.c.b16 %v1510, %v1509
    %v1524 = vpack.c.b16 %v1512, %v1511
    %v1525 = vpack.c.b16 %v1514, %v1513
    %v1526 = vpack.c.b16 %v1516, %v1515
    %v1527 = vpack.c.b16 %v1518, %v1517
    %v1528 = vpack.c.b16 %v1520, %v1519
    %1537 = vmatprep.subr.bf16.mxu0 0
    %1538 = vmatpush1.bf16.msra.mxu0 %v1521
    %1539 = vmatprep.subr.bf16.mxu0 0
    %1540 = vmatpush1.bf16.msra.mxu0 %v1522
    %1541 = vmatprep.subr.bf16.mxu0 0
    %1542 = vmatpush1.bf16.msra.mxu0 %v1523
    %1543 = vmatprep.subr.bf16.mxu0 0
    %1544 = vmatpush1.bf16.msra.mxu0 %v1524
    %1545 = vmatprep.subr.bf16.mxu0 0
    %1546 = vmatpush1.bf16.msra.mxu0 %v1525
    %1547 = vmatprep.subr.bf16.mxu0 0
    %1548 = vmatpush1.bf16.msra.mxu0 %v1526
    %1549 = vmatprep.subr.bf16.mxu0 0
    %1550 = vmatpush1.bf16.msra.mxu0 %v1527
    %1551 = vmatprep.subr.bf16.mxu0 0
    %1552 = vmatpush1.bf16.msra.mxu0 %v1528
    %1553 = vmatprep.subr.bf16.mxu0 0
    %1554 = vmatpush1.bf16.msra.mxu0 0
    %1555 = vmatprep.subr.bf16.mxu0 0
    %1556 = vmatpush1.bf16.msra.mxu0 0
    %1557 = vmatprep.subr.bf16.mxu0 0
    %1558 = vmatpush1.bf16.msra.mxu0 0
    %1559 = vmatprep.subr.bf16.mxu0 0
    %1560 = vmatpush1.bf16.msra.mxu0 0
    %1561 = vmatprep.subr.bf16.mxu0 0
    %1562 = vmatpush1.bf16.msra.mxu0 0
    %1563 = vmatprep.subr.bf16.mxu0 0
    %1564 = vmatpush1.bf16.msra.mxu0 0
    %1565 = vmatprep.subr.bf16.mxu0 0
    %1566 = vmatpush1.bf16.msra.mxu0 0
    %1567 = vmatprep.subr.bf16.mxu0 0
    %1568 = vmatpush1.bf16.msra.mxu0 0
    %1569 = vmatprep.mubr.bf16.mxu0 0
    %1570 = vmatmul.mubr.bf16.gmra.mrb[0].mxu0 %v1464
    %v1571 = vpop.f32.mrb[0].mxu0
    %v1572 = vadd.f32 0.0, %v1571
    %v1573 = vpop.f32.mrb[0].mxu0
    %v1574 = vpop.f32.mrb[0].mxu0
    %v1575 = vadd.f32 0.0, %v1574
    %v1576 = vpop.f32.mrb[0].mxu0
    %1577 = vmatprep.mubr.bf16.mxu0 0
    %1578 = vmatmul.mubr.bf16.gmra.mrb[0].mxu0 %v1465
    %v1579 = vpop.f32.mrb[0].mxu0
    %v1580 = vadd.f32 0.0, %v1579
    %v1581 = vpop.f32.mrb[0].mxu0
    %v1582 = vpop.f32.mrb[0].mxu0
    %v1583 = vadd.f32 0.0, %v1582
    %v1584 = vpop.f32.mrb[0].mxu0
    %1585 = vmatprep.mubr.bf16.mxu0 0
    %1586 = vmatmul.mubr.bf16.gmra.mrb[0].mxu0 %v1466
    %v1587 = vpop.f32.mrb[0].mxu0
    %v1588 = vadd.f32 0.0, %v1587
    %v1589 = vpop.f32.mrb[0].mxu0
    %v1590 = vpop.f32.mrb[0].mxu0
    %v1591 = vadd.f32 0.0, %v1590
    %v1592 = vpop.f32.mrb[0].mxu0
    %1593 = vmatprep.mubr.bf16.mxu0 0
    %1594 = vmatmul.mubr.bf16.gmra.mrb[0].mxu0 %v1467
    %v1595 = vpop.f32.mrb[0].mxu0
    %v1596 = vadd.f32 0.0, %v1595
    %v1597 = vpop.f32.mrb[0].mxu0
    %v1598 = vpop.f32.mrb[0].mxu0
    %v1599 = vadd.f32 0.0, %v1598
    %v1600 = vpop.f32.mrb[0].mxu0
    %1601 = vmatprep.mubr.bf16.mxu0 0
    %1602 = vmatmul.mubr.bf16.gmra.mrb[0].mxu0 %v1468
    %v1603 = vpop.f32.mrb[0].mxu0
    %v1604 = vadd.f32 0.0, %v1603
    %v1605 = vpop.f32.mrb[0].mxu0
    %v1606 = vpop.f32.mrb[0].mxu0
    %v1607 = vadd.f32 0.0, %v1606
    %v1608 = vpop.f32.mrb[0].mxu0
    %1609 = vmatprep.mubr.bf16.mxu0 0
    %1610 = vmatmul.mubr.bf16.gmra.mrb[0].mxu0 %v1469
    %v1611 = vpop.f32.mrb[0].mxu0
    %v1612 = vadd.f32 0.0, %v1611
    %v1613 = vpop.f32.mrb[0].mxu0
    %v1614 = vpop.f32.mrb[0].mxu0
    %v1615 = vadd.f32 0.0, %v1614
    %v1616 = vpop.f32.mrb[0].mxu0
    %1617 = vmatprep.mubr.bf16.mxu0 0
    %1618 = vmatmul.mubr.bf16.gmra.mrb[0].mxu0 %v1470
    %v1619 = vpop.f32.mrb[0].mxu0
    %v1620 = vadd.f32 0.0, %v1619
    %v1621 = vpop.f32.mrb[0].mxu0
    %v1622 = vpop.f32.mrb[0].mxu0
    %v1623 = vadd.f32 0.0, %v1622
    %v1624 = vpop.f32.mrb[0].mxu0
    %1625 = vmatprep.mubr.bf16.mxu0 0
    %1626 = vmatmul.mubr.bf16.gmra.mrb[0].mxu0 %v1471
    %v1627 = vpop.f32.mrb[0].mxu0
    %v1628 = vadd.f32 0.0, %v1627
    %v1629 = vpop.f32.mrb[0].mxu0
    %v1630 = vpop.f32.mrb[0].mxu0
    %v1631 = vadd.f32 0.0, %v1630
    %v1632 = vpop.f32.mrb[0].mxu0
    %1633 = vdwg.mxu0
    %v1634 = vadd.f32 %v1289, %v1572
    %v1635 = vadd.f32 %v1292, %v1575
    %v1636 = vadd.f32 %v1297, %v1580
    %v1637 = vadd.f32 %v1300, %v1583
    %v1638 = vadd.f32 %v1305, %v1588
    %v1639 = vadd.f32 %v1308, %v1591
    %v1640 = vadd.f32 %v1313, %v1596
    %v1641 = vadd.f32 %v1316, %v1599
    %v1642 = vadd.f32 %v1321, %v1604
    %v1643 = vadd.f32 %v1324, %v1607
    %v1644 = vadd.f32 %v1329, %v1612
    %v1645 = vadd.f32 %v1332, %v1615
    %v1646 = vadd.f32 %v1337, %v1620
    %v1647 = vadd.f32 %v1340, %v1623
    %v1648 = vadd.f32 %v1345, %v1628
    %v1649 = vadd.f32 %v1348, %v1631
    %v1650 = vsel %vm884, 1, 0
    %v1651 = vsel %vm885, 1, 0
    %v1652 = vsel %vm886, 1, 0
    %v1653 = vsel %vm887, 1, 0
    %v1654 = vsel %vm888, 1, 0
    %v1655 = vsel %vm889, 1, 0
    %v1656 = vsel %vm890, 1, 0
    %v1657 = vsel %vm891, 1, 0
    %v1658 = vsel %vm892, 1, 0
    %v1659 = vsel %vm893, 1, 0
    %v1660 = vsel %vm894, 1, 0
    %v1661 = vsel %vm895, 1, 0
    %v1662 = vsel %vm896, 1, 0
    %v1663 = vsel %vm897, 1, 0
    %v1664 = vsel %vm898, 1, 0
    %v1665 = vsel %vm899, 1, 0
    %vm1666 = vcmp.eq.s32.totalorder %v1650, 1
    %vm1667 = vcmp.eq.s32.totalorder %v1651, 1
    %vm1668 = vcmp.eq.s32.totalorder %v1652, 1
    %vm1669 = vcmp.eq.s32.totalorder %v1653, 1
    %vm1670 = vcmp.eq.s32.totalorder %v1654, 1
    %vm1671 = vcmp.eq.s32.totalorder %v1655, 1
    %vm1672 = vcmp.eq.s32.totalorder %v1656, 1
    %vm1673 = vcmp.eq.s32.totalorder %v1657, 1
    %vm1674 = vcmp.eq.s32.totalorder %v1658, 1
    %vm1675 = vcmp.eq.s32.totalorder %v1659, 1
    %vm1676 = vcmp.eq.s32.totalorder %v1660, 1
    %vm1677 = vcmp.eq.s32.totalorder %v1661, 1
    %vm1678 = vcmp.eq.s32.totalorder %v1662, 1
    %vm1679 = vcmp.eq.s32.totalorder %v1663, 1
    %vm1680 = vcmp.eq.s32.totalorder %v1664, 1
    %vm1681 = vcmp.eq.s32.totalorder %v1665, 1
    %v1682 = vsel %vm1666, %v867, 0.0
    %v1683 = vsel %vm1667, %v866, 0.0
    %v1684 = vsel %vm1668, %v865, 0.0
    %v1685 = vsel %vm1669, %v864, 0.0
    %v1686 = vsel %vm1670, %v863, 0.0
    %v1687 = vsel %vm1671, %v862, 0.0
    %v1688 = vsel %vm1672, %v861, 0.0
    %v1689 = vsel %vm1673, %v860, 0.0
    %v1690 = vsel %vm1674, %v859, 0.0
    %v1691 = vsel %vm1675, %v858, 0.0
    %v1692 = vsel %vm1676, %v857, 0.0
    %v1693 = vsel %vm1677, %v856, 0.0
    %v1694 = vsel %vm1678, %v855, 0.0
    %v1695 = vsel %vm1679, %v854, 0.0
    %v1696 = vsel %vm1680, %v853, 0.0
    %v1697 = vsel %vm1681, %v852, 0.0
    %v1698 = vpack.c.bf16 %v1683, %v1682
    %v1699 = vpack.c.bf16 %v1685, %v1684
    %v1700 = vpack.c.bf16 %v1687, %v1686
    %v1701 = vpack.c.bf16 %v1689, %v1688
    %v1702 = vpack.c.bf16 %v1691, %v1690
    %v1703 = vpack.c.bf16 %v1693, %v1692
    %v1704 = vpack.c.bf16 %v1695, %v1694
    %v1705 = vpack.c.bf16 %v1697, %v1696
    %s1706 = scalar_lea.vmem [#allocation13], 192
    %v1707 = vld [vmem:[%s1706] sm:$0xf]
    %v1708 = vld [vmem:[%s1706 + $0x4] sm:$0xf]
    %v1709 = vld [vmem:[%s1706 + $0x8] sm:$0xf]
    %v1710 = vld [vmem:[%s1706 + $0xc] sm:$0xf]
    %v1711 = vld [vmem:[%s1706 + $0x10] sm:$0xf]
    %v1712 = vld [vmem:[%s1706 + $0x14] sm:$0xf]
    %v1713 = vld [vmem:[%s1706 + $0x18] sm:$0xf]
    %v1714 = vld [vmem:[%s1706 + $0x1c] sm:$0xf]
    %v1715 = vld [vmem:[%s1706 + $0x20] sm:$0xf]
    %v1716 = vld [vmem:[%s1706 + $0x24] sm:$0xf]
    %v1717 = vld [vmem:[%s1706 + $0x28] sm:$0xf]
    %v1718 = vld [vmem:[%s1706 + $0x2c] sm:$0xf]
    %v1719 = vld [vmem:[%s1706 + $0x30] sm:$0xf]
    %v1720 = vld [vmem:[%s1706 + $0x34] sm:$0xf]
    %v1721 = vld [vmem:[%s1706 + $0x38] sm:$0xf]
    %v1722 = vld [vmem:[%s1706 + $0x3c] sm:$0xf]
    %v1739 = vunpack.c.l.b16 %v1707
    %v1740 = vunpack.c.l.b16 %v1708
    %v1741 = vunpack.c.l.b16 %v1709
    %v1742 = vunpack.c.l.b16 %v1710
    %v1743 = vunpack.c.l.b16 %v1711
    %v1744 = vunpack.c.l.b16 %v1712
    %v1745 = vunpack.c.l.b16 %v1713
    %v1746 = vunpack.c.l.b16 %v1714
    %v1747 = vunpack.c.l.b16 %v1715
    %v1748 = vunpack.c.l.b16 %v1716
    %v1749 = vunpack.c.l.b16 %v1717
    %v1750 = vunpack.c.l.b16 %v1718
    %v1751 = vunpack.c.l.b16 %v1719
    %v1752 = vunpack.c.l.b16 %v1720
    %v1753 = vunpack.c.l.b16 %v1721
    %v1754 = vunpack.c.l.b16 %v1722
    %v1755 = vpack.c.b16 %v1740, %v1739
    %v1756 = vpack.c.b16 %v1742, %v1741
    %v1757 = vpack.c.b16 %v1744, %v1743
    %v1758 = vpack.c.b16 %v1746, %v1745
    %v1759 = vpack.c.b16 %v1748, %v1747
    %v1760 = vpack.c.b16 %v1750, %v1749
    %v1761 = vpack.c.b16 %v1752, %v1751
    %v1762 = vpack.c.b16 %v1754, %v1753
    %1771 = vmatprep.subr.bf16.mxu0 0
    %1772 = vmatpush1.bf16.msra.mxu0 %v1755
    %1773 = vmatprep.subr.bf16.mxu0 0
    %1774 = vmatpush1.bf16.msra.mxu0 %v1756
    %1775 = vmatprep.subr.bf16.mxu0 0
    %1776 = vmatpush1.bf16.msra.mxu0 %v1757
    %1777 = vmatprep.subr.bf16.mxu0 0
    %1778 = vmatpush1.bf16.msra.mxu0 %v1758
    %1779 = vmatprep.subr.bf16.mxu0 0
    %1780 = vmatpush1.bf16.msra.mxu0 %v1759
    %1781 = vmatprep.subr.bf16.mxu0 0
    %1782 = vmatpush1.bf16.msra.mxu0 %v1760
    %1783 = vmatprep.subr.bf16.mxu0 0
    %1784 = vmatpush1.bf16.msra.mxu0 %v1761
    %1785 = vmatprep.subr.bf16.mxu0 0
    %1786 = vmatpush1.bf16.msra.mxu0 %v1762
    %1787 = vmatprep.subr.bf16.mxu0 0
    %1788 = vmatpush1.bf16.msra.mxu0 0
    %1789 = vmatprep.subr.bf16.mxu0 0
    %1790 = vmatpush1.bf16.msra.mxu0 0
    %1791 = vmatprep.subr.bf16.mxu0 0
    %1792 = vmatpush1.bf16.msra.mxu0 0
    %1793 = vmatprep.subr.bf16.mxu0 0
    %1794 = vmatpush1.bf16.msra.mxu0 0
    %1795 = vmatprep.subr.bf16.mxu0 0
    %1796 = vmatpush1.bf16.msra.mxu0 0
    %1797 = vmatprep.subr.bf16.mxu0 0
    %1798 = vmatpush1.bf16.msra.mxu0 0
    %1799 = vmatprep.subr.bf16.mxu0 0
    %1800 = vmatpush1.bf16.msra.mxu0 0
    %1801 = vmatprep.subr.bf16.mxu0 0
    %1802 = vmatpush1.bf16.msra.mxu0 0
    %1803 = vmatprep.mubr.bf16.mxu0 0
    %1804 = vmatmul.mubr.bf16.gmra.mrb[0].mxu0 %v1698
    %v1805 = vpop.f32.mrb[0].mxu0
    %v1806 = vadd.f32 0.0, %v1805
    %v1807 = vpop.f32.mrb[0].mxu0
    %v1808 = vpop.f32.mrb[0].mxu0
    %v1809 = vadd.f32 0.0, %v1808
    %v1810 = vpop.f32.mrb[0].mxu0
    %1811 = vmatprep.mubr.bf16.mxu0 0
    %1812 = vmatmul.mubr.bf16.gmra.mrb[0].mxu0 %v1699
    %v1813 = vpop.f32.mrb[0].mxu0
    %v1814 = vadd.f32 0.0, %v1813
    %v1815 = vpop.f32.mrb[0].mxu0
    %v1816 = vpop.f32.mrb[0].mxu0
    %v1817 = vadd.f32 0.0, %v1816
    %v1818 = vpop.f32.mrb[0].mxu0
    %1819 = vmatprep.mubr.bf16.mxu0 0
    %1820 = vmatmul.mubr.bf16.gmra.mrb[0].mxu0 %v1700
    %v1821 = vpop.f32.mrb[0].mxu0
    %v1822 = vadd.f32 0.0, %v1821
    %v1823 = vpop.f32.mrb[0].mxu0
    %v1824 = vpop.f32.mrb[0].mxu0
    %v1825 = vadd.f32 0.0, %v1824
    %v1826 = vpop.f32.mrb[0].mxu0
    %1827 = vmatprep.mubr.bf16.mxu0 0
    %1828 = vmatmul.mubr.bf16.gmra.mrb[0].mxu0 %v1701
    %v1829 = vpop.f32.mrb[0].mxu0
    %v1830 = vadd.f32 0.0, %v1829
    %v1831 = vpop.f32.mrb[0].mxu0
    %v1832 = vpop.f32.mrb[0].mxu0
    %v1833 = vadd.f32 0.0, %v1832
    %v1834 = vpop.f32.mrb[0].mxu0
    %1835 = vmatprep.mubr.bf16.mxu0 0
    %1836 = vmatmul.mubr.bf16.gmra.mrb[0].mxu0 %v1702
    %v1837 = vpop.f32.mrb[0].mxu0
    %v1838 = vadd.f32 0.0, %v1837
    %v1839 = vpop.f32.mrb[0].mxu0
    %v1840 = vpop.f32.mrb[0].mxu0
    %v1841 = vadd.f32 0.0, %v1840
    %v1842 = vpop.f32.mrb[0].mxu0
    %1843 = vmatprep.mubr.bf16.mxu0 0
    %1844 = vmatmul.mubr.bf16.gmra.mrb[0].mxu0 %v1703
    %v1845 = vpop.f32.mrb[0].mxu0
    %v1846 = vadd.f32 0.0, %v1845
    %v1847 = vpop.f32.mrb[0].mxu0
    %v1848 = vpop.f32.mrb[0].mxu0
    %v1849 = vadd.f32 0.0, %v1848
    %v1850 = vpop.f32.mrb[0].mxu0
    %1851 = vmatprep.mubr.bf16.mxu0 0
    %1852 = vmatmul.mubr.bf16.gmra.mrb[0].mxu0 %v1704
    %v1853 = vpop.f32.mrb[0].mxu0
    %v1854 = vadd.f32 0.0, %v1853
    %v1855 = vpop.f32.mrb[0].mxu0
    %v1856 = vpop.f32.mrb[0].mxu0
    %v1857 = vadd.f32 0.0, %v1856
    %v1858 = vpop.f32.mrb[0].mxu0
    %1859 = vmatprep.mubr.bf16.mxu0 0
    %1860 = vmatmul.mubr.bf16.gmra.mrb[0].mxu0 %v1705
    %v1861 = vpop.f32.mrb[0].mxu0
    %v1862 = vadd.f32 0.0, %v1861
    %v1863 = vpop.f32.mrb[0].mxu0
    %v1864 = vpop.f32.mrb[0].mxu0
    %v1865 = vadd.f32 0.0, %v1864
    %v1866 = vpop.f32.mrb[0].mxu0
    %1867 = vdwg.mxu0
    %v1868 = vadd.f32 %v1634, %v1806
    %v1869 = vadd.f32 %v1635, %v1809
    %v1870 = vadd.f32 %v1636, %v1814
    %v1871 = vadd.f32 %v1637, %v1817
    %v1872 = vadd.f32 %v1638, %v1822
    %v1873 = vadd.f32 %v1639, %v1825
    %v1874 = vadd.f32 %v1640, %v1830
    %v1875 = vadd.f32 %v1641, %v1833
    %v1876 = vadd.f32 %v1642, %v1838
    %v1877 = vadd.f32 %v1643, %v1841
    %v1878 = vadd.f32 %v1644, %v1846
    %v1879 = vadd.f32 %v1645, %v1849
    %v1880 = vadd.f32 %v1646, %v1854
    %v1881 = vadd.f32 %v1647, %v1857
    %v1882 = vadd.f32 %v1648, %v1862
    %v1883 = vadd.f32 %v1649, %v1865
    %v1884 = vpack.c.bf16 %v502, %v501
    %v1885 = vpack.c.bf16 %v504, %v503
    %v1886 = vpack.c.bf16 %v506, %v505
    %v1887 = vpack.c.bf16 %v508, %v507
    %v1888 = vpack.c.bf16 %v510, %v509
    %v1889 = vpack.c.bf16 %v512, %v511
    %v1890 = vpack.c.bf16 %v514, %v513
    %v1891 = vpack.c.bf16 %v516, %v515
    %s1892 = scalar_lea.vmem [#allocation13], 256
    %v1893 = vld [vmem:[%s1892] sm:$0xf]
    %v1894 = vld [vmem:[%s1892 + $0x4] sm:$0xf]
    %v1895 = vld [vmem:[%s1892 + $0x8] sm:$0xf]
    %v1896 = vld [vmem:[%s1892 + $0xc] sm:$0xf]
    %v1897 = vld [vmem:[%s1892 + $0x10] sm:$0xf]
    %v1898 = vld [vmem:[%s1892 + $0x14] sm:$0xf]
    %v1899 = vld [vmem:[%s1892 + $0x18] sm:$0xf]
    %v1900 = vld [vmem:[%s1892 + $0x1c] sm:$0xf]
    %v1901 = vld [vmem:[%s1892 + $0x20] sm:$0xf]
    %v1902 = vld [vmem:[%s1892 + $0x24] sm:$0xf]
    %v1903 = vld [vmem:[%s1892 + $0x28] sm:$0xf]
    %v1904 = vld [vmem:[%s1892 + $0x2c] sm:$0xf]
    %v1905 = vld [vmem:[%s1892 + $0x30] sm:$0xf]
    %v1906 = vld [vmem:[%s1892 + $0x34] sm:$0xf]
    %v1907 = vld [vmem:[%s1892 + $0x38] sm:$0xf]
    %v1908 = vld [vmem:[%s1892 + $0x3c] sm:$0xf]
    %v1925 = vunpack.c.l.b16 %v1893
    %v1926 = vunpack.c.l.b16 %v1894
    %v1927 = vunpack.c.l.b16 %v1895
    %v1928 = vunpack.c.l.b16 %v1896
    %v1929 = vunpack.c.l.b16 %v1897
    %v1930 = vunpack.c.l.b16 %v1898
    %v1931 = vunpack.c.l.b16 %v1899
    %v1932 = vunpack.c.l.b16 %v1900
    %v1933 = vunpack.c.l.b16 %v1901
    %v1934 = vunpack.c.l.b16 %v1902
    %v1935 = vunpack.c.l.b16 %v1903
    %v1936 = vunpack.c.l.b16 %v1904
    %v1937 = vunpack.c.l.b16 %v1905
    %v1938 = vunpack.c.l.b16 %v1906
    %v1939 = vunpack.c.l.b16 %v1907
    %v1940 = vunpack.c.l.b16 %v1908
    %v1941 = vpack.c.b16 %v1926, %v1925
    %v1942 = vpack.c.b16 %v1928, %v1927
    %v1943 = vpack.c.b16 %v1930, %v1929
    %v1944 = vpack.c.b16 %v1932, %v1931
    %v1945 = vpack.c.b16 %v1934, %v1933
    %v1946 = vpack.c.b16 %v1936, %v1935
    %v1947 = vpack.c.b16 %v1938, %v1937
    %v1948 = vpack.c.b16 %v1940, %v1939
    %1957 = vmatprep.subr.bf16.mxu0 0
    %1958 = vmatpush1.bf16.msra.mxu0 %v1941
    %1959 = vmatprep.subr.bf16.mxu0 0
    %1960 = vmatpush1.bf16.msra.mxu0 %v1942
    %1961 = vmatprep.subr.bf16.mxu0 0
    %1962 = vmatpush1.bf16.msra.mxu0 %v1943
    %1963 = vmatprep.subr.bf16.mxu0 0
    %1964 = vmatpush1.bf16.msra.mxu0 %v1944
    %1965 = vmatprep.subr.bf16.mxu0 0
    %1966 = vmatpush1.bf16.msra.mxu0 %v1945
    %1967 = vmatprep.subr.bf16.mxu0 0
    %1968 = vmatpush1.bf16.msra.mxu0 %v1946
    %1969 = vmatprep.subr.bf16.mxu0 0
    %1970 = vmatpush1.bf16.msra.mxu0 %v1947
    %1971 = vmatprep.subr.bf16.mxu0 0
    %1972 = vmatpush1.bf16.msra.mxu0 %v1948
    %1973 = vmatprep.subr.bf16.mxu0 0
    %1974 = vmatpush1.bf16.msra.mxu0 0
    %1975 = vmatprep.subr.bf16.mxu0 0
    %1976 = vmatpush1.bf16.msra.mxu0 0
    %1977 = vmatprep.subr.bf16.mxu0 0
    %1978 = vmatpush1.bf16.msra.mxu0 0
    %1979 = vmatprep.subr.bf16.mxu0 0
    %1980 = vmatpush1.bf16.msra.mxu0 0
    %1981 = vmatprep.subr.bf16.mxu0 0
    %1982 = vmatpush1.bf16.msra.mxu0 0
    %1983 = vmatprep.subr.bf16.mxu0 0
    %1984 = vmatpush1.bf16.msra.mxu0 0
    %1985 = vmatprep.subr.bf16.mxu0 0
    %1986 = vmatpush1.bf16.msra.mxu0 0
    %1987 = vmatprep.subr.bf16.mxu0 0
    %1988 = vmatpush1.bf16.msra.mxu0 0
    %1989 = vmatprep.mubr.bf16.mxu0 0
    %1990 = vmatmul.mubr.bf16.gmra.mrb[0].mxu0 %v1884
    %v1991 = vpop.f32.mrb[0].mxu0
    %v1992 = vadd.f32 0.0, %v1991
    %v1993 = vpop.f32.mrb[0].mxu0
    %v1994 = vpop.f32.mrb[0].mxu0
    %v1995 = vadd.f32 0.0, %v1994
    %v1996 = vpop.f32.mrb[0].mxu0
    %1997 = vmatprep.mubr.bf16.mxu0 0
    %1998 = vmatmul.mubr.bf16.gmra.mrb[0].mxu0 %v1885
    %v1999 = vpop.f32.mrb[0].mxu0
    %v2000 = vadd.f32 0.0, %v1999
    %v2001 = vpop.f32.mrb[0].mxu0
    %v2002 = vpop.f32.mrb[0].mxu0
    %v2003 = vadd.f32 0.0, %v2002
    %v2004 = vpop.f32.mrb[0].mxu0
    %2005 = vmatprep.mubr.bf16.mxu0 0
    %2006 = vmatmul.mubr.bf16.gmra.mrb[0].mxu0 %v1886
    %v2007 = vpop.f32.mrb[0].mxu0
    %v2008 = vadd.f32 0.0, %v2007
    %v2009 = vpop.f32.mrb[0].mxu0
    %v2010 = vpop.f32.mrb[0].mxu0
    %v2011 = vadd.f32 0.0, %v2010
    %v2012 = vpop.f32.mrb[0].mxu0
    %2013 = vmatprep.mubr.bf16.mxu0 0
    %2014 = vmatmul.mubr.bf16.gmra.mrb[0].mxu0 %v1887
    %v2015 = vpop.f32.mrb[0].mxu0
    %v2016 = vadd.f32 0.0, %v2015
    %v2017 = vpop.f32.mrb[0].mxu0
    %v2018 = vpop.f32.mrb[0].mxu0
    %v2019 = vadd.f32 0.0, %v2018
    %v2020 = vpop.f32.mrb[0].mxu0
    %2021 = vmatprep.mubr.bf16.mxu0 0
    %2022 = vmatmul.mubr.bf16.gmra.mrb[0].mxu0 %v1888
    %v2023 = vpop.f32.mrb[0].mxu0
    %v2024 = vadd.f32 0.0, %v2023
    %v2025 = vpop.f32.mrb[0].mxu0
    %v2026 = vpop.f32.mrb[0].mxu0
    %v2027 = vadd.f32 0.0, %v2026
    %v2028 = vpop.f32.mrb[0].mxu0
    %2029 = vmatprep.mubr.bf16.mxu0 0
    %2030 = vmatmul.mubr.bf16.gmra.mrb[0].mxu0 %v1889
    %v2031 = vpop.f32.mrb[0].mxu0
    %v2032 = vadd.f32 0.0, %v2031
    %v2033 = vpop.f32.mrb[0].mxu0
    %v2034 = vpop.f32.mrb[0].mxu0
    %v2035 = vadd.f32 0.0, %v2034
    %v2036 = vpop.f32.mrb[0].mxu0
    %2037 = vmatprep.mubr.bf16.mxu0 0
    %2038 = vmatmul.mubr.bf16.gmra.mrb[0].mxu0 %v1890
    %v2039 = vpop.f32.mrb[0].mxu0
    %v2040 = vadd.f32 0.0, %v2039
    %v2041 = vpop.f32.mrb[0].mxu0
    %v2042 = vpop.f32.mrb[0].mxu0
    %v2043 = vadd.f32 0.0, %v2042
    %v2044 = vpop.f32.mrb[0].mxu0
    %2045 = vmatprep.mubr.bf16.mxu0 0
    %2046 = vmatmul.mubr.bf16.gmra.mrb[0].mxu0 %v1891
    %v2047 = vpop.f32.mrb[0].mxu0
    %v2048 = vadd.f32 0.0, %v2047
    %v2049 = vpop.f32.mrb[0].mxu0
    %v2050 = vpop.f32.mrb[0].mxu0
    %v2051 = vadd.f32 0.0, %v2050
    %v2052 = vpop.f32.mrb[0].mxu0
    %2053 = vdwg.mxu0
    %v2054 = vadd.f32 %v1868, %v1992
    %v2055 = vadd.f32 %v1869, %v1995
    %v2056 = vadd.f32 %v1870, %v2000
    %v2057 = vadd.f32 %v1871, %v2003
    %v2058 = vadd.f32 %v1872, %v2008
    %v2059 = vadd.f32 %v1873, %v2011
    %v2060 = vadd.f32 %v1874, %v2016
    %v2061 = vadd.f32 %v1875, %v2019
    %v2062 = vadd.f32 %v1876, %v2024
    %v2063 = vadd.f32 %v1877, %v2027
    %v2064 = vadd.f32 %v1878, %v2032
    %v2065 = vadd.f32 %v1879, %v2035
    %v2066 = vadd.f32 %v1880, %v2040
    %v2067 = vadd.f32 %v1881, %v2043
    %v2068 = vadd.f32 %v1882, %v2048
    %v2069 = vadd.f32 %v1883, %v2051
    %v2070 = vsel %vm1384, 1, 0
    %v2071 = vsel %vm1385, 1, 0
    %v2072 = vsel %vm1386, 1, 0
    %v2073 = vsel %vm1387, 1, 0
    %v2074 = vsel %vm1388, 1, 0
    %v2075 = vsel %vm1389, 1, 0
    %v2076 = vsel %vm1390, 1, 0
    %v2077 = vsel %vm1391, 1, 0
    %v2078 = vsel %vm1392, 1, 0
    %v2079 = vsel %vm1393, 1, 0
    %v2080 = vsel %vm1394, 1, 0
    %v2081 = vsel %vm1395, 1, 0
    %v2082 = vsel %vm1396, 1, 0
    %v2083 = vsel %vm1397, 1, 0
    %v2084 = vsel %vm1398, 1, 0
    %v2085 = vsel %vm1399, 1, 0
    %vm2086 = vcmp.eq.s32.totalorder %v2070, 1
    %vm2087 = vcmp.eq.s32.totalorder %v2071, 1
    %vm2088 = vcmp.eq.s32.totalorder %v2072, 1
    %vm2089 = vcmp.eq.s32.totalorder %v2073, 1
    %vm2090 = vcmp.eq.s32.totalorder %v2074, 1
    %vm2091 = vcmp.eq.s32.totalorder %v2075, 1
    %vm2092 = vcmp.eq.s32.totalorder %v2076, 1
    %vm2093 = vcmp.eq.s32.totalorder %v2077, 1
    %vm2094 = vcmp.eq.s32.totalorder %v2078, 1
    %vm2095 = vcmp.eq.s32.totalorder %v2079, 1
    %vm2096 = vcmp.eq.s32.totalorder %v2080, 1
    %vm2097 = vcmp.eq.s32.totalorder %v2081, 1
    %vm2098 = vcmp.eq.s32.totalorder %v2082, 1
    %vm2099 = vcmp.eq.s32.totalorder %v2083, 1
    %vm2100 = vcmp.eq.s32.totalorder %v2084, 1
    %vm2101 = vcmp.eq.s32.totalorder %v2085, 1
    %v2102 = vsel %vm2086, %v1382, 0.0
    %v2103 = vsel %vm2087, %v1381, 0.0
    %v2104 = vsel %vm2088, %v1380, 0.0
    %v2105 = vsel %vm2089, %v1379, 0.0
    %v2106 = vsel %vm2090, %v1378, 0.0
    %v2107 = vsel %vm2091, %v1377, 0.0
    %v2108 = vsel %vm2092, %v1376, 0.0
    %v2109 = vsel %vm2093, %v1375, 0.0
    %v2110 = vsel %vm2094, %v1374, 0.0
    %v2111 = vsel %vm2095, %v1373, 0.0
    %v2112 = vsel %vm2096, %v1372, 0.0
    %v2113 = vsel %vm2097, %v1371, 0.0
    %v2114 = vsel %vm2098, %v1370, 0.0
    %v2115 = vsel %vm2099, %v1369, 0.0
    %v2116 = vsel %vm2100, %v1368, 0.0
    %v2117 = vsel %vm2101, %v1383, 0.0
    %v2118 = vpack.c.bf16 %v2103, %v2102
    %v2119 = vpack.c.bf16 %v2105, %v2104
    %v2120 = vpack.c.bf16 %v2107, %v2106
    %v2121 = vpack.c.bf16 %v2109, %v2108
    %v2122 = vpack.c.bf16 %v2111, %v2110
    %v2123 = vpack.c.bf16 %v2113, %v2112
    %v2124 = vpack.c.bf16 %v2115, %v2114
    %v2125 = vpack.c.bf16 %v2117, %v2116
    %s2126 = scalar_lea.vmem [#allocation13], 320
    %v2127 = vld [vmem:[%s2126] sm:$0xf]
    %v2128 = vld [vmem:[%s2126 + $0x4] sm:$0xf]
    %v2129 = vld [vmem:[%s2126 + $0x8] sm:$0xf]
    %v2130 = vld [vmem:[%s2126 + $0xc] sm:$0xf]
    %v2131 = vld [vmem:[%s2126 + $0x10] sm:$0xf]
    %v2132 = vld [vmem:[%s2126 + $0x14] sm:$0xf]
    %v2133 = vld [vmem:[%s2126 + $0x18] sm:$0xf]
    %v2134 = vld [vmem:[%s2126 + $0x1c] sm:$0xf]
    %v2135 = vld [vmem:[%s2126 + $0x20] sm:$0xf]
    %v2136 = vld [vmem:[%s2126 + $0x24] sm:$0xf]
    %v2137 = vld [vmem:[%s2126 + $0x28] sm:$0xf]
    %v2138 = vld [vmem:[%s2126 + $0x2c] sm:$0xf]
    %v2139 = vld [vmem:[%s2126 + $0x30] sm:$0xf]
    %v2140 = vld [vmem:[%s2126 + $0x34] sm:$0xf]
    %v2141 = vld [vmem:[%s2126 + $0x38] sm:$0xf]
    %v2142 = vld [vmem:[%s2126 + $0x3c] sm:$0xf]
    %v2159 = vunpack.c.l.b16 %v2127
    %v2160 = vunpack.c.l.b16 %v2128
    %v2161 = vunpack.c.l.b16 %v2129
    %v2162 = vunpack.c.l.b16 %v2130
    %v2163 = vunpack.c.l.b16 %v2131
    %v2164 = vunpack.c.l.b16 %v2132
    %v2165 = vunpack.c.l.b16 %v2133
    %v2166 = vunpack.c.l.b16 %v2134
    %v2167 = vunpack.c.l.b16 %v2135
    %v2168 = vunpack.c.l.b16 %v2136
    %v2169 = vunpack.c.l.b16 %v2137
    %v2170 = vunpack.c.l.b16 %v2138
    %v2171 = vunpack.c.l.b16 %v2139
    %v2172 = vunpack.c.l.b16 %v2140
    %v2173 = vunpack.c.l.b16 %v2141
    %v2174 = vunpack.c.l.b16 %v2142
    %v2175 = vpack.c.b16 %v2160, %v2159
    %v2176 = vpack.c.b16 %v2162, %v2161
    %v2177 = vpack.c.b16 %v2164, %v2163
    %v2178 = vpack.c.b16 %v2166, %v2165
    %v2179 = vpack.c.b16 %v2168, %v2167
    %v2180 = vpack.c.b16 %v2170, %v2169
    %v2181 = vpack.c.b16 %v2172, %v2171
    %v2182 = vpack.c.b16 %v2174, %v2173
    %2191 = vmatprep.subr.bf16.mxu0 0
    %2192 = vmatpush1.bf16.msra.mxu0 %v2175
    %2193 = vmatprep.subr.bf16.mxu0 0
    %2194 = vmatpush1.bf16.msra.mxu0 %v2176
    %2195 = vmatprep.subr.bf16.mxu0 0
    %2196 = vmatpush1.bf16.msra.mxu0 %v2177
    %2197 = vmatprep.subr.bf16.mxu0 0
    %2198 = vmatpush1.bf16.msra.mxu0 %v2178
    %2199 = vmatprep.subr.bf16.mxu0 0
    %2200 = vmatpush1.bf16.msra.mxu0 %v2179
    %2201 = vmatprep.subr.bf16.mxu0 0
    %2202 = vmatpush1.bf16.msra.mxu0 %v2180
    %2203 = vmatprep.subr.bf16.mxu0 0
    %2204 = vmatpush1.bf16.msra.mxu0 %v2181
    %2205 = vmatprep.subr.bf16.mxu0 0
    %2206 = vmatpush1.bf16.msra.mxu0 %v2182
    %2207 = vmatprep.subr.bf16.mxu0 0
    %2208 = vmatpush1.bf16.msra.mxu0 0
    %2209 = vmatprep.subr.bf16.mxu0 0
    %2210 = vmatpush1.bf16.msra.mxu0 0
    %2211 = vmatprep.subr.bf16.mxu0 0
    %2212 = vmatpush1.bf16.msra.mxu0 0
    %2213 = vmatprep.subr.bf16.mxu0 0
    %2214 = vmatpush1.bf16.msra.mxu0 0
    %2215 = vmatprep.subr.bf16.mxu0 0
    %2216 = vmatpush1.bf16.msra.mxu0 0
    %2217 = vmatprep.subr.bf16.mxu0 0
    %2218 = vmatpush1.bf16.msra.mxu0 0
    %2219 = vmatprep.subr.bf16.mxu0 0
    %2220 = vmatpush1.bf16.msra.mxu0 0
    %2221 = vmatprep.subr.bf16.mxu0 0
    %2222 = vmatpush1.bf16.msra.mxu0 0
    %2223 = vmatprep.mubr.bf16.mxu0 0
    %2224 = vmatmul.mubr.bf16.gmra.mrb[0].mxu0 %v2118
    %v2225 = vpop.f32.mrb[0].mxu0
    %v2226 = vadd.f32 0.0, %v2225
    %v2227 = vpop.f32.mrb[0].mxu0
    %v2228 = vpop.f32.mrb[0].mxu0
    %v2229 = vadd.f32 0.0, %v2228
    %v2230 = vpop.f32.mrb[0].mxu0
    %2231 = vmatprep.mubr.bf16.mxu0 0
    %2232 = vmatmul.mubr.bf16.gmra.mrb[0].mxu0 %v2119
    %v2233 = vpop.f32.mrb[0].mxu0
    %v2234 = vadd.f32 0.0, %v2233
    %v2235 = vpop.f32.mrb[0].mxu0
    %v2236 = vpop.f32.mrb[0].mxu0
    %v2237 = vadd.f32 0.0, %v2236
    %v2238 = vpop.f32.mrb[0].mxu0
    %2239 = vmatprep.mubr.bf16.mxu0 0
    %2240 = vmatmul.mubr.bf16.gmra.mrb[0].mxu0 %v2120
    %v2241 = vpop.f32.mrb[0].mxu0
    %v2242 = vadd.f32 0.0, %v2241
    %v2243 = vpop.f32.mrb[0].mxu0
    %v2244 = vpop.f32.mrb[0].mxu0
    %v2245 = vadd.f32 0.0, %v2244
    %v2246 = vpop.f32.mrb[0].mxu0
    %2247 = vmatprep.mubr.bf16.mxu0 0
    %2248 = vmatmul.mubr.bf16.gmra.mrb[0].mxu0 %v2121
    %v2249 = vpop.f32.mrb[0].mxu0
    %v2250 = vadd.f32 0.0, %v2249
    %v2251 = vpop.f32.mrb[0].mxu0
    %v2252 = vpop.f32.mrb[0].mxu0
    %v2253 = vadd.f32 0.0, %v2252
    %v2254 = vpop.f32.mrb[0].mxu0
    %2255 = vmatprep.mubr.bf16.mxu0 0
    %2256 = vmatmul.mubr.bf16.gmra.mrb[0].mxu0 %v2122
    %v2257 = vpop.f32.mrb[0].mxu0
    %v2258 = vadd.f32 0.0, %v2257
    %v2259 = vpop.f32.mrb[0].mxu0
    %v2260 = vpop.f32.mrb[0].mxu0
    %v2261 = vadd.f32 0.0, %v2260
    %v2262 = vpop.f32.mrb[0].mxu0
    %2263 = vmatprep.mubr.bf16.mxu0 0
    %2264 = vmatmul.mubr.bf16.gmra.mrb[0].mxu0 %v2123
    %v2265 = vpop.f32.mrb[0].mxu0
    %v2266 = vadd.f32 0.0, %v2265
    %v2267 = vpop.f32.mrb[0].mxu0
    %v2268 = vpop.f32.mrb[0].mxu0
    %v2269 = vadd.f32 0.0, %v2268
    %v2270 = vpop.f32.mrb[0].mxu0
    %2271 = vmatprep.mubr.bf16.mxu0 0
    %2272 = vmatmul.mubr.bf16.gmra.mrb[0].mxu0 %v2124
    %v2273 = vpop.f32.mrb[0].mxu0
    %v2274 = vadd.f32 0.0, %v2273
    %v2275 = vpop.f32.mrb[0].mxu0
    %v2276 = vpop.f32.mrb[0].mxu0
    %v2277 = vadd.f32 0.0, %v2276
    %v2278 = vpop.f32.mrb[0].mxu0
    %2279 = vmatprep.mubr.bf16.mxu0 0
    %2280 = vmatmul.mubr.bf16.gmra.mrb[0].mxu0 %v2125
    %v2281 = vpop.f32.mrb[0].mxu0
    %v2282 = vadd.f32 0.0, %v2281
    %v2283 = vpop.f32.mrb[0].mxu0
    %v2284 = vpop.f32.mrb[0].mxu0
    %v2285 = vadd.f32 0.0, %v2284
    %v2286 = vpop.f32.mrb[0].mxu0
    %2287 = vdwg.mxu0
    %v2288 = vadd.f32 %v2054, %v2226
    %v2289 = vadd.f32 %v2055, %v2229
    %v2290 = vadd.f32 %v2056, %v2234
    %v2291 = vadd.f32 %v2057, %v2237
    %v2292 = vadd.f32 %v2058, %v2242
    %v2293 = vadd.f32 %v2059, %v2245
    %v2294 = vadd.f32 %v2060, %v2250
    %v2295 = vadd.f32 %v2061, %v2253
    %v2296 = vadd.f32 %v2062, %v2258
    %v2297 = vadd.f32 %v2063, %v2261
    %v2298 = vadd.f32 %v2064, %v2266
    %v2299 = vadd.f32 %v2065, %v2269
    %v2300 = vadd.f32 %v2066, %v2274
    %v2301 = vadd.f32 %v2067, %v2277
    %v2302 = vadd.f32 %v2068, %v2282
    %v2303 = vadd.f32 %v2069, %v2285
    %vm2304 = vcmp.lt.f32.partialorder %v819, 7.0
    %vm2305 = vcmp.lt.f32.partialorder %v820, 7.0
    %vm2306 = vcmp.lt.f32.partialorder %v821, 7.0
    %vm2307 = vcmp.lt.f32.partialorder %v822, 7.0
    %vm2308 = vcmp.lt.f32.partialorder %v823, 7.0
    %vm2309 = vcmp.lt.f32.partialorder %v824, 7.0
    %vm2310 = vcmp.lt.f32.partialorder %v825, 7.0
    %vm2311 = vcmp.lt.f32.partialorder %v826, 7.0
    %vm2312 = vcmp.lt.f32.partialorder %v827, 7.0
    %vm2313 = vcmp.lt.f32.partialorder %v828, 7.0
    %vm2314 = vcmp.lt.f32.partialorder %v829, 7.0
    %vm2315 = vcmp.lt.f32.partialorder %v830, 7.0
    %vm2316 = vcmp.lt.f32.partialorder %v831, 7.0
    %vm2317 = vcmp.lt.f32.partialorder %v832, 7.0
    %vm2318 = vcmp.lt.f32.partialorder %v833, 7.0
    %vm2319 = vcmp.lt.f32.partialorder %v834, 7.0
    %vm2320 = vmand %vm2304, %vm884
    %vm2321 = vmand %vm2305, %vm885
    %vm2322 = vmand %vm2306, %vm886
    %vm2323 = vmand %vm2307, %vm887
    %vm2324 = vmand %vm2308, %vm888
    %vm2325 = vmand %vm2309, %vm889
    %vm2326 = vmand %vm2310, %vm890
    %vm2327 = vmand %vm2311, %vm891
    %vm2328 = vmand %vm2312, %vm892
    %vm2329 = vmand %vm2313, %vm893
    %vm2330 = vmand %vm2314, %vm894
    %vm2331 = vmand %vm2315, %vm895
    %vm2332 = vmand %vm2316, %vm896
    %vm2333 = vmand %vm2317, %vm897
    %vm2334 = vmand %vm2318, %vm898
    %vm2335 = vmand %vm2319, %vm899
    %v2336 = vsel %vm2320, 1, 0
    %v2337 = vsel %vm2321, 1, 0
    %v2338 = vsel %vm2322, 1, 0
    %v2339 = vsel %vm2323, 1, 0
    %v2340 = vsel %vm2324, 1, 0
    %v2341 = vsel %vm2325, 1, 0
    %v2342 = vsel %vm2326, 1, 0
    %v2343 = vsel %vm2327, 1, 0
    %v2344 = vsel %vm2328, 1, 0
    %v2345 = vsel %vm2329, 1, 0
    %v2346 = vsel %vm2330, 1, 0
    %v2347 = vsel %vm2331, 1, 0
    %v2348 = vsel %vm2332, 1, 0
    %v2349 = vsel %vm2333, 1, 0
    %v2350 = vsel %vm2334, 1, 0
    %v2351 = vsel %vm2335, 1, 0
    %vm2352 = vcmp.eq.s32.totalorder %v2336, 1
    %vm2353 = vcmp.eq.s32.totalorder %v2337, 1
    %vm2354 = vcmp.eq.s32.totalorder %v2338, 1
    %vm2355 = vcmp.eq.s32.totalorder %v2339, 1
    %vm2356 = vcmp.eq.s32.totalorder %v2340, 1
    %vm2357 = vcmp.eq.s32.totalorder %v2341, 1
    %vm2358 = vcmp.eq.s32.totalorder %v2342, 1
    %vm2359 = vcmp.eq.s32.totalorder %v2343, 1
    %vm2360 = vcmp.eq.s32.totalorder %v2344, 1
    %vm2361 = vcmp.eq.s32.totalorder %v2345, 1
    %vm2362 = vcmp.eq.s32.totalorder %v2346, 1
    %vm2363 = vcmp.eq.s32.totalorder %v2347, 1
    %vm2364 = vcmp.eq.s32.totalorder %v2348, 1
    %vm2365 = vcmp.eq.s32.totalorder %v2349, 1
    %vm2366 = vcmp.eq.s32.totalorder %v2350, 1
    %vm2367 = vcmp.eq.s32.totalorder %v2351, 1
    %v2368 = vsel %vm2352, %v866, 0.0
    %v2369 = vsel %vm2353, %v865, 0.0
    %v2370 = vsel %vm2354, %v864, 0.0
    %v2371 = vsel %vm2355, %v863, 0.0
    %v2372 = vsel %vm2356, %v862, 0.0
    %v2373 = vsel %vm2357, %v861, 0.0
    %v2374 = vsel %vm2358, %v860, 0.0
    %v2375 = vsel %vm2359, %v859, 0.0
    %v2376 = vsel %vm2360, %v858, 0.0
    %v2377 = vsel %vm2361, %v857, 0.0
    %v2378 = vsel %vm2362, %v856, 0.0
    %v2379 = vsel %vm2363, %v855, 0.0
    %v2380 = vsel %vm2364, %v854, 0.0
    %v2381 = vsel %vm2365, %v853, 0.0
    %v2382 = vsel %vm2366, %v852, 0.0
    %v2383 = vsel %vm2367, %v867, 0.0
    %v2384 = vpack.c.bf16 %v2369, %v2368
    %v2385 = vpack.c.bf16 %v2371, %v2370
    %v2386 = vpack.c.bf16 %v2373, %v2372
    %v2387 = vpack.c.bf16 %v2375, %v2374
    %v2388 = vpack.c.bf16 %v2377, %v2376
    %v2389 = vpack.c.bf16 %v2379, %v2378
    %v2390 = vpack.c.bf16 %v2381, %v2380
    %v2391 = vpack.c.bf16 %v2383, %v2382
    %s2392 = scalar_lea.vmem [#allocation13], 384
    %v2393 = vld [vmem:[%s2392] sm:$0xf]
    %v2394 = vld [vmem:[%s2392 + $0x4] sm:$0xf]
    %v2395 = vld [vmem:[%s2392 + $0x8] sm:$0xf]
    %v2396 = vld [vmem:[%s2392 + $0xc] sm:$0xf]
    %v2397 = vld [vmem:[%s2392 + $0x10] sm:$0xf]
    %v2398 = vld [vmem:[%s2392 + $0x14] sm:$0xf]
    %v2399 = vld [vmem:[%s2392 + $0x18] sm:$0xf]
    %v2400 = vld [vmem:[%s2392 + $0x1c] sm:$0xf]
    %v2401 = vld [vmem:[%s2392 + $0x20] sm:$0xf]
    %v2402 = vld [vmem:[%s2392 + $0x24] sm:$0xf]
    %v2403 = vld [vmem:[%s2392 + $0x28] sm:$0xf]
    %v2404 = vld [vmem:[%s2392 + $0x2c] sm:$0xf]
    %v2405 = vld [vmem:[%s2392 + $0x30] sm:$0xf]
    %v2406 = vld [vmem:[%s2392 + $0x34] sm:$0xf]
    %v2407 = vld [vmem:[%s2392 + $0x38] sm:$0xf]
    %v2408 = vld [vmem:[%s2392 + $0x3c] sm:$0xf]
    %v2425 = vunpack.c.l.b16 %v2393
    %v2426 = vunpack.c.l.b16 %v2394
    %v2427 = vunpack.c.l.b16 %v2395
    %v2428 = vunpack.c.l.b16 %v2396
    %v2429 = vunpack.c.l.b16 %v2397
    %v2430 = vunpack.c.l.b16 %v2398
    %v2431 = vunpack.c.l.b16 %v2399
    %v2432 = vunpack.c.l.b16 %v2400
    %v2433 = vunpack.c.l.b16 %v2401
    %v2434 = vunpack.c.l.b16 %v2402
    %v2435 = vunpack.c.l.b16 %v2403
    %v2436 = vunpack.c.l.b16 %v2404
    %v2437 = vunpack.c.l.b16 %v2405
    %v2438 = vunpack.c.l.b16 %v2406
    %v2439 = vunpack.c.l.b16 %v2407
    %v2440 = vunpack.c.l.b16 %v2408
    %v2441 = vpack.c.b16 %v2426, %v2425
    %v2442 = vpack.c.b16 %v2428, %v2427
    %v2443 = vpack.c.b16 %v2430, %v2429
    %v2444 = vpack.c.b16 %v2432, %v2431
    %v2445 = vpack.c.b16 %v2434, %v2433
    %v2446 = vpack.c.b16 %v2436, %v2435
    %v2447 = vpack.c.b16 %v2438, %v2437
    %v2448 = vpack.c.b16 %v2440, %v2439
    %2457 = vmatprep.subr.bf16.mxu0 0
    %2458 = vmatpush1.bf16.msra.mxu0 %v2441
    %2459 = vmatprep.subr.bf16.mxu0 0
    %2460 = vmatpush1.bf16.msra.mxu0 %v2442
    %2461 = vmatprep.subr.bf16.mxu0 0
    %2462 = vmatpush1.bf16.msra.mxu0 %v2443
    %2463 = vmatprep.subr.bf16.mxu0 0
    %2464 = vmatpush1.bf16.msra.mxu0 %v2444
    %2465 = vmatprep.subr.bf16.mxu0 0
    %2466 = vmatpush1.bf16.msra.mxu0 %v2445
    %2467 = vmatprep.subr.bf16.mxu0 0
    %2468 = vmatpush1.bf16.msra.mxu0 %v2446
    %2469 = vmatprep.subr.bf16.mxu0 0
    %2470 = vmatpush1.bf16.msra.mxu0 %v2447
    %2471 = vmatprep.subr.bf16.mxu0 0
    %2472 = vmatpush1.bf16.msra.mxu0 %v2448
    %2473 = vmatprep.subr.bf16.mxu0 0
    %2474 = vmatpush1.bf16.msra.mxu0 0
    %2475 = vmatprep.subr.bf16.mxu0 0
    %2476 = vmatpush1.bf16.msra.mxu0 0
    %2477 = vmatprep.subr.bf16.mxu0 0
    %2478 = vmatpush1.bf16.msra.mxu0 0
    %2479 = vmatprep.subr.bf16.mxu0 0
    %2480 = vmatpush1.bf16.msra.mxu0 0
    %2481 = vmatprep.subr.bf16.mxu0 0
    %2482 = vmatpush1.bf16.msra.mxu0 0
    %2483 = vmatprep.subr.bf16.mxu0 0
    %2484 = vmatpush1.bf16.msra.mxu0 0
    %2485 = vmatprep.subr.bf16.mxu0 0
    %2486 = vmatpush1.bf16.msra.mxu0 0
    %2487 = vmatprep.subr.bf16.mxu0 0
    %2488 = vmatpush1.bf16.msra.mxu0 0
    %2489 = vmatprep.mubr.bf16.mxu0 0
    %2490 = vmatmul.mubr.bf16.gmra.mrb[0].mxu0 %v2384
    %v2491 = vpop.f32.mrb[0].mxu0
    %v2492 = vadd.f32 0.0, %v2491
    %v2493 = vpop.f32.mrb[0].mxu0
    %v2494 = vpop.f32.mrb[0].mxu0
    %v2495 = vadd.f32 0.0, %v2494
    %v2496 = vpop.f32.mrb[0].mxu0
    %2497 = vmatprep.mubr.bf16.mxu0 0
    %2498 = vmatmul.mubr.bf16.gmra.mrb[0].mxu0 %v2385
    %v2499 = vpop.f32.mrb[0].mxu0
    %v2500 = vadd.f32 0.0, %v2499
    %v2501 = vpop.f32.mrb[0].mxu0
    %v2502 = vpop.f32.mrb[0].mxu0
    %v2503 = vadd.f32 0.0, %v2502
    %v2504 = vpop.f32.mrb[0].mxu0
    %2505 = vmatprep.mubr.bf16.mxu0 0
    %2506 = vmatmul.mubr.bf16.gmra.mrb[0].mxu0 %v2386
    %v2507 = vpop.f32.mrb[0].mxu0
    %v2508 = vadd.f32 0.0, %v2507
    %v2509 = vpop.f32.mrb[0].mxu0
    %v2510 = vpop.f32.mrb[0].mxu0
    %v2511 = vadd.f32 0.0, %v2510
    %v2512 = vpop.f32.mrb[0].mxu0
    %2513 = vmatprep.mubr.bf16.mxu0 0
    %2514 = vmatmul.mubr.bf16.gmra.mrb[0].mxu0 %v2387
    %v2515 = vpop.f32.mrb[0].mxu0
    %v2516 = vadd.f32 0.0, %v2515
    %v2517 = vpop.f32.mrb[0].mxu0
    %v2518 = vpop.f32.mrb[0].mxu0
    %v2519 = vadd.f32 0.0, %v2518
    %v2520 = vpop.f32.mrb[0].mxu0
    %2521 = vmatprep.mubr.bf16.mxu0 0
    %2522 = vmatmul.mubr.bf16.gmra.mrb[0].mxu0 %v2388
    %v2523 = vpop.f32.mrb[0].mxu0
    %v2524 = vadd.f32 0.0, %v2523
    %v2525 = vpop.f32.mrb[0].mxu0
    %v2526 = vpop.f32.mrb[0].mxu0
    %v2527 = vadd.f32 0.0, %v2526
    %v2528 = vpop.f32.mrb[0].mxu0
    %2529 = vmatprep.mubr.bf16.mxu0 0
    %2530 = vmatmul.mubr.bf16.gmra.mrb[0].mxu0 %v2389
    %v2531 = vpop.f32.mrb[0].mxu0
    %v2532 = vadd.f32 0.0, %v2531
    %v2533 = vpop.f32.mrb[0].mxu0
    %v2534 = vpop.f32.mrb[0].mxu0
    %v2535 = vadd.f32 0.0, %v2534
    %v2536 = vpop.f32.mrb[0].mxu0
    %2537 = vmatprep.mubr.bf16.mxu0 0
    %2538 = vmatmul.mubr.bf16.gmra.mrb[0].mxu0 %v2390
    %v2539 = vpop.f32.mrb[0].mxu0
    %v2540 = vadd.f32 0.0, %v2539
    %v2541 = vpop.f32.mrb[0].mxu0
    %v2542 = vpop.f32.mrb[0].mxu0
    %v2543 = vadd.f32 0.0, %v2542
    %v2544 = vpop.f32.mrb[0].mxu0
    %2545 = vmatprep.mubr.bf16.mxu0 0
    %2546 = vmatmul.mubr.bf16.gmra.mrb[0].mxu0 %v2391
    %v2547 = vpop.f32.mrb[0].mxu0
    %v2548 = vadd.f32 0.0, %v2547
    %v2549 = vpop.f32.mrb[0].mxu0
    %v2550 = vpop.f32.mrb[0].mxu0
    %v2551 = vadd.f32 0.0, %v2550
    %v2552 = vpop.f32.mrb[0].mxu0
    %2553 = vdwg.mxu0
    %v2554 = vadd.f32 %v2288, %v2492
    %v2555 = vadd.f32 %v2289, %v2495
    %v2556 = vadd.f32 %v2290, %v2500
    %v2557 = vadd.f32 %v2291, %v2503
    %v2558 = vadd.f32 %v2292, %v2508
    %v2559 = vadd.f32 %v2293, %v2511
    %v2560 = vadd.f32 %v2294, %v2516
    %v2561 = vadd.f32 %v2295, %v2519
    %v2562 = vadd.f32 %v2296, %v2524
    %v2563 = vadd.f32 %v2297, %v2527
    %v2564 = vadd.f32 %v2298, %v2532
    %v2565 = vadd.f32 %v2299, %v2535
    %v2566 = vadd.f32 %v2300, %v2540
    %v2567 = vadd.f32 %v2301, %v2543
    %v2568 = vadd.f32 %v2302, %v2548
    %v2569 = vadd.f32 %v2303, %v2551
    %v2570 = vsel %vm2304, 1, 0
    %v2571 = vsel %vm2305, 1, 0
    %v2572 = vsel %vm2306, 1, 0
    %v2573 = vsel %vm2307, 1, 0
    %v2574 = vsel %vm2308, 1, 0
    %v2575 = vsel %vm2309, 1, 0
    %v2576 = vsel %vm2310, 1, 0
    %v2577 = vsel %vm2311, 1, 0
    %v2578 = vsel %vm2312, 1, 0
    %v2579 = vsel %vm2313, 1, 0
    %v2580 = vsel %vm2314, 1, 0
    %v2581 = vsel %vm2315, 1, 0
    %v2582 = vsel %vm2316, 1, 0
    %v2583 = vsel %vm2317, 1, 0
    %v2584 = vsel %vm2318, 1, 0
    %v2585 = vsel %vm2319, 1, 0
    %vm2586 = vcmp.eq.s32.totalorder %v2570, 1
    %vm2587 = vcmp.eq.s32.totalorder %v2571, 1
    %vm2588 = vcmp.eq.s32.totalorder %v2572, 1
    %vm2589 = vcmp.eq.s32.totalorder %v2573, 1
    %vm2590 = vcmp.eq.s32.totalorder %v2574, 1
    %vm2591 = vcmp.eq.s32.totalorder %v2575, 1
    %vm2592 = vcmp.eq.s32.totalorder %v2576, 1
    %vm2593 = vcmp.eq.s32.totalorder %v2577, 1
    %vm2594 = vcmp.eq.s32.totalorder %v2578, 1
    %vm2595 = vcmp.eq.s32.totalorder %v2579, 1
    %vm2596 = vcmp.eq.s32.totalorder %v2580, 1
    %vm2597 = vcmp.eq.s32.totalorder %v2581, 1
    %vm2598 = vcmp.eq.s32.totalorder %v2582, 1
    %vm2599 = vcmp.eq.s32.totalorder %v2583, 1
    %vm2600 = vcmp.eq.s32.totalorder %v2584, 1
    %vm2601 = vcmp.eq.s32.totalorder %v2585, 1
    %v2602 = vsel %vm2586, %v502, 0.0
    %v2603 = vsel %vm2587, %v503, 0.0
    %v2604 = vsel %vm2588, %v504, 0.0
    %v2605 = vsel %vm2589, %v505, 0.0
    %v2606 = vsel %vm2590, %v506, 0.0
    %v2607 = vsel %vm2591, %v507, 0.0
    %v2608 = vsel %vm2592, %v508, 0.0
    %v2609 = vsel %vm2593, %v509, 0.0
    %v2610 = vsel %vm2594, %v510, 0.0
    %v2611 = vsel %vm2595, %v511, 0.0
    %v2612 = vsel %vm2596, %v512, 0.0
    %v2613 = vsel %vm2597, %v513, 0.0
    %v2614 = vsel %vm2598, %v514, 0.0
    %v2615 = vsel %vm2599, %v515, 0.0
    %v2616 = vsel %vm2600, %v516, 0.0
    %v2617 = vsel %vm2601, %v501, 0.0
    %v2618 = vpack.c.bf16 %v2603, %v2602
    %v2619 = vpack.c.bf16 %v2605, %v2604
    %v2620 = vpack.c.bf16 %v2607, %v2606
    %v2621 = vpack.c.bf16 %v2609, %v2608
    %v2622 = vpack.c.bf16 %v2611, %v2610
    %v2623 = vpack.c.bf16 %v2613, %v2612
    %v2624 = vpack.c.bf16 %v2615, %v2614
    %v2625 = vpack.c.bf16 %v2617, %v2616
    %s2626 = scalar_lea.vmem [#allocation13], 448
    %v2627 = vld [vmem:[%s2626] sm:$0xf]
    %v2628 = vld [vmem:[%s2626 + $0x4] sm:$0xf]
    %v2629 = vld [vmem:[%s2626 + $0x8] sm:$0xf]
    %v2630 = vld [vmem:[%s2626 + $0xc] sm:$0xf]
    %v2631 = vld [vmem:[%s2626 + $0x10] sm:$0xf]
    %v2632 = vld [vmem:[%s2626 + $0x14] sm:$0xf]
    %v2633 = vld [vmem:[%s2626 + $0x18] sm:$0xf]
    %v2634 = vld [vmem:[%s2626 + $0x1c] sm:$0xf]
    %v2635 = vld [vmem:[%s2626 + $0x20] sm:$0xf]
    %v2636 = vld [vmem:[%s2626 + $0x24] sm:$0xf]
    %v2637 = vld [vmem:[%s2626 + $0x28] sm:$0xf]
    %v2638 = vld [vmem:[%s2626 + $0x2c] sm:$0xf]
    %v2639 = vld [vmem:[%s2626 + $0x30] sm:$0xf]
    %v2640 = vld [vmem:[%s2626 + $0x34] sm:$0xf]
    %v2641 = vld [vmem:[%s2626 + $0x38] sm:$0xf]
    %v2642 = vld [vmem:[%s2626 + $0x3c] sm:$0xf]
    %v2659 = vunpack.c.l.b16 %v2627
    %v2660 = vunpack.c.l.b16 %v2628
    %v2661 = vunpack.c.l.b16 %v2629
    %v2662 = vunpack.c.l.b16 %v2630
    %v2663 = vunpack.c.l.b16 %v2631
    %v2664 = vunpack.c.l.b16 %v2632
    %v2665 = vunpack.c.l.b16 %v2633
    %v2666 = vunpack.c.l.b16 %v2634
    %v2667 = vunpack.c.l.b16 %v2635
    %v2668 = vunpack.c.l.b16 %v2636
    %v2669 = vunpack.c.l.b16 %v2637
    %v2670 = vunpack.c.l.b16 %v2638
    %v2671 = vunpack.c.l.b16 %v2639
    %v2672 = vunpack.c.l.b16 %v2640
    %v2673 = vunpack.c.l.b16 %v2641
    %v2674 = vunpack.c.l.b16 %v2642
    %v2675 = vpack.c.b16 %v2660, %v2659
    %v2676 = vpack.c.b16 %v2662, %v2661
    %v2677 = vpack.c.b16 %v2664, %v2663
    %v2678 = vpack.c.b16 %v2666, %v2665
    %v2679 = vpack.c.b16 %v2668, %v2667
    %v2680 = vpack.c.b16 %v2670, %v2669
    %v2681 = vpack.c.b16 %v2672, %v2671
    %v2682 = vpack.c.b16 %v2674, %v2673
    %2691 = vmatprep.subr.bf16.mxu0 0
    %2692 = vmatpush1.bf16.msra.mxu0 %v2675
    %2693 = vmatprep.subr.bf16.mxu0 0
    %2694 = vmatpush1.bf16.msra.mxu0 %v2676
    %2695 = vmatprep.subr.bf16.mxu0 0
    %2696 = vmatpush1.bf16.msra.mxu0 %v2677
    %2697 = vmatprep.subr.bf16.mxu0 0
    %2698 = vmatpush1.bf16.msra.mxu0 %v2678
    %2699 = vmatprep.subr.bf16.mxu0 0
    %2700 = vmatpush1.bf16.msra.mxu0 %v2679
    %2701 = vmatprep.subr.bf16.mxu0 0
    %2702 = vmatpush1.bf16.msra.mxu0 %v2680
    %2703 = vmatprep.subr.bf16.mxu0 0
    %2704 = vmatpush1.bf16.msra.mxu0 %v2681
    %2705 = vmatprep.subr.bf16.mxu0 0
    %2706 = vmatpush1.bf16.msra.mxu0 %v2682
    %2707 = vmatprep.subr.bf16.mxu0 0
    %2708 = vmatpush1.bf16.msra.mxu0 0
    %2709 = vmatprep.subr.bf16.mxu0 0
    %2710 = vmatpush1.bf16.msra.mxu0 0
    %2711 = vmatprep.subr.bf16.mxu0 0
    %2712 = vmatpush1.bf16.msra.mxu0 0
    %2713 = vmatprep.subr.bf16.mxu0 0
    %2714 = vmatpush1.bf16.msra.mxu0 0
    %2715 = vmatprep.subr.bf16.mxu0 0
    %2716 = vmatpush1.bf16.msra.mxu0 0
    %2717 = vmatprep.subr.bf16.mxu0 0
    %2718 = vmatpush1.bf16.msra.mxu0 0
    %2719 = vmatprep.subr.bf16.mxu0 0
    %2720 = vmatpush1.bf16.msra.mxu0 0
    %2721 = vmatprep.subr.bf16.mxu0 0
    %2722 = vmatpush1.bf16.msra.mxu0 0
    %2723 = vmatprep.mubr.bf16.mxu0 0
    %2724 = vmatmul.mubr.bf16.gmra.mrb[0].mxu0 %v2618
    %v2725 = vpop.f32.mrb[0].mxu0
    %v2726 = vadd.f32 0.0, %v2725
    %v2727 = vpop.f32.mrb[0].mxu0
    %v2728 = vpop.f32.mrb[0].mxu0
    %v2729 = vadd.f32 0.0, %v2728
    %v2730 = vpop.f32.mrb[0].mxu0
    %2731 = vmatprep.mubr.bf16.mxu0 0
    %2732 = vmatmul.mubr.bf16.gmra.mrb[0].mxu0 %v2619
    %v2733 = vpop.f32.mrb[0].mxu0
    %v2734 = vadd.f32 0.0, %v2733
    %v2735 = vpop.f32.mrb[0].mxu0
    %v2736 = vpop.f32.mrb[0].mxu0
    %v2737 = vadd.f32 0.0, %v2736
    %v2738 = vpop.f32.mrb[0].mxu0
    %2739 = vmatprep.mubr.bf16.mxu0 0
    %2740 = vmatmul.mubr.bf16.gmra.mrb[0].mxu0 %v2620
    %v2741 = vpop.f32.mrb[0].mxu0
    %v2742 = vadd.f32 0.0, %v2741
    %v2743 = vpop.f32.mrb[0].mxu0
    %v2744 = vpop.f32.mrb[0].mxu0
    %v2745 = vadd.f32 0.0, %v2744
    %v2746 = vpop.f32.mrb[0].mxu0
    %2747 = vmatprep.mubr.bf16.mxu0 0
    %2748 = vmatmul.mubr.bf16.gmra.mrb[0].mxu0 %v2621
    %v2749 = vpop.f32.mrb[0].mxu0
    %v2750 = vadd.f32 0.0, %v2749
    %v2751 = vpop.f32.mrb[0].mxu0
    %v2752 = vpop.f32.mrb[0].mxu0
    %v2753 = vadd.f32 0.0, %v2752
    %v2754 = vpop.f32.mrb[0].mxu0
    %2755 = vmatprep.mubr.bf16.mxu0 0
    %2756 = vmatmul.mubr.bf16.gmra.mrb[0].mxu0 %v2622
    %v2757 = vpop.f32.mrb[0].mxu0
    %v2758 = vadd.f32 0.0, %v2757
    %v2759 = vpop.f32.mrb[0].mxu0
    %v2760 = vpop.f32.mrb[0].mxu0
    %v2761 = vadd.f32 0.0, %v2760
    %v2762 = vpop.f32.mrb[0].mxu0
    %2763 = vmatprep.mubr.bf16.mxu0 0
    %2764 = vmatmul.mubr.bf16.gmra.mrb[0].mxu0 %v2623
    %v2765 = vpop.f32.mrb[0].mxu0
    %v2766 = vadd.f32 0.0, %v2765
    %v2767 = vpop.f32.mrb[0].mxu0
    %v2768 = vpop.f32.mrb[0].mxu0
    %v2769 = vadd.f32 0.0, %v2768
    %v2770 = vpop.f32.mrb[0].mxu0
    %2771 = vmatprep.mubr.bf16.mxu0 0
    %2772 = vmatmul.mubr.bf16.gmra.mrb[0].mxu0 %v2624
    %v2773 = vpop.f32.mrb[0].mxu0
    %v2774 = vadd.f32 0.0, %v2773
    %v2775 = vpop.f32.mrb[0].mxu0
    %v2776 = vpop.f32.mrb[0].mxu0
    %v2777 = vadd.f32 0.0, %v2776
    %v2778 = vpop.f32.mrb[0].mxu0
    %2779 = vmatprep.mubr.bf16.mxu0 0
    %2780 = vmatmul.mubr.bf16.gmra.mrb[0].mxu0 %v2625
    %v2781 = vpop.f32.mrb[0].mxu0
    %v2782 = vadd.f32 0.0, %v2781
    %v2783 = vpop.f32.mrb[0].mxu0
    %v2784 = vpop.f32.mrb[0].mxu0
    %v2785 = vadd.f32 0.0, %v2784
    %v2786 = vpop.f32.mrb[0].mxu0
    %2787 = vdwg.mxu0
    %v2788 = vadd.f32 %v2554, %v2726
    %v2789 = vadd.f32 %v2555, %v2729
    %v2790 = vadd.f32 %v2556, %v2734
    %v2791 = vadd.f32 %v2557, %v2737
    %v2792 = vadd.f32 %v2558, %v2742
    %v2793 = vadd.f32 %v2559, %v2745
    %v2794 = vadd.f32 %v2560, %v2750
    %v2795 = vadd.f32 %v2561, %v2753
    %v2796 = vadd.f32 %v2562, %v2758
    %v2797 = vadd.f32 %v2563, %v2761
    %v2798 = vadd.f32 %v2564, %v2766
    %v2799 = vadd.f32 %v2565, %v2769
    %v2800 = vadd.f32 %v2566, %v2774
    %v2801 = vadd.f32 %v2567, %v2777
    %v2802 = vadd.f32 %v2568, %v2782
    %v2803 = vadd.f32 %v2569, %v2785
    %vm2804 = vmand %vm2304, %vm1384
    %vm2805 = vmand %vm2305, %vm1385
    %vm2806 = vmand %vm2306, %vm1386
    %vm2807 = vmand %vm2307, %vm1387
    %vm2808 = vmand %vm2308, %vm1388
    %vm2809 = vmand %vm2309, %vm1389
    %vm2810 = vmand %vm2310, %vm1390
    %vm2811 = vmand %vm2311, %vm1391
    %vm2812 = vmand %vm2312, %vm1392
    %vm2813 = vmand %vm2313, %vm1393
    %vm2814 = vmand %vm2314, %vm1394
    %vm2815 = vmand %vm2315, %vm1395
    %vm2816 = vmand %vm2316, %vm1396
    %vm2817 = vmand %vm2317, %vm1397
    %vm2818 = vmand %vm2318, %vm1398
    %vm2819 = vmand %vm2319, %vm1399
    %v2820 = vsel %vm2804, 1, 0
    %v2821 = vsel %vm2805, 1, 0
    %v2822 = vsel %vm2806, 1, 0
    %v2823 = vsel %vm2807, 1, 0
    %v2824 = vsel %vm2808, 1, 0
    %v2825 = vsel %vm2809, 1, 0
    %v2826 = vsel %vm2810, 1, 0
    %v2827 = vsel %vm2811, 1, 0
    %v2828 = vsel %vm2812, 1, 0
    %v2829 = vsel %vm2813, 1, 0
    %v2830 = vsel %vm2814, 1, 0
    %v2831 = vsel %vm2815, 1, 0
    %v2832 = vsel %vm2816, 1, 0
    %v2833 = vsel %vm2817, 1, 0
    %v2834 = vsel %vm2818, 1, 0
    %v2835 = vsel %vm2819, 1, 0
    %vm2836 = vcmp.eq.s32.totalorder %v2820, 1
    %vm2837 = vcmp.eq.s32.totalorder %v2821, 1
    %vm2838 = vcmp.eq.s32.totalorder %v2822, 1
    %vm2839 = vcmp.eq.s32.totalorder %v2823, 1
    %vm2840 = vcmp.eq.s32.totalorder %v2824, 1
    %vm2841 = vcmp.eq.s32.totalorder %v2825, 1
    %vm2842 = vcmp.eq.s32.totalorder %v2826, 1
    %vm2843 = vcmp.eq.s32.totalorder %v2827, 1
    %vm2844 = vcmp.eq.s32.totalorder %v2828, 1
    %vm2845 = vcmp.eq.s32.totalorder %v2829, 1
    %vm2846 = vcmp.eq.s32.totalorder %v2830, 1
    %vm2847 = vcmp.eq.s32.totalorder %v2831, 1
    %vm2848 = vcmp.eq.s32.totalorder %v2832, 1
    %vm2849 = vcmp.eq.s32.totalorder %v2833, 1
    %vm2850 = vcmp.eq.s32.totalorder %v2834, 1
    %vm2851 = vcmp.eq.s32.totalorder %v2835, 1
    %v2852 = vsel %vm2836, %v1381, 0.0
    %v2853 = vsel %vm2837, %v1380, 0.0
    %v2854 = vsel %vm2838, %v1379, 0.0
    %v2855 = vsel %vm2839, %v1378, 0.0
    %v2856 = vsel %vm2840, %v1377, 0.0
    %v2857 = vsel %vm2841, %v1376, 0.0
    %v2858 = vsel %vm2842, %v1375, 0.0
    %v2859 = vsel %vm2843, %v1374, 0.0
    %v2860 = vsel %vm2844, %v1373, 0.0
    %v2861 = vsel %vm2845, %v1372, 0.0
    %v2862 = vsel %vm2846, %v1371, 0.0
    %v2863 = vsel %vm2847, %v1370, 0.0
    %v2864 = vsel %vm2848, %v1369, 0.0
    %v2865 = vsel %vm2849, %v1368, 0.0
    %v2866 = vsel %vm2850, %v1383, 0.0
    %v2867 = vsel %vm2851, %v1382, 0.0
    %v2868 = vpack.c.bf16 %v2853, %v2852
    %v2869 = vpack.c.bf16 %v2855, %v2854
    %v2870 = vpack.c.bf16 %v2857, %v2856
    %v2871 = vpack.c.bf16 %v2859, %v2858
    %v2872 = vpack.c.bf16 %v2861, %v2860
    %v2873 = vpack.c.bf16 %v2863, %v2862
    %v2874 = vpack.c.bf16 %v2865, %v2864
    %v2875 = vpack.c.bf16 %v2867, %v2866
    %s2876 = scalar_lea.vmem [#allocation13], 512
    %v2877 = vld [vmem:[%s2876] sm:$0xf]
    %v2878 = vld [vmem:[%s2876 + $0x4] sm:$0xf]
    %v2879 = vld [vmem:[%s2876 + $0x8] sm:$0xf]
    %v2880 = vld [vmem:[%s2876 + $0xc] sm:$0xf]
    %v2881 = vld [vmem:[%s2876 + $0x10] sm:$0xf]
    %v2882 = vld [vmem:[%s2876 + $0x14] sm:$0xf]
    %v2883 = vld [vmem:[%s2876 + $0x18] sm:$0xf]
    %v2884 = vld [vmem:[%s2876 + $0x1c] sm:$0xf]
    %v2885 = vld [vmem:[%s2876 + $0x20] sm:$0xf]
    %v2886 = vld [vmem:[%s2876 + $0x24] sm:$0xf]
    %v2887 = vld [vmem:[%s2876 + $0x28] sm:$0xf]
    %v2888 = vld [vmem:[%s2876 + $0x2c] sm:$0xf]
    %v2889 = vld [vmem:[%s2876 + $0x30] sm:$0xf]
    %v2890 = vld [vmem:[%s2876 + $0x34] sm:$0xf]
    %v2891 = vld [vmem:[%s2876 + $0x38] sm:$0xf]
    %v2892 = vld [vmem:[%s2876 + $0x3c] sm:$0xf]
    %v2909 = vunpack.c.l.b16 %v2877
    %v2910 = vunpack.c.l.b16 %v2878
    %v2911 = vunpack.c.l.b16 %v2879
    %v2912 = vunpack.c.l.b16 %v2880
    %v2913 = vunpack.c.l.b16 %v2881
    %v2914 = vunpack.c.l.b16 %v2882
    %v2915 = vunpack.c.l.b16 %v2883
    %v2916 = vunpack.c.l.b16 %v2884
    %v2917 = vunpack.c.l.b16 %v2885
    %v2918 = vunpack.c.l.b16 %v2886
    %v2919 = vunpack.c.l.b16 %v2887
    %v2920 = vunpack.c.l.b16 %v2888
    %v2921 = vunpack.c.l.b16 %v2889
    %v2922 = vunpack.c.l.b16 %v2890
    %v2923 = vunpack.c.l.b16 %v2891
    %v2924 = vunpack.c.l.b16 %v2892
    %v2925 = vpack.c.b16 %v2910, %v2909
    %v2926 = vpack.c.b16 %v2912, %v2911
    %v2927 = vpack.c.b16 %v2914, %v2913
    %v2928 = vpack.c.b16 %v2916, %v2915
    %v2929 = vpack.c.b16 %v2918, %v2917
    %v2930 = vpack.c.b16 %v2920, %v2919
    %v2931 = vpack.c.b16 %v2922, %v2921
    %v2932 = vpack.c.b16 %v2924, %v2923
    %2941 = vmatprep.subr.bf16.mxu0 0
    %2942 = vmatpush1.bf16.msra.mxu0 %v2925
    %2943 = vmatprep.subr.bf16.mxu0 0
    %2944 = vmatpush1.bf16.msra.mxu0 %v2926
    %2945 = vmatprep.subr.bf16.mxu0 0
    %2946 = vmatpush1.bf16.msra.mxu0 %v2927
    %2947 = vmatprep.subr.bf16.mxu0 0
    %2948 = vmatpush1.bf16.msra.mxu0 %v2928
    %2949 = vmatprep.subr.bf16.mxu0 0
    %2950 = vmatpush1.bf16.msra.mxu0 %v2929
    %2951 = vmatprep.subr.bf16.mxu0 0
    %2952 = vmatpush1.bf16.msra.mxu0 %v2930
    %2953 = vmatprep.subr.bf16.mxu0 0
    %2954 = vmatpush1.bf16.msra.mxu0 %v2931
    %2955 = vmatprep.subr.bf16.mxu0 0
    %2956 = vmatpush1.bf16.msra.mxu0 %v2932
    %2957 = vmatprep.subr.bf16.mxu0 0
    %2958 = vmatpush1.bf16.msra.mxu0 0
    %2959 = vmatprep.subr.bf16.mxu0 0
    %2960 = vmatpush1.bf16.msra.mxu0 0
    %2961 = vmatprep.subr.bf16.mxu0 0
    %2962 = vmatpush1.bf16.msra.mxu0 0
    %2963 = vmatprep.subr.bf16.mxu0 0
    %2964 = vmatpush1.bf16.msra.mxu0 0
    %2965 = vmatprep.subr.bf16.mxu0 0
    %2966 = vmatpush1.bf16.msra.mxu0 0
    %2967 = vmatprep.subr.bf16.mxu0 0
    %2968 = vmatpush1.bf16.msra.mxu0 0
    %2969 = vmatprep.subr.bf16.mxu0 0
    %2970 = vmatpush1.bf16.msra.mxu0 0
    %2971 = vmatprep.subr.bf16.mxu0 0
    %2972 = vmatpush1.bf16.msra.mxu0 0
    %2973 = vmatprep.mubr.bf16.mxu0 0
    %2974 = vmatmul.mubr.bf16.gmra.mrb[0].mxu0 %v2868
    %v2975 = vpop.f32.mrb[0].mxu0
    %v2976 = vadd.f32 0.0, %v2975
    %v2977 = vpop.f32.mrb[0].mxu0
    %v2978 = vpop.f32.mrb[0].mxu0
    %v2979 = vadd.f32 0.0, %v2978
    %v2980 = vpop.f32.mrb[0].mxu0
    %2981 = vmatprep.mubr.bf16.mxu0 0
    %2982 = vmatmul.mubr.bf16.gmra.mrb[0].mxu0 %v2869
    %v2983 = vpop.f32.mrb[0].mxu0
    %v2984 = vadd.f32 0.0, %v2983
    %v2985 = vpop.f32.mrb[0].mxu0
    %v2986 = vpop.f32.mrb[0].mxu0
    %v2987 = vadd.f32 0.0, %v2986
    %v2988 = vpop.f32.mrb[0].mxu0
    %2989 = vmatprep.mubr.bf16.mxu0 0
    %2990 = vmatmul.mubr.bf16.gmra.mrb[0].mxu0 %v2870
    %v2991 = vpop.f32.mrb[0].mxu0
    %v2992 = vadd.f32 0.0, %v2991
    %v2993 = vpop.f32.mrb[0].mxu0
    %v2994 = vpop.f32.mrb[0].mxu0
    %v2995 = vadd.f32 0.0, %v2994
    %v2996 = vpop.f32.mrb[0].mxu0
    %2997 = vmatprep.mubr.bf16.mxu0 0
    %2998 = vmatmul.mubr.bf16.gmra.mrb[0].mxu0 %v2871
    %v2999 = vpop.f32.mrb[0].mxu0
    %v3000 = vadd.f32 0.0, %v2999
    %v3001 = vpop.f32.mrb[0].mxu0
    %v3002 = vpop.f32.mrb[0].mxu0
    %v3003 = vadd.f32 0.0, %v3002
    %v3004 = vpop.f32.mrb[0].mxu0
    %3005 = vmatprep.mubr.bf16.mxu0 0
    %3006 = vmatmul.mubr.bf16.gmra.mrb[0].mxu0 %v2872
    %v3007 = vpop.f32.mrb[0].mxu0
    %v3008 = vadd.f32 0.0, %v3007
    %v3009 = vpop.f32.mrb[0].mxu0
    %v3010 = vpop.f32.mrb[0].mxu0
    %v3011 = vadd.f32 0.0, %v3010
    %v3012 = vpop.f32.mrb[0].mxu0
    %3013 = vmatprep.mubr.bf16.mxu0 0
    %3014 = vmatmul.mubr.bf16.gmra.mrb[0].mxu0 %v2873
    %v3015 = vpop.f32.mrb[0].mxu0
    %v3016 = vadd.f32 0.0, %v3015
    %v3017 = vpop.f32.mrb[0].mxu0
    %v3018 = vpop.f32.mrb[0].mxu0
    %v3019 = vadd.f32 0.0, %v3018
    %v3020 = vpop.f32.mrb[0].mxu0
    %3021 = vmatprep.mubr.bf16.mxu0 0
    %3022 = vmatmul.mubr.bf16.gmra.mrb[0].mxu0 %v2874
    %v3023 = vpop.f32.mrb[0].mxu0
    %v3024 = vadd.f32 0.0, %v3023
    %v3025 = vpop.f32.mrb[0].mxu0
    %v3026 = vpop.f32.mrb[0].mxu0
    %v3027 = vadd.f32 0.0, %v3026
    %v3028 = vpop.f32.mrb[0].mxu0
    %3029 = vmatprep.mubr.bf16.mxu0 0
    %3030 = vmatmul.mubr.bf16.gmra.mrb[0].mxu0 %v2875
    %v3031 = vpop.f32.mrb[0].mxu0
    %v3032 = vadd.f32 0.0, %v3031
    %v3033 = vpop.f32.mrb[0].mxu0
    %v3034 = vpop.f32.mrb[0].mxu0
    %v3035 = vadd.f32 0.0, %v3034
    %v3036 = vpop.f32.mrb[0].mxu0
    %3037 = vdwg.mxu0
    %v3038 = vadd.f32 %v2788, %v2976
    %v3039 = vadd.f32 %v2789, %v2979
    %v3040 = vadd.f32 %v2790, %v2984
    %v3041 = vadd.f32 %v2791, %v2987
    %v3042 = vadd.f32 %v2792, %v2992
    %v3043 = vadd.f32 %v2793, %v2995
    %v3044 = vadd.f32 %v2794, %v3000
    %v3045 = vadd.f32 %v2795, %v3003
    %v3046 = vadd.f32 %v2796, %v3008
    %v3047 = vadd.f32 %v2797, %v3011
    %v3048 = vadd.f32 %v2798, %v3016
    %v3049 = vadd.f32 %v2799, %v3019
    %v3050 = vadd.f32 %v2800, %v3024
    %v3051 = vadd.f32 %v2801, %v3027
    %v3052 = vadd.f32 %v2802, %v3032
    %v3053 = vadd.f32 %v2803, %v3035
    %v3054 = vld [vmem:[#allocation14] sm:$0x1]
    %v3055 = vld [vmem:[#allocation16] sm:$0x1]
    %v3056 = vadd.f32 %v3038, %v3039
    %v3057 = vadd.f32 %v3056, %v3040
    %v3058 = vadd.f32 %v3057, %v3041
    %v3059 = vadd.f32 %v3058, %v3042
    %v3060 = vadd.f32 %v3059, %v3043
    %v3061 = vadd.f32 %v3060, %v3044
    %v3062 = vadd.f32 %v3061, %v3045
    %v3063 = vadd.f32 %v3062, %v3046
    %v3064 = vadd.f32 %v3063, %v3047
    %v3065 = vadd.f32 %v3064, %v3048
    %v3066 = vadd.f32 %v3065, %v3049
    %v3067 = vadd.f32 %v3066, %v3050
    %v3068 = vadd.f32 %v3067, %v3051
    %v3069 = vadd.f32 %v3068, %v3052
    %v3070 = vadd.f32 %v3069, %v3053
    %v3071 = vrot.slane %v3070, 4
    %v3072 = vadd.f32 %v3070, %v3071
    %v3073 = vrot.slane %v3072, 2
    %v3074 = vadd.f32 %v3072, %v3073
    %v3075 = vrot.slane %v3074, 1
    %v3076 = vadd.f32 %v3074, %v3075
    %v3077 = vmul.f32 %v3076, %v398
    %v3078 = vsub.f32 %v3038, %v3077
    %v3079 = vsub.f32 %v3039, %v3077
    %v3080 = vsub.f32 %v3040, %v3077
    %v3081 = vsub.f32 %v3041, %v3077
    %v3082 = vsub.f32 %v3042, %v3077
    %v3083 = vsub.f32 %v3043, %v3077
    %v3084 = vsub.f32 %v3044, %v3077
    %v3085 = vsub.f32 %v3045, %v3077
    %v3086 = vsub.f32 %v3046, %v3077
    %v3087 = vsub.f32 %v3047, %v3077
    %v3088 = vsub.f32 %v3048, %v3077
    %v3089 = vsub.f32 %v3049, %v3077
    %v3090 = vsub.f32 %v3050, %v3077
    %v3091 = vsub.f32 %v3051, %v3077
    %v3092 = vsub.f32 %v3052, %v3077
    %v3093 = vsub.f32 %v3053, %v3077
    %v3094 = vmul.f32 %v3078, %v3078
    %v3095 = vmul.f32 %v3079, %v3079
    %v3096 = vmul.f32 %v3080, %v3080
    %v3097 = vmul.f32 %v3081, %v3081
    %v3098 = vmul.f32 %v3082, %v3082
    %v3099 = vmul.f32 %v3083, %v3083
    %v3100 = vmul.f32 %v3084, %v3084
    %v3101 = vmul.f32 %v3085, %v3085
    %v3102 = vmul.f32 %v3086, %v3086
    %v3103 = vmul.f32 %v3087, %v3087
    %v3104 = vmul.f32 %v3088, %v3088
    %v3105 = vmul.f32 %v3089, %v3089
    %v3106 = vmul.f32 %v3090, %v3090
    %v3107 = vmul.f32 %v3091, %v3091
    %v3108 = vmul.f32 %v3092, %v3092
    %v3109 = vmul.f32 %v3093, %v3093
    %v3110 = vadd.f32 %v3094, %v3095
    %v3111 = vadd.f32 %v3110, %v3096
    %v3112 = vadd.f32 %v3111, %v3097
    %v3113 = vadd.f32 %v3112, %v3098
    %v3114 = vadd.f32 %v3113, %v3099
    %v3115 = vadd.f32 %v3114, %v3100
    %v3116 = vadd.f32 %v3115, %v3101
    %v3117 = vadd.f32 %v3116, %v3102
    %v3118 = vadd.f32 %v3117, %v3103
    %v3119 = vadd.f32 %v3118, %v3104
    %v3120 = vadd.f32 %v3119, %v3105
    %v3121 = vadd.f32 %v3120, %v3106
    %v3122 = vadd.f32 %v3121, %v3107
    %v3123 = vadd.f32 %v3122, %v3108
    %v3124 = vadd.f32 %v3123, %v3109
    %v3125 = vrot.slane %v3124, 4
    %v3126 = vadd.f32 %v3124, %v3125
    %v3127 = vrot.slane %v3126, 2
    %v3128 = vadd.f32 %v3126, %v3127
    %v3129 = vrot.slane %v3128, 1
    %v3130 = vadd.f32 %v3128, %v3129
    %v3131 = vmul.f32 %v3130, %v398
    %v3132 = vadd.f32 %v3131, 1e-05
    %v3133 = vrsqrt.pop %v3132
    %v3134 = vmul.f32 %v3054, %v3133
    %v3136 = vlaneseq
    %v3137 = vshrl.u32 %v3136, 7
    %v3138 = vsub.s32 0, %v3137
    %v3139 = vrot.slane %v3134, %v3138
    %v3141 = vmul.f32 %v3078, %v3139
    %v3142 = vmul.f32 %v3079, %v3139
    %v3143 = vmul.f32 %v3080, %v3139
    %v3144 = vmul.f32 %v3081, %v3139
    %v3145 = vmul.f32 %v3082, %v3139
    %v3146 = vmul.f32 %v3083, %v3139
    %v3147 = vmul.f32 %v3084, %v3139
    %v3148 = vmul.f32 %v3085, %v3139
    %v3149 = vmul.f32 %v3086, %v3139
    %v3150 = vmul.f32 %v3087, %v3139
    %v3151 = vmul.f32 %v3088, %v3139
    %v3152 = vmul.f32 %v3089, %v3139
    %v3153 = vmul.f32 %v3090, %v3139
    %v3154 = vmul.f32 %v3091, %v3139
    %v3155 = vmul.f32 %v3092, %v3139
    %v3156 = vmul.f32 %v3093, %v3139
    %v3158 = vlaneseq
    %v3159 = vshrl.u32 %v3158, 7
    %v3160 = vsub.s32 0, %v3159
    %v3161 = vrot.slane %v3055, %v3160
    %v3163 = vadd.f32 %v3141, %v3161
    %v3164 = vadd.f32 %v3142, %v3161
    %v3165 = vadd.f32 %v3143, %v3161
    %v3166 = vadd.f32 %v3144, %v3161
    %v3167 = vadd.f32 %v3145, %v3161
    %v3168 = vadd.f32 %v3146, %v3161
    %v3169 = vadd.f32 %v3147, %v3161
    %v3170 = vadd.f32 %v3148, %v3161
    %v3171 = vadd.f32 %v3149, %v3161
    %v3172 = vadd.f32 %v3150, %v3161
    %v3173 = vadd.f32 %v3151, %v3161
    %v3174 = vadd.f32 %v3152, %v3161
    %v3175 = vadd.f32 %v3153, %v3161
    %v3176 = vadd.f32 %v3154, %v3161
    %v3177 = vadd.f32 %v3155, %v3161
    %v3178 = vadd.f32 %v3156, %v3161
    %v3179 = vadd.f32 %v3163, %v626
    %v3180 = vadd.f32 %v3164, %v627
    %v3181 = vadd.f32 %v3165, %v628
    %v3182 = vadd.f32 %v3166, %v629
    %v3183 = vadd.f32 %v3167, %v630
    %v3184 = vadd.f32 %v3168, %v631
    %v3185 = vadd.f32 %v3169, %v632
    %v3186 = vadd.f32 %v3170, %v633
    %v3187 = vadd.f32 %v3171, %v634
    %v3188 = vadd.f32 %v3172, %v635
    %v3189 = vadd.f32 %v3173, %v636
    %v3190 = vadd.f32 %v3174, %v637
    %v3191 = vadd.f32 %v3175, %v638
    %v3192 = vadd.f32 %v3176, %v639
    %v3193 = vadd.f32 %v3177, %v640
    %v3194 = vadd.f32 %v3178, %v641
    %v3195 = vmax.f32 %v3179, 0.0
    %v3196 = vmax.f32 %v3180, 0.0
    %v3197 = vmax.f32 %v3181, 0.0
    %v3198 = vmax.f32 %v3182, 0.0
    %v3199 = vmax.f32 %v3183, 0.0
    %v3200 = vmax.f32 %v3184, 0.0
    %v3201 = vmax.f32 %v3185, 0.0
    %v3202 = vmax.f32 %v3186, 0.0
    %v3203 = vmax.f32 %v3187, 0.0
    %v3204 = vmax.f32 %v3188, 0.0
    %v3205 = vmax.f32 %v3189, 0.0
    %v3206 = vmax.f32 %v3190, 0.0
    %v3207 = vmax.f32 %v3191, 0.0
    %v3208 = vmax.f32 %v3192, 0.0
    %v3209 = vmax.f32 %v3193, 0.0
    %v3210 = vmax.f32 %v3194, 0.0
    %3211 = vst [vmem:[#allocation17] sm:$0xff] %v3195
    %3212 = vst [vmem:[#allocation17 + $0x8] sm:$0xff] %v3196
    %3213 = vst [vmem:[#allocation17 + $0x10] sm:$0xff] %v3197
    %3214 = vst [vmem:[#allocation17 + $0x18] sm:$0xff] %v3198
    %3215 = vst [vmem:[#allocation17 + $0x20] sm:$0xff] %v3199
    %3216 = vst [vmem:[#allocation17 + $0x28] sm:$0xff] %v3200
    %3217 = vst [vmem:[#allocation17 + $0x30] sm:$0xff] %v3201
    %3218 = vst [vmem:[#allocation17 + $0x38] sm:$0xff] %v3202
    %3219 = vst [vmem:[#allocation17 + $0x40] sm:$0xff] %v3203
    %3220 = vst [vmem:[#allocation17 + $0x48] sm:$0xff] %v3204
    %3221 = vst [vmem:[#allocation17 + $0x50] sm:$0xff] %v3205
    %3222 = vst [vmem:[#allocation17 + $0x58] sm:$0xff] %v3206
    %3223 = vst [vmem:[#allocation17 + $0x60] sm:$0xff] %v3207
    %3224 = vst [vmem:[#allocation17 + $0x68] sm:$0xff] %v3208
    %3225 = vst [vmem:[#allocation17 + $0x70] sm:$0xff] %v3209
    %3226 = vst [vmem:[#allocation17 + $0x78] sm:$0xff] %v3210
    // Predicated region
    $region74: #{downsample_block_forward.1} parent=1 // pred_check
      _
    $region75: #{downsample_block_forward.1} parent=1 // pred_check_branch
      %3228 = sbr.rel (0) target = $region77
    $region76: #{downsample_block_forward.1} parent=1 // pred_region
      %s3230 = ssub.s32 2048, 2048
      %3231 = vsyncadd [#allocation4], %s3230
      %s3232 = sshll.u32 [#allocation17], 4
      %s3233 = int_to_ptr.vmem [resolvable:$true] %s3232
      %3238 = dma.vmem_to_hbm [thread:$0]  %s3233, 2048, %s9, [#allocation4], 128, 128, 8
    $region77: #{downsample_block_forward.1} parent=1 // pred_fallthru
      _
    // Predicated region
    $region78: #{downsample_block_forward.1} parent=1 // pred_check
      _
    $region79: #{downsample_block_forward.1} parent=1 // pred_check_branch
      %3240 = sbr.rel (0) target = $region81
    $region80: #{downsample_block_forward.1} parent=1 // pred_region
      %3241 = dma.done [#allocation4], 2048
    $region81: #{downsample_block_forward.1} parent=1 // pred_fallthru
      _
    %3242 = vsyncpa [#allocation3], 1
    %3243 = vsyncpa [#allocation6], 1
    %3244 = vsyncpa [#allocation9], 1
    %3245 = vsyncpa [#allocation12], 1
    %3246 = vsyncpa [#allocation15], 1
    %3247 = vsyncpa [#allocation4], 1

// kernel: downsample_block_forward.1
$region0: #{downsample_block_forward.1}
  #allocation0 [shape = 'u32[]', space=smem, size = 0x4, offset = 0x4, fixed_abs, tag = 'smem constant byte address 0x4 - core index']
  #allocation1 [shape = 'u32[144,128]{1,0:T(1,128)}', space=vmem, size = 0x12000, scoped, tag = 'internal scratch']
  %s0 = inlined_call_operand.hbm [shape: bf16[128,36], index: 0, kind: input, shape index: {}]
  %s1 = inlined_call_operand.hbm [shape: bf16[36,256], index: 1, kind: input, shape index: {}]
  %s2 = inlined_call_operand.hbm [shape: f32[1,128], index: 2, kind: input, shape index: {}]
  %s3 = inlined_call_operand.hbm [shape: f32[1,128], index: 3, kind: input, shape index: {}]
  %s4 = inlined_call_operand.hbm [shape: f32[1,128], index: 4, kind: input, shape index: {}]
  %s5 = inlined_call_operand.hbm [shape: f32[1,128], index: 5, kind: input, shape index: {}]
  %s6 = inlined_call_operand.hbm [shape: bf16[9,128,128], index: 6, kind: input, shape index: {}]
  %s7 = inlined_call_operand.hbm [shape: f32[1,128], index: 7, kind: input, shape index: {}]
  %s8 = inlined_call_operand.hbm [shape: f32[1,128], index: 8, kind: input, shape index: {}]
  %s9 = inlined_call_operand.hbm [shape: f32[128,128], index: 9, kind: output, shape index: {}]
  %s10 = sld [smem:[#allocation0]]
  $region82: #{downsample_block_forward.1} parent=0
    _
  %s12 = ssub.s32 1, %s10
  %s13 = scalar_select 0, %s12, %s10
  $region1: #{downsample_block_forward.1} parent=0
    #allocation2 [shape = 'u8[32768]{0}', space=vmem, size = 0x8000, scoped, tag = 'input window, operand 0, single buffered']
    #allocation3 [shape = 's32[1]{0}', space=sflag, size = 0x4, scoped, tag = 'scoped memory for downsample_block_forward.1']
    #allocation4 [shape = 's32[1]{0}', space=sflag, size = 0x4, scoped, tag = 'scoped memory for downsample_block_forward.1']
    #allocation5 [shape = 'u8[20480]{0}', space=vmem, size = 0x5000, scoped, tag = 'input window, operand 1, single buffered']
    #allocation6 [shape = 's32[1]{0}', space=sflag, size = 0x4, scoped, tag = 'scoped memory for downsample_block_forward.1']
    #allocation7 [shape = 'u8[512]{0}', space=vmem, size = 0x400, scoped, tag = 'input window, operand 2, single buffered']
    #allocation8 [shape = 'u8[512]{0}', space=vmem, size = 0x400, scoped, tag = 'input window, operand 3, single buffered']
    #allocation9 [shape = 's32[1]{0}', space=sflag, size = 0x4, scoped, tag = 'scoped memory for downsample_block_forward.1']
    #allocation10 [shape = 'u8[512]{0}', space=vmem, size = 0x400, scoped, tag = 'input window, operand 4, single buffered']
    #allocation11 [shape = 'u8[512]{0}', space=vmem, size = 0x400, scoped, tag = 'input window, operand 5, single buffered']
    #allocation12 [shape = 's32[1]{0}', space=sflag, size = 0x4, scoped, tag = 'scoped memory for downsample_block_forward.1']
    #allocation13 [shape = 'u8[294912]{0}', space=vmem, size = 0x48000, scoped, tag = 'input window, operand 6, single buffered']
    #allocation14 [shape = 'u8[512]{0}', space=vmem, size = 0x400, scoped, tag = 'input window, operand 7, single buffered']
    #allocation15 [shape = 's32[1]{0}', space=sflag, size = 0x4, scoped, tag = 'scoped memory for downsample_block_forward.1']
    #allocation16 [shape = 'u8[512]{0}', space=vmem, size = 0x400, scoped, tag = 'input window, operand 8, single buffered']
    #allocation17 [shape = 'u8[65536]{0}', space=vmem, size = 0x10000, scoped, tag = 'output window, operand 0, single buffered']
    %14 = vsyncpa [#allocation3], 0
    %15 = vsyncpa [#allocation6], 0
    %16 = vsyncpa [#allocation9], 0
    %17 = vsyncpa [#allocation12], 0
    %18 = vsyncpa [#allocation15], 0
    %19 = vsyncpa [#allocation4], 0
    // Predicated region
    $region2: #{downsample_block_forward.1} parent=1 // pred_check
      _
    $region3: #{downsample_block_forward.1} parent=1 // pred_check_branch
      %21 = sbr.rel (0) target = $region5
    $region4: #{downsample_block_forward.1} parent=1 // pred_region
      %s23 = ssub.s32 1024, 1024
      %24 = vsyncadd [#allocation3], %s23
      %s25 = sshll.u32 [#allocation2], 4
      %s26 = int_to_ptr.vmem [resolvable:$true] %s25
      %31 = dma.hbm_to_vmem [thread:$0]  %s0, 1024, %s26, [#allocation3], 64, 64, 4
    $region5: #{downsample_block_forward.1} parent=1 // pred_fallthru
      _
    // Predicated region
    $region6: #{downsample_block_forward.1} parent=1 // pred_check
      _
    $region7: #{downsample_block_forward.1} parent=1 // pred_check_branch
      %33 = sbr.rel (0) target = $region9
    $region8: #{downsample_block_forward.1} parent=1 // pred_region
      %s35 = ssub.s32 640, 640
      %36 = vsyncadd [#allocation6], %s35
      %s37 = sshll.u32 [#allocation5], 4
      %s38 = int_to_ptr.vmem [resolvable:$true] %s37
      %43 = dma.hbm_to_vmem [thread:$0]  %s1, 640, %s38, [#allocation6], 128, 128, 8
    $region9: #{downsample_block_forward.1} parent=1 // pred_fallthru
      _
    // Predicated region
    $region10: #{downsample_block_forward.1} parent=1 // pred_check
      _
    $region11: #{downsample_block_forward.1} parent=1 // pred_check_branch
      %45 = sbr.rel (0) target = $region13
    $region12: #{downsample_block_forward.1} parent=1 // pred_region
      %s47 = ssub.s32 16, 16
      %48 = vsyncadd [#allocation6], %s47
      %s50 = sshll.u32 [#allocation7], 4
      %s51 = int_to_ptr.vmem [resolvable:$true] %s50
      %53 = dma.hbm_to_vmem [thread:$0]  %s2, 16, %s51, [#allocation6]
    $region13: #{downsample_block_forward.1} parent=1 // pred_fallthru
      _
    // Predicated region
    $region14: #{downsample_block_forward.1} parent=1 // pred_check
      _
    $region15: #{downsample_block_forward.1} parent=1 // pred_check_branch
      %55 = sbr.rel (0) target = $region17
    $region16: #{downsample_block_forward.1} parent=1 // pred_region
      %s57 = ssub.s32 16, 16
      %58 = vsyncadd [#allocation9], %s57
      %s60 = sshll.u32 [#allocation8], 4
      %s61 = int_to_ptr.vmem [resolvable:$true] %s60
      %63 = dma.hbm_to_vmem [thread:$0]  %s3, 16, %s61, [#allocation9]
    $region17: #{downsample_block_forward.1} parent=1 // pred_fallthru
      _
    // Predicated region
    $region18: #{downsample_block_forward.1} parent=1 // pred_check
      _
    $region19: #{downsample_block_forward.1} parent=1 // pred_check_branch
      %65 = sbr.rel (0) target = $region21
    $region20: #{downsample_block_forward.1} parent=1 // pred_region
      %s67 = ssub.s32 16, 16
      %68 = vsyncadd [#allocation9], %s67
      %s70 = sshll.u32 [#allocation10], 4
      %s71 = int_to_ptr.vmem [resolvable:$true] %s70
      %73 = dma.hbm_to_vmem [thread:$0]  %s4, 16, %s71, [#allocation9]
    $region21: #{downsample_block_forward.1} parent=1 // pred_fallthru
      _
    // Predicated region
    $region22: #{downsample_block_forward.1} parent=1 // pred_check
      _
    $region23: #{downsample_block_forward.1} parent=1 // pred_check_branch
      %75 = sbr.rel (0) target = $region25
    $region24: #{downsample_block_forward.1} parent=1 // pred_region
      %s77 = ssub.s32 16, 16
      %78 = vsyncadd [#allocation12], %s77
      %s80 = sshll.u32 [#allocation11], 4
      %s81 = int_to_ptr.vmem [resolvable:$true] %s80
      %83 = dma.hbm_to_vmem [thread:$0]  %s5, 16, %s81, [#allocation12]
    $region25: #{downsample_block_forward.1} parent=1 // pred_fallthru
      _
    // Predicated region
    $region26: #{downsample_block_forward.1} parent=1 // pred_check
      _
    $region27: #{downsample_block_forward.1} parent=1 // pred_check_branch
      %85 = sbr.rel (0) target = $region29
    $region28: #{downsample_block_forward.1} parent=1 // pred_region
      %s87 = ssub.s32 9216, 9216
      %88 = vsyncadd [#allocation12], %s87
      %s89 = sshll.u32 [#allocation13], 4
      %s90 = int_to_ptr.vmem [resolvable:$true] %s89
      %95 = dma.hbm_to_vmem [thread:$0]  %s6, 9216, %s90, [#allocation12], 64, 64, 4
    $region29: #{downsample_block_forward.1} parent=1 // pred_fallthru
      _
    // Predicated region
    $region30: #{downsample_block_forward.1} parent=1 // pred_check
      _
    $region31: #{downsample_block_forward.1} parent=1 // pred_check_branch
      %97 = sbr.rel (0) target = $region33
    $region32: #{downsample_block_forward.1} parent=1 // pred_region
      %s99 = ssub.s32 16, 16
      %100 = vsyncadd [#allocation15], %s99
      %s102 = sshll.u32 [#allocation14], 4
      %s103 = int_to_ptr.vmem [resolvable:$true] %s102
      %105 = dma.hbm_to_vmem [thread:$0]  %s7, 16, %s103, [#allocation15]
    $region33: #{downsample_block_forward.1} parent=1 // pred_fallthru
      _
    // Predicated region
    $region34: #{downsample_block_forward.1} parent=1 // pred_check
      _
    $region35: #{downsample_block_forward.1} parent=1 // pred_check_branch
      %107 = sbr.rel (0) target = $region37
    $region36: #{downsample_block_forward.1} parent=1 // pred_region
      %s109 = ssub.s32 16, 16
      %110 = vsyncadd [#allocation15], %s109
      %s112 = sshll.u32 [#allocation16], 4
      %s113 = int_to_ptr.vmem [resolvable:$true] %s112
      %115 = dma.hbm_to_vmem [thread:$0]  %s8, 16, %s113, [#allocation15]
    $region37: #{downsample_block_forward.1} parent=1 // pred_fallthru
      _
    // Predicated region
    $region38: #{downsample_block_forward.1} parent=1 // pred_check
      _
    $region39: #{downsample_block_forward.1} parent=1 // pred_check_branch
      %117 = sbr.rel (0) target = $region41
    $region40: #{downsample_block_forward.1} parent=1 // pred_region
      %118 = dma.done [#allocation3], 1024
    $region41: #{downsample_block_forward.1} parent=1 // pred_fallthru
      _
    // Predicated region
    $region42: #{downsample_block_forward.1} parent=1 // pred_check
      _
    $region43: #{downsample_block_forward.1} parent=1 // pred_check_branch
      %120 = sbr.rel (0) target = $region45
    $region44: #{downsample_block_forward.1} parent=1 // pred_region
      %121 = dma.done [#allocation6], 640
    $region45: #{downsample_block_forward.1} parent=1 // pred_fallthru
      _
    // Predicated region
    $region46: #{downsample_block_forward.1} parent=1 // pred_check
      _
    $region47: #{downsample_block_forward.1} parent=1 // pred_check_branch
      %123 = sbr.rel (0) target = $region49
    $region48: #{downsample_block_forward.1} parent=1 // pred_region
      %124 = dma.done [#allocation6], 16
    $region49: #{downsample_block_forward.1} parent=1 // pred_fallthru
      _
    // Predicated region
    $region50: #{downsample_block_forward.1} parent=1 // pred_check
      _
    $region51: #{downsample_block_forward.1} parent=1 // pred_check_branch
      %126 = sbr.rel (0) target = $region53
    $region52: #{downsample_block_forward.1} parent=1 // pred_region
      %127 = dma.done [#allocation9], 16
    $region53: #{downsample_block_forward.1} parent=1 // pred_fallthru
      _
    // Predicated region
    $region54: #{downsample_block_forward.1} parent=1 // pred_check
      _
    $region55: #{downsample_block_forward.1} parent=1 // pred_check_branch
      %129 = sbr.rel (0) target = $region57
    $region56: #{downsample_block_forward.1} parent=1 // pred_region
      %130 = dma.done [#allocation9], 16
    $region57: #{downsample_block_forward.1} parent=1 // pred_fallthru
      _
    // Predicated region
    $region58: #{downsample_block_forward.1} parent=1 // pred_check
      _
    $region59: #{downsample_block_forward.1} parent=1 // pred_check_branch
      %132 = sbr.rel (0) target = $region61
    $region60: #{downsample_block_forward.1} parent=1 // pred_region
      %133 = dma.done [#allocation12], 16
    $region61: #{downsample_block_forward.1} parent=1 // pred_fallthru
      _
    // Predicated region
    $region62: #{downsample_block_forward.1} parent=1 // pred_check
      _
    $region63: #{downsample_block_forward.1} parent=1 // pred_check_branch
      %135 = sbr.rel (0) target = $region65
    $region64: #{downsample_block_forward.1} parent=1 // pred_region
      %136 = dma.done [#allocation12], 9216
    $region65: #{downsample_block_forward.1} parent=1 // pred_fallthru
      _
    // Predicated region
    $region66: #{downsample_block_forward.1} parent=1 // pred_check
      _
    $region67: #{downsample_block_forward.1} parent=1 // pred_check_branch
      %138 = sbr.rel (0) target = $region69
    $region68: #{downsample_block_forward.1} parent=1 // pred_region
      %139 = dma.done [#allocation15], 16
    $region69: #{downsample_block_forward.1} parent=1 // pred_fallthru
      _
    // Predicated region
    $region70: #{downsample_block_forward.1} parent=1 // pred_check
      _
    $region71: #{downsample_block_forward.1} parent=1 // pred_check_branch
      %141 = sbr.rel (0) target = $region73
    $region72: #{downsample_block_forward.1} parent=1 // pred_region
      %142 = dma.done [#allocation15], 16
    $region73: #{downsample_block_forward.1} parent=1 // pred_fallthru
      _
    %v144 = vld [vmem:[#allocation2] sm:$0xf]
    %v145 = vld [vmem:[#allocation2 + $0x4] sm:$0xf]
    %v146 = vld [vmem:[#allocation2 + $0x8] sm:$0xf]
    %v147 = vld [vmem:[#allocation2 + $0xc] sm:$0xf]
    %v148 = vld [vmem:[#allocation2 + $0x10] sm:$0xf]
    %v149 = vld [vmem:[#allocation2 + $0x14] sm:$0xf]
    %v150 = vld [vmem:[#allocation2 + $0x18] sm:$0xf]
    %v151 = vld [vmem:[#allocation2 + $0x1c] sm:$0xf]
    %v152 = vld [vmem:[#allocation2 + $0x20] sm:$0xf]
    %v153 = vld [vmem:[#allocation2 + $0x24] sm:$0xf]
    %v154 = vld [vmem:[#allocation2 + $0x28] sm:$0xf]
    %v155 = vld [vmem:[#allocation2 + $0x2c] sm:$0xf]
    %v156 = vld [vmem:[#allocation2 + $0x30] sm:$0xf]
    %v157 = vld [vmem:[#allocation2 + $0x34] sm:$0xf]
    %v158 = vld [vmem:[#allocation2 + $0x38] sm:$0xf]
    %v159 = vld [vmem:[#allocation2 + $0x3c] sm:$0xf]
    %v160 = vld [vmem:[#allocation5] sm:$0xff]
    %v161 = vld [vmem:[#allocation5 + $0x8] sm:$0xff]
    %v162 = vld [vmem:[#allocation5 + $0x10] sm:$0xff]
    %v163 = vld [vmem:[#allocation5 + $0x18] sm:$0xff]
    %v164 = vld [vmem:[#allocation5 + $0x20] sm:$0x33]
    %v181 = vunpack.c.l.b16 %v144
    %v182 = vunpack.c.l.b16 %v145
    %v183 = vunpack.c.l.b16 %v146
    %v184 = vunpack.c.l.b16 %v147
    %v185 = vunpack.c.l.b16 %v148
    %v186 = vunpack.c.l.b16 %v149
    %v187 = vunpack.c.l.b16 %v150
    %v188 = vunpack.c.l.b16 %v151
    %v189 = vunpack.c.l.b16 %v152
    %v190 = vunpack.c.l.b16 %v153
    %v191 = vunpack.c.l.b16 %v154
    %v192 = vunpack.c.l.b16 %v155
    %v193 = vunpack.c.l.b16 %v156
    %v194 = vunpack.c.l.b16 %v157
    %v195 = vunpack.c.l.b16 %v158
    %v196 = vunpack.c.l.b16 %v159
    %v197 = vpack.c.b16 %v182, %v181
    %v198 = vpack.c.b16 %v184, %v183
    %v199 = vpack.c.b16 %v186, %v185
    %v200 = vpack.c.b16 %v188, %v187
    %v201 = vpack.c.b16 %v190, %v189
    %v202 = vpack.c.b16 %v192, %v191
    %v203 = vpack.c.b16 %v194, %v193
    %v204 = vpack.c.b16 %v196, %v195
    %v210 = vunpack.c.l.b16 %v160
    %v211 = vunpack.c.h.b16 %v160
    %v212 = vunpack.c.l.b16 %v161
    %v213 = vunpack.c.h.b16 %v161
    %v214 = vunpack.c.l.b16 %v162
    %v215 = vunpack.c.h.b16 %v162
    %v216 = vunpack.c.l.b16 %v163
    %v217 = vunpack.c.h.b16 %v163
    %v218 = vunpack.c.l.b16 %v164
    %v219 = vunpack.c.h.b16 %v164
    %v220 = vpack.c.b16 %v212, %v210
    %v221 = vpack.c.b16 %v213, %v211
    %v222 = vpack.c.b16 %v216, %v214
    %v223 = vpack.c.b16 %v217, %v215
    %v224 = vpack.c.b16 %v218, %v218
    %v225 = vpack.c.b16 %v219, %v219
    %vm230 = vcmask 293888
    %v232 = vsel %vm230, %v197, 0
    %v235 = vsel %vm230, %v198, 0
    %v238 = vsel %vm230, %v199, 0
    %v241 = vsel %vm230, %v200, 0
    %v244 = vsel %vm230, %v201, 0
    %v247 = vsel %vm230, %v202, 0
    %v250 = vsel %vm230, %v203, 0
    %v253 = vsel %vm230, %v204, 0
    %vm255 = vcmask 1041408
    %v257 = vsel %vm255, %v224, 0
    %v260 = vsel %vm255, %v225, 0
    %262 = vmatprep.subr.bf16.mxu0 %v221
    %263 = vmatpush1.bf16.msra.mxu0 %v220
    %264 = vmatprep.subr.bf16.mxu0 %v223
    %265 = vmatpush1.bf16.msra.mxu0 %v222
    %266 = vmatprep.subr.bf16.mxu0 %v260
    %267 = vmatpush1.bf16.msra.mxu0 %v257
    %268 = vmatprep.subr.bf16.mxu0 0
    %269 = vmatpush1.bf16.msra.mxu0 0
    %270 = vmatprep.subr.bf16.mxu0 0
    %271 = vmatpush1.bf16.msra.mxu0 0
    %272 = vmatprep.subr.bf16.mxu0 0
    %273 = vmatpush1.bf16.msra.mxu0 0
    %274 = vmatprep.subr.bf16.mxu0 0
    %275 = vmatpush1.bf16.msra.mxu0 0
    %276 = vmatprep.subr.bf16.mxu0 0
    %277 = vmatpush1.bf16.msra.mxu0 0
    %278 = vmatprep.subr.bf16.mxu0 0
    %279 = vmatpush1.bf16.msra.mxu0 0
    %280 = vmatprep.subr.bf16.mxu0 0
    %281 = vmatpush1.bf16.msra.mxu0 0
    %282 = vmatprep.subr.bf16.mxu0 0
    %283 = vmatpush1.bf16.msra.mxu0 0
    %284 = vmatprep.subr.bf16.mxu0 0
    %285 = vmatpush1.bf16.msra.mxu0 0
    %286 = vmatprep.subr.bf16.mxu0 0
    %287 = vmatpush1.bf16.msra.mxu0 0
    %288 = vmatprep.subr.bf16.mxu0 0
    %289 = vmatpush1.bf16.msra.mxu0 0
    %290 = vmatprep.subr.bf16.mxu0 0
    %291 = vmatpush1.bf16.msra.mxu0 0
    %292 = vmatprep.subr.bf16.mxu0 0
    %293 = vmatpush1.bf16.msra.mxu0 0
    %294 = vmatprep.mubr.bf16.mxu0 0
    %295 = vmatmul.mubr.bf16.gmra.mrb[0].mxu0 %v232
    %v296 = vpop.f32.mrb[0].mxu0
    %v297 = vadd.f32 0.0, %v296
    %v298 = vpop.f32.mrb[0].mxu0
    %v299 = vadd.f32 0.0, %v298
    %v300 = vpop.f32.mrb[0].mxu0
    %v301 = vadd.f32 0.0, %v300
    %v302 = vpop.f32.mrb[0].mxu0
    %v303 = vadd.f32 0.0, %v302
    %304 = vmatprep.mubr.bf16.mxu0 0
    %305 = vmatmul.mubr.bf16.gmra.mrb[0].mxu0 %v235
    %v306 = vpop.f32.mrb[0].mxu0
    %v307 = vadd.f32 0.0, %v306
    %v308 = vpop.f32.mrb[0].mxu0
    %v309 = vadd.f32 0.0, %v308
    %v310 = vpop.f32.mrb[0].mxu0
    %v311 = vadd.f32 0.0, %v310
    %v312 = vpop.f32.mrb[0].mxu0
    %v313 = vadd.f32 0.0, %v312
    %314 = vmatprep.mubr.bf16.mxu0 0
    %315 = vmatmul.mubr.bf16.gmra.mrb[0].mxu0 %v238
    %v316 = vpop.f32.mrb[0].mxu0
    %v317 = vadd.f32 0.0, %v316
    %v318 = vpop.f32.mrb[0].mxu0
    %v319 = vadd.f32 0.0, %v318
    %v320 = vpop.f32.mrb[0].mxu0
    %v321 = vadd.f32 0.0, %v320
    %v322 = vpop.f32.mrb[0].mxu0
    %v323 = vadd.f32 0.0, %v322
    %324 = vmatprep.mubr.bf16.mxu0 0
    %325 = vmatmul.mubr.bf16.gmra.mrb[0].mxu0 %v241
    %v326 = vpop.f32.mrb[0].mxu0
    %v327 = vadd.f32 0.0, %v326
    %v328 = vpop.f32.mrb[0].mxu0
    %v329 = vadd.f32 0.0, %v328
    %v330 = vpop.f32.mrb[0].mxu0
    %v331 = vadd.f32 0.0, %v330
    %v332 = vpop.f32.mrb[0].mxu0
    %v333 = vadd.f32 0.0, %v332
    %334 = vmatprep.mubr.bf16.mxu0 0
    %335 = vmatmul.mubr.bf16.gmra.mrb[0].mxu0 %v244
    %v336 = vpop.f32.mrb[0].mxu0
    %v337 = vadd.f32 0.0, %v336
    %v338 = vpop.f32.mrb[0].mxu0
    %v339 = vadd.f32 0.0, %v338
    %v340 = vpop.f32.mrb[0].mxu0
    %v341 = vadd.f32 0.0, %v340
    %v342 = vpop.f32.mrb[0].mxu0
    %v343 = vadd.f32 0.0, %v342
    %344 = vmatprep.mubr.bf16.mxu0 0
    %345 = vmatmul.mubr.bf16.gmra.mrb[0].mxu0 %v247
    %v346 = vpop.f32.mrb[0].mxu0
    %v347 = vadd.f32 0.0, %v346
    %v348 = vpop.f32.mrb[0].mxu0
    %v349 = vadd.f32 0.0, %v348
    %v350 = vpop.f32.mrb[0].mxu0
    %v351 = vadd.f32 0.0, %v350
    %v352 = vpop.f32.mrb[0].mxu0
    %v353 = vadd.f32 0.0, %v352
    %354 = vmatprep.mubr.bf16.mxu0 0
    %355 = vmatmul.mubr.bf16.gmra.mrb[0].mxu0 %v250
    %v356 = vpop.f32.mrb[0].mxu0
    %v357 = vadd.f32 0.0, %v356
    %v358 = vpop.f32.mrb[0].mxu0
    %v359 = vadd.f32 0.0, %v358
    %v360 = vpop.f32.mrb[0].mxu0
    %v361 = vadd.f32 0.0, %v360
    %v362 = vpop.f32.mrb[0].mxu0
    %v363 = vadd.f32 0.0, %v362
    %364 = vmatprep.mubr.bf16.mxu0 0
    %365 = vmatmul.mubr.bf16.gmra.mrb[0].mxu0 %v253
    %v366 = vpop.f32.mrb[0].mxu0
    %v367 = vadd.f32 0.0, %v366
    %v368 = vpop.f32.mrb[0].mxu0
    %v369 = vadd.f32 0.0, %v368
    %v370 = vpop.f32.mrb[0].mxu0
    %v371 = vadd.f32 0.0, %v370
    %v372 = vpop.f32.mrb[0].mxu0
    %v373 = vadd.f32 0.0, %v372
    %374 = vdwg.mxu0
    %v375 = vld [vmem:[#allocation7] sm:$0x1]
    %v376 = vld [vmem:[#allocation8] sm:$0x1]
    %v377 = vadd.f32 %v297, %v301
    %v378 = vadd.f32 %v377, %v307
    %v379 = vadd.f32 %v378, %v311
    %v380 = vadd.f32 %v379, %v317
    %v381 = vadd.f32 %v380, %v321
    %v382 = vadd.f32 %v381, %v327
    %v383 = vadd.f32 %v382, %v331
    %v384 = vadd.f32 %v383, %v337
    %v385 = vadd.f32 %v384, %v341
    %v386 = vadd.f32 %v385, %v347
    %v387 = vadd.f32 %v386, %v351
    %v388 = vadd.f32 %v387, %v357
    %v389 = vadd.f32 %v388, %v361
    %v390 = vadd.f32 %v389, %v367
    %v391 = vadd.f32 %v390, %v371
    %v392 = vrot.slane %v391, 4
    %v393 = vadd.f32 %v391, %v392
    %v394 = vrot.slane %v393, 2
    %v395 = vadd.f32 %v393, %v394
    %v396 = vrot.slane %v395, 1
    %v397 = vadd.f32 %v395, %v396
    %v398 = vrcp.pop 128.0
    %v399 = vmul.f32 %v397, %v398
    %v400 = vsub.f32 %v297, %v399
    %v401 = vsub.f32 %v301, %v399
    %v402 = vsub.f32 %v307, %v399
    %v403 = vsub.f32 %v311, %v399
    %v404 = vsub.f32 %v317, %v399
    %v405 = vsub.f32 %v321, %v399
    %v406 = vsub.f32 %v327, %v399
    %v407 = vsub.f32 %v331, %v399
    %v408 = vsub.f32 %v337, %v399
    %v409 = vsub.f32 %v341, %v399
    %v410 = vsub.f32 %v347, %v399
    %v411 = vsub.f32 %v351, %v399
    %v412 = vsub.f32 %v357, %v399
    %v413 = vsub.f32 %v361, %v399
    %v414 = vsub.f32 %v367, %v399
    %v415 = vsub.f32 %v371, %v399
    %v416 = vmul.f32 %v400, %v400
    %v417 = vmul.f32 %v401, %v401
    %v418 = vmul.f32 %v402, %v402
    %v419 = vmul.f32 %v403, %v403
    %v420 = vmul.f32 %v404, %v404
    %v421 = vmul.f32 %v405, %v405
    %v422 = vmul.f32 %v406, %v406
    %v423 = vmul.f32 %v407, %v407
    %v424 = vmul.f32 %v408, %v408
    %v425 = vmul.f32 %v409, %v409
    %v426 = vmul.f32 %v410, %v410
    %v427 = vmul.f32 %v411, %v411
    %v428 = vmul.f32 %v412, %v412
    %v429 = vmul.f32 %v413, %v413
    %v430 = vmul.f32 %v414, %v414
    %v431 = vmul.f32 %v415, %v415
    %v432 = vadd.f32 %v416, %v417
    %v433 = vadd.f32 %v432, %v418
    %v434 = vadd.f32 %v433, %v419
    %v435 = vadd.f32 %v434, %v420
    %v436 = vadd.f32 %v435, %v421
    %v437 = vadd.f32 %v436, %v422
    %v438 = vadd.f32 %v437, %v423
    %v439 = vadd.f32 %v438, %v424
    %v440 = vadd.f32 %v439, %v425
    %v441 = vadd.f32 %v440, %v426
    %v442 = vadd.f32 %v441, %v427
    %v443 = vadd.f32 %v442, %v428
    %v444 = vadd.f32 %v443, %v429
    %v445 = vadd.f32 %v444, %v430
    %v446 = vadd.f32 %v445, %v431
    %v447 = vrot.slane %v446, 4
    %v448 = vadd.f32 %v446, %v447
    %v449 = vrot.slane %v448, 2
    %v450 = vadd.f32 %v448, %v449
    %v451 = vrot.slane %v450, 1
    %v452 = vadd.f32 %v450, %v451
    %v453 = vmul.f32 %v452, %v398
    %v454 = vadd.f32 %v453, 1e-05
    %v455 = vrsqrt.pop %v454
    %v456 = vmul.f32 %v375, %v455
    %v458 = vlaneseq
    %v459 = vshrl.u32 %v458, 7
    %v460 = vsub.s32 0, %v459
    %v461 = vrot.slane %v456, %v460
    %v463 = vmul.f32 %v400, %v461
    %v464 = vmul.f32 %v401, %v461
    %v465 = vmul.f32 %v402, %v461
    %v466 = vmul.f32 %v403, %v461
    %v467 = vmul.f32 %v404, %v461
    %v468 = vmul.f32 %v405, %v461
    %v469 = vmul.f32 %v406, %v461
    %v470 = vmul.f32 %v407, %v461
    %v471 = vmul.f32 %v408, %v461
    %v472 = vmul.f32 %v409, %v461
    %v473 = vmul.f32 %v410, %v461
    %v474 = vmul.f32 %v411, %v461
    %v475 = vmul.f32 %v412, %v461
    %v476 = vmul.f32 %v413, %v461
    %v477 = vmul.f32 %v414, %v461
    %v478 = vmul.f32 %v415, %v461
    %v480 = vlaneseq
    %v481 = vshrl.u32 %v480, 7
    %v482 = vsub.s32 0, %v481
    %v483 = vrot.slane %v376, %v482
    %v485 = vadd.f32 %v463, %v483
    %v486 = vadd.f32 %v464, %v483
    %v487 = vadd.f32 %v465, %v483
    %v488 = vadd.f32 %v466, %v483
    %v489 = vadd.f32 %v467, %v483
    %v490 = vadd.f32 %v468, %v483
    %v491 = vadd.f32 %v469, %v483
    %v492 = vadd.f32 %v470, %v483
    %v493 = vadd.f32 %v471, %v483
    %v494 = vadd.f32 %v472, %v483
    %v495 = vadd.f32 %v473, %v483
    %v496 = vadd.f32 %v474, %v483
    %v497 = vadd.f32 %v475, %v483
    %v498 = vadd.f32 %v476, %v483
    %v499 = vadd.f32 %v477, %v483
    %v500 = vadd.f32 %v478, %v483
    %v501 = vmax.f32 %v485, 0.0
    %v502 = vmax.f32 %v486, 0.0
    %v503 = vmax.f32 %v487, 0.0
    %v504 = vmax.f32 %v488, 0.0
    %v505 = vmax.f32 %v489, 0.0
    %v506 = vmax.f32 %v490, 0.0
    %v507 = vmax.f32 %v491, 0.0
    %v508 = vmax.f32 %v492, 0.0
    %v509 = vmax.f32 %v493, 0.0
    %v510 = vmax.f32 %v494, 0.0
    %v511 = vmax.f32 %v495, 0.0
    %v512 = vmax.f32 %v496, 0.0
    %v513 = vmax.f32 %v497, 0.0
    %v514 = vmax.f32 %v498, 0.0
    %v515 = vmax.f32 %v499, 0.0
    %v516 = vmax.f32 %v500, 0.0
    %v517 = vld [vmem:[#allocation10] sm:$0x1]
    %v518 = vld [vmem:[#allocation11] sm:$0x1]
    %v519 = vadd.f32 %v299, %v303
    %v520 = vadd.f32 %v519, %v309
    %v521 = vadd.f32 %v520, %v313
    %v522 = vadd.f32 %v521, %v319
    %v523 = vadd.f32 %v522, %v323
    %v524 = vadd.f32 %v523, %v329
    %v525 = vadd.f32 %v524, %v333
    %v526 = vadd.f32 %v525, %v339
    %v527 = vadd.f32 %v526, %v343
    %v528 = vadd.f32 %v527, %v349
    %v529 = vadd.f32 %v528, %v353
    %v530 = vadd.f32 %v529, %v359
    %v531 = vadd.f32 %v530, %v363
    %v532 = vadd.f32 %v531, %v369
    %v533 = vadd.f32 %v532, %v373
    %v534 = vrot.slane %v533, 4
    %v535 = vadd.f32 %v533, %v534
    %v536 = vrot.slane %v535, 2
    %v537 = vadd.f32 %v535, %v536
    %v538 = vrot.slane %v537, 1
    %v539 = vadd.f32 %v537, %v538
    %v540 = vmul.f32 %v539, %v398
    %v541 = vsub.f32 %v299, %v540
    %v542 = vsub.f32 %v303, %v540
    %v543 = vsub.f32 %v309, %v540
    %v544 = vsub.f32 %v313, %v540
    %v545 = vsub.f32 %v319, %v540
    %v546 = vsub.f32 %v323, %v540
    %v547 = vsub.f32 %v329, %v540
    %v548 = vsub.f32 %v333, %v540
    %v549 = vsub.f32 %v339, %v540
    %v550 = vsub.f32 %v343, %v540
    %v551 = vsub.f32 %v349, %v540
    %v552 = vsub.f32 %v353, %v540
    %v553 = vsub.f32 %v359, %v540
    %v554 = vsub.f32 %v363, %v540
    %v555 = vsub.f32 %v369, %v540
    %v556 = vsub.f32 %v373, %v540
    %v557 = vmul.f32 %v541, %v541
    %v558 = vmul.f32 %v542, %v542
    %v559 = vmul.f32 %v543, %v543
    %v560 = vmul.f32 %v544, %v544
    %v561 = vmul.f32 %v545, %v545
    %v562 = vmul.f32 %v546, %v546
    %v563 = vmul.f32 %v547, %v547
    %v564 = vmul.f32 %v548, %v548
    %v565 = vmul.f32 %v549, %v549
    %v566 = vmul.f32 %v550, %v550
    %v567 = vmul.f32 %v551, %v551
    %v568 = vmul.f32 %v552, %v552
    %v569 = vmul.f32 %v553, %v553
    %v570 = vmul.f32 %v554, %v554
    %v571 = vmul.f32 %v555, %v555
    %v572 = vmul.f32 %v556, %v556
    %v573 = vadd.f32 %v557, %v558
    %v574 = vadd.f32 %v573, %v559
    %v575 = vadd.f32 %v574, %v560
    %v576 = vadd.f32 %v575, %v561
    %v577 = vadd.f32 %v576, %v562
    %v578 = vadd.f32 %v577, %v563
    %v579 = vadd.f32 %v578, %v564
    %v580 = vadd.f32 %v579, %v565
    %v581 = vadd.f32 %v580, %v566
    %v582 = vadd.f32 %v581, %v567
    %v583 = vadd.f32 %v582, %v568
    %v584 = vadd.f32 %v583, %v569
    %v585 = vadd.f32 %v584, %v570
    %v586 = vadd.f32 %v585, %v571
    %v587 = vadd.f32 %v586, %v572
    %v588 = vrot.slane %v587, 4
    %v589 = vadd.f32 %v587, %v588
    %v590 = vrot.slane %v589, 2
    %v591 = vadd.f32 %v589, %v590
    %v592 = vrot.slane %v591, 1
    %v593 = vadd.f32 %v591, %v592
    %v594 = vmul.f32 %v593, %v398
    %v595 = vadd.f32 %v594, 1e-05
    %v596 = vrsqrt.pop %v595
    %v597 = vmul.f32 %v517, %v596
    %v599 = vlaneseq
    %v600 = vshrl.u32 %v599, 7
    %v601 = vsub.s32 0, %v600
    %v602 = vrot.slane %v597, %v601
    %v604 = vmul.f32 %v541, %v602
    %v605 = vmul.f32 %v542, %v602
    %v606 = vmul.f32 %v543, %v602
    %v607 = vmul.f32 %v544, %v602
    %v608 = vmul.f32 %v545, %v602
    %v609 = vmul.f32 %v546, %v602
    %v610 = vmul.f32 %v547, %v602
    %v611 = vmul.f32 %v548, %v602
    %v612 = vmul.f32 %v549, %v602
    %v613 = vmul.f32 %v550, %v602
    %v614 = vmul.f32 %v551, %v602
    %v615 = vmul.f32 %v552, %v602
    %v616 = vmul.f32 %v553, %v602
    %v617 = vmul.f32 %v554, %v602
    %v618 = vmul.f32 %v555, %v602
    %v619 = vmul.f32 %v556, %v602
    %v621 = vlaneseq
    %v622 = vshrl.u32 %v621, 7
    %v623 = vsub.s32 0, %v622
    %v624 = vrot.slane %v518, %v623
    %v626 = vadd.f32 %v604, %v624
    %v627 = vadd.f32 %v605, %v624
    %v628 = vadd.f32 %v606, %v624
    %v629 = vadd.f32 %v607, %v624
    %v630 = vadd.f32 %v608, %v624
    %v631 = vadd.f32 %v609, %v624
    %v632 = vadd.f32 %v610, %v624
    %v633 = vadd.f32 %v611, %v624
    %v634 = vadd.f32 %v612, %v624
    %v635 = vadd.f32 %v613, %v624
    %v636 = vadd.f32 %v614, %v624
    %v637 = vadd.f32 %v615, %v624
    %v638 = vadd.f32 %v616, %v624
    %v639 = vadd.f32 %v617, %v624
    %v640 = vadd.f32 %v618, %v624
    %v641 = vadd.f32 %v619, %v624
    %v642 = vlaneseq
    %v643 = vshrl.u32 %v642, 7
    %v644 = vadd.s32 %v643, 8
    %v645 = vadd.s32 %v643, 16
    %v646 = vadd.s32 %v643, 24
    %v647 = vadd.s32 %v643, 32
    %v648 = vadd.s32 %v643, 40
    %v649 = vadd.s32 %v643, 48
    %v650 = vadd.s32 %v643, 56
    %v651 = vadd.s32 %v643, 64
    %v652 = vadd.s32 %v643, 72
    %v653 = vadd.s32 %v643, 80
    %v654 = vadd.s32 %v643, 88
    %v655 = vadd.s32 %v643, 96
    %v656 = vadd.s32 %v643, 104
    %v657 = vadd.s32 %v643, 112
    %v658 = vadd.s32 %v643, 120
    %v659 = vcvt.s32.f32 %v643
    %v660 = vcvt.s32.f32 %v644
    %v661 = vcvt.s32.f32 %v645
    %v662 = vcvt.s32.f32 %v646
    %v663 = vcvt.s32.f32 %v647
    %v664 = vcvt.s32.f32 %v648
    %v665 = vcvt.s32.f32 %v649
    %v666 = vcvt.s32.f32 %v650
    %v667 = vcvt.s32.f32 %v651
    %v668 = vcvt.s32.f32 %v652
    %v669 = vcvt.s32.f32 %v653
    %v670 = vcvt.s32.f32 %v654
    %v671 = vcvt.s32.f32 %v655
    %v672 = vcvt.s32.f32 %v656
    %v673 = vcvt.s32.f32 %v657
    %v674 = vcvt.s32.f32 %v658
    %v675 = vadd.f32 %v659, 0.5
    %v676 = vadd.f32 %v660, 0.5
    %v677 = vadd.f32 %v661, 0.5
    %v678 = vadd.f32 %v662, 0.5
    %v679 = vadd.f32 %v663, 0.5
    %v680 = vadd.f32 %v664, 0.5
    %v681 = vadd.f32 %v665, 0.5
    %v682 = vadd.f32 %v666, 0.5
    %v683 = vadd.f32 %v667, 0.5
    %v684 = vadd.f32 %v668, 0.5
    %v685 = vadd.f32 %v669, 0.5
    %v686 = vadd.f32 %v670, 0.5
    %v687 = vadd.f32 %v671, 0.5
    %v688 = vadd.f32 %v672, 0.5
    %v689 = vadd.f32 %v673, 0.5
    %v690 = vadd.f32 %v674, 0.5
    %v691 = vmul.f32 %v675, 0.125
    %v692 = vmul.f32 %v676, 0.125
    %v693 = vmul.f32 %v677, 0.125
    %v694 = vmul.f32 %v678, 0.125
    %v695 = vmul.f32 %v679, 0.125
    %v696 = vmul.f32 %v680, 0.125
    %v697 = vmul.f32 %v681, 0.125
    %v698 = vmul.f32 %v682, 0.125
    %v699 = vmul.f32 %v683, 0.125
    %v700 = vmul.f32 %v684, 0.125
    %v701 = vmul.f32 %v685, 0.125
    %v702 = vmul.f32 %v686, 0.125
    %v703 = vmul.f32 %v687, 0.125
    %v704 = vmul.f32 %v688, 0.125
    %v705 = vmul.f32 %v689, 0.125
    %v706 = vmul.f32 %v690, 0.125
    %v707 = vfloor.f32 %v691
    %v708 = vfloor.f32 %v692
    %v709 = vfloor.f32 %v693
    %v710 = vfloor.f32 %v694
    %v711 = vfloor.f32 %v695
    %v712 = vfloor.f32 %v696
    %v713 = vfloor.f32 %v697
    %v714 = vfloor.f32 %v698
    %v715 = vfloor.f32 %v699
    %v716 = vfloor.f32 %v700
    %v717 = vfloor.f32 %v701
    %v718 = vfloor.f32 %v702
    %v719 = vfloor.f32 %v703
    %v720 = vfloor.f32 %v704
    %v721 = vfloor.f32 %v705
    %v722 = vfloor.f32 %v706
    %v723 = vmul.f32 %v707, 8.0
    %v724 = vmul.f32 %v708, 8.0
    %v725 = vmul.f32 %v709, 8.0
    %v726 = vmul.f32 %v710, 8.0
    %v727 = vmul.f32 %v711, 8.0
    %v728 = vmul.f32 %v712, 8.0
    %v729 = vmul.f32 %v713, 8.0
    %v730 = vmul.f32 %v714, 8.0
    %v731 = vmul.f32 %v715, 8.0
    %v732 = vmul.f32 %v716, 8.0
    %v733 = vmul.f32 %v717, 8.0
    %v734 = vmul.f32 %v718, 8.0
    %v735 = vmul.f32 %v719, 8.0
    %v736 = vmul.f32 %v720, 8.0
    %v737 = vmul.f32 %v721, 8.0
    %v738 = vmul.f32 %v722, 8.0
    %v739 = vsub.f32 %v659, %v723
    %v740 = vsub.f32 %v660, %v724
    %v741 = vsub.f32 %v661, %v725
    %v742 = vsub.f32 %v662, %v726
    %v743 = vsub.f32 %v663, %v727
    %v744 = vsub.f32 %v664, %v728
    %v745 = vsub.f32 %v665, %v729
    %v746 = vsub.f32 %v666, %v730
    %v747 = vsub.f32 %v667, %v731
    %v748 = vsub.f32 %v668, %v732
    %v749 = vsub.f32 %v669, %v733
    %v750 = vsub.f32 %v670, %v734
    %v751 = vsub.f32 %v671, %v735
    %v752 = vsub.f32 %v672, %v736
    %v753 = vsub.f32 %v673, %v737
    %v754 = vsub.f32 %v674, %v738
    %v755 = vadd.f32 %v707, 0.5
    %v756 = vadd.f32 %v708, 0.5
    %v757 = vadd.f32 %v709, 0.5
    %v758 = vadd.f32 %v710, 0.5
    %v759 = vadd.f32 %v711, 0.5
    %v760 = vadd.f32 %v712, 0.5
    %v761 = vadd.f32 %v713, 0.5
    %v762 = vadd.f32 %v714, 0.5
    %v763 = vadd.f32 %v715, 0.5
    %v764 = vadd.f32 %v716, 0.5
    %v765 = vadd.f32 %v717, 0.5
    %v766 = vadd.f32 %v718, 0.5
    %v767 = vadd.f32 %v719, 0.5
    %v768 = vadd.f32 %v720, 0.5
    %v769 = vadd.f32 %v721, 0.5
    %v770 = vadd.f32 %v722, 0.5
    %v771 = vmul.f32 %v755, 0.125
    %v772 = vmul.f32 %v756, 0.125
    %v773 = vmul.f32 %v757, 0.125
    %v774 = vmul.f32 %v758, 0.125
    %v775 = vmul.f32 %v759, 0.125
    %v776 = vmul.f32 %v760, 0.125
    %v777 = vmul.f32 %v761, 0.125
    %v778 = vmul.f32 %v762, 0.125
    %v779 = vmul.f32 %v763, 0.125
    %v780 = vmul.f32 %v764, 0.125
    %v781 = vmul.f32 %v765, 0.125
    %v782 = vmul.f32 %v766, 0.125
    %v783 = vmul.f32 %v767, 0.125
    %v784 = vmul.f32 %v768, 0.125
    %v785 = vmul.f32 %v769, 0.125
    %v786 = vmul.f32 %v770, 0.125
    %v787 = vfloor.f32 %v771
    %v788 = vfloor.f32 %v772
    %v789 = vfloor.f32 %v773
    %v790 = vfloor.f32 %v774
    %v791 = vfloor.f32 %v775
    %v792 = vfloor.f32 %v776
    %v793 = vfloor.f32 %v777
    %v794 = vfloor.f32 %v778
    %v795 = vfloor.f32 %v779
    %v796 = vfloor.f32 %v780
    %v797 = vfloor.f32 %v781
    %v798 = vfloor.f32 %v782
    %v799 = vfloor.f32 %v783
    %v800 = vfloor.f32 %v784
    %v801 = vfloor.f32 %v785
    %v802 = vfloor.f32 %v786
    %v803 = vmul.f32 %v787, 8.0
    %v804 = vmul.f32 %v788, 8.0
    %v805 = vmul.f32 %v789, 8.0
    %v806 = vmul.f32 %v790, 8.0
    %v807 = vmul.f32 %v791, 8.0
    %v808 = vmul.f32 %v792, 8.0
    %v809 = vmul.f32 %v793, 8.0
    %v810 = vmul.f32 %v794, 8.0
    %v811 = vmul.f32 %v795, 8.0
    %v812 = vmul.f32 %v796, 8.0
    %v813 = vmul.f32 %v797, 8.0
    %v814 = vmul.f32 %v798, 8.0
    %v815 = vmul.f32 %v799, 8.0
    %v816 = vmul.f32 %v800, 8.0
    %v817 = vmul.f32 %v801, 8.0
    %v818 = vmul.f32 %v802, 8.0
    %v819 = vsub.f32 %v707, %v803
    %v820 = vsub.f32 %v708, %v804
    %v821 = vsub.f32 %v709, %v805
    %v822 = vsub.f32 %v710, %v806
    %v823 = vsub.f32 %v711, %v807
    %v824 = vsub.f32 %v712, %v808
    %v825 = vsub.f32 %v713, %v809
    %v826 = vsub.f32 %v714, %v810
    %v827 = vsub.f32 %v715, %v811
    %v828 = vsub.f32 %v716, %v812
    %v829 = vsub.f32 %v717, %v813
    %v830 = vsub.f32 %v718, %v814
    %v831 = vsub.f32 %v719, %v815
    %v832 = vsub.f32 %v720, %v816
    %v833 = vsub.f32 %v721, %v817
    %v834 = vsub.f32 %v722, %v818
    %vm850 = vcmask 1040384
    %v851 = vrot.slane %v501, 7
    %v852 = vrot.slane %v502, 7
    %v853 = vsel %vm850, %v851, %v852
    %v854 = vrot.slane %v503, 7
    %v855 = vsel %vm850, %v852, %v854
    %v856 = vrot.slane %v504, 7
    %v857 = vsel %vm850, %v854, %v856
    %v858 = vrot.slane %v505, 7
    %v859 = vsel %vm850, %v856, %v858
    %v860 = vrot.slane %v506, 7
    %v861 = vsel %vm850, %v858, %v860
    %v862 = vrot.slane %v507, 7
    %v863 = vsel %vm850, %v860, %v862
    %v864 = vrot.slane %v508, 7
    %v865 = vsel %vm850, %v862, %v864
    %v866 = vrot.slane %v509, 7
    %v867 = vsel %vm850, %v864, %v866
    %v868 = vrot.slane %v510, 7
    %v869 = vsel %vm850, %v866, %v868
    %v870 = vrot.slane %v511, 7
    %v871 = vsel %vm850, %v868, %v870
    %v872 = vrot.slane %v512, 7
    %v873 = vsel %vm850, %v870, %v872
    %v874 = vrot.slane %v513, 7
    %v875 = vsel %vm850, %v872, %v874
    %v876 = vrot.slane %v514, 7
    %v877 = vsel %vm850, %v874, %v876
    %v878 = vrot.slane %v515, 7
    %v879 = vsel %vm850, %v876, %v878
    %v895 = vsel %vm850, 0.0, %v851
    %vm896 = vcmp.ge.f32.partialorder %v819, 1.0
    %vm897 = vcmp.ge.f32.partialorder %v820, 1.0
    %vm898 = vcmp.ge.f32.partialorder %v821, 1.0
    %vm899 = vcmp.ge.f32.partialorder %v822, 1.0
    %vm900 = vcmp.ge.f32.partialorder %v823, 1.0
    %vm901 = vcmp.ge.f32.partialorder %v824, 1.0
    %vm902 = vcmp.ge.f32.partialorder %v825, 1.0
    %vm903 = vcmp.ge.f32.partialorder %v826, 1.0
    %vm904 = vcmp.ge.f32.partialorder %v827, 1.0
    %vm905 = vcmp.ge.f32.partialorder %v828, 1.0
    %vm906 = vcmp.ge.f32.partialorder %v829, 1.0
    %vm907 = vcmp.ge.f32.partialorder %v830, 1.0
    %vm908 = vcmp.ge.f32.partialorder %v831, 1.0
    %vm909 = vcmp.ge.f32.partialorder %v832, 1.0
    %vm910 = vcmp.ge.f32.partialorder %v833, 1.0
    %vm911 = vcmp.ge.f32.partialorder %v834, 1.0
    %vm912 = vcmp.ge.f32.partialorder %v739, 1.0
    %vm913 = vcmp.ge.f32.partialorder %v740, 1.0
    %vm914 = vcmp.ge.f32.partialorder %v741, 1.0
    %vm915 = vcmp.ge.f32.partialorder %v742, 1.0
    %vm916 = vcmp.ge.f32.partialorder %v743, 1.0
    %vm917 = vcmp.ge.f32.partialorder %v744, 1.0
    %vm918 = vcmp.ge.f32.partialorder %v745, 1.0
    %vm919 = vcmp.ge.f32.partialorder %v746, 1.0
    %vm920 = vcmp.ge.f32.partialorder %v747, 1.0
    %vm921 = vcmp.ge.f32.partialorder %v748, 1.0
    %vm922 = vcmp.ge.f32.partialorder %v749, 1.0
    %vm923 = vcmp.ge.f32.partialorder %v750, 1.0
    %vm924 = vcmp.ge.f32.partialorder %v751, 1.0
    %vm925 = vcmp.ge.f32.partialorder %v752, 1.0
    %vm926 = vcmp.ge.f32.partialorder %v753, 1.0
    %vm927 = vcmp.ge.f32.partialorder %v754, 1.0
    %vm928 = vmand %vm897, %vm913
    %vm929 = vmand %vm898, %vm914
    %vm930 = vmand %vm899, %vm915
    %vm931 = vmand %vm900, %vm916
    %vm932 = vmand %vm901, %vm917
    %vm933 = vmand %vm902, %vm918
    %vm934 = vmand %vm903, %vm919
    %vm935 = vmand %vm904, %vm920
    %vm936 = vmand %vm905, %vm921
    %vm937 = vmand %vm906, %vm922
    %vm938 = vmand %vm907, %vm923
    %vm939 = vmand %vm908, %vm924
    %vm940 = vmand %vm909, %vm925
    %vm941 = vmand %vm910, %vm926
    %vm942 = vmand %vm911, %vm927
    %v943 = vsel %vm928, 1, 0
    %v944 = vsel %vm929, 1, 0
    %v945 = vsel %vm930, 1, 0
    %v946 = vsel %vm931, 1, 0
    %v947 = vsel %vm932, 1, 0
    %v948 = vsel %vm933, 1, 0
    %v949 = vsel %vm934, 1, 0
    %v950 = vsel %vm935, 1, 0
    %v951 = vsel %vm936, 1, 0
    %v952 = vsel %vm937, 1, 0
    %v953 = vsel %vm938, 1, 0
    %v954 = vsel %vm939, 1, 0
    %v955 = vsel %vm940, 1, 0
    %v956 = vsel %vm941, 1, 0
    %v957 = vsel %vm942, 1, 0
    %vm958 = vcmp.eq.s32.totalorder %v943, 1
    %vm959 = vcmp.eq.s32.totalorder %v944, 1
    %vm960 = vcmp.eq.s32.totalorder %v945, 1
    %vm961 = vcmp.eq.s32.totalorder %v946, 1
    %vm962 = vcmp.eq.s32.totalorder %v947, 1
    %vm963 = vcmp.eq.s32.totalorder %v948, 1
    %vm964 = vcmp.eq.s32.totalorder %v949, 1
    %vm965 = vcmp.eq.s32.totalorder %v950, 1
    %vm966 = vcmp.eq.s32.totalorder %v951, 1
    %vm967 = vcmp.eq.s32.totalorder %v952, 1
    %vm968 = vcmp.eq.s32.totalorder %v953, 1
    %vm969 = vcmp.eq.s32.totalorder %v954, 1
    %vm970 = vcmp.eq.s32.totalorder %v955, 1
    %vm971 = vcmp.eq.s32.totalorder %v956, 1
    %vm972 = vcmp.eq.s32.totalorder %v957, 1
    %v973 = vsel %vm958, %v895, 0.0
    %v974 = vsel %vm959, %v853, 0.0
    %v975 = vsel %vm960, %v855, 0.0
    %v976 = vsel %vm961, %v857, 0.0
    %v977 = vsel %vm962, %v859, 0.0
    %v978 = vsel %vm963, %v861, 0.0
    %v979 = vsel %vm964, %v863, 0.0
    %v980 = vsel %vm965, %v865, 0.0
    %v981 = vsel %vm966, %v867, 0.0
    %v982 = vsel %vm967, %v869, 0.0
    %v983 = vsel %vm968, %v871, 0.0
    %v984 = vsel %vm969, %v873, 0.0
    %v985 = vsel %vm970, %v875, 0.0
    %v986 = vsel %vm971, %v877, 0.0
    %v987 = vsel %vm972, %v879, 0.0
    %v988 = vpack.c.bf16 %v973, 0.0
    %v989 = vpack.c.bf16 %v975, %v974
    %v990 = vpack.c.bf16 %v977, %v976
    %v991 = vpack.c.bf16 %v979, %v978
    %v992 = vpack.c.bf16 %v981, %v980
    %v993 = vpack.c.bf16 %v983, %v982
    %v994 = vpack.c.bf16 %v985, %v984
    %v995 = vpack.c.bf16 %v987, %v986
    %v996 = vld [vmem:[#allocation13] sm:$0xf]
    %v997 = vld [vmem:[#allocation13 + $0x4] sm:$0xf]
    %v998 = vld [vmem:[#allocation13 + $0x8] sm:$0xf]
    %v999 = vld [vmem:[#allocation13 + $0xc] sm:$0xf]
    %v1000 = vld [vmem:[#allocation13 + $0x10] sm:$0xf]
    %v1001 = vld [vmem:[#allocation13 + $0x14] sm:$0xf]
    %v1002 = vld [vmem:[#allocation13 + $0x18] sm:$0xf]
    %v1003 = vld [vmem:[#allocation13 + $0x1c] sm:$0xf]
    %v1004 = vld [vmem:[#allocation13 + $0x20] sm:$0xf]
    %v1005 = vld [vmem:[#allocation13 + $0x24] sm:$0xf]
    %v1006 = vld [vmem:[#allocation13 + $0x28] sm:$0xf]
    %v1007 = vld [vmem:[#allocation13 + $0x2c] sm:$0xf]
    %v1008 = vld [vmem:[#allocation13 + $0x30] sm:$0xf]
    %v1009 = vld [vmem:[#allocation13 + $0x34] sm:$0xf]
    %v1010 = vld [vmem:[#allocation13 + $0x38] sm:$0xf]
    %v1011 = vld [vmem:[#allocation13 + $0x3c] sm:$0xf]
    %v1012 = vsel %vm897, 1, 0
    %v1013 = vsel %vm898, 1, 0
    %v1014 = vsel %vm899, 1, 0
    %v1015 = vsel %vm900, 1, 0
    %v1016 = vsel %vm901, 1, 0
    %v1017 = vsel %vm902, 1, 0
    %v1018 = vsel %vm903, 1, 0
    %v1019 = vsel %vm904, 1, 0
    %v1020 = vsel %vm905, 1, 0
    %v1021 = vsel %vm906, 1, 0
    %v1022 = vsel %vm907, 1, 0
    %v1023 = vsel %vm908, 1, 0
    %v1024 = vsel %vm909, 1, 0
    %v1025 = vsel %vm910, 1, 0
    %v1026 = vsel %vm911, 1, 0
    %vm1027 = vcmp.eq.s32.totalorder %v1012, 1
    %vm1028 = vcmp.eq.s32.totalorder %v1013, 1
    %vm1029 = vcmp.eq.s32.totalorder %v1014, 1
    %vm1030 = vcmp.eq.s32.totalorder %v1015, 1
    %vm1031 = vcmp.eq.s32.totalorder %v1016, 1
    %vm1032 = vcmp.eq.s32.totalorder %v1017, 1
    %vm1033 = vcmp.eq.s32.totalorder %v1018, 1
    %vm1034 = vcmp.eq.s32.totalorder %v1019, 1
    %vm1035 = vcmp.eq.s32.totalorder %v1020, 1
    %vm1036 = vcmp.eq.s32.totalorder %v1021, 1
    %vm1037 = vcmp.eq.s32.totalorder %v1022, 1
    %vm1038 = vcmp.eq.s32.totalorder %v1023, 1
    %vm1039 = vcmp.eq.s32.totalorder %v1024, 1
    %vm1040 = vcmp.eq.s32.totalorder %v1025, 1
    %vm1041 = vcmp.eq.s32.totalorder %v1026, 1
    %v1042 = vsel %vm1027, %v501, 0.0
    %v1043 = vsel %vm1028, %v502, 0.0
    %v1044 = vsel %vm1029, %v503, 0.0
    %v1045 = vsel %vm1030, %v504, 0.0
    %v1046 = vsel %vm1031, %v505, 0.0
    %v1047 = vsel %vm1032, %v506, 0.0
    %v1048 = vsel %vm1033, %v507, 0.0
    %v1049 = vsel %vm1034, %v508, 0.0
    %v1050 = vsel %vm1035, %v509, 0.0
    %v1051 = vsel %vm1036, %v510, 0.0
    %v1052 = vsel %vm1037, %v511, 0.0
    %v1053 = vsel %vm1038, %v512, 0.0
    %v1054 = vsel %vm1039, %v513, 0.0
    %v1055 = vsel %vm1040, %v514, 0.0
    %v1056 = vsel %vm1041, %v515, 0.0
    %v1057 = vpack.c.bf16 %v1042, 0.0
    %v1058 = vpack.c.bf16 %v1044, %v1043
    %v1059 = vpack.c.bf16 %v1046, %v1045
    %v1060 = vpack.c.bf16 %v1048, %v1047
    %v1061 = vpack.c.bf16 %v1050, %v1049
    %v1062 = vpack.c.bf16 %v1052, %v1051
    %v1063 = vpack.c.bf16 %v1054, %v1053
    %v1064 = vpack.c.bf16 %v1056, %v1055
    %s1065 = scalar_lea.vmem [#allocation13], 64
    %v1066 = vld [vmem:[%s1065] sm:$0xf]
    %v1067 = vld [vmem:[%s1065 + $0x4] sm:$0xf]
    %v1068 = vld [vmem:[%s1065 + $0x8] sm:$0xf]
    %v1069 = vld [vmem:[%s1065 + $0xc] sm:$0xf]
    %v1070 = vld [vmem:[%s1065 + $0x10] sm:$0xf]
    %v1071 = vld [vmem:[%s1065 + $0x14] sm:$0xf]
    %v1072 = vld [vmem:[%s1065 + $0x18] sm:$0xf]
    %v1073 = vld [vmem:[%s1065 + $0x1c] sm:$0xf]
    %v1074 = vld [vmem:[%s1065 + $0x20] sm:$0xf]
    %v1075 = vld [vmem:[%s1065 + $0x24] sm:$0xf]
    %v1076 = vld [vmem:[%s1065 + $0x28] sm:$0xf]
    %v1077 = vld [vmem:[%s1065 + $0x2c] sm:$0xf]
    %v1078 = vld [vmem:[%s1065 + $0x30] sm:$0xf]
    %v1079 = vld [vmem:[%s1065 + $0x34] sm:$0xf]
    %v1080 = vld [vmem:[%s1065 + $0x38] sm:$0xf]
    %v1081 = vld [vmem:[%s1065 + $0x3c] sm:$0xf]
    %v1098 = vunpack.c.l.b16 %v1066
    %v1099 = vunpack.c.l.b16 %v1067
    %v1100 = vunpack.c.l.b16 %v1068
    %v1101 = vunpack.c.l.b16 %v1069
    %v1102 = vunpack.c.l.b16 %v1070
    %v1103 = vunpack.c.l.b16 %v1071
    %v1104 = vunpack.c.l.b16 %v1072
    %v1105 = vunpack.c.l.b16 %v1073
    %v1106 = vunpack.c.l.b16 %v1074
    %v1107 = vunpack.c.l.b16 %v1075
    %v1108 = vunpack.c.l.b16 %v1076
    %v1109 = vunpack.c.l.b16 %v1077
    %v1110 = vunpack.c.l.b16 %v1078
    %v1111 = vunpack.c.l.b16 %v1079
    %v1112 = vunpack.c.l.b16 %v1080
    %v1113 = vunpack.c.l.b16 %v1081
    %v1114 = vpack.c.b16 %v1099, %v1098
    %v1115 = vpack.c.b16 %v1101, %v1100
    %v1116 = vpack.c.b16 %v1103, %v1102
    %v1117 = vpack.c.b16 %v1105, %v1104
    %v1118 = vpack.c.b16 %v1107, %v1106
    %v1119 = vpack.c.b16 %v1109, %v1108
    %v1120 = vpack.c.b16 %v1111, %v1110
    %v1121 = vpack.c.b16 %v1113, %v1112
    %1130 = vmatprep.subr.bf16.mxu0 0
    %1131 = vmatpush1.bf16.msra.mxu0 %v1114
    %1132 = vmatprep.subr.bf16.mxu0 0
    %1133 = vmatpush1.bf16.msra.mxu0 %v1115
    %1134 = vmatprep.subr.bf16.mxu0 0
    %1135 = vmatpush1.bf16.msra.mxu0 %v1116
    %1136 = vmatprep.subr.bf16.mxu0 0
    %1137 = vmatpush1.bf16.msra.mxu0 %v1117
    %1138 = vmatprep.subr.bf16.mxu0 0
    %1139 = vmatpush1.bf16.msra.mxu0 %v1118
    %1140 = vmatprep.subr.bf16.mxu0 0
    %1141 = vmatpush1.bf16.msra.mxu0 %v1119
    %1142 = vmatprep.subr.bf16.mxu0 0
    %1143 = vmatpush1.bf16.msra.mxu0 %v1120
    %1144 = vmatprep.subr.bf16.mxu0 0
    %1145 = vmatpush1.bf16.msra.mxu0 %v1121
    %1146 = vmatprep.subr.bf16.mxu0 0
    %1147 = vmatpush1.bf16.msra.mxu0 0
    %1148 = vmatprep.subr.bf16.mxu0 0
    %1149 = vmatpush1.bf16.msra.mxu0 0
    %1150 = vmatprep.subr.bf16.mxu0 0
    %1151 = vmatpush1.bf16.msra.mxu0 0
    %1152 = vmatprep.subr.bf16.mxu0 0
    %1153 = vmatpush1.bf16.msra.mxu0 0
    %1154 = vmatprep.subr.bf16.mxu0 0
    %1155 = vmatpush1.bf16.msra.mxu0 0
    %1156 = vmatprep.subr.bf16.mxu0 0
    %1157 = vmatpush1.bf16.msra.mxu0 0
    %1158 = vmatprep.subr.bf16.mxu0 0
    %1159 = vmatpush1.bf16.msra.mxu0 0
    %1160 = vmatprep.subr.bf16.mxu0 0
    %1161 = vmatpush1.bf16.msra.mxu0 0
    %1162 = vmatprep.mubr.bf16.mxu0 0
    %1163 = vmatmul.mubr.bf16.gmra.mrb[0].mxu0 %v1057
    %v1164 = vpop.f32.mrb[0].mxu0
    %v1165 = vadd.f32 0.0, %v1164
    %v1166 = vpop.f32.mrb[0].mxu0
    %v1167 = vpop.f32.mrb[0].mxu0
    %v1168 = vadd.f32 0.0, %v1167
    %v1169 = vpop.f32.mrb[0].mxu0
    %1170 = vmatprep.mubr.bf16.mxu0 0
    %1171 = vmatmul.mubr.bf16.gmra.mrb[0].mxu0 %v1058
    %v1172 = vpop.f32.mrb[0].mxu0
    %v1173 = vadd.f32 0.0, %v1172
    %v1174 = vpop.f32.mrb[0].mxu0
    %v1175 = vpop.f32.mrb[0].mxu0
    %v1176 = vadd.f32 0.0, %v1175
    %v1177 = vpop.f32.mrb[0].mxu0
    %1178 = vmatprep.mubr.bf16.mxu0 0
    %1179 = vmatmul.mubr.bf16.gmra.mrb[0].mxu0 %v1059
    %v1180 = vpop.f32.mrb[0].mxu0
    %v1181 = vadd.f32 0.0, %v1180
    %v1182 = vpop.f32.mrb[0].mxu0
    %v1183 = vpop.f32.mrb[0].mxu0
    %v1184 = vadd.f32 0.0, %v1183
    %v1185 = vpop.f32.mrb[0].mxu0
    %1186 = vmatprep.mubr.bf16.mxu0 0
    %1187 = vmatmul.mubr.bf16.gmra.mrb[0].mxu0 %v1060
    %v1188 = vpop.f32.mrb[0].mxu0
    %v1189 = vadd.f32 0.0, %v1188
    %v1190 = vpop.f32.mrb[0].mxu0
    %v1191 = vpop.f32.mrb[0].mxu0
    %v1192 = vadd.f32 0.0, %v1191
    %v1193 = vpop.f32.mrb[0].mxu0
    %1194 = vmatprep.mubr.bf16.mxu0 0
    %1195 = vmatmul.mubr.bf16.gmra.mrb[0].mxu0 %v1061
    %v1196 = vpop.f32.mrb[0].mxu0
    %v1197 = vadd.f32 0.0, %v1196
    %v1198 = vpop.f32.mrb[0].mxu0
    %v1199 = vpop.f32.mrb[0].mxu0
    %v1200 = vadd.f32 0.0, %v1199
    %v1201 = vpop.f32.mrb[0].mxu0
    %1202 = vmatprep.mubr.bf16.mxu0 0
    %1203 = vmatmul.mubr.bf16.gmra.mrb[0].mxu0 %v1062
    %v1204 = vpop.f32.mrb[0].mxu0
    %v1205 = vadd.f32 0.0, %v1204
    %v1206 = vpop.f32.mrb[0].mxu0
    %v1207 = vpop.f32.mrb[0].mxu0
    %v1208 = vadd.f32 0.0, %v1207
    %v1209 = vpop.f32.mrb[0].mxu0
    %1210 = vmatprep.mubr.bf16.mxu0 0
    %1211 = vmatmul.mubr.bf16.gmra.mrb[0].mxu0 %v1063
    %v1212 = vpop.f32.mrb[0].mxu0
    %v1213 = vadd.f32 0.0, %v1212
    %v1214 = vpop.f32.mrb[0].mxu0
    %v1215 = vpop.f32.mrb[0].mxu0
    %v1216 = vadd.f32 0.0, %v1215
    %v1217 = vpop.f32.mrb[0].mxu0
    %1218 = vmatprep.mubr.bf16.mxu0 0
    %1219 = vmatmul.mubr.bf16.gmra.mrb[0].mxu0 %v1064
    %v1220 = vpop.f32.mrb[0].mxu0
    %v1221 = vadd.f32 0.0, %v1220
    %v1222 = vpop.f32.mrb[0].mxu0
    %v1223 = vpop.f32.mrb[0].mxu0
    %v1224 = vadd.f32 0.0, %v1223
    %v1225 = vpop.f32.mrb[0].mxu0
    %1226 = vdwg.mxu0
    %v1243 = vunpack.c.l.b16 %v996
    %v1244 = vunpack.c.l.b16 %v997
    %v1245 = vunpack.c.l.b16 %v998
    %v1246 = vunpack.c.l.b16 %v999
    %v1247 = vunpack.c.l.b16 %v1000
    %v1248 = vunpack.c.l.b16 %v1001
    %v1249 = vunpack.c.l.b16 %v1002
    %v1250 = vunpack.c.l.b16 %v1003
    %v1251 = vunpack.c.l.b16 %v1004
    %v1252 = vunpack.c.l.b16 %v1005
    %v1253 = vunpack.c.l.b16 %v1006
    %v1254 = vunpack.c.l.b16 %v1007
    %v1255 = vunpack.c.l.b16 %v1008
    %v1256 = vunpack.c.l.b16 %v1009
    %v1257 = vunpack.c.l.b16 %v1010
    %v1258 = vunpack.c.l.b16 %v1011
    %v1259 = vpack.c.b16 %v1244, %v1243
    %v1260 = vpack.c.b16 %v1246, %v1245
    %v1261 = vpack.c.b16 %v1248, %v1247
    %v1262 = vpack.c.b16 %v1250, %v1249
    %v1263 = vpack.c.b16 %v1252, %v1251
    %v1264 = vpack.c.b16 %v1254, %v1253
    %v1265 = vpack.c.b16 %v1256, %v1255
    %v1266 = vpack.c.b16 %v1258, %v1257
    %1275 = vmatprep.subr.bf16.mxu0 0
    %1276 = vmatpush1.bf16.msra.mxu0 %v1259
    %1277 = vmatprep.subr.bf16.mxu0 0
    %1278 = vmatpush1.bf16.msra.mxu0 %v1260
    %1279 = vmatprep.subr.bf16.mxu0 0
    %1280 = vmatpush1.bf16.msra.mxu0 %v1261
    %1281 = vmatprep.subr.bf16.mxu0 0
    %1282 = vmatpush1.bf16.msra.mxu0 %v1262
    %1283 = vmatprep.subr.bf16.mxu0 0
    %1284 = vmatpush1.bf16.msra.mxu0 %v1263
    %1285 = vmatprep.subr.bf16.mxu0 0
    %1286 = vmatpush1.bf16.msra.mxu0 %v1264
    %1287 = vmatprep.subr.bf16.mxu0 0
    %1288 = vmatpush1.bf16.msra.mxu0 %v1265
    %1289 = vmatprep.subr.bf16.mxu0 0
    %1290 = vmatpush1.bf16.msra.mxu0 %v1266
    %1291 = vmatprep.subr.bf16.mxu0 0
    %1292 = vmatpush1.bf16.msra.mxu0 0
    %1293 = vmatprep.subr.bf16.mxu0 0
    %1294 = vmatpush1.bf16.msra.mxu0 0
    %1295 = vmatprep.subr.bf16.mxu0 0
    %1296 = vmatpush1.bf16.msra.mxu0 0
    %1297 = vmatprep.subr.bf16.mxu0 0
    %1298 = vmatpush1.bf16.msra.mxu0 0
    %1299 = vmatprep.subr.bf16.mxu0 0
    %1300 = vmatpush1.bf16.msra.mxu0 0
    %1301 = vmatprep.subr.bf16.mxu0 0
    %1302 = vmatpush1.bf16.msra.mxu0 0
    %1303 = vmatprep.subr.bf16.mxu0 0
    %1304 = vmatpush1.bf16.msra.mxu0 0
    %1305 = vmatprep.subr.bf16.mxu0 0
    %1306 = vmatpush1.bf16.msra.mxu0 0
    %1307 = vmatprep.mubr.bf16.mxu0 0
    %1308 = vmatmul.mubr.bf16.gmra.mrb[0].mxu0 %v988
    %v1309 = vpop.f32.mrb[0].mxu0
    %v1310 = vadd.f32 %v1165, %v1309
    %v1311 = vpop.f32.mrb[0].mxu0
    %v1312 = vpop.f32.mrb[0].mxu0
    %v1313 = vadd.f32 %v1168, %v1312
    %v1314 = vpop.f32.mrb[0].mxu0
    %1315 = vmatprep.mubr.bf16.mxu0 0
    %1316 = vmatmul.mubr.bf16.gmra.mrb[0].mxu0 %v989
    %v1317 = vpop.f32.mrb[0].mxu0
    %v1318 = vadd.f32 %v1173, %v1317
    %v1319 = vpop.f32.mrb[0].mxu0
    %v1320 = vpop.f32.mrb[0].mxu0
    %v1321 = vadd.f32 %v1176, %v1320
    %v1322 = vpop.f32.mrb[0].mxu0
    %1323 = vmatprep.mubr.bf16.mxu0 0
    %1324 = vmatmul.mubr.bf16.gmra.mrb[0].mxu0 %v990
    %v1325 = vpop.f32.mrb[0].mxu0
    %v1326 = vadd.f32 %v1181, %v1325
    %v1327 = vpop.f32.mrb[0].mxu0
    %v1328 = vpop.f32.mrb[0].mxu0
    %v1329 = vadd.f32 %v1184, %v1328
    %v1330 = vpop.f32.mrb[0].mxu0
    %1331 = vmatprep.mubr.bf16.mxu0 0
    %1332 = vmatmul.mubr.bf16.gmra.mrb[0].mxu0 %v991
    %v1333 = vpop.f32.mrb[0].mxu0
    %v1334 = vadd.f32 %v1189, %v1333
    %v1335 = vpop.f32.mrb[0].mxu0
    %v1336 = vpop.f32.mrb[0].mxu0
    %v1337 = vadd.f32 %v1192, %v1336
    %v1338 = vpop.f32.mrb[0].mxu0
    %1339 = vmatprep.mubr.bf16.mxu0 0
    %1340 = vmatmul.mubr.bf16.gmra.mrb[0].mxu0 %v992
    %v1341 = vpop.f32.mrb[0].mxu0
    %v1342 = vadd.f32 %v1197, %v1341
    %v1343 = vpop.f32.mrb[0].mxu0
    %v1344 = vpop.f32.mrb[0].mxu0
    %v1345 = vadd.f32 %v1200, %v1344
    %v1346 = vpop.f32.mrb[0].mxu0
    %1347 = vmatprep.mubr.bf16.mxu0 0
    %1348 = vmatmul.mubr.bf16.gmra.mrb[0].mxu0 %v993
    %v1349 = vpop.f32.mrb[0].mxu0
    %v1350 = vadd.f32 %v1205, %v1349
    %v1351 = vpop.f32.mrb[0].mxu0
    %v1352 = vpop.f32.mrb[0].mxu0
    %v1353 = vadd.f32 %v1208, %v1352
    %v1354 = vpop.f32.mrb[0].mxu0
    %1355 = vmatprep.mubr.bf16.mxu0 0
    %1356 = vmatmul.mubr.bf16.gmra.mrb[0].mxu0 %v994
    %v1357 = vpop.f32.mrb[0].mxu0
    %v1358 = vadd.f32 %v1213, %v1357
    %v1359 = vpop.f32.mrb[0].mxu0
    %v1360 = vpop.f32.mrb[0].mxu0
    %v1361 = vadd.f32 %v1216, %v1360
    %v1362 = vpop.f32.mrb[0].mxu0
    %1363 = vmatprep.mubr.bf16.mxu0 0
    %1364 = vmatmul.mubr.bf16.gmra.mrb[0].mxu0 %v995
    %v1365 = vpop.f32.mrb[0].mxu0
    %v1366 = vadd.f32 %v1221, %v1365
    %v1367 = vpop.f32.mrb[0].mxu0
    %v1368 = vpop.f32.mrb[0].mxu0
    %v1369 = vadd.f32 %v1224, %v1368
    %v1370 = vpop.f32.mrb[0].mxu0
    %1371 = vdwg.mxu0
    %vm1373 = vcmask 1046528
    %v1374 = vrot.slane %v501, 1
    %v1375 = vrot.slane %v502, 1
    %v1376 = vsel %vm1373, %v1374, %v1375
    %v1377 = vrot.slane %v503, 1
    %v1378 = vsel %vm1373, %v1375, %v1377
    %v1379 = vrot.slane %v504, 1
    %v1380 = vsel %vm1373, %v1377, %v1379
    %v1381 = vrot.slane %v505, 1
    %v1382 = vsel %vm1373, %v1379, %v1381
    %v1383 = vrot.slane %v506, 1
    %v1384 = vsel %vm1373, %v1381, %v1383
    %v1385 = vrot.slane %v507, 1
    %v1386 = vsel %vm1373, %v1383, %v1385
    %v1387 = vrot.slane %v508, 1
    %v1388 = vsel %vm1373, %v1385, %v1387
    %v1389 = vrot.slane %v509, 1
    %v1390 = vsel %vm1373, %v1387, %v1389
    %v1391 = vrot.slane %v510, 1
    %v1392 = vsel %vm1373, %v1389, %v1391
    %v1393 = vrot.slane %v511, 1
    %v1394 = vsel %vm1373, %v1391, %v1393
    %v1395 = vrot.slane %v512, 1
    %v1396 = vsel %vm1373, %v1393, %v1395
    %v1397 = vrot.slane %v513, 1
    %v1398 = vsel %vm1373, %v1395, %v1397
    %v1399 = vrot.slane %v514, 1
    %v1400 = vsel %vm1373, %v1397, %v1399
    %v1401 = vrot.slane %v515, 1
    %v1402 = vsel %vm1373, %v1399, %v1401
    %v1403 = vrot.slane %v516, 1
    %v1404 = vsel %vm1373, %v1401, %v1403
    %v1421 = vsel %vm1373, 0.0, %v1374
    %vm1422 = vcmp.lt.f32.partialorder %v739, 7.0
    %vm1423 = vcmp.lt.f32.partialorder %v740, 7.0
    %vm1424 = vcmp.lt.f32.partialorder %v741, 7.0
    %vm1425 = vcmp.lt.f32.partialorder %v742, 7.0
    %vm1426 = vcmp.lt.f32.partialorder %v743, 7.0
    %vm1427 = vcmp.lt.f32.partialorder %v744, 7.0
    %vm1428 = vcmp.lt.f32.partialorder %v745, 7.0
    %vm1429 = vcmp.lt.f32.partialorder %v746, 7.0
    %vm1430 = vcmp.lt.f32.partialorder %v747, 7.0
    %vm1431 = vcmp.lt.f32.partialorder %v748, 7.0
    %vm1432 = vcmp.lt.f32.partialorder %v749, 7.0
    %vm1433 = vcmp.lt.f32.partialorder %v750, 7.0
    %vm1434 = vcmp.lt.f32.partialorder %v751, 7.0
    %vm1435 = vcmp.lt.f32.partialorder %v752, 7.0
    %vm1436 = vcmp.lt.f32.partialorder %v753, 7.0
    %vm1437 = vcmp.lt.f32.partialorder %v754, 7.0
    %vm1438 = vmand %vm896, %vm1422
    %vm1439 = vmand %vm897, %vm1423
    %vm1440 = vmand %vm898, %vm1424
    %vm1441 = vmand %vm899, %vm1425
    %vm1442 = vmand %vm900, %vm1426
    %vm1443 = vmand %vm901, %vm1427
    %vm1444 = vmand %vm902, %vm1428
    %vm1445 = vmand %vm903, %vm1429
    %vm1446 = vmand %vm904, %vm1430
    %vm1447 = vmand %vm905, %vm1431
    %vm1448 = vmand %vm906, %vm1432
    %vm1449 = vmand %vm907, %vm1433
    %vm1450 = vmand %vm908, %vm1434
    %vm1451 = vmand %vm909, %vm1435
    %vm1452 = vmand %vm910, %vm1436
    %vm1453 = vmand %vm911, %vm1437
    %v1454 = vsel %vm1438, 1, 0
    %v1455 = vsel %vm1439, 1, 0
    %v1456 = vsel %vm1440, 1, 0
    %v1457 = vsel %vm1441, 1, 0
    %v1458 = vsel %vm1442, 1, 0
    %v1459 = vsel %vm1443, 1, 0
    %v1460 = vsel %vm1444, 1, 0
    %v1461 = vsel %vm1445, 1, 0
    %v1462 = vsel %vm1446, 1, 0
    %v1463 = vsel %vm1447, 1, 0
    %v1464 = vsel %vm1448, 1, 0
    %v1465 = vsel %vm1449, 1, 0
    %v1466 = vsel %vm1450, 1, 0
    %v1467 = vsel %vm1451, 1, 0
    %v1468 = vsel %vm1452, 1, 0
    %v1469 = vsel %vm1453, 1, 0
    %vm1470 = vcmp.eq.s32.totalorder %v1454, 1
    %vm1471 = vcmp.eq.s32.totalorder %v1455, 1
    %vm1472 = vcmp.eq.s32.totalorder %v1456, 1
    %vm1473 = vcmp.eq.s32.totalorder %v1457, 1
    %vm1474 = vcmp.eq.s32.totalorder %v1458, 1
    %vm1475 = vcmp.eq.s32.totalorder %v1459, 1
    %vm1476 = vcmp.eq.s32.totalorder %v1460, 1
    %vm1477 = vcmp.eq.s32.totalorder %v1461, 1
    %vm1478 = vcmp.eq.s32.totalorder %v1462, 1
    %vm1479 = vcmp.eq.s32.totalorder %v1463, 1
    %vm1480 = vcmp.eq.s32.totalorder %v1464, 1
    %vm1481 = vcmp.eq.s32.totalorder %v1465, 1
    %vm1482 = vcmp.eq.s32.totalorder %v1466, 1
    %vm1483 = vcmp.eq.s32.totalorder %v1467, 1
    %vm1484 = vcmp.eq.s32.totalorder %v1468, 1
    %vm1485 = vcmp.eq.s32.totalorder %v1469, 1
    %v1486 = vsel %vm1470, %v1421, 0.0
    %v1487 = vsel %vm1471, %v1376, 0.0
    %v1488 = vsel %vm1472, %v1378, 0.0
    %v1489 = vsel %vm1473, %v1380, 0.0
    %v1490 = vsel %vm1474, %v1382, 0.0
    %v1491 = vsel %vm1475, %v1384, 0.0
    %v1492 = vsel %vm1476, %v1386, 0.0
    %v1493 = vsel %vm1477, %v1388, 0.0
    %v1494 = vsel %vm1478, %v1390, 0.0
    %v1495 = vsel %vm1479, %v1392, 0.0
    %v1496 = vsel %vm1480, %v1394, 0.0
    %v1497 = vsel %vm1481, %v1396, 0.0
    %v1498 = vsel %vm1482, %v1398, 0.0
    %v1499 = vsel %vm1483, %v1400, 0.0
    %v1500 = vsel %vm1484, %v1402, 0.0
    %v1501 = vsel %vm1485, %v1404, 0.0
    %v1502 = vpack.c.bf16 %v1487, %v1486
    %v1503 = vpack.c.bf16 %v1489, %v1488
    %v1504 = vpack.c.bf16 %v1491, %v1490
    %v1505 = vpack.c.bf16 %v1493, %v1492
    %v1506 = vpack.c.bf16 %v1495, %v1494
    %v1507 = vpack.c.bf16 %v1497, %v1496
    %v1508 = vpack.c.bf16 %v1499, %v1498
    %v1509 = vpack.c.bf16 %v1501, %v1500
    %s1510 = scalar_lea.vmem [#allocation13], 128
    %v1511 = vld [vmem:[%s1510] sm:$0xf]
    %v1512 = vld [vmem:[%s1510 + $0x4] sm:$0xf]
    %v1513 = vld [vmem:[%s1510 + $0x8] sm:$0xf]
    %v1514 = vld [vmem:[%s1510 + $0xc] sm:$0xf]
    %v1515 = vld [vmem:[%s1510 + $0x10] sm:$0xf]
    %v1516 = vld [vmem:[%s1510 + $0x14] sm:$0xf]
    %v1517 = vld [vmem:[%s1510 + $0x18] sm:$0xf]
    %v1518 = vld [vmem:[%s1510 + $0x1c] sm:$0xf]
    %v1519 = vld [vmem:[%s1510 + $0x20] sm:$0xf]
    %v1520 = vld [vmem:[%s1510 + $0x24] sm:$0xf]
    %v1521 = vld [vmem:[%s1510 + $0x28] sm:$0xf]
    %v1522 = vld [vmem:[%s1510 + $0x2c] sm:$0xf]
    %v1523 = vld [vmem:[%s1510 + $0x30] sm:$0xf]
    %v1524 = vld [vmem:[%s1510 + $0x34] sm:$0xf]
    %v1525 = vld [vmem:[%s1510 + $0x38] sm:$0xf]
    %v1526 = vld [vmem:[%s1510 + $0x3c] sm:$0xf]
    %v1543 = vunpack.c.l.b16 %v1511
    %v1544 = vunpack.c.l.b16 %v1512
    %v1545 = vunpack.c.l.b16 %v1513
    %v1546 = vunpack.c.l.b16 %v1514
    %v1547 = vunpack.c.l.b16 %v1515
    %v1548 = vunpack.c.l.b16 %v1516
    %v1549 = vunpack.c.l.b16 %v1517
    %v1550 = vunpack.c.l.b16 %v1518
    %v1551 = vunpack.c.l.b16 %v1519
    %v1552 = vunpack.c.l.b16 %v1520
    %v1553 = vunpack.c.l.b16 %v1521
    %v1554 = vunpack.c.l.b16 %v1522
    %v1555 = vunpack.c.l.b16 %v1523
    %v1556 = vunpack.c.l.b16 %v1524
    %v1557 = vunpack.c.l.b16 %v1525
    %v1558 = vunpack.c.l.b16 %v1526
    %v1559 = vpack.c.b16 %v1544, %v1543
    %v1560 = vpack.c.b16 %v1546, %v1545
    %v1561 = vpack.c.b16 %v1548, %v1547
    %v1562 = vpack.c.b16 %v1550, %v1549
    %v1563 = vpack.c.b16 %v1552, %v1551
    %v1564 = vpack.c.b16 %v1554, %v1553
    %v1565 = vpack.c.b16 %v1556, %v1555
    %v1566 = vpack.c.b16 %v1558, %v1557
    %1575 = vmatprep.subr.bf16.mxu0 0
    %1576 = vmatpush1.bf16.msra.mxu0 %v1559
    %1577 = vmatprep.subr.bf16.mxu0 0
    %1578 = vmatpush1.bf16.msra.mxu0 %v1560
    %1579 = vmatprep.subr.bf16.mxu0 0
    %1580 = vmatpush1.bf16.msra.mxu0 %v1561
    %1581 = vmatprep.subr.bf16.mxu0 0
    %1582 = vmatpush1.bf16.msra.mxu0 %v1562
    %1583 = vmatprep.subr.bf16.mxu0 0
    %1584 = vmatpush1.bf16.msra.mxu0 %v1563
    %1585 = vmatprep.subr.bf16.mxu0 0
    %1586 = vmatpush1.bf16.msra.mxu0 %v1564
    %1587 = vmatprep.subr.bf16.mxu0 0
    %1588 = vmatpush1.bf16.msra.mxu0 %v1565
    %1589 = vmatprep.subr.bf16.mxu0 0
    %1590 = vmatpush1.bf16.msra.mxu0 %v1566
    %1591 = vmatprep.subr.bf16.mxu0 0
    %1592 = vmatpush1.bf16.msra.mxu0 0
    %1593 = vmatprep.subr.bf16.mxu0 0
    %1594 = vmatpush1.bf16.msra.mxu0 0
    %1595 = vmatprep.subr.bf16.mxu0 0
    %1596 = vmatpush1.bf16.msra.mxu0 0
    %1597 = vmatprep.subr.bf16.mxu0 0
    %1598 = vmatpush1.bf16.msra.mxu0 0
    %1599 = vmatprep.subr.bf16.mxu0 0
    %1600 = vmatpush1.bf16.msra.mxu0 0
    %1601 = vmatprep.subr.bf16.mxu0 0
    %1602 = vmatpush1.bf16.msra.mxu0 0
    %1603 = vmatprep.subr.bf16.mxu0 0
    %1604 = vmatpush1.bf16.msra.mxu0 0
    %1605 = vmatprep.subr.bf16.mxu0 0
    %1606 = vmatpush1.bf16.msra.mxu0 0
    %1607 = vmatprep.mubr.bf16.mxu0 0
    %1608 = vmatmul.mubr.bf16.gmra.mrb[0].mxu0 %v1502
    %v1609 = vpop.f32.mrb[0].mxu0
    %v1610 = vadd.f32 0.0, %v1609
    %v1611 = vpop.f32.mrb[0].mxu0
    %v1612 = vpop.f32.mrb[0].mxu0
    %v1613 = vadd.f32 0.0, %v1612
    %v1614 = vpop.f32.mrb[0].mxu0
    %1615 = vmatprep.mubr.bf16.mxu0 0
    %1616 = vmatmul.mubr.bf16.gmra.mrb[0].mxu0 %v1503
    %v1617 = vpop.f32.mrb[0].mxu0
    %v1618 = vadd.f32 0.0, %v1617
    %v1619 = vpop.f32.mrb[0].mxu0
    %v1620 = vpop.f32.mrb[0].mxu0
    %v1621 = vadd.f32 0.0, %v1620
    %v1622 = vpop.f32.mrb[0].mxu0
    %1623 = vmatprep.mubr.bf16.mxu0 0
    %1624 = vmatmul.mubr.bf16.gmra.mrb[0].mxu0 %v1504
    %v1625 = vpop.f32.mrb[0].mxu0
    %v1626 = vadd.f32 0.0, %v1625
    %v1627 = vpop.f32.mrb[0].mxu0
    %v1628 = vpop.f32.mrb[0].mxu0
    %v1629 = vadd.f32 0.0, %v1628
    %v1630 = vpop.f32.mrb[0].mxu0
    %1631 = vmatprep.mubr.bf16.mxu0 0
    %1632 = vmatmul.mubr.bf16.gmra.mrb[0].mxu0 %v1505
    %v1633 = vpop.f32.mrb[0].mxu0
    %v1634 = vadd.f32 0.0, %v1633
    %v1635 = vpop.f32.mrb[0].mxu0
    %v1636 = vpop.f32.mrb[0].mxu0
    %v1637 = vadd.f32 0.0, %v1636
    %v1638 = vpop.f32.mrb[0].mxu0
    %1639 = vmatprep.mubr.bf16.mxu0 0
    %1640 = vmatmul.mubr.bf16.gmra.mrb[0].mxu0 %v1506
    %v1641 = vpop.f32.mrb[0].mxu0
    %v1642 = vadd.f32 0.0, %v1641
    %v1643 = vpop.f32.mrb[0].mxu0
    %v1644 = vpop.f32.mrb[0].mxu0
    %v1645 = vadd.f32 0.0, %v1644
    %v1646 = vpop.f32.mrb[0].mxu0
    %1647 = vmatprep.mubr.bf16.mxu0 0
    %1648 = vmatmul.mubr.bf16.gmra.mrb[0].mxu0 %v1507
    %v1649 = vpop.f32.mrb[0].mxu0
    %v1650 = vadd.f32 0.0, %v1649
    %v1651 = vpop.f32.mrb[0].mxu0
    %v1652 = vpop.f32.mrb[0].mxu0
    %v1653 = vadd.f32 0.0, %v1652
    %v1654 = vpop.f32.mrb[0].mxu0
    %1655 = vmatprep.mubr.bf16.mxu0 0
    %1656 = vmatmul.mubr.bf16.gmra.mrb[0].mxu0 %v1508
    %v1657 = vpop.f32.mrb[0].mxu0
    %v1658 = vadd.f32 0.0, %v1657
    %v1659 = vpop.f32.mrb[0].mxu0
    %v1660 = vpop.f32.mrb[0].mxu0
    %v1661 = vadd.f32 0.0, %v1660
    %v1662 = vpop.f32.mrb[0].mxu0
    %1663 = vmatprep.mubr.bf16.mxu0 0
    %1664 = vmatmul.mubr.bf16.gmra.mrb[0].mxu0 %v1509
    %v1665 = vpop.f32.mrb[0].mxu0
    %v1666 = vadd.f32 0.0, %v1665
    %v1667 = vpop.f32.mrb[0].mxu0
    %v1668 = vpop.f32.mrb[0].mxu0
    %v1669 = vadd.f32 0.0, %v1668
    %v1670 = vpop.f32.mrb[0].mxu0
    %1671 = vdwg.mxu0
    %v1672 = vadd.f32 %v1310, %v1610
    %v1673 = vadd.f32 %v1313, %v1613
    %v1674 = vadd.f32 %v1318, %v1618
    %v1675 = vadd.f32 %v1321, %v1621
    %v1676 = vadd.f32 %v1326, %v1626
    %v1677 = vadd.f32 %v1329, %v1629
    %v1678 = vadd.f32 %v1334, %v1634
    %v1679 = vadd.f32 %v1337, %v1637
    %v1680 = vadd.f32 %v1342, %v1642
    %v1681 = vadd.f32 %v1345, %v1645
    %v1682 = vadd.f32 %v1350, %v1650
    %v1683 = vadd.f32 %v1353, %v1653
    %v1684 = vadd.f32 %v1358, %v1658
    %v1685 = vadd.f32 %v1361, %v1661
    %v1686 = vadd.f32 %v1366, %v1666
    %v1687 = vadd.f32 %v1369, %v1669
    %v1688 = vrot.slane %v516, 7
    %v1689 = vsel %vm850, %v878, %v1688
    %v1691 = vsel %vm912, 1, 0
    %v1692 = vsel %vm913, 1, 0
    %v1693 = vsel %vm914, 1, 0
    %v1694 = vsel %vm915, 1, 0
    %v1695 = vsel %vm916, 1, 0
    %v1696 = vsel %vm917, 1, 0
    %v1697 = vsel %vm918, 1, 0
    %v1698 = vsel %vm919, 1, 0
    %v1699 = vsel %vm920, 1, 0
    %v1700 = vsel %vm921, 1, 0
    %v1701 = vsel %vm922, 1, 0
    %v1702 = vsel %vm923, 1, 0
    %v1703 = vsel %vm924, 1, 0
    %v1704 = vsel %vm925, 1, 0
    %v1705 = vsel %vm926, 1, 0
    %v1706 = vsel %vm927, 1, 0
    %vm1707 = vcmp.eq.s32.totalorder %v1691, 1
    %vm1708 = vcmp.eq.s32.totalorder %v1692, 1
    %vm1709 = vcmp.eq.s32.totalorder %v1693, 1
    %vm1710 = vcmp.eq.s32.totalorder %v1694, 1
    %vm1711 = vcmp.eq.s32.totalorder %v1695, 1
    %vm1712 = vcmp.eq.s32.totalorder %v1696, 1
    %vm1713 = vcmp.eq.s32.totalorder %v1697, 1
    %vm1714 = vcmp.eq.s32.totalorder %v1698, 1
    %vm1715 = vcmp.eq.s32.totalorder %v1699, 1
    %vm1716 = vcmp.eq.s32.totalorder %v1700, 1
    %vm1717 = vcmp.eq.s32.totalorder %v1701, 1
    %vm1718 = vcmp.eq.s32.totalorder %v1702, 1
    %vm1719 = vcmp.eq.s32.totalorder %v1703, 1
    %vm1720 = vcmp.eq.s32.totalorder %v1704, 1
    %vm1721 = vcmp.eq.s32.totalorder %v1705, 1
    %vm1722 = vcmp.eq.s32.totalorder %v1706, 1
    %v1723 = vsel %vm1707, %v895, 0.0
    %v1724 = vsel %vm1708, %v853, 0.0
    %v1725 = vsel %vm1709, %v855, 0.0
    %v1726 = vsel %vm1710, %v857, 0.0
    %v1727 = vsel %vm1711, %v859, 0.0
    %v1728 = vsel %vm1712, %v861, 0.0
    %v1729 = vsel %vm1713, %v863, 0.0
    %v1730 = vsel %vm1714, %v865, 0.0
    %v1731 = vsel %vm1715, %v867, 0.0
    %v1732 = vsel %vm1716, %v869, 0.0
    %v1733 = vsel %vm1717, %v871, 0.0
    %v1734 = vsel %vm1718, %v873, 0.0
    %v1735 = vsel %vm1719, %v875, 0.0
    %v1736 = vsel %vm1720, %v877, 0.0
    %v1737 = vsel %vm1721, %v879, 0.0
    %v1738 = vsel %vm1722, %v1689, 0.0
    %v1739 = vpack.c.bf16 %v1724, %v1723
    %v1740 = vpack.c.bf16 %v1726, %v1725
    %v1741 = vpack.c.bf16 %v1728, %v1727
    %v1742 = vpack.c.bf16 %v1730, %v1729
    %v1743 = vpack.c.bf16 %v1732, %v1731
    %v1744 = vpack.c.bf16 %v1734, %v1733
    %v1745 = vpack.c.bf16 %v1736, %v1735
    %v1746 = vpack.c.bf16 %v1738, %v1737
    %s1747 = scalar_lea.vmem [#allocation13], 192
    %v1748 = vld [vmem:[%s1747] sm:$0xf]
    %v1749 = vld [vmem:[%s1747 + $0x4] sm:$0xf]
    %v1750 = vld [vmem:[%s1747 + $0x8] sm:$0xf]
    %v1751 = vld [vmem:[%s1747 + $0xc] sm:$0xf]
    %v1752 = vld [vmem:[%s1747 + $0x10] sm:$0xf]
    %v1753 = vld [vmem:[%s1747 + $0x14] sm:$0xf]
    %v1754 = vld [vmem:[%s1747 + $0x18] sm:$0xf]
    %v1755 = vld [vmem:[%s1747 + $0x1c] sm:$0xf]
    %v1756 = vld [vmem:[%s1747 + $0x20] sm:$0xf]
    %v1757 = vld [vmem:[%s1747 + $0x24] sm:$0xf]
    %v1758 = vld [vmem:[%s1747 + $0x28] sm:$0xf]
    %v1759 = vld [vmem:[%s1747 + $0x2c] sm:$0xf]
    %v1760 = vld [vmem:[%s1747 + $0x30] sm:$0xf]
    %v1761 = vld [vmem:[%s1747 + $0x34] sm:$0xf]
    %v1762 = vld [vmem:[%s1747 + $0x38] sm:$0xf]
    %v1763 = vld [vmem:[%s1747 + $0x3c] sm:$0xf]
    %v1780 = vunpack.c.l.b16 %v1748
    %v1781 = vunpack.c.l.b16 %v1749
    %v1782 = vunpack.c.l.b16 %v1750
    %v1783 = vunpack.c.l.b16 %v1751
    %v1784 = vunpack.c.l.b16 %v1752
    %v1785 = vunpack.c.l.b16 %v1753
    %v1786 = vunpack.c.l.b16 %v1754
    %v1787 = vunpack.c.l.b16 %v1755
    %v1788 = vunpack.c.l.b16 %v1756
    %v1789 = vunpack.c.l.b16 %v1757
    %v1790 = vunpack.c.l.b16 %v1758
    %v1791 = vunpack.c.l.b16 %v1759
    %v1792 = vunpack.c.l.b16 %v1760
    %v1793 = vunpack.c.l.b16 %v1761
    %v1794 = vunpack.c.l.b16 %v1762
    %v1795 = vunpack.c.l.b16 %v1763
    %v1796 = vpack.c.b16 %v1781, %v1780
    %v1797 = vpack.c.b16 %v1783, %v1782
    %v1798 = vpack.c.b16 %v1785, %v1784
    %v1799 = vpack.c.b16 %v1787, %v1786
    %v1800 = vpack.c.b16 %v1789, %v1788
    %v1801 = vpack.c.b16 %v1791, %v1790
    %v1802 = vpack.c.b16 %v1793, %v1792
    %v1803 = vpack.c.b16 %v1795, %v1794
    %1812 = vmatprep.subr.bf16.mxu0 0
    %1813 = vmatpush1.bf16.msra.mxu0 %v1796
    %1814 = vmatprep.subr.bf16.mxu0 0
    %1815 = vmatpush1.bf16.msra.mxu0 %v1797
    %1816 = vmatprep.subr.bf16.mxu0 0
    %1817 = vmatpush1.bf16.msra.mxu0 %v1798
    %1818 = vmatprep.subr.bf16.mxu0 0
    %1819 = vmatpush1.bf16.msra.mxu0 %v1799
    %1820 = vmatprep.subr.bf16.mxu0 0
    %1821 = vmatpush1.bf16.msra.mxu0 %v1800
    %1822 = vmatprep.subr.bf16.mxu0 0
    %1823 = vmatpush1.bf16.msra.mxu0 %v1801
    %1824 = vmatprep.subr.bf16.mxu0 0
    %1825 = vmatpush1.bf16.msra.mxu0 %v1802
    %1826 = vmatprep.subr.bf16.mxu0 0
    %1827 = vmatpush1.bf16.msra.mxu0 %v1803
    %1828 = vmatprep.subr.bf16.mxu0 0
    %1829 = vmatpush1.bf16.msra.mxu0 0
    %1830 = vmatprep.subr.bf16.mxu0 0
    %1831 = vmatpush1.bf16.msra.mxu0 0
    %1832 = vmatprep.subr.bf16.mxu0 0
    %1833 = vmatpush1.bf16.msra.mxu0 0
    %1834 = vmatprep.subr.bf16.mxu0 0
    %1835 = vmatpush1.bf16.msra.mxu0 0
    %1836 = vmatprep.subr.bf16.mxu0 0
    %1837 = vmatpush1.bf16.msra.mxu0 0
    %1838 = vmatprep.subr.bf16.mxu0 0
    %1839 = vmatpush1.bf16.msra.mxu0 0
    %1840 = vmatprep.subr.bf16.mxu0 0
    %1841 = vmatpush1.bf16.msra.mxu0 0
    %1842 = vmatprep.subr.bf16.mxu0 0
    %1843 = vmatpush1.bf16.msra.mxu0 0
    %1844 = vmatprep.mubr.bf16.mxu0 0
    %1845 = vmatmul.mubr.bf16.gmra.mrb[0].mxu0 %v1739
    %v1846 = vpop.f32.mrb[0].mxu0
    %v1847 = vadd.f32 0.0, %v1846
    %v1848 = vpop.f32.mrb[0].mxu0
    %v1849 = vpop.f32.mrb[0].mxu0
    %v1850 = vadd.f32 0.0, %v1849
    %v1851 = vpop.f32.mrb[0].mxu0
    %1852 = vmatprep.mubr.bf16.mxu0 0
    %1853 = vmatmul.mubr.bf16.gmra.mrb[0].mxu0 %v1740
    %v1854 = vpop.f32.mrb[0].mxu0
    %v1855 = vadd.f32 0.0, %v1854
    %v1856 = vpop.f32.mrb[0].mxu0
    %v1857 = vpop.f32.mrb[0].mxu0
    %v1858 = vadd.f32 0.0, %v1857
    %v1859 = vpop.f32.mrb[0].mxu0
    %1860 = vmatprep.mubr.bf16.mxu0 0
    %1861 = vmatmul.mubr.bf16.gmra.mrb[0].mxu0 %v1741
    %v1862 = vpop.f32.mrb[0].mxu0
    %v1863 = vadd.f32 0.0, %v1862
    %v1864 = vpop.f32.mrb[0].mxu0
    %v1865 = vpop.f32.mrb[0].mxu0
    %v1866 = vadd.f32 0.0, %v1865
    %v1867 = vpop.f32.mrb[0].mxu0
    %1868 = vmatprep.mubr.bf16.mxu0 0
    %1869 = vmatmul.mubr.bf16.gmra.mrb[0].mxu0 %v1742
    %v1870 = vpop.f32.mrb[0].mxu0
    %v1871 = vadd.f32 0.0, %v1870
    %v1872 = vpop.f32.mrb[0].mxu0
    %v1873 = vpop.f32.mrb[0].mxu0
    %v1874 = vadd.f32 0.0, %v1873
    %v1875 = vpop.f32.mrb[0].mxu0
    %1876 = vmatprep.mubr.bf16.mxu0 0
    %1877 = vmatmul.mubr.bf16.gmra.mrb[0].mxu0 %v1743
    %v1878 = vpop.f32.mrb[0].mxu0
    %v1879 = vadd.f32 0.0, %v1878
    %v1880 = vpop.f32.mrb[0].mxu0
    %v1881 = vpop.f32.mrb[0].mxu0
    %v1882 = vadd.f32 0.0, %v1881
    %v1883 = vpop.f32.mrb[0].mxu0
    %1884 = vmatprep.mubr.bf16.mxu0 0
    %1885 = vmatmul.mubr.bf16.gmra.mrb[0].mxu0 %v1744
    %v1886 = vpop.f32.mrb[0].mxu0
    %v1887 = vadd.f32 0.0, %v1886
    %v1888 = vpop.f32.mrb[0].mxu0
    %v1889 = vpop.f32.mrb[0].mxu0
    %v1890 = vadd.f32 0.0, %v1889
    %v1891 = vpop.f32.mrb[0].mxu0
    %1892 = vmatprep.mubr.bf16.mxu0 0
    %1893 = vmatmul.mubr.bf16.gmra.mrb[0].mxu0 %v1745
    %v1894 = vpop.f32.mrb[0].mxu0
    %v1895 = vadd.f32 0.0, %v1894
    %v1896 = vpop.f32.mrb[0].mxu0
    %v1897 = vpop.f32.mrb[0].mxu0
    %v1898 = vadd.f32 0.0, %v1897
    %v1899 = vpop.f32.mrb[0].mxu0
    %1900 = vmatprep.mubr.bf16.mxu0 0
    %1901 = vmatmul.mubr.bf16.gmra.mrb[0].mxu0 %v1746
    %v1902 = vpop.f32.mrb[0].mxu0
    %v1903 = vadd.f32 0.0, %v1902
    %v1904 = vpop.f32.mrb[0].mxu0
    %v1905 = vpop.f32.mrb[0].mxu0
    %v1906 = vadd.f32 0.0, %v1905
    %v1907 = vpop.f32.mrb[0].mxu0
    %1908 = vdwg.mxu0
    %v1909 = vadd.f32 %v1672, %v1847
    %v1910 = vadd.f32 %v1673, %v1850
    %v1911 = vadd.f32 %v1674, %v1855
    %v1912 = vadd.f32 %v1675, %v1858
    %v1913 = vadd.f32 %v1676, %v1863
    %v1914 = vadd.f32 %v1677, %v1866
    %v1915 = vadd.f32 %v1678, %v1871
    %v1916 = vadd.f32 %v1679, %v1874
    %v1917 = vadd.f32 %v1680, %v1879
    %v1918 = vadd.f32 %v1681, %v1882
    %v1919 = vadd.f32 %v1682, %v1887
    %v1920 = vadd.f32 %v1683, %v1890
    %v1921 = vadd.f32 %v1684, %v1895
    %v1922 = vadd.f32 %v1685, %v1898
    %v1923 = vadd.f32 %v1686, %v1903
    %v1924 = vadd.f32 %v1687, %v1906
    %v1925 = vpack.c.bf16 %v502, %v501
    %v1926 = vpack.c.bf16 %v504, %v503
    %v1927 = vpack.c.bf16 %v506, %v505
    %v1928 = vpack.c.bf16 %v508, %v507
    %v1929 = vpack.c.bf16 %v510, %v509
    %v1930 = vpack.c.bf16 %v512, %v511
    %v1931 = vpack.c.bf16 %v514, %v513
    %v1932 = vpack.c.bf16 %v516, %v515
    %s1933 = scalar_lea.vmem [#allocation13], 256
    %v1934 = vld [vmem:[%s1933] sm:$0xf]
    %v1935 = vld [vmem:[%s1933 + $0x4] sm:$0xf]
    %v1936 = vld [vmem:[%s1933 + $0x8] sm:$0xf]
    %v1937 = vld [vmem:[%s1933 + $0xc] sm:$0xf]
    %v1938 = vld [vmem:[%s1933 + $0x10] sm:$0xf]
    %v1939 = vld [vmem:[%s1933 + $0x14] sm:$0xf]
    %v1940 = vld [vmem:[%s1933 + $0x18] sm:$0xf]
    %v1941 = vld [vmem:[%s1933 + $0x1c] sm:$0xf]
    %v1942 = vld [vmem:[%s1933 + $0x20] sm:$0xf]
    %v1943 = vld [vmem:[%s1933 + $0x24] sm:$0xf]
    %v1944 = vld [vmem:[%s1933 + $0x28] sm:$0xf]
    %v1945 = vld [vmem:[%s1933 + $0x2c] sm:$0xf]
    %v1946 = vld [vmem:[%s1933 + $0x30] sm:$0xf]
    %v1947 = vld [vmem:[%s1933 + $0x34] sm:$0xf]
    %v1948 = vld [vmem:[%s1933 + $0x38] sm:$0xf]
    %v1949 = vld [vmem:[%s1933 + $0x3c] sm:$0xf]
    %v1966 = vunpack.c.l.b16 %v1934
    %v1967 = vunpack.c.l.b16 %v1935
    %v1968 = vunpack.c.l.b16 %v1936
    %v1969 = vunpack.c.l.b16 %v1937
    %v1970 = vunpack.c.l.b16 %v1938
    %v1971 = vunpack.c.l.b16 %v1939
    %v1972 = vunpack.c.l.b16 %v1940
    %v1973 = vunpack.c.l.b16 %v1941
    %v1974 = vunpack.c.l.b16 %v1942
    %v1975 = vunpack.c.l.b16 %v1943
    %v1976 = vunpack.c.l.b16 %v1944
    %v1977 = vunpack.c.l.b16 %v1945
    %v1978 = vunpack.c.l.b16 %v1946
    %v1979 = vunpack.c.l.b16 %v1947
    %v1980 = vunpack.c.l.b16 %v1948
    %v1981 = vunpack.c.l.b16 %v1949
    %v1982 = vpack.c.b16 %v1967, %v1966
    %v1983 = vpack.c.b16 %v1969, %v1968
    %v1984 = vpack.c.b16 %v1971, %v1970
    %v1985 = vpack.c.b16 %v1973, %v1972
    %v1986 = vpack.c.b16 %v1975, %v1974
    %v1987 = vpack.c.b16 %v1977, %v1976
    %v1988 = vpack.c.b16 %v1979, %v1978
    %v1989 = vpack.c.b16 %v1981, %v1980
    %1998 = vmatprep.subr.bf16.mxu0 0
    %1999 = vmatpush1.bf16.msra.mxu0 %v1982
    %2000 = vmatprep.subr.bf16.mxu0 0
    %2001 = vmatpush1.bf16.msra.mxu0 %v1983
    %2002 = vmatprep.subr.bf16.mxu0 0
    %2003 = vmatpush1.bf16.msra.mxu0 %v1984
    %2004 = vmatprep.subr.bf16.mxu0 0
    %2005 = vmatpush1.bf16.msra.mxu0 %v1985
    %2006 = vmatprep.subr.bf16.mxu0 0
    %2007 = vmatpush1.bf16.msra.mxu0 %v1986
    %2008 = vmatprep.subr.bf16.mxu0 0
    %2009 = vmatpush1.bf16.msra.mxu0 %v1987
    %2010 = vmatprep.subr.bf16.mxu0 0
    %2011 = vmatpush1.bf16.msra.mxu0 %v1988
    %2012 = vmatprep.subr.bf16.mxu0 0
    %2013 = vmatpush1.bf16.msra.mxu0 %v1989
    %2014 = vmatprep.subr.bf16.mxu0 0
    %2015 = vmatpush1.bf16.msra.mxu0 0
    %2016 = vmatprep.subr.bf16.mxu0 0
    %2017 = vmatpush1.bf16.msra.mxu0 0
    %2018 = vmatprep.subr.bf16.mxu0 0
    %2019 = vmatpush1.bf16.msra.mxu0 0
    %2020 = vmatprep.subr.bf16.mxu0 0
    %2021 = vmatpush1.bf16.msra.mxu0 0
    %2022 = vmatprep.subr.bf16.mxu0 0
    %2023 = vmatpush1.bf16.msra.mxu0 0
    %2024 = vmatprep.subr.bf16.mxu0 0
    %2025 = vmatpush1.bf16.msra.mxu0 0
    %2026 = vmatprep.subr.bf16.mxu0 0
    %2027 = vmatpush1.bf16.msra.mxu0 0
    %2028 = vmatprep.subr.bf16.mxu0 0
    %2029 = vmatpush1.bf16.msra.mxu0 0
    %2030 = vmatprep.mubr.bf16.mxu0 0
    %2031 = vmatmul.mubr.bf16.gmra.mrb[0].mxu0 %v1925
    %v2032 = vpop.f32.mrb[0].mxu0
    %v2033 = vadd.f32 0.0, %v2032
    %v2034 = vpop.f32.mrb[0].mxu0
    %v2035 = vpop.f32.mrb[0].mxu0
    %v2036 = vadd.f32 0.0, %v2035
    %v2037 = vpop.f32.mrb[0].mxu0
    %2038 = vmatprep.mubr.bf16.mxu0 0
    %2039 = vmatmul.mubr.bf16.gmra.mrb[0].mxu0 %v1926
    %v2040 = vpop.f32.mrb[0].mxu0
    %v2041 = vadd.f32 0.0, %v2040
    %v2042 = vpop.f32.mrb[0].mxu0
    %v2043 = vpop.f32.mrb[0].mxu0
    %v2044 = vadd.f32 0.0, %v2043
    %v2045 = vpop.f32.mrb[0].mxu0
    %2046 = vmatprep.mubr.bf16.mxu0 0
    %2047 = vmatmul.mubr.bf16.gmra.mrb[0].mxu0 %v1927
    %v2048 = vpop.f32.mrb[0].mxu0
    %v2049 = vadd.f32 0.0, %v2048
    %v2050 = vpop.f32.mrb[0].mxu0
    %v2051 = vpop.f32.mrb[0].mxu0
    %v2052 = vadd.f32 0.0, %v2051
    %v2053 = vpop.f32.mrb[0].mxu0
    %2054 = vmatprep.mubr.bf16.mxu0 0
    %2055 = vmatmul.mubr.bf16.gmra.mrb[0].mxu0 %v1928
    %v2056 = vpop.f32.mrb[0].mxu0
    %v2057 = vadd.f32 0.0, %v2056
    %v2058 = vpop.f32.mrb[0].mxu0
    %v2059 = vpop.f32.mrb[0].mxu0
    %v2060 = vadd.f32 0.0, %v2059
    %v2061 = vpop.f32.mrb[0].mxu0
    %2062 = vmatprep.mubr.bf16.mxu0 0
    %2063 = vmatmul.mubr.bf16.gmra.mrb[0].mxu0 %v1929
    %v2064 = vpop.f32.mrb[0].mxu0
    %v2065 = vadd.f32 0.0, %v2064
    %v2066 = vpop.f32.mrb[0].mxu0
    %v2067 = vpop.f32.mrb[0].mxu0
    %v2068 = vadd.f32 0.0, %v2067
    %v2069 = vpop.f32.mrb[0].mxu0
    %2070 = vmatprep.mubr.bf16.mxu0 0
    %2071 = vmatmul.mubr.bf16.gmra.mrb[0].mxu0 %v1930
    %v2072 = vpop.f32.mrb[0].mxu0
    %v2073 = vadd.f32 0.0, %v2072
    %v2074 = vpop.f32.mrb[0].mxu0
    %v2075 = vpop.f32.mrb[0].mxu0
    %v2076 = vadd.f32 0.0, %v2075
    %v2077 = vpop.f32.mrb[0].mxu0
    %2078 = vmatprep.mubr.bf16.mxu0 0
    %2079 = vmatmul.mubr.bf16.gmra.mrb[0].mxu0 %v1931
    %v2080 = vpop.f32.mrb[0].mxu0
    %v2081 = vadd.f32 0.0, %v2080
    %v2082 = vpop.f32.mrb[0].mxu0
    %v2083 = vpop.f32.mrb[0].mxu0
    %v2084 = vadd.f32 0.0, %v2083
    %v2085 = vpop.f32.mrb[0].mxu0
    %2086 = vmatprep.mubr.bf16.mxu0 0
    %2087 = vmatmul.mubr.bf16.gmra.mrb[0].mxu0 %v1932
    %v2088 = vpop.f32.mrb[0].mxu0
    %v2089 = vadd.f32 0.0, %v2088
    %v2090 = vpop.f32.mrb[0].mxu0
    %v2091 = vpop.f32.mrb[0].mxu0
    %v2092 = vadd.f32 0.0, %v2091
    %v2093 = vpop.f32.mrb[0].mxu0
    %2094 = vdwg.mxu0
    %v2095 = vadd.f32 %v1909, %v2033
    %v2096 = vadd.f32 %v1910, %v2036
    %v2097 = vadd.f32 %v1911, %v2041
    %v2098 = vadd.f32 %v1912, %v2044
    %v2099 = vadd.f32 %v1913, %v2049
    %v2100 = vadd.f32 %v1914, %v2052
    %v2101 = vadd.f32 %v1915, %v2057
    %v2102 = vadd.f32 %v1916, %v2060
    %v2103 = vadd.f32 %v1917, %v2065
    %v2104 = vadd.f32 %v1918, %v2068
    %v2105 = vadd.f32 %v1919, %v2073
    %v2106 = vadd.f32 %v1920, %v2076
    %v2107 = vadd.f32 %v1921, %v2081
    %v2108 = vadd.f32 %v1922, %v2084
    %v2109 = vadd.f32 %v1923, %v2089
    %v2110 = vadd.f32 %v1924, %v2092
    %v2112 = vsel %vm1373, %v1403, 0.0
    %v2113 = vsel %vm1422, 1, 0
    %v2114 = vsel %vm1423, 1, 0
    %v2115 = vsel %vm1424, 1, 0
    %v2116 = vsel %vm1425, 1, 0
    %v2117 = vsel %vm1426, 1, 0
    %v2118 = vsel %vm1427, 1, 0
    %v2119 = vsel %vm1428, 1, 0
    %v2120 = vsel %vm1429, 1, 0
    %v2121 = vsel %vm1430, 1, 0
    %v2122 = vsel %vm1431, 1, 0
    %v2123 = vsel %vm1432, 1, 0
    %v2124 = vsel %vm1433, 1, 0
    %v2125 = vsel %vm1434, 1, 0
    %v2126 = vsel %vm1435, 1, 0
    %v2127 = vsel %vm1436, 1, 0
    %v2128 = vsel %vm1437, 1, 0
    %vm2129 = vcmp.eq.s32.totalorder %v2113, 1
    %vm2130 = vcmp.eq.s32.totalorder %v2114, 1
    %vm2131 = vcmp.eq.s32.totalorder %v2115, 1
    %vm2132 = vcmp.eq.s32.totalorder %v2116, 1
    %vm2133 = vcmp.eq.s32.totalorder %v2117, 1
    %vm2134 = vcmp.eq.s32.totalorder %v2118, 1
    %vm2135 = vcmp.eq.s32.totalorder %v2119, 1
    %vm2136 = vcmp.eq.s32.totalorder %v2120, 1
    %vm2137 = vcmp.eq.s32.totalorder %v2121, 1
    %vm2138 = vcmp.eq.s32.totalorder %v2122, 1
    %vm2139 = vcmp.eq.s32.totalorder %v2123, 1
    %vm2140 = vcmp.eq.s32.totalorder %v2124, 1
    %vm2141 = vcmp.eq.s32.totalorder %v2125, 1
    %vm2142 = vcmp.eq.s32.totalorder %v2126, 1
    %vm2143 = vcmp.eq.s32.totalorder %v2127, 1
    %vm2144 = vcmp.eq.s32.totalorder %v2128, 1
    %v2145 = vsel %vm2129, %v1376, 0.0
    %v2146 = vsel %vm2130, %v1378, 0.0
    %v2147 = vsel %vm2131, %v1380, 0.0
    %v2148 = vsel %vm2132, %v1382, 0.0
    %v2149 = vsel %vm2133, %v1384, 0.0
    %v2150 = vsel %vm2134, %v1386, 0.0
    %v2151 = vsel %vm2135, %v1388, 0.0
    %v2152 = vsel %vm2136, %v1390, 0.0
    %v2153 = vsel %vm2137, %v1392, 0.0
    %v2154 = vsel %vm2138, %v1394, 0.0
    %v2155 = vsel %vm2139, %v1396, 0.0
    %v2156 = vsel %vm2140, %v1398, 0.0
    %v2157 = vsel %vm2141, %v1400, 0.0
    %v2158 = vsel %vm2142, %v1402, 0.0
    %v2159 = vsel %vm2143, %v1404, 0.0
    %v2160 = vsel %vm2144, %v2112, 0.0
    %v2161 = vpack.c.bf16 %v2146, %v2145
    %v2162 = vpack.c.bf16 %v2148, %v2147
    %v2163 = vpack.c.bf16 %v2150, %v2149
    %v2164 = vpack.c.bf16 %v2152, %v2151
    %v2165 = vpack.c.bf16 %v2154, %v2153
    %v2166 = vpack.c.bf16 %v2156, %v2155
    %v2167 = vpack.c.bf16 %v2158, %v2157
    %v2168 = vpack.c.bf16 %v2160, %v2159
    %s2169 = scalar_lea.vmem [#allocation13], 320
    %v2170 = vld [vmem:[%s2169] sm:$0xf]
    %v2171 = vld [vmem:[%s2169 + $0x4] sm:$0xf]
    %v2172 = vld [vmem:[%s2169 + $0x8] sm:$0xf]
    %v2173 = vld [vmem:[%s2169 + $0xc] sm:$0xf]
    %v2174 = vld [vmem:[%s2169 + $0x10] sm:$0xf]
    %v2175 = vld [vmem:[%s2169 + $0x14] sm:$0xf]
    %v2176 = vld [vmem:[%s2169 + $0x18] sm:$0xf]
    %v2177 = vld [vmem:[%s2169 + $0x1c] sm:$0xf]
    %v2178 = vld [vmem:[%s2169 + $0x20] sm:$0xf]
    %v2179 = vld [vmem:[%s2169 + $0x24] sm:$0xf]
    %v2180 = vld [vmem:[%s2169 + $0x28] sm:$0xf]
    %v2181 = vld [vmem:[%s2169 + $0x2c] sm:$0xf]
    %v2182 = vld [vmem:[%s2169 + $0x30] sm:$0xf]
    %v2183 = vld [vmem:[%s2169 + $0x34] sm:$0xf]
    %v2184 = vld [vmem:[%s2169 + $0x38] sm:$0xf]
    %v2185 = vld [vmem:[%s2169 + $0x3c] sm:$0xf]
    %v2202 = vunpack.c.l.b16 %v2170
    %v2203 = vunpack.c.l.b16 %v2171
    %v2204 = vunpack.c.l.b16 %v2172
    %v2205 = vunpack.c.l.b16 %v2173
    %v2206 = vunpack.c.l.b16 %v2174
    %v2207 = vunpack.c.l.b16 %v2175
    %v2208 = vunpack.c.l.b16 %v2176
    %v2209 = vunpack.c.l.b16 %v2177
    %v2210 = vunpack.c.l.b16 %v2178
    %v2211 = vunpack.c.l.b16 %v2179
    %v2212 = vunpack.c.l.b16 %v2180
    %v2213 = vunpack.c.l.b16 %v2181
    %v2214 = vunpack.c.l.b16 %v2182
    %v2215 = vunpack.c.l.b16 %v2183
    %v2216 = vunpack.c.l.b16 %v2184
    %v2217 = vunpack.c.l.b16 %v2185
    %v2218 = vpack.c.b16 %v2203, %v2202
    %v2219 = vpack.c.b16 %v2205, %v2204
    %v2220 = vpack.c.b16 %v2207, %v2206
    %v2221 = vpack.c.b16 %v2209, %v2208
    %v2222 = vpack.c.b16 %v2211, %v2210
    %v2223 = vpack.c.b16 %v2213, %v2212
    %v2224 = vpack.c.b16 %v2215, %v2214
    %v2225 = vpack.c.b16 %v2217, %v2216
    %2234 = vmatprep.subr.bf16.mxu0 0
    %2235 = vmatpush1.bf16.msra.mxu0 %v2218
    %2236 = vmatprep.subr.bf16.mxu0 0
    %2237 = vmatpush1.bf16.msra.mxu0 %v2219
    %2238 = vmatprep.subr.bf16.mxu0 0
    %2239 = vmatpush1.bf16.msra.mxu0 %v2220
    %2240 = vmatprep.subr.bf16.mxu0 0
    %2241 = vmatpush1.bf16.msra.mxu0 %v2221
    %2242 = vmatprep.subr.bf16.mxu0 0
    %2243 = vmatpush1.bf16.msra.mxu0 %v2222
    %2244 = vmatprep.subr.bf16.mxu0 0
    %2245 = vmatpush1.bf16.msra.mxu0 %v2223
    %2246 = vmatprep.subr.bf16.mxu0 0
    %2247 = vmatpush1.bf16.msra.mxu0 %v2224
    %2248 = vmatprep.subr.bf16.mxu0 0
    %2249 = vmatpush1.bf16.msra.mxu0 %v2225
    %2250 = vmatprep.subr.bf16.mxu0 0
    %2251 = vmatpush1.bf16.msra.mxu0 0
    %2252 = vmatprep.subr.bf16.mxu0 0
    %2253 = vmatpush1.bf16.msra.mxu0 0
    %2254 = vmatprep.subr.bf16.mxu0 0
    %2255 = vmatpush1.bf16.msra.mxu0 0
    %2256 = vmatprep.subr.bf16.mxu0 0
    %2257 = vmatpush1.bf16.msra.mxu0 0
    %2258 = vmatprep.subr.bf16.mxu0 0
    %2259 = vmatpush1.bf16.msra.mxu0 0
    %2260 = vmatprep.subr.bf16.mxu0 0
    %2261 = vmatpush1.bf16.msra.mxu0 0
    %2262 = vmatprep.subr.bf16.mxu0 0
    %2263 = vmatpush1.bf16.msra.mxu0 0
    %2264 = vmatprep.subr.bf16.mxu0 0
    %2265 = vmatpush1.bf16.msra.mxu0 0
    %2266 = vmatprep.mubr.bf16.mxu0 0
    %2267 = vmatmul.mubr.bf16.gmra.mrb[0].mxu0 %v2161
    %v2268 = vpop.f32.mrb[0].mxu0
    %v2269 = vadd.f32 0.0, %v2268
    %v2270 = vpop.f32.mrb[0].mxu0
    %v2271 = vpop.f32.mrb[0].mxu0
    %v2272 = vadd.f32 0.0, %v2271
    %v2273 = vpop.f32.mrb[0].mxu0
    %2274 = vmatprep.mubr.bf16.mxu0 0
    %2275 = vmatmul.mubr.bf16.gmra.mrb[0].mxu0 %v2162
    %v2276 = vpop.f32.mrb[0].mxu0
    %v2277 = vadd.f32 0.0, %v2276
    %v2278 = vpop.f32.mrb[0].mxu0
    %v2279 = vpop.f32.mrb[0].mxu0
    %v2280 = vadd.f32 0.0, %v2279
    %v2281 = vpop.f32.mrb[0].mxu0
    %2282 = vmatprep.mubr.bf16.mxu0 0
    %2283 = vmatmul.mubr.bf16.gmra.mrb[0].mxu0 %v2163
    %v2284 = vpop.f32.mrb[0].mxu0
    %v2285 = vadd.f32 0.0, %v2284
    %v2286 = vpop.f32.mrb[0].mxu0
    %v2287 = vpop.f32.mrb[0].mxu0
    %v2288 = vadd.f32 0.0, %v2287
    %v2289 = vpop.f32.mrb[0].mxu0
    %2290 = vmatprep.mubr.bf16.mxu0 0
    %2291 = vmatmul.mubr.bf16.gmra.mrb[0].mxu0 %v2164
    %v2292 = vpop.f32.mrb[0].mxu0
    %v2293 = vadd.f32 0.0, %v2292
    %v2294 = vpop.f32.mrb[0].mxu0
    %v2295 = vpop.f32.mrb[0].mxu0
    %v2296 = vadd.f32 0.0, %v2295
    %v2297 = vpop.f32.mrb[0].mxu0
    %2298 = vmatprep.mubr.bf16.mxu0 0
    %2299 = vmatmul.mubr.bf16.gmra.mrb[0].mxu0 %v2165
    %v2300 = vpop.f32.mrb[0].mxu0
    %v2301 = vadd.f32 0.0, %v2300
    %v2302 = vpop.f32.mrb[0].mxu0
    %v2303 = vpop.f32.mrb[0].mxu0
    %v2304 = vadd.f32 0.0, %v2303
    %v2305 = vpop.f32.mrb[0].mxu0
    %2306 = vmatprep.mubr.bf16.mxu0 0
    %2307 = vmatmul.mubr.bf16.gmra.mrb[0].mxu0 %v2166
    %v2308 = vpop.f32.mrb[0].mxu0
    %v2309 = vadd.f32 0.0, %v2308
    %v2310 = vpop.f32.mrb[0].mxu0
    %v2311 = vpop.f32.mrb[0].mxu0
    %v2312 = vadd.f32 0.0, %v2311
    %v2313 = vpop.f32.mrb[0].mxu0
    %2314 = vmatprep.mubr.bf16.mxu0 0
    %2315 = vmatmul.mubr.bf16.gmra.mrb[0].mxu0 %v2167
    %v2316 = vpop.f32.mrb[0].mxu0
    %v2317 = vadd.f32 0.0, %v2316
    %v2318 = vpop.f32.mrb[0].mxu0
    %v2319 = vpop.f32.mrb[0].mxu0
    %v2320 = vadd.f32 0.0, %v2319
    %v2321 = vpop.f32.mrb[0].mxu0
    %2322 = vmatprep.mubr.bf16.mxu0 0
    %2323 = vmatmul.mubr.bf16.gmra.mrb[0].mxu0 %v2168
    %v2324 = vpop.f32.mrb[0].mxu0
    %v2325 = vadd.f32 0.0, %v2324
    %v2326 = vpop.f32.mrb[0].mxu0
    %v2327 = vpop.f32.mrb[0].mxu0
    %v2328 = vadd.f32 0.0, %v2327
    %v2329 = vpop.f32.mrb[0].mxu0
    %2330 = vdwg.mxu0
    %v2331 = vadd.f32 %v2095, %v2269
    %v2332 = vadd.f32 %v2096, %v2272
    %v2333 = vadd.f32 %v2097, %v2277
    %v2334 = vadd.f32 %v2098, %v2280
    %v2335 = vadd.f32 %v2099, %v2285
    %v2336 = vadd.f32 %v2100, %v2288
    %v2337 = vadd.f32 %v2101, %v2293
    %v2338 = vadd.f32 %v2102, %v2296
    %v2339 = vadd.f32 %v2103, %v2301
    %v2340 = vadd.f32 %v2104, %v2304
    %v2341 = vadd.f32 %v2105, %v2309
    %v2342 = vadd.f32 %v2106, %v2312
    %v2343 = vadd.f32 %v2107, %v2317
    %v2344 = vadd.f32 %v2108, %v2320
    %v2345 = vadd.f32 %v2109, %v2325
    %v2346 = vadd.f32 %v2110, %v2328
    %v2348 = vsel %vm850, %v1688, 0.0
    %vm2349 = vcmp.lt.f32.partialorder %v819, 7.0
    %vm2350 = vcmp.lt.f32.partialorder %v820, 7.0
    %vm2351 = vcmp.lt.f32.partialorder %v821, 7.0
    %vm2352 = vcmp.lt.f32.partialorder %v822, 7.0
    %vm2353 = vcmp.lt.f32.partialorder %v823, 7.0
    %vm2354 = vcmp.lt.f32.partialorder %v824, 7.0
    %vm2355 = vcmp.lt.f32.partialorder %v825, 7.0
    %vm2356 = vcmp.lt.f32.partialorder %v826, 7.0
    %vm2357 = vcmp.lt.f32.partialorder %v827, 7.0
    %vm2358 = vcmp.lt.f32.partialorder %v828, 7.0
    %vm2359 = vcmp.lt.f32.partialorder %v829, 7.0
    %vm2360 = vcmp.lt.f32.partialorder %v830, 7.0
    %vm2361 = vcmp.lt.f32.partialorder %v831, 7.0
    %vm2362 = vcmp.lt.f32.partialorder %v832, 7.0
    %vm2363 = vcmp.lt.f32.partialorder %v833, 7.0
    %vm2364 = vcmp.lt.f32.partialorder %v834, 7.0
    %vm2365 = vmand %vm2349, %vm912
    %vm2366 = vmand %vm2350, %vm913
    %vm2367 = vmand %vm2351, %vm914
    %vm2368 = vmand %vm2352, %vm915
    %vm2369 = vmand %vm2353, %vm916
    %vm2370 = vmand %vm2354, %vm917
    %vm2371 = vmand %vm2355, %vm918
    %vm2372 = vmand %vm2356, %vm919
    %vm2373 = vmand %vm2357, %vm920
    %vm2374 = vmand %vm2358, %vm921
    %vm2375 = vmand %vm2359, %vm922
    %vm2376 = vmand %vm2360, %vm923
    %vm2377 = vmand %vm2361, %vm924
    %vm2378 = vmand %vm2362, %vm925
    %vm2379 = vmand %vm2363, %vm926
    %vm2380 = vmand %vm2364, %vm927
    %v2381 = vsel %vm2365, 1, 0
    %v2382 = vsel %vm2366, 1, 0
    %v2383 = vsel %vm2367, 1, 0
    %v2384 = vsel %vm2368, 1, 0
    %v2385 = vsel %vm2369, 1, 0
    %v2386 = vsel %vm2370, 1, 0
    %v2387 = vsel %vm2371, 1, 0
    %v2388 = vsel %vm2372, 1, 0
    %v2389 = vsel %vm2373, 1, 0
    %v2390 = vsel %vm2374, 1, 0
    %v2391 = vsel %vm2375, 1, 0
    %v2392 = vsel %vm2376, 1, 0
    %v2393 = vsel %vm2377, 1, 0
    %v2394 = vsel %vm2378, 1, 0
    %v2395 = vsel %vm2379, 1, 0
    %v2396 = vsel %vm2380, 1, 0
    %vm2397 = vcmp.eq.s32.totalorder %v2381, 1
    %vm2398 = vcmp.eq.s32.totalorder %v2382, 1
    %vm2399 = vcmp.eq.s32.totalorder %v2383, 1
    %vm2400 = vcmp.eq.s32.totalorder %v2384, 1
    %vm2401 = vcmp.eq.s32.totalorder %v2385, 1
    %vm2402 = vcmp.eq.s32.totalorder %v2386, 1
    %vm2403 = vcmp.eq.s32.totalorder %v2387, 1
    %vm2404 = vcmp.eq.s32.totalorder %v2388, 1
    %vm2405 = vcmp.eq.s32.totalorder %v2389, 1
    %vm2406 = vcmp.eq.s32.totalorder %v2390, 1
    %vm2407 = vcmp.eq.s32.totalorder %v2391, 1
    %vm2408 = vcmp.eq.s32.totalorder %v2392, 1
    %vm2409 = vcmp.eq.s32.totalorder %v2393, 1
    %vm2410 = vcmp.eq.s32.totalorder %v2394, 1
    %vm2411 = vcmp.eq.s32.totalorder %v2395, 1
    %vm2412 = vcmp.eq.s32.totalorder %v2396, 1
    %v2413 = vsel %vm2397, %v853, 0.0
    %v2414 = vsel %vm2398, %v855, 0.0
    %v2415 = vsel %vm2399, %v857, 0.0
    %v2416 = vsel %vm2400, %v859, 0.0
    %v2417 = vsel %vm2401, %v861, 0.0
    %v2418 = vsel %vm2402, %v863, 0.0
    %v2419 = vsel %vm2403, %v865, 0.0
    %v2420 = vsel %vm2404, %v867, 0.0
    %v2421 = vsel %vm2405, %v869, 0.0
    %v2422 = vsel %vm2406, %v871, 0.0
    %v2423 = vsel %vm2407, %v873, 0.0
    %v2424 = vsel %vm2408, %v875, 0.0
    %v2425 = vsel %vm2409, %v877, 0.0
    %v2426 = vsel %vm2410, %v879, 0.0
    %v2427 = vsel %vm2411, %v1689, 0.0
    %v2428 = vsel %vm2412, %v2348, 0.0
    %v2429 = vpack.c.bf16 %v2414, %v2413
    %v2430 = vpack.c.bf16 %v2416, %v2415
    %v2431 = vpack.c.bf16 %v2418, %v2417
    %v2432 = vpack.c.bf16 %v2420, %v2419
    %v2433 = vpack.c.bf16 %v2422, %v2421
    %v2434 = vpack.c.bf16 %v2424, %v2423
    %v2435 = vpack.c.bf16 %v2426, %v2425
    %v2436 = vpack.c.bf16 %v2428, %v2427
    %s2437 = scalar_lea.vmem [#allocation13], 384
    %v2438 = vld [vmem:[%s2437] sm:$0xf]
    %v2439 = vld [vmem:[%s2437 + $0x4] sm:$0xf]
    %v2440 = vld [vmem:[%s2437 + $0x8] sm:$0xf]
    %v2441 = vld [vmem:[%s2437 + $0xc] sm:$0xf]
    %v2442 = vld [vmem:[%s2437 + $0x10] sm:$0xf]
    %v2443 = vld [vmem:[%s2437 + $0x14] sm:$0xf]
    %v2444 = vld [vmem:[%s2437 + $0x18] sm:$0xf]
    %v2445 = vld [vmem:[%s2437 + $0x1c] sm:$0xf]
    %v2446 = vld [vmem:[%s2437 + $0x20] sm:$0xf]
    %v2447 = vld [vmem:[%s2437 + $0x24] sm:$0xf]
    %v2448 = vld [vmem:[%s2437 + $0x28] sm:$0xf]
    %v2449 = vld [vmem:[%s2437 + $0x2c] sm:$0xf]
    %v2450 = vld [vmem:[%s2437 + $0x30] sm:$0xf]
    %v2451 = vld [vmem:[%s2437 + $0x34] sm:$0xf]
    %v2452 = vld [vmem:[%s2437 + $0x38] sm:$0xf]
    %v2453 = vld [vmem:[%s2437 + $0x3c] sm:$0xf]
    %v2470 = vunpack.c.l.b16 %v2438
    %v2471 = vunpack.c.l.b16 %v2439
    %v2472 = vunpack.c.l.b16 %v2440
    %v2473 = vunpack.c.l.b16 %v2441
    %v2474 = vunpack.c.l.b16 %v2442
    %v2475 = vunpack.c.l.b16 %v2443
    %v2476 = vunpack.c.l.b16 %v2444
    %v2477 = vunpack.c.l.b16 %v2445
    %v2478 = vunpack.c.l.b16 %v2446
    %v2479 = vunpack.c.l.b16 %v2447
    %v2480 = vunpack.c.l.b16 %v2448
    %v2481 = vunpack.c.l.b16 %v2449
    %v2482 = vunpack.c.l.b16 %v2450
    %v2483 = vunpack.c.l.b16 %v2451
    %v2484 = vunpack.c.l.b16 %v2452
    %v2485 = vunpack.c.l.b16 %v2453
    %v2486 = vpack.c.b16 %v2471, %v2470
    %v2487 = vpack.c.b16 %v2473, %v2472
    %v2488 = vpack.c.b16 %v2475, %v2474
    %v2489 = vpack.c.b16 %v2477, %v2476
    %v2490 = vpack.c.b16 %v2479, %v2478
    %v2491 = vpack.c.b16 %v2481, %v2480
    %v2492 = vpack.c.b16 %v2483, %v2482
    %v2493 = vpack.c.b16 %v2485, %v2484
    %2502 = vmatprep.subr.bf16.mxu0 0
    %2503 = vmatpush1.bf16.msra.mxu0 %v2486
    %2504 = vmatprep.subr.bf16.mxu0 0
    %2505 = vmatpush1.bf16.msra.mxu0 %v2487
    %2506 = vmatprep.subr.bf16.mxu0 0
    %2507 = vmatpush1.bf16.msra.mxu0 %v2488
    %2508 = vmatprep.subr.bf16.mxu0 0
    %2509 = vmatpush1.bf16.msra.mxu0 %v2489
    %2510 = vmatprep.subr.bf16.mxu0 0
    %2511 = vmatpush1.bf16.msra.mxu0 %v2490
    %2512 = vmatprep.subr.bf16.mxu0 0
    %2513 = vmatpush1.bf16.msra.mxu0 %v2491
    %2514 = vmatprep.subr.bf16.mxu0 0
    %2515 = vmatpush1.bf16.msra.mxu0 %v2492
    %2516 = vmatprep.subr.bf16.mxu0 0
    %2517 = vmatpush1.bf16.msra.mxu0 %v2493
    %2518 = vmatprep.subr.bf16.mxu0 0
    %2519 = vmatpush1.bf16.msra.mxu0 0
    %2520 = vmatprep.subr.bf16.mxu0 0
    %2521 = vmatpush1.bf16.msra.mxu0 0
    %2522 = vmatprep.subr.bf16.mxu0 0
    %2523 = vmatpush1.bf16.msra.mxu0 0
    %2524 = vmatprep.subr.bf16.mxu0 0
    %2525 = vmatpush1.bf16.msra.mxu0 0
    %2526 = vmatprep.subr.bf16.mxu0 0
    %2527 = vmatpush1.bf16.msra.mxu0 0
    %2528 = vmatprep.subr.bf16.mxu0 0
    %2529 = vmatpush1.bf16.msra.mxu0 0
    %2530 = vmatprep.subr.bf16.mxu0 0
    %2531 = vmatpush1.bf16.msra.mxu0 0
    %2532 = vmatprep.subr.bf16.mxu0 0
    %2533 = vmatpush1.bf16.msra.mxu0 0
    %2534 = vmatprep.mubr.bf16.mxu0 0
    %2535 = vmatmul.mubr.bf16.gmra.mrb[0].mxu0 %v2429
    %v2536 = vpop.f32.mrb[0].mxu0
    %v2537 = vadd.f32 0.0, %v2536
    %v2538 = vpop.f32.mrb[0].mxu0
    %v2539 = vpop.f32.mrb[0].mxu0
    %v2540 = vadd.f32 0.0, %v2539
    %v2541 = vpop.f32.mrb[0].mxu0
    %2542 = vmatprep.mubr.bf16.mxu0 0
    %2543 = vmatmul.mubr.bf16.gmra.mrb[0].mxu0 %v2430
    %v2544 = vpop.f32.mrb[0].mxu0
    %v2545 = vadd.f32 0.0, %v2544
    %v2546 = vpop.f32.mrb[0].mxu0
    %v2547 = vpop.f32.mrb[0].mxu0
    %v2548 = vadd.f32 0.0, %v2547
    %v2549 = vpop.f32.mrb[0].mxu0
    %2550 = vmatprep.mubr.bf16.mxu0 0
    %2551 = vmatmul.mubr.bf16.gmra.mrb[0].mxu0 %v2431
    %v2552 = vpop.f32.mrb[0].mxu0
    %v2553 = vadd.f32 0.0, %v2552
    %v2554 = vpop.f32.mrb[0].mxu0
    %v2555 = vpop.f32.mrb[0].mxu0
    %v2556 = vadd.f32 0.0, %v2555
    %v2557 = vpop.f32.mrb[0].mxu0
    %2558 = vmatprep.mubr.bf16.mxu0 0
    %2559 = vmatmul.mubr.bf16.gmra.mrb[0].mxu0 %v2432
    %v2560 = vpop.f32.mrb[0].mxu0
    %v2561 = vadd.f32 0.0, %v2560
    %v2562 = vpop.f32.mrb[0].mxu0
    %v2563 = vpop.f32.mrb[0].mxu0
    %v2564 = vadd.f32 0.0, %v2563
    %v2565 = vpop.f32.mrb[0].mxu0
    %2566 = vmatprep.mubr.bf16.mxu0 0
    %2567 = vmatmul.mubr.bf16.gmra.mrb[0].mxu0 %v2433
    %v2568 = vpop.f32.mrb[0].mxu0
    %v2569 = vadd.f32 0.0, %v2568
    %v2570 = vpop.f32.mrb[0].mxu0
    %v2571 = vpop.f32.mrb[0].mxu0
    %v2572 = vadd.f32 0.0, %v2571
    %v2573 = vpop.f32.mrb[0].mxu0
    %2574 = vmatprep.mubr.bf16.mxu0 0
    %2575 = vmatmul.mubr.bf16.gmra.mrb[0].mxu0 %v2434
    %v2576 = vpop.f32.mrb[0].mxu0
    %v2577 = vadd.f32 0.0, %v2576
    %v2578 = vpop.f32.mrb[0].mxu0
    %v2579 = vpop.f32.mrb[0].mxu0
    %v2580 = vadd.f32 0.0, %v2579
    %v2581 = vpop.f32.mrb[0].mxu0
    %2582 = vmatprep.mubr.bf16.mxu0 0
    %2583 = vmatmul.mubr.bf16.gmra.mrb[0].mxu0 %v2435
    %v2584 = vpop.f32.mrb[0].mxu0
    %v2585 = vadd.f32 0.0, %v2584
    %v2586 = vpop.f32.mrb[0].mxu0
    %v2587 = vpop.f32.mrb[0].mxu0
    %v2588 = vadd.f32 0.0, %v2587
    %v2589 = vpop.f32.mrb[0].mxu0
    %2590 = vmatprep.mubr.bf16.mxu0 0
    %2591 = vmatmul.mubr.bf16.gmra.mrb[0].mxu0 %v2436
    %v2592 = vpop.f32.mrb[0].mxu0
    %v2593 = vadd.f32 0.0, %v2592
    %v2594 = vpop.f32.mrb[0].mxu0
    %v2595 = vpop.f32.mrb[0].mxu0
    %v2596 = vadd.f32 0.0, %v2595
    %v2597 = vpop.f32.mrb[0].mxu0
    %2598 = vdwg.mxu0
    %v2599 = vadd.f32 %v2331, %v2537
    %v2600 = vadd.f32 %v2332, %v2540
    %v2601 = vadd.f32 %v2333, %v2545
    %v2602 = vadd.f32 %v2334, %v2548
    %v2603 = vadd.f32 %v2335, %v2553
    %v2604 = vadd.f32 %v2336, %v2556
    %v2605 = vadd.f32 %v2337, %v2561
    %v2606 = vadd.f32 %v2338, %v2564
    %v2607 = vadd.f32 %v2339, %v2569
    %v2608 = vadd.f32 %v2340, %v2572
    %v2609 = vadd.f32 %v2341, %v2577
    %v2610 = vadd.f32 %v2342, %v2580
    %v2611 = vadd.f32 %v2343, %v2585
    %v2612 = vadd.f32 %v2344, %v2588
    %v2613 = vadd.f32 %v2345, %v2593
    %v2614 = vadd.f32 %v2346, %v2596
    %v2615 = vsel %vm2349, 1, 0
    %v2616 = vsel %vm2350, 1, 0
    %v2617 = vsel %vm2351, 1, 0
    %v2618 = vsel %vm2352, 1, 0
    %v2619 = vsel %vm2353, 1, 0
    %v2620 = vsel %vm2354, 1, 0
    %v2621 = vsel %vm2355, 1, 0
    %v2622 = vsel %vm2356, 1, 0
    %v2623 = vsel %vm2357, 1, 0
    %v2624 = vsel %vm2358, 1, 0
    %v2625 = vsel %vm2359, 1, 0
    %v2626 = vsel %vm2360, 1, 0
    %v2627 = vsel %vm2361, 1, 0
    %v2628 = vsel %vm2362, 1, 0
    %v2629 = vsel %vm2363, 1, 0
    %vm2630 = vcmp.eq.s32.totalorder %v2615, 1
    %vm2631 = vcmp.eq.s32.totalorder %v2616, 1
    %vm2632 = vcmp.eq.s32.totalorder %v2617, 1
    %vm2633 = vcmp.eq.s32.totalorder %v2618, 1
    %vm2634 = vcmp.eq.s32.totalorder %v2619, 1
    %vm2635 = vcmp.eq.s32.totalorder %v2620, 1
    %vm2636 = vcmp.eq.s32.totalorder %v2621, 1
    %vm2637 = vcmp.eq.s32.totalorder %v2622, 1
    %vm2638 = vcmp.eq.s32.totalorder %v2623, 1
    %vm2639 = vcmp.eq.s32.totalorder %v2624, 1
    %vm2640 = vcmp.eq.s32.totalorder %v2625, 1
    %vm2641 = vcmp.eq.s32.totalorder %v2626, 1
    %vm2642 = vcmp.eq.s32.totalorder %v2627, 1
    %vm2643 = vcmp.eq.s32.totalorder %v2628, 1
    %vm2644 = vcmp.eq.s32.totalorder %v2629, 1
    %v2645 = vsel %vm2630, %v502, 0.0
    %v2646 = vsel %vm2631, %v503, 0.0
    %v2647 = vsel %vm2632, %v504, 0.0
    %v2648 = vsel %vm2633, %v505, 0.0
    %v2649 = vsel %vm2634, %v506, 0.0
    %v2650 = vsel %vm2635, %v507, 0.0
    %v2651 = vsel %vm2636, %v508, 0.0
    %v2652 = vsel %vm2637, %v509, 0.0
    %v2653 = vsel %vm2638, %v510, 0.0
    %v2654 = vsel %vm2639, %v511, 0.0
    %v2655 = vsel %vm2640, %v512, 0.0
    %v2656 = vsel %vm2641, %v513, 0.0
    %v2657 = vsel %vm2642, %v514, 0.0
    %v2658 = vsel %vm2643, %v515, 0.0
    %v2659 = vsel %vm2644, %v516, 0.0
    %v2660 = vpack.c.bf16 %v2646, %v2645
    %v2661 = vpack.c.bf16 %v2648, %v2647
    %v2662 = vpack.c.bf16 %v2650, %v2649
    %v2663 = vpack.c.bf16 %v2652, %v2651
    %v2664 = vpack.c.bf16 %v2654, %v2653
    %v2665 = vpack.c.bf16 %v2656, %v2655
    %v2666 = vpack.c.bf16 %v2658, %v2657
    %v2667 = vpack.c.bf16 0.0, %v2659
    %s2668 = scalar_lea.vmem [#allocation13], 448
    %v2669 = vld [vmem:[%s2668] sm:$0xf]
    %v2670 = vld [vmem:[%s2668 + $0x4] sm:$0xf]
    %v2671 = vld [vmem:[%s2668 + $0x8] sm:$0xf]
    %v2672 = vld [vmem:[%s2668 + $0xc] sm:$0xf]
    %v2673 = vld [vmem:[%s2668 + $0x10] sm:$0xf]
    %v2674 = vld [vmem:[%s2668 + $0x14] sm:$0xf]
    %v2675 = vld [vmem:[%s2668 + $0x18] sm:$0xf]
    %v2676 = vld [vmem:[%s2668 + $0x1c] sm:$0xf]
    %v2677 = vld [vmem:[%s2668 + $0x20] sm:$0xf]
    %v2678 = vld [vmem:[%s2668 + $0x24] sm:$0xf]
    %v2679 = vld [vmem:[%s2668 + $0x28] sm:$0xf]
    %v2680 = vld [vmem:[%s2668 + $0x2c] sm:$0xf]
    %v2681 = vld [vmem:[%s2668 + $0x30] sm:$0xf]
    %v2682 = vld [vmem:[%s2668 + $0x34] sm:$0xf]
    %v2683 = vld [vmem:[%s2668 + $0x38] sm:$0xf]
    %v2684 = vld [vmem:[%s2668 + $0x3c] sm:$0xf]
    %v2701 = vunpack.c.l.b16 %v2669
    %v2702 = vunpack.c.l.b16 %v2670
    %v2703 = vunpack.c.l.b16 %v2671
    %v2704 = vunpack.c.l.b16 %v2672
    %v2705 = vunpack.c.l.b16 %v2673
    %v2706 = vunpack.c.l.b16 %v2674
    %v2707 = vunpack.c.l.b16 %v2675
    %v2708 = vunpack.c.l.b16 %v2676
    %v2709 = vunpack.c.l.b16 %v2677
    %v2710 = vunpack.c.l.b16 %v2678
    %v2711 = vunpack.c.l.b16 %v2679
    %v2712 = vunpack.c.l.b16 %v2680
    %v2713 = vunpack.c.l.b16 %v2681
    %v2714 = vunpack.c.l.b16 %v2682
    %v2715 = vunpack.c.l.b16 %v2683
    %v2716 = vunpack.c.l.b16 %v2684
    %v2717 = vpack.c.b16 %v2702, %v2701
    %v2718 = vpack.c.b16 %v2704, %v2703
    %v2719 = vpack.c.b16 %v2706, %v2705
    %v2720 = vpack.c.b16 %v2708, %v2707
    %v2721 = vpack.c.b16 %v2710, %v2709
    %v2722 = vpack.c.b16 %v2712, %v2711
    %v2723 = vpack.c.b16 %v2714, %v2713
    %v2724 = vpack.c.b16 %v2716, %v2715
    %2733 = vmatprep.subr.bf16.mxu0 0
    %2734 = vmatpush1.bf16.msra.mxu0 %v2717
    %2735 = vmatprep.subr.bf16.mxu0 0
    %2736 = vmatpush1.bf16.msra.mxu0 %v2718
    %2737 = vmatprep.subr.bf16.mxu0 0
    %2738 = vmatpush1.bf16.msra.mxu0 %v2719
    %2739 = vmatprep.subr.bf16.mxu0 0
    %2740 = vmatpush1.bf16.msra.mxu0 %v2720
    %2741 = vmatprep.subr.bf16.mxu0 0
    %2742 = vmatpush1.bf16.msra.mxu0 %v2721
    %2743 = vmatprep.subr.bf16.mxu0 0
    %2744 = vmatpush1.bf16.msra.mxu0 %v2722
    %2745 = vmatprep.subr.bf16.mxu0 0
    %2746 = vmatpush1.bf16.msra.mxu0 %v2723
    %2747 = vmatprep.subr.bf16.mxu0 0
    %2748 = vmatpush1.bf16.msra.mxu0 %v2724
    %2749 = vmatprep.subr.bf16.mxu0 0
    %2750 = vmatpush1.bf16.msra.mxu0 0
    %2751 = vmatprep.subr.bf16.mxu0 0
    %2752 = vmatpush1.bf16.msra.mxu0 0
    %2753 = vmatprep.subr.bf16.mxu0 0
    %2754 = vmatpush1.bf16.msra.mxu0 0
    %2755 = vmatprep.subr.bf16.mxu0 0
    %2756 = vmatpush1.bf16.msra.mxu0 0
    %2757 = vmatprep.subr.bf16.mxu0 0
    %2758 = vmatpush1.bf16.msra.mxu0 0
    %2759 = vmatprep.subr.bf16.mxu0 0
    %2760 = vmatpush1.bf16.msra.mxu0 0
    %2761 = vmatprep.subr.bf16.mxu0 0
    %2762 = vmatpush1.bf16.msra.mxu0 0
    %2763 = vmatprep.subr.bf16.mxu0 0
    %2764 = vmatpush1.bf16.msra.mxu0 0
    %2765 = vmatprep.mubr.bf16.mxu0 0
    %2766 = vmatmul.mubr.bf16.gmra.mrb[0].mxu0 %v2660
    %v2767 = vpop.f32.mrb[0].mxu0
    %v2768 = vadd.f32 0.0, %v2767
    %v2769 = vpop.f32.mrb[0].mxu0
    %v2770 = vpop.f32.mrb[0].mxu0
    %v2771 = vadd.f32 0.0, %v2770
    %v2772 = vpop.f32.mrb[0].mxu0
    %2773 = vmatprep.mubr.bf16.mxu0 0
    %2774 = vmatmul.mubr.bf16.gmra.mrb[0].mxu0 %v2661
    %v2775 = vpop.f32.mrb[0].mxu0
    %v2776 = vadd.f32 0.0, %v2775
    %v2777 = vpop.f32.mrb[0].mxu0
    %v2778 = vpop.f32.mrb[0].mxu0
    %v2779 = vadd.f32 0.0, %v2778
    %v2780 = vpop.f32.mrb[0].mxu0
    %2781 = vmatprep.mubr.bf16.mxu0 0
    %2782 = vmatmul.mubr.bf16.gmra.mrb[0].mxu0 %v2662
    %v2783 = vpop.f32.mrb[0].mxu0
    %v2784 = vadd.f32 0.0, %v2783
    %v2785 = vpop.f32.mrb[0].mxu0
    %v2786 = vpop.f32.mrb[0].mxu0
    %v2787 = vadd.f32 0.0, %v2786
    %v2788 = vpop.f32.mrb[0].mxu0
    %2789 = vmatprep.mubr.bf16.mxu0 0
    %2790 = vmatmul.mubr.bf16.gmra.mrb[0].mxu0 %v2663
    %v2791 = vpop.f32.mrb[0].mxu0
    %v2792 = vadd.f32 0.0, %v2791
    %v2793 = vpop.f32.mrb[0].mxu0
    %v2794 = vpop.f32.mrb[0].mxu0
    %v2795 = vadd.f32 0.0, %v2794
    %v2796 = vpop.f32.mrb[0].mxu0
    %2797 = vmatprep.mubr.bf16.mxu0 0
    %2798 = vmatmul.mubr.bf16.gmra.mrb[0].mxu0 %v2664
    %v2799 = vpop.f32.mrb[0].mxu0
    %v2800 = vadd.f32 0.0, %v2799
    %v2801 = vpop.f32.mrb[0].mxu0
    %v2802 = vpop.f32.mrb[0].mxu0
    %v2803 = vadd.f32 0.0, %v2802
    %v2804 = vpop.f32.mrb[0].mxu0
    %2805 = vmatprep.mubr.bf16.mxu0 0
    %2806 = vmatmul.mubr.bf16.gmra.mrb[0].mxu0 %v2665
    %v2807 = vpop.f32.mrb[0].mxu0
    %v2808 = vadd.f32 0.0, %v2807
    %v2809 = vpop.f32.mrb[0].mxu0
    %v2810 = vpop.f32.mrb[0].mxu0
    %v2811 = vadd.f32 0.0, %v2810
    %v2812 = vpop.f32.mrb[0].mxu0
    %2813 = vmatprep.mubr.bf16.mxu0 0
    %2814 = vmatmul.mubr.bf16.gmra.mrb[0].mxu0 %v2666
    %v2815 = vpop.f32.mrb[0].mxu0
    %v2816 = vadd.f32 0.0, %v2815
    %v2817 = vpop.f32.mrb[0].mxu0
    %v2818 = vpop.f32.mrb[0].mxu0
    %v2819 = vadd.f32 0.0, %v2818
    %v2820 = vpop.f32.mrb[0].mxu0
    %2821 = vmatprep.mubr.bf16.mxu0 0
    %2822 = vmatmul.mubr.bf16.gmra.mrb[0].mxu0 %v2667
    %v2823 = vpop.f32.mrb[0].mxu0
    %v2824 = vadd.f32 0.0, %v2823
    %v2825 = vpop.f32.mrb[0].mxu0
    %v2826 = vpop.f32.mrb[0].mxu0
    %v2827 = vadd.f32 0.0, %v2826
    %v2828 = vpop.f32.mrb[0].mxu0
    %2829 = vdwg.mxu0
    %v2830 = vadd.f32 %v2599, %v2768
    %v2831 = vadd.f32 %v2600, %v2771
    %v2832 = vadd.f32 %v2601, %v2776
    %v2833 = vadd.f32 %v2602, %v2779
    %v2834 = vadd.f32 %v2603, %v2784
    %v2835 = vadd.f32 %v2604, %v2787
    %v2836 = vadd.f32 %v2605, %v2792
    %v2837 = vadd.f32 %v2606, %v2795
    %v2838 = vadd.f32 %v2607, %v2800
    %v2839 = vadd.f32 %v2608, %v2803
    %v2840 = vadd.f32 %v2609, %v2808
    %v2841 = vadd.f32 %v2610, %v2811
    %v2842 = vadd.f32 %v2611, %v2816
    %v2843 = vadd.f32 %v2612, %v2819
    %v2844 = vadd.f32 %v2613, %v2824
    %v2845 = vadd.f32 %v2614, %v2827
    %vm2846 = vmand %vm2349, %vm1422
    %vm2847 = vmand %vm2350, %vm1423
    %vm2848 = vmand %vm2351, %vm1424
    %vm2849 = vmand %vm2352, %vm1425
    %vm2850 = vmand %vm2353, %vm1426
    %vm2851 = vmand %vm2354, %vm1427
    %vm2852 = vmand %vm2355, %vm1428
    %vm2853 = vmand %vm2356, %vm1429
    %vm2854 = vmand %vm2357, %vm1430
    %vm2855 = vmand %vm2358, %vm1431
    %vm2856 = vmand %vm2359, %vm1432
    %vm2857 = vmand %vm2360, %vm1433
    %vm2858 = vmand %vm2361, %vm1434
    %vm2859 = vmand %vm2362, %vm1435
    %vm2860 = vmand %vm2363, %vm1436
    %v2861 = vsel %vm2846, 1, 0
    %v2862 = vsel %vm2847, 1, 0
    %v2863 = vsel %vm2848, 1, 0
    %v2864 = vsel %vm2849, 1, 0
    %v2865 = vsel %vm2850, 1, 0
    %v2866 = vsel %vm2851, 1, 0
    %v2867 = vsel %vm2852, 1, 0
    %v2868 = vsel %vm2853, 1, 0
    %v2869 = vsel %vm2854, 1, 0
    %v2870 = vsel %vm2855, 1, 0
    %v2871 = vsel %vm2856, 1, 0
    %v2872 = vsel %vm2857, 1, 0
    %v2873 = vsel %vm2858, 1, 0
    %v2874 = vsel %vm2859, 1, 0
    %v2875 = vsel %vm2860, 1, 0
    %vm2876 = vcmp.eq.s32.totalorder %v2861, 1
    %vm2877 = vcmp.eq.s32.totalorder %v2862, 1
    %vm2878 = vcmp.eq.s32.totalorder %v2863, 1
    %vm2879 = vcmp.eq.s32.totalorder %v2864, 1
    %vm2880 = vcmp.eq.s32.totalorder %v2865, 1
    %vm2881 = vcmp.eq.s32.totalorder %v2866, 1
    %vm2882 = vcmp.eq.s32.totalorder %v2867, 1
    %vm2883 = vcmp.eq.s32.totalorder %v2868, 1
    %vm2884 = vcmp.eq.s32.totalorder %v2869, 1
    %vm2885 = vcmp.eq.s32.totalorder %v2870, 1
    %vm2886 = vcmp.eq.s32.totalorder %v2871, 1
    %vm2887 = vcmp.eq.s32.totalorder %v2872, 1
    %vm2888 = vcmp.eq.s32.totalorder %v2873, 1
    %vm2889 = vcmp.eq.s32.totalorder %v2874, 1
    %vm2890 = vcmp.eq.s32.totalorder %v2875, 1
    %v2891 = vsel %vm2876, %v1378, 0.0
    %v2892 = vsel %vm2877, %v1380, 0.0
    %v2893 = vsel %vm2878, %v1382, 0.0
    %v2894 = vsel %vm2879, %v1384, 0.0
    %v2895 = vsel %vm2880, %v1386, 0.0
    %v2896 = vsel %vm2881, %v1388, 0.0
    %v2897 = vsel %vm2882, %v1390, 0.0
    %v2898 = vsel %vm2883, %v1392, 0.0
    %v2899 = vsel %vm2884, %v1394, 0.0
    %v2900 = vsel %vm2885, %v1396, 0.0
    %v2901 = vsel %vm2886, %v1398, 0.0
    %v2902 = vsel %vm2887, %v1400, 0.0
    %v2903 = vsel %vm2888, %v1402, 0.0
    %v2904 = vsel %vm2889, %v1404, 0.0
    %v2905 = vsel %vm2890, %v2112, 0.0
    %v2906 = vpack.c.bf16 %v2892, %v2891
    %v2907 = vpack.c.bf16 %v2894, %v2893
    %v2908 = vpack.c.bf16 %v2896, %v2895
    %v2909 = vpack.c.bf16 %v2898, %v2897
    %v2910 = vpack.c.bf16 %v2900, %v2899
    %v2911 = vpack.c.bf16 %v2902, %v2901
    %v2912 = vpack.c.bf16 %v2904, %v2903
    %v2913 = vpack.c.bf16 0.0, %v2905
    %s2914 = scalar_lea.vmem [#allocation13], 512
    %v2915 = vld [vmem:[%s2914] sm:$0xf]
    %v2916 = vld [vmem:[%s2914 + $0x4] sm:$0xf]
    %v2917 = vld [vmem:[%s2914 + $0x8] sm:$0xf]
    %v2918 = vld [vmem:[%s2914 + $0xc] sm:$0xf]
    %v2919 = vld [vmem:[%s2914 + $0x10] sm:$0xf]
    %v2920 = vld [vmem:[%s2914 + $0x14] sm:$0xf]
    %v2921 = vld [vmem:[%s2914 + $0x18] sm:$0xf]
    %v2922 = vld [vmem:[%s2914 + $0x1c] sm:$0xf]
    %v2923 = vld [vmem:[%s2914 + $0x20] sm:$0xf]
    %v2924 = vld [vmem:[%s2914 + $0x24] sm:$0xf]
    %v2925 = vld [vmem:[%s2914 + $0x28] sm:$0xf]
    %v2926 = vld [vmem:[%s2914 + $0x2c] sm:$0xf]
    %v2927 = vld [vmem:[%s2914 + $0x30] sm:$0xf]
    %v2928 = vld [vmem:[%s2914 + $0x34] sm:$0xf]
    %v2929 = vld [vmem:[%s2914 + $0x38] sm:$0xf]
    %v2930 = vld [vmem:[%s2914 + $0x3c] sm:$0xf]
    %v2947 = vunpack.c.l.b16 %v2915
    %v2948 = vunpack.c.l.b16 %v2916
    %v2949 = vunpack.c.l.b16 %v2917
    %v2950 = vunpack.c.l.b16 %v2918
    %v2951 = vunpack.c.l.b16 %v2919
    %v2952 = vunpack.c.l.b16 %v2920
    %v2953 = vunpack.c.l.b16 %v2921
    %v2954 = vunpack.c.l.b16 %v2922
    %v2955 = vunpack.c.l.b16 %v2923
    %v2956 = vunpack.c.l.b16 %v2924
    %v2957 = vunpack.c.l.b16 %v2925
    %v2958 = vunpack.c.l.b16 %v2926
    %v2959 = vunpack.c.l.b16 %v2927
    %v2960 = vunpack.c.l.b16 %v2928
    %v2961 = vunpack.c.l.b16 %v2929
    %v2962 = vunpack.c.l.b16 %v2930
    %v2963 = vpack.c.b16 %v2948, %v2947
    %v2964 = vpack.c.b16 %v2950, %v2949
    %v2965 = vpack.c.b16 %v2952, %v2951
    %v2966 = vpack.c.b16 %v2954, %v2953
    %v2967 = vpack.c.b16 %v2956, %v2955
    %v2968 = vpack.c.b16 %v2958, %v2957
    %v2969 = vpack.c.b16 %v2960, %v2959
    %v2970 = vpack.c.b16 %v2962, %v2961
    %2979 = vmatprep.subr.bf16.mxu0 0
    %2980 = vmatpush1.bf16.msra.mxu0 %v2963
    %2981 = vmatprep.subr.bf16.mxu0 0
    %2982 = vmatpush1.bf16.msra.mxu0 %v2964
    %2983 = vmatprep.subr.bf16.mxu0 0
    %2984 = vmatpush1.bf16.msra.mxu0 %v2965
    %2985 = vmatprep.subr.bf16.mxu0 0
    %2986 = vmatpush1.bf16.msra.mxu0 %v2966
    %2987 = vmatprep.subr.bf16.mxu0 0
    %2988 = vmatpush1.bf16.msra.mxu0 %v2967
    %2989 = vmatprep.subr.bf16.mxu0 0
    %2990 = vmatpush1.bf16.msra.mxu0 %v2968
    %2991 = vmatprep.subr.bf16.mxu0 0
    %2992 = vmatpush1.bf16.msra.mxu0 %v2969
    %2993 = vmatprep.subr.bf16.mxu0 0
    %2994 = vmatpush1.bf16.msra.mxu0 %v2970
    %2995 = vmatprep.subr.bf16.mxu0 0
    %2996 = vmatpush1.bf16.msra.mxu0 0
    %2997 = vmatprep.subr.bf16.mxu0 0
    %2998 = vmatpush1.bf16.msra.mxu0 0
    %2999 = vmatprep.subr.bf16.mxu0 0
    %3000 = vmatpush1.bf16.msra.mxu0 0
    %3001 = vmatprep.subr.bf16.mxu0 0
    %3002 = vmatpush1.bf16.msra.mxu0 0
    %3003 = vmatprep.subr.bf16.mxu0 0
    %3004 = vmatpush1.bf16.msra.mxu0 0
    %3005 = vmatprep.subr.bf16.mxu0 0
    %3006 = vmatpush1.bf16.msra.mxu0 0
    %3007 = vmatprep.subr.bf16.mxu0 0
    %3008 = vmatpush1.bf16.msra.mxu0 0
    %3009 = vmatprep.subr.bf16.mxu0 0
    %3010 = vmatpush1.bf16.msra.mxu0 0
    %3011 = vmatprep.mubr.bf16.mxu0 0
    %3012 = vmatmul.mubr.bf16.gmra.mrb[0].mxu0 %v2906
    %v3013 = vpop.f32.mrb[0].mxu0
    %v3014 = vadd.f32 0.0, %v3013
    %v3015 = vpop.f32.mrb[0].mxu0
    %v3016 = vpop.f32.mrb[0].mxu0
    %v3017 = vadd.f32 0.0, %v3016
    %v3018 = vpop.f32.mrb[0].mxu0
    %3019 = vmatprep.mubr.bf16.mxu0 0
    %3020 = vmatmul.mubr.bf16.gmra.mrb[0].mxu0 %v2907
    %v3021 = vpop.f32.mrb[0].mxu0
    %v3022 = vadd.f32 0.0, %v3021
    %v3023 = vpop.f32.mrb[0].mxu0
    %v3024 = vpop.f32.mrb[0].mxu0
    %v3025 = vadd.f32 0.0, %v3024
    %v3026 = vpop.f32.mrb[0].mxu0
    %3027 = vmatprep.mubr.bf16.mxu0 0
    %3028 = vmatmul.mubr.bf16.gmra.mrb[0].mxu0 %v2908
    %v3029 = vpop.f32.mrb[0].mxu0
    %v3030 = vadd.f32 0.0, %v3029
    %v3031 = vpop.f32.mrb[0].mxu0
    %v3032 = vpop.f32.mrb[0].mxu0
    %v3033 = vadd.f32 0.0, %v3032
    %v3034 = vpop.f32.mrb[0].mxu0
    %3035 = vmatprep.mubr.bf16.mxu0 0
    %3036 = vmatmul.mubr.bf16.gmra.mrb[0].mxu0 %v2909
    %v3037 = vpop.f32.mrb[0].mxu0
    %v3038 = vadd.f32 0.0, %v3037
    %v3039 = vpop.f32.mrb[0].mxu0
    %v3040 = vpop.f32.mrb[0].mxu0
    %v3041 = vadd.f32 0.0, %v3040
    %v3042 = vpop.f32.mrb[0].mxu0
    %3043 = vmatprep.mubr.bf16.mxu0 0
    %3044 = vmatmul.mubr.bf16.gmra.mrb[0].mxu0 %v2910
    %v3045 = vpop.f32.mrb[0].mxu0
    %v3046 = vadd.f32 0.0, %v3045
    %v3047 = vpop.f32.mrb[0].mxu0
    %v3048 = vpop.f32.mrb[0].mxu0
    %v3049 = vadd.f32 0.0, %v3048
    %v3050 = vpop.f32.mrb[0].mxu0
    %3051 = vmatprep.mubr.bf16.mxu0 0
    %3052 = vmatmul.mubr.bf16.gmra.mrb[0].mxu0 %v2911
    %v3053 = vpop.f32.mrb[0].mxu0
    %v3054 = vadd.f32 0.0, %v3053
    %v3055 = vpop.f32.mrb[0].mxu0
    %v3056 = vpop.f32.mrb[0].mxu0
    %v3057 = vadd.f32 0.0, %v3056
    %v3058 = vpop.f32.mrb[0].mxu0
    %3059 = vmatprep.mubr.bf16.mxu0 0
    %3060 = vmatmul.mubr.bf16.gmra.mrb[0].mxu0 %v2912
    %v3061 = vpop.f32.mrb[0].mxu0
    %v3062 = vadd.f32 0.0, %v3061
    %v3063 = vpop.f32.mrb[0].mxu0
    %v3064 = vpop.f32.mrb[0].mxu0
    %v3065 = vadd.f32 0.0, %v3064
    %v3066 = vpop.f32.mrb[0].mxu0
    %3067 = vmatprep.mubr.bf16.mxu0 0
    %3068 = vmatmul.mubr.bf16.gmra.mrb[0].mxu0 %v2913
    %v3069 = vpop.f32.mrb[0].mxu0
    %v3070 = vadd.f32 0.0, %v3069
    %v3071 = vpop.f32.mrb[0].mxu0
    %v3072 = vpop.f32.mrb[0].mxu0
    %v3073 = vadd.f32 0.0, %v3072
    %v3074 = vpop.f32.mrb[0].mxu0
    %3075 = vdwg.mxu0
    %v3076 = vadd.f32 %v2830, %v3014
    %v3077 = vadd.f32 %v2831, %v3017
    %v3078 = vadd.f32 %v2832, %v3022
    %v3079 = vadd.f32 %v2833, %v3025
    %v3080 = vadd.f32 %v2834, %v3030
    %v3081 = vadd.f32 %v2835, %v3033
    %v3082 = vadd.f32 %v2836, %v3038
    %v3083 = vadd.f32 %v2837, %v3041
    %v3084 = vadd.f32 %v2838, %v3046
    %v3085 = vadd.f32 %v2839, %v3049
    %v3086 = vadd.f32 %v2840, %v3054
    %v3087 = vadd.f32 %v2841, %v3057
    %v3088 = vadd.f32 %v2842, %v3062
    %v3089 = vadd.f32 %v2843, %v3065
    %v3090 = vadd.f32 %v2844, %v3070
    %v3091 = vadd.f32 %v2845, %v3073
    %v3092 = vld [vmem:[#allocation14] sm:$0x1]
    %v3093 = vld [vmem:[#allocation16] sm:$0x1]
    %v3094 = vadd.f32 %v3076, %v3077
    %v3095 = vadd.f32 %v3094, %v3078
    %v3096 = vadd.f32 %v3095, %v3079
    %v3097 = vadd.f32 %v3096, %v3080
    %v3098 = vadd.f32 %v3097, %v3081
    %v3099 = vadd.f32 %v3098, %v3082
    %v3100 = vadd.f32 %v3099, %v3083
    %v3101 = vadd.f32 %v3100, %v3084
    %v3102 = vadd.f32 %v3101, %v3085
    %v3103 = vadd.f32 %v3102, %v3086
    %v3104 = vadd.f32 %v3103, %v3087
    %v3105 = vadd.f32 %v3104, %v3088
    %v3106 = vadd.f32 %v3105, %v3089
    %v3107 = vadd.f32 %v3106, %v3090
    %v3108 = vadd.f32 %v3107, %v3091
    %v3109 = vrot.slane %v3108, 4
    %v3110 = vadd.f32 %v3108, %v3109
    %v3111 = vrot.slane %v3110, 2
    %v3112 = vadd.f32 %v3110, %v3111
    %v3113 = vrot.slane %v3112, 1
    %v3114 = vadd.f32 %v3112, %v3113
    %v3115 = vmul.f32 %v3114, %v398
    %v3116 = vsub.f32 %v3076, %v3115
    %v3117 = vsub.f32 %v3077, %v3115
    %v3118 = vsub.f32 %v3078, %v3115
    %v3119 = vsub.f32 %v3079, %v3115
    %v3120 = vsub.f32 %v3080, %v3115
    %v3121 = vsub.f32 %v3081, %v3115
    %v3122 = vsub.f32 %v3082, %v3115
    %v3123 = vsub.f32 %v3083, %v3115
    %v3124 = vsub.f32 %v3084, %v3115
    %v3125 = vsub.f32 %v3085, %v3115
    %v3126 = vsub.f32 %v3086, %v3115
    %v3127 = vsub.f32 %v3087, %v3115
    %v3128 = vsub.f32 %v3088, %v3115
    %v3129 = vsub.f32 %v3089, %v3115
    %v3130 = vsub.f32 %v3090, %v3115
    %v3131 = vsub.f32 %v3091, %v3115
    %v3132 = vmul.f32 %v3116, %v3116
    %v3133 = vmul.f32 %v3117, %v3117
    %v3134 = vmul.f32 %v3118, %v3118
    %v3135 = vmul.f32 %v3119, %v3119
    %v3136 = vmul.f32 %v3120, %v3120
    %v3137 = vmul.f32 %v3121, %v3121
    %v3138 = vmul.f32 %v3122, %v3122
    %v3139 = vmul.f32 %v3123, %v3123
    %v3140 = vmul.f32 %v3124, %v3124
    %v3141 = vmul.f32 %v3125, %v3125
    %v3142 = vmul.f32 %v3126, %v3126
    %v3143 = vmul.f32 %v3127, %v3127
    %v3144 = vmul.f32 %v3128, %v3128
    %v3145 = vmul.f32 %v3129, %v3129
    %v3146 = vmul.f32 %v3130, %v3130
    %v3147 = vmul.f32 %v3131, %v3131
    %v3148 = vadd.f32 %v3132, %v3133
    %v3149 = vadd.f32 %v3148, %v3134
    %v3150 = vadd.f32 %v3149, %v3135
    %v3151 = vadd.f32 %v3150, %v3136
    %v3152 = vadd.f32 %v3151, %v3137
    %v3153 = vadd.f32 %v3152, %v3138
    %v3154 = vadd.f32 %v3153, %v3139
    %v3155 = vadd.f32 %v3154, %v3140
    %v3156 = vadd.f32 %v3155, %v3141
    %v3157 = vadd.f32 %v3156, %v3142
    %v3158 = vadd.f32 %v3157, %v3143
    %v3159 = vadd.f32 %v3158, %v3144
    %v3160 = vadd.f32 %v3159, %v3145
    %v3161 = vadd.f32 %v3160, %v3146
    %v3162 = vadd.f32 %v3161, %v3147
    %v3163 = vrot.slane %v3162, 4
    %v3164 = vadd.f32 %v3162, %v3163
    %v3165 = vrot.slane %v3164, 2
    %v3166 = vadd.f32 %v3164, %v3165
    %v3167 = vrot.slane %v3166, 1
    %v3168 = vadd.f32 %v3166, %v3167
    %v3169 = vmul.f32 %v3168, %v398
    %v3170 = vadd.f32 %v3169, 1e-05
    %v3171 = vrsqrt.pop %v3170
    %v3172 = vmul.f32 %v3092, %v3171
    %v3174 = vlaneseq
    %v3175 = vshrl.u32 %v3174, 7
    %v3176 = vsub.s32 0, %v3175
    %v3177 = vrot.slane %v3172, %v3176
    %v3179 = vmul.f32 %v3116, %v3177
    %v3180 = vmul.f32 %v3117, %v3177
    %v3181 = vmul.f32 %v3118, %v3177
    %v3182 = vmul.f32 %v3119, %v3177
    %v3183 = vmul.f32 %v3120, %v3177
    %v3184 = vmul.f32 %v3121, %v3177
    %v3185 = vmul.f32 %v3122, %v3177
    %v3186 = vmul.f32 %v3123, %v3177
    %v3187 = vmul.f32 %v3124, %v3177
    %v3188 = vmul.f32 %v3125, %v3177
    %v3189 = vmul.f32 %v3126, %v3177
    %v3190 = vmul.f32 %v3127, %v3177
    %v3191 = vmul.f32 %v3128, %v3177
    %v3192 = vmul.f32 %v3129, %v3177
    %v3193 = vmul.f32 %v3130, %v3177
    %v3194 = vmul.f32 %v3131, %v3177
    %v3196 = vlaneseq
    %v3197 = vshrl.u32 %v3196, 7
    %v3198 = vsub.s32 0, %v3197
    %v3199 = vrot.slane %v3093, %v3198
    %v3201 = vadd.f32 %v3179, %v3199
    %v3202 = vadd.f32 %v3180, %v3199
    %v3203 = vadd.f32 %v3181, %v3199
    %v3204 = vadd.f32 %v3182, %v3199
    %v3205 = vadd.f32 %v3183, %v3199
    %v3206 = vadd.f32 %v3184, %v3199
    %v3207 = vadd.f32 %v3185, %v3199
    %v3208 = vadd.f32 %v3186, %v3199
    %v3209 = vadd.f32 %v3187, %v3199
    %v3210 = vadd.f32 %v3188, %v3199
    %v3211 = vadd.f32 %v3189, %v3199
    %v3212 = vadd.f32 %v3190, %v3199
    %v3213 = vadd.f32 %v3191, %v3199
    %v3214 = vadd.f32 %v3192, %v3199
    %v3215 = vadd.f32 %v3193, %v3199
    %v3216 = vadd.f32 %v3194, %v3199
    %v3217 = vadd.f32 %v3201, %v626
    %v3218 = vadd.f32 %v3202, %v627
    %v3219 = vadd.f32 %v3203, %v628
    %v3220 = vadd.f32 %v3204, %v629
    %v3221 = vadd.f32 %v3205, %v630
    %v3222 = vadd.f32 %v3206, %v631
    %v3223 = vadd.f32 %v3207, %v632
    %v3224 = vadd.f32 %v3208, %v633
    %v3225 = vadd.f32 %v3209, %v634
    %v3226 = vadd.f32 %v3210, %v635
    %v3227 = vadd.f32 %v3211, %v636
    %v3228 = vadd.f32 %v3212, %v637
    %v3229 = vadd.f32 %v3213, %v638
    %v3230 = vadd.f32 %v3214, %v639
    %v3231 = vadd.f32 %v3215, %v640
    %v3232 = vadd.f32 %v3216, %v641
    %v3233 = vmax.f32 %v3217, 0.0
    %v3234 = vmax.f32 %v3218, 0.0
    %v3235 = vmax.f32 %v3219, 0.0
    %v3236 = vmax.f32 %v3220, 0.0
    %v3237 = vmax.f32 %v3221, 0.0
    %v3238 = vmax.f32 %v3222, 0.0
    %v3239 = vmax.f32 %v3223, 0.0
    %v3240 = vmax.f32 %v3224, 0.0
    %v3241 = vmax.f32 %v3225, 0.0
    %v3242 = vmax.f32 %v3226, 0.0
    %v3243 = vmax.f32 %v3227, 0.0
    %v3244 = vmax.f32 %v3228, 0.0
    %v3245 = vmax.f32 %v3229, 0.0
    %v3246 = vmax.f32 %v3230, 0.0
    %v3247 = vmax.f32 %v3231, 0.0
    %v3248 = vmax.f32 %v3232, 0.0
    %3249 = vst [vmem:[#allocation17] sm:$0xff] %v3233
    %3250 = vst [vmem:[#allocation17 + $0x8] sm:$0xff] %v3234
    %3251 = vst [vmem:[#allocation17 + $0x10] sm:$0xff] %v3235
    %3252 = vst [vmem:[#allocation17 + $0x18] sm:$0xff] %v3236
    %3253 = vst [vmem:[#allocation17 + $0x20] sm:$0xff] %v3237
    %3254 = vst [vmem:[#allocation17 + $0x28] sm:$0xff] %v3238
    %3255 = vst [vmem:[#allocation17 + $0x30] sm:$0xff] %v3239
    %3256 = vst [vmem:[#allocation17 + $0x38] sm:$0xff] %v3240
    %3257 = vst [vmem:[#allocation17 + $0x40] sm:$0xff] %v3241
    %3258 = vst [vmem:[#allocation17 + $0x48] sm:$0xff] %v3242
    %3259 = vst [vmem:[#allocation17 + $0x50] sm:$0xff] %v3243
    %3260 = vst [vmem:[#allocation17 + $0x58] sm:$0xff] %v3244
    %3261 = vst [vmem:[#allocation17 + $0x60] sm:$0xff] %v3245
    %3262 = vst [vmem:[#allocation17 + $0x68] sm:$0xff] %v3246
    %3263 = vst [vmem:[#allocation17 + $0x70] sm:$0xff] %v3247
    %3264 = vst [vmem:[#allocation17 + $0x78] sm:$0xff] %v3248
    // Predicated region
    $region74: #{downsample_block_forward.1} parent=1 // pred_check
      _
    $region75: #{downsample_block_forward.1} parent=1 // pred_check_branch
      %3266 = sbr.rel (0) target = $region77
    $region76: #{downsample_block_forward.1} parent=1 // pred_region
      %s3268 = ssub.s32 2048, 2048
      %3269 = vsyncadd [#allocation4], %s3268
      %s3270 = sshll.u32 [#allocation17], 4
      %s3271 = int_to_ptr.vmem [resolvable:$true] %s3270
      %3276 = dma.vmem_to_hbm [thread:$0]  %s3271, 2048, %s9, [#allocation4], 128, 128, 8
    $region77: #{downsample_block_forward.1} parent=1 // pred_fallthru
      _
    // Predicated region
    $region78: #{downsample_block_forward.1} parent=1 // pred_check
      _
    $region79: #{downsample_block_forward.1} parent=1 // pred_check_branch
      %3278 = sbr.rel (0) target = $region81
    $region80: #{downsample_block_forward.1} parent=1 // pred_region
      %3279 = dma.done [#allocation4], 2048
    $region81: #{downsample_block_forward.1} parent=1 // pred_fallthru
      _
    %3280 = vsyncpa [#allocation3], 1
    %3281 = vsyncpa [#allocation6], 1
    %3282 = vsyncpa [#allocation9], 1
    %3283 = vsyncpa [#allocation12], 1
    %3284 = vsyncpa [#allocation15], 1
    %3285 = vsyncpa [#allocation4], 1

</llo_original>
